<compile_context>
chip_gen: v6e
topology: v6e:2x2x1
jax: 0.10.0
libtpu: 0.0.40
codegen_flags: <defaults>
</compile_context>

<pallas_src>
import functools

import jax
import jax.numpy as jnp
from jax.experimental import pallas as pl
from jax.experimental.pallas import tpu as pltpu

_BF16 = jnp.bfloat16

CFG = dict(
    num_neurons=16,
    num_hiddens=32,
    num_residual_layers=2,
    num_residual_hiddens=8,
    num_embeddings=32,
    embedding_dim=16,
    commitment_cost=0.25,
    behavior_dim=4,
)


# ---------------------------------------------------------------------------
# In-kernel polyphase conv helpers.
#
# A full-rate signal y is held as P phase buffers with one zero column of
# padding on each side:  buf[r][:, 1 + u] = y[P*u + r].  `read(r, c)` must
# return columns [1+c, 1+c+T4) of phase r (already in matmul dtype), so
# out-of-range taps read zeros.  Offsets c are always in {-1, 0, 1}, i.e. all
# slices are static and contiguous -- the conv itself is just shifted MXU
# matmuls accumulated in f32.
# ---------------------------------------------------------------------------
def _conv_s1(read, get_w, bias, ksize, pad, phases, relu):
    """Stride-1 'same' Conv1d: P phase inputs -> P phase outputs."""
    outs = []
    for q in range(phases):
        acc = None
        for k in range(ksize):
            m = q + k - pad
            part = jnp.dot(get_w(k), read(m % phases, m // phases),
                           preferred_element_type=jnp.float32)
            acc = part if acc is None else acc + part
        acc = acc + bias
        outs.append(jnp.maximum(acc, 0.0) if relu else acc)
    return outs


def _conv_s2(read, get_w, bias, ksize, pad, in_phases, relu):
    """Stride-2 Conv1d: `in_phases` phase inputs -> in_phases//2 phase outputs."""
    outs = []
    for s in range(in_phases // 2):
        acc = None
        for k in range(ksize):
            m = 2 * s + k - pad
            part = jnp.dot(get_w(k), read(m % in_phases, m // in_phases),
                           preferred_element_type=jnp.float32)
            acc = part if acc is None else acc + part
        acc = acc + bias
        outs.append(jnp.maximum(acc, 0.0) if relu else acc)
    return outs


def _conv_t_s2(read, get_w, bias, ksize, pad, in_phases, relu):
    """Stride-2 ConvTranspose1d (output_padding=1): polyphase, `in_phases`
    phase inputs -> 2*in_phases phase outputs.  No zero-stuffing."""
    outs = []
    for q in range(2 * in_phases):
        acc = None
        for k in range(ksize):
            if (q + pad - k) % 2:
                continue
            e = (q + pad - k) // 2
            part = jnp.dot(get_w(k), read(e % in_phases, e // in_phases),
                           preferred_element_type=jnp.float32)
            acc = part if acc is None else acc + part
        acc = acc + bias
        outs.append(jnp.maximum(acc, 0.0) if relu else acc)
    return outs


def _residual_stack(cur, rpad, wr1_ref, br1_ref, wr2_ref, br2_ref, num_layers, T4):
    # TODO(synk): ImprovedResidualBlock source unavailable; standard VQ-VAE
    # block  x + conv1x1(relu(conv3x3(relu(x))))  is used.
    read = lambda r, c: rpad[:, 1 + c:1 + c + T4]
    for l in range(num_layers):
        rpad[:, 1:1 + T4] = jnp.maximum(cur, 0.0).astype(_BF16)
        (h,) = _conv_s1(read, lambda k, l=l: wr1_ref[l, k], br1_ref[l],
                        ksize=3, pad=1, phases=1, relu=False)
        h = jnp.maximum(h, 0.0).astype(_BF16)
        h = jnp.dot(wr2_ref[l, 0], h, preferred_element_type=jnp.float32) + br2_ref[l]
        cur = cur + h
    return cur


# ---------------------------------------------------------------------------
# Fused kernel 1: encoder + pre-quant 1x1 conv + vector quantization.
# One grid step per batch element; all intermediates in VMEM scratch.
# ---------------------------------------------------------------------------
def _enc_vq_kernel(xph_ref,
                   w1_ref, b1_ref, w2_ref, b2_ref, w3_ref, b3_ref,
                   wr1_ref, br1_ref, wr2_ref, br2_ref,
                   wq_ref, bq_ref, cb_ref, cbt_ref, esq_ref,
                   z_ref, q_ref, idx_ref,
                   h1p, h2p, rpad,
                   *, T4, num_layers, num_codes):
    # Zero the padded scratch buffers (pad columns must read 0; scratch
    # persists across grid steps).
    h1p[...] = jnp.zeros_like(h1p)
    h2p[...] = jnp.zeros_like(h2p)
    rpad[...] = jnp.zeros_like(rpad)

    # conv k7 / s1 / p3 + ReLU   (4-phase in -> 4-phase out)
    read_x = lambda r, c: xph_ref[0, r, :, 1 + c:1 + c + T4]
    h1 = _conv_s1(read_x, lambda k: w1_ref[k], b1_ref[...], 7, 3, 4, relu=True)
    for r in range(4):
        h1p[r, :, 1:1 + T4] = h1[r].astype(_BF16)

    # conv k5 / s2 / p2 + ReLU   (4 phases -> 2 phases)
    read_h1 = lambda r, c: h1p[r, :, 1 + c:1 + c + T4]
    h2 = _conv_s2(read_h1, lambda k: w2_ref[k], b2_ref[...], 5, 2, 4, relu=True)
    for s in range(2):
        h2p[s, :, 1:1 + T4] = h2[s].astype(_BF16)

    # conv k3 / s2 / p1          (2 phases -> single stream at T/4)
    read_h2 = lambda r, c: h2p[r, :, 1 + c:1 + c + T4]
    (cur,) = _conv_s2(read_h2, lambda k: w3_ref[k], b3_ref[...], 3, 1, 2, relu=False)

    # residual stack
    cur = _residual_stack(cur, rpad, wr1_ref, br1_ref, wr2_ref, br2_ref,
                          num_layers, T4)

    # pre-quantization 1x1 conv (dropout = identity in eval)
    z = jnp.dot(wq_ref[...], cur.astype(_BF16), preferred_element_type=jnp.float32)
    z = z + bq_ref[...]                                       # (ed, T4) f32

    # vector quantization -- distances kept in f32 for argmin fidelity.
    z_sq = jnp.sum(z * z, axis=0, keepdims=True)              # (1, T4)
    scores = jnp.dot(cb_ref[...], z, preferred_element_type=jnp.float32)   # (M, T4)
    dist = esq_ref[...] - 2.0 * scores + z_sq                 # (M, T4)
    dmin = jnp.min(dist, axis=0, keepdims=True)
    row = jax.lax.broadcasted_iota(jnp.int32, dist.shape, 0)
    idx = jnp.min(jnp.where(dist <= dmin, row, num_codes), axis=0, keepdims=True)
    onehot = (row == idx).astype(jnp.float32)                 # (M, T4)
    q = jnp.dot(cbt_ref[...], onehot, preferred_element_type=jnp.float32)  # (ed, T4)

    z_ref[0] = z
    q_ref[0] = q
    idx_ref[0] = idx


# ---------------------------------------------------------------------------
# Fused kernel 2: decoder (residual stack + 2 polyphase transpose convs +
# final conv).  One grid step per batch element.
# ---------------------------------------------------------------------------
def _dec_kernel(q_ref,
                wr1_ref, br1_ref, wr2_ref, br2_ref,
                a1_ref, bt1_ref, a2_ref, bt2_ref, wf_ref, bf_ref,
                o_ref,
                rpad, d1p, d2p,
                *, T4, num_layers):
    rpad[...] = jnp.zeros_like(rpad)
    d1p[...] = jnp.zeros_like(d1p)
    d2p[...] = jnp.zeros_like(d2p)

    cur = q_ref[0]                                            # (ed, T4) f32
    cur = _residual_stack(cur, rpad, wr1_ref, br1_ref, wr2_ref, br2_ref,
                          num_layers, T4)

    # ConvTranspose1d k3/s2/p1/op1 + ReLU   (1 phase -> 2 phases)
    rpad[:, 1:1 + T4] = cur.astype(_BF16)
    read_d0 = lambda r, c: rpad[:, 1 + c:1 + c + T4]
    d1 = _conv_t_s2(read_d0, lambda k: a1_ref[k], bt1_ref[...], 3, 1, 1, relu=True)
    for s in range(2):
        d1p[s, :, 1:1 + T4] = d1[s].astype(_BF16)

    # ConvTranspose1d k5/s2/p2/op1 + ReLU   (2 phases -> 4 phases)
    read_d1 = lambda r, c: d1p[r, :, 1 + c:1 + c + T4]
    d2 = _conv_t_s2(read_d1, lambda k: a2_ref[k], bt2_ref[...], 5, 2, 2, relu=True)
    for qp in range(4):
        d2p[qp, :, 1:1 + T4] = d2[qp].astype(_BF16)

    # final Conv1d k7/s1/p3                 (4 phases -> 4 phases)
    read_d2 = lambda r, c: d2p[r, :, 1 + c:1 + c + T4]
    xr = _conv_s1(read_d2, lambda k: wf_ref[k], bf_ref[...], 7, 3, 4, relu=False)
    for qp in range(4):
        o_ref[0, qp] = xr[qp]


# ---------------------------------------------------------------------------
# BlockSpec helpers, parameter packing, forward.
# ---------------------------------------------------------------------------
def _full_spec(arr):
    nd = arr.ndim
    return pl.BlockSpec(tuple(arr.shape), lambda b, _n=nd: (0,) * _n)


def _batch_spec(shape):
    nd = len(shape)
    return pl.BlockSpec((1,) + tuple(shape[1:]),
                        lambda b, _n=nd: (b,) + (0,) * (_n - 1))


def init_params(key, cfg):
    nn_, nh = cfg["num_neurons"], cfg["num_hiddens"]
    nrl, nrh = cfg["num_residual_layers"], cfg["num_residual_hiddens"]
    ne, ed, bd = cfg["num_embeddings"], cfg["embedding_dim"], cfg["behavior_dim"]
    keys = iter(jax.random.split(key, 64))

    def nrm(shape, scale=0.1):
        return scale * jax.random.normal(next(keys), shape, dtype=jnp.float32)

    def res_blocks(channels, n):
        return [
            dict(w1=nrm((nrh, channels, 3)), b1=nrm((nrh,)),
                 w2=nrm((channels, nrh, 1)), b2=nrm((channels,)))
            for _ in range(n)
        ]

    return dict(
        # CalciumEncoder (assumed symmetric to CalciumDecoder): k7/s1, k5/s2, k3/s2
        enc1_w=nrm((nh // 2, nn_, 7)), enc1_b=nrm((nh // 2,)),
        enc2_w=nrm((nh, nh // 2, 5)), enc2_b=nrm((nh,)),
        enc3_w=nrm((nh, nh, 3)), enc3_b=nrm((nh,)),
        enc_res=res_blocks(nh, nrl),
        preq_w=nrm((ed, nh, 1)), preq_b=nrm((ed,)),
        codebook=nrm((ne, ed), scale=1.0),
        dec_res=res_blocks(ed, nrl),
        dect1_w=nrm((ed, nh, 3)), dect1_b=nrm((nh,)),      # ConvTranspose1d (Cin, Cout, K)
        dect2_w=nrm((nh, nh // 2, 5)), dect2_b=nrm((nh // 2,)),
        decf_w=nrm((nn_, nh // 2, 7)), decf_b=nrm((nn_,)),
        beh_w1=nrm((ed, 128)), beh_b1=nrm((128,)),
        beh_w2=nrm((128, bd)), beh_b2=nrm((bd,)),
    )


def _pack_params(params, cfg):
    """Re-layout weights once: kernel-major (K, Cout, Cin) bf16 matmul stacks,
    biases as (C, 1) f32 columns, codebook norms hoisted out of the kernel."""
    nh, ed = cfg["num_hiddens"], cfg["embedding_dim"]

    def conv_w(w):    # Conv1d (Cout, Cin, K) -> (K, Cout, Cin)
        return jnp.transpose(w, (2, 0, 1)).astype(_BF16)

    def convt_w(w):   # ConvTranspose1d (Cin, Cout, K) -> (K, Cout, Cin)
        return jnp.transpose(w, (2, 1, 0)).astype(_BF16)

    def bias(b):
        return b.reshape(-1, 1).astype(jnp.float32)

    def res_pack(blocks):
        w1 = jnp.stack([jnp.transpose(b["w1"], (2, 0, 1)) for b in blocks]).astype(_BF16)
        b1 = jnp.stack([b["b1"].reshape(-1, 1) for b in blocks]).astype(jnp.float32)
        w2 = jnp.stack([jnp.transpose(b["w2"], (2, 0, 1)) for b in blocks]).astype(_BF16)
        b2 = jnp.stack([b["b2"].reshape(-1, 1) for b in blocks]).astype(jnp.float32)
        return w1, b1, w2, b2

    cb = params["codebook"].astype(jnp.float32)
    er_w1, er_b1, er_w2, er_b2 = res_pack(params["enc_res"])
    dr_w1, dr_b1, dr_w2, dr_b2 = res_pack(params["dec_res"])
    return dict(
        w1=conv_w(params["enc1_w"]), b1=bias(params["enc1_b"]),
        w2=conv_w(params["enc2_w"]), b2=bias(params["enc2_b"]),
        w3=conv_w(params["enc3_w"]), b3=bias(params["enc3_b"]),
        er_w1=er_w1, er_b1=er_b1, er_w2=er_w2, er_b2=er_b2,
        wq=params["preq_w"].reshape(ed, nh).astype(_BF16), bq=bias(params["preq_b"]),
        cb=cb, cbt=cb.T, esq=jnp.sum(cb * cb, axis=1, keepdims=True),
        dr_w1=dr_w1, dr_b1=dr_b1, dr_w2=dr_w2, dr_b2=dr_b2,
        a1=convt_w(params["dect1_w"]), bt1=bias(params["dect1_b"]),
        a2=convt_w(params["dect2_w"]), bt2=bias(params["dect2_b"]),
        wf=conv_w(params["decf_w"]), bf=bias(params["decf_b"]),
    )


def calcium_vqvae_forward(x, params, cfg):
    """x: (B, num_neurons, T) -> (vq_loss, x_recon, perplexity, quantized,
    encodings, behavior_pred).  Eval-mode forward."""
    B, Cn, T = x.shape
    assert Cn == cfg["num_neurons"]
    assert T % 4 == 0, "encoder/decoder assume T divisible by 4"
    # TODO(synk): F.interpolate fallback of the PyTorch model is unnecessary
    # here (down/upsample by exactly 4 always matches when T % 4 == 0).
    nh = cfg["num_hiddens"]
    C1, C2 = nh // 2, nh
    Cr, L = cfg["num_residual_hiddens"], cfg["num_residual_layers"]
    ed, M = cfg["embedding_dim"], cfg["num_embeddings"]
    T4 = T // 4
    Tb = T4 + 2

    p = _pack_params(params, cfg)

    # 4-phase split of the input + per-phase zero pad (cheap XLA glue; keeps
    # every in-kernel access contiguous and avoids any HBM im2col).
    x_ph = x.astype(jnp.float32).reshape(B, Cn, T4, 4).transpose(0, 3, 1, 2)
    x_ph = jnp.pad(x_ph, ((0, 0), (0, 0), (0, 0), (1, 1))).astype(_BF16)  # (B,4,Cn,Tb)

    # ---------------- encoder + VQ kernel ----------------
    enc_inputs = (x_ph, p["w1"], p["b1"], p["w2"], p["b2"], p["w3"], p["b3"],
                  p["er_w1"], p["er_b1"], p["er_w2"], p["er_b2"],
                  p["wq"], p["bq"], p["cb"], p["cbt"], p["esq"])
    enc_in_specs = [_batch_spec(x_ph.shape)] + [_full_spec(a) for a in enc_inputs[1:]]
    enc_flops = 2 * B * (T * 7 * Cn * C1 + (T // 2) * 5 * C1 * C2
                         + T4 * 3 * C2 * C2 + L * T4 * (3 * C2 * Cr + Cr * C2)
                         + T4 * C2 * ed + 2 * T4 * M * ed)
    enc_bytes = sum(int(a.size) * a.dtype.itemsize for a in enc_inputs) \
        + B * T4 * (2 * ed * 4 + 4)

    z, q, idx = pl.pallas_call(
        functools.partial(_enc_vq_kernel, T4=T4, num_layers=L, num_codes=M),
        grid=(B,),
        in_specs=enc_in_specs,
        out_specs=(_batch_spec((B, ed, T4)),
                   _batch_spec((B, ed, T4)),
                   _batch_spec((B, 1, T4))),
        out_shape=(jax.ShapeDtypeStruct((B, ed, T4), jnp.float32),
                   jax.ShapeDtypeStruct((B, ed, T4), jnp.float32),
                   jax.ShapeDtypeStruct((B, 1, T4), jnp.int32)),
        scratch_shapes=[pltpu.VMEM((4, C1, Tb), _BF16),
                        pltpu.VMEM((2, C2, Tb), _BF16),
                        pltpu.VMEM((C2, Tb), _BF16)],
        compiler_params=pltpu.CompilerParams(
            dimension_semantics=("parallel",),
            vmem_limit_bytes=32 * 1024 * 1024),
        cost_estimate=pl.CostEstimate(flops=enc_flops, transcendentals=0,
                                      bytes_accessed=enc_bytes),
    )(*enc_inputs)

    # ---------------- VQ losses / perplexity / encodings (tiny XLA glue) ----
    sg = jax.lax.stop_gradient
    e_latent_loss = jnp.mean((sg(q) - z) ** 2)
    q_latent_loss = jnp.mean((q - sg(z)) ** 2)
    vq_loss = q_latent_loss + cfg["commitment_cost"] * e_latent_loss
    quantized = z + sg(q - z)                                  # straight-through
    encodings = jax.nn.one_hot(idx.reshape(B * T4), M, dtype=jnp.float32)
    avg_probs = jnp.mean(encodings, axis=0)
    perplexity = jnp.exp(-jnp.sum(avg_probs * jnp.log(avg_probs + 1e-10)))
    # TODO(synk): no custom VJP is defined for the Pallas kernels -- this
    # forward is eval-oriented; gradients through it are not supported.

    # ---------------- decoder kernel ----------------
    dec_inputs = (quantized, p["dr_w1"], p["dr_b1"], p["dr_w2"], p["dr_b2"],
                  p["a1"], p["bt1"], p["a2"], p["bt2"], p["wf"], p["bf"])
    dec_in_specs = [_batch_spec((B, ed, T4))] + [_full_spec(a) for a in dec_inputs[1:]]
    dec_flops = 2 * B * (L * T4 * (3 * ed * Cr + Cr * ed)
                         + T4 * 3 * ed * nh + (T // 2) * 5 * nh * C1
                         + T * 7 * C1 * Cn)
    dec_bytes = sum(int(a.size) * a.dtype.itemsize for a in dec_inputs) + B * Cn * T * 4

    xr_ph = pl.pallas_call(
        functools.partial(_dec_kernel, T4=T4, num_layers=L),
        grid=(B,),
        in_specs=dec_in_specs,
        out_specs=_batch_spec((B, 4, Cn, T4)),
        out_shape=jax.ShapeDtypeStruct((B, 4, Cn, T4), jnp.float32),
        scratch_shapes=[pltpu.VMEM((ed, Tb), _BF16),
                        pltpu.VMEM((2, nh, Tb), _BF16),
                        pltpu.VMEM((4, C1, Tb), _BF16)],
        compiler_params=pltpu.CompilerParams(
            dimension_semantics=("parallel",),
            vmem_limit_bytes=32 * 1024 * 1024),
        cost_estimate=pl.CostEstimate(flops=dec_flops, transcendentals=0,
                                      bytes_accessed=dec_bytes),
    )(*dec_inputs)

    # interleave the 4 decoder output phases back to full rate: -> (B, Cn, T)
    x_recon = jnp.transpose(xr_ph, (0, 2, 3, 1)).reshape(B, Cn, T)

    # ---------------- behavior head (left to XLA: two tiny linears) ---------
    # TODO(synk): BehaviorHead source unavailable; mean-pool over time ->
    # Linear(ed,128) -> ReLU -> Linear(128, behavior_dim) is assumed.
    pooled = jnp.mean(quantized, axis=2)                       # (B, ed)
    hb = jnp.maximum(pooled @ params["beh_w1"] + params["beh_b1"], 0.0)
    behavior_pred = hb @ params["beh_w2"] + params["beh_b2"]

    return vq_loss, x_recon, perplexity, quantized, encodings, behavior_pred


# ---------------------------------------------------------------------------
if __name__ == "__main__":
    key = jax.random.PRNGKey(0)
    k_param, k_x = jax.random.split(key)

    B, T = 2, 32
    x = jax.random.normal(k_x, (B, CFG["num_neurons"], T), dtype=jnp.float32)
    params = init_params(k_param, CFG)

    fwd = jax.jit(functools.partial(calcium_vqvae_forward, cfg=CFG))
    outs = fwd(x, params)
    jax.block_until_ready(outs)
    vq_loss, x_recon, perplexity, quantized, encodings, behavior_pred = outs

    assert x_recon.shape == (B, CFG["num_neurons"], T)
    assert quantized.shape == (B, CFG["embedding_dim"], T // 4)
    assert encodings.shape == (B * (T // 4), CFG["num_embeddings"])
    assert behavior_pred.shape == (B, CFG["behavior_dim"])
    assert bool(jnp.isfinite(vq_loss)) and bool(jnp.isfinite(perplexity))
    assert bool(jnp.all(jnp.isfinite(x_recon)))

    print("KERNEL_OK")
</pallas_src>

<mosaic_0001>
module attributes {stable_mosaic.version = 11 : i64} {
  func.func @_enc_vq_kernel(%arg0: i32, %arg1: memref<1x4x16x10xbf16, #tpu.memory_space<vmem>>, %arg2: memref<7x16x16xbf16, #tpu.memory_space<vmem>>, %arg3: memref<16x1xf32, #tpu.memory_space<vmem>>, %arg4: memref<5x32x16xbf16, #tpu.memory_space<vmem>>, %arg5: memref<32x1xf32, #tpu.memory_space<vmem>>, %arg6: memref<3x32x32xbf16, #tpu.memory_space<vmem>>, %arg7: memref<32x1xf32, #tpu.memory_space<vmem>>, %arg8: memref<2x3x8x32xbf16, #tpu.memory_space<vmem>>, %arg9: memref<2x8x1xf32, #tpu.memory_space<vmem>>, %arg10: memref<2x1x32x8xbf16, #tpu.memory_space<vmem>>, %arg11: memref<2x32x1xf32, #tpu.memory_space<vmem>>, %arg12: memref<16x32xbf16, #tpu.memory_space<vmem>>, %arg13: memref<16x1xf32, #tpu.memory_space<vmem>>, %arg14: memref<32x16xf32, #tpu.memory_space<vmem>>, %arg15: memref<16x32xf32, #tpu.memory_space<vmem>>, %arg16: memref<32x1xf32, #tpu.memory_space<vmem>>, %arg17: memref<1x16x8xf32, #tpu.memory_space<vmem>>, %arg18: memref<1x16x8xf32, #tpu.memory_space<vmem>>, %arg19: memref<1x1x8xi32, #tpu.memory_space<vmem>>, %arg20: memref<4x16x10xbf16, #tpu.memory_space<vmem>>, %arg21: memref<2x32x10xbf16, #tpu.memory_space<vmem>>, %arg22: memref<32x10xbf16, #tpu.memory_space<vmem>>) attributes {dimension_semantics = [#tpu.dimension_semantics<parallel>], iteration_bounds = array<i64: 2>, scalar_prefetch = 0 : i64, scratch_operands = 3 : i64, tpu.core_type = #tpu.core_type<tc>, window_params = [{transform_indices = @transform_0, window_bounds = array<i64: 1, 4, 16, 10>}, {pipeline_mode = #tpu.pipeline_mode<synchronous>, transform_indices = @transform_1, window_bounds = array<i64: 7, 16, 16>}, {pipeline_mode = #tpu.pipeline_mode<synchronous>, transform_indices = @transform_2, window_bounds = array<i64: 16, 1>}, {pipeline_mode = #tpu.pipeline_mode<synchronous>, transform_indices = @transform_3, window_bounds = array<i64: 5, 32, 16>}, {pipeline_mode = #tpu.pipeline_mode<synchronous>, transform_indices = @transform_4, window_bounds = array<i64: 32, 1>}, {pipeline_mode = #tpu.pipeline_mode<synchronous>, transform_indices = @transform_5, window_bounds = array<i64: 3, 32, 32>}, {pipeline_mode = #tpu.pipeline_mode<synchronous>, transform_indices = @transform_6, window_bounds = array<i64: 32, 1>}, {pipeline_mode = #tpu.pipeline_mode<synchronous>, transform_indices = @transform_7, window_bounds = array<i64: 2, 3, 8, 32>}, {pipeline_mode = #tpu.pipeline_mode<synchronous>, transform_indices = @transform_8, window_bounds = array<i64: 2, 8, 1>}, {pipeline_mode = #tpu.pipeline_mode<synchronous>, transform_indices = @transform_9, window_bounds = array<i64: 2, 1, 32, 8>}, {pipeline_mode = #tpu.pipeline_mode<synchronous>, transform_indices = @transform_10, window_bounds = array<i64: 2, 32, 1>}, {pipeline_mode = #tpu.pipeline_mode<synchronous>, transform_indices = @transform_11, window_bounds = array<i64: 16, 32>}, {pipeline_mode = #tpu.pipeline_mode<synchronous>, transform_indices = @transform_12, window_bounds = array<i64: 16, 1>}, {pipeline_mode = #tpu.pipeline_mode<synchronous>, transform_indices = @transform_13, window_bounds = array<i64: 32, 16>}, {pipeline_mode = #tpu.pipeline_mode<synchronous>, transform_indices = @transform_14, window_bounds = array<i64: 16, 32>}, {pipeline_mode = #tpu.pipeline_mode<synchronous>, transform_indices = @transform_15, window_bounds = array<i64: 32, 1>}, {transform_indices = @transform_16, window_bounds = array<i64: 1, 16, 8>}, {transform_indices = @transform_17, window_bounds = array<i64: 1, 16, 8>}, {transform_indices = @transform_18, window_bounds = array<i64: 1, 1, 8>}]} {
    %cst = arith.constant 0.000000e+00 : bf16
    %0 = vector.broadcast %cst : bf16 to vector<4x16x10xbf16>
    %c0 = arith.constant 0 : index
    %c0_0 = arith.constant 0 : index
    %c0_1 = arith.constant 0 : index
    %1 = vector.load %arg20[%c0, %c0_0, %c0_1] : memref<4x16x10xbf16, #tpu.memory_space<vmem>>, vector<4x16x10xbf16>
    tpu.vector_store %arg20[%c0, %c0_0, %c0_1], %0 {strides = array<i32>} : memref<4x16x10xbf16, #tpu.memory_space<vmem>>, vector<4x16x10xbf16>,
    %cst_2 = arith.constant 0.000000e+00 : bf16
    %2 = vector.broadcast %cst_2 : bf16 to vector<2x32x10xbf16>
    %c0_3 = arith.constant 0 : index
    %c0_4 = arith.constant 0 : index
    %c0_5 = arith.constant 0 : index
    %3 = vector.load %arg21[%c0_3, %c0_4, %c0_5] : memref<2x32x10xbf16, #tpu.memory_space<vmem>>, vector<2x32x10xbf16>
    tpu.vector_store %arg21[%c0_3, %c0_4, %c0_5], %2 {strides = array<i32>} : memref<2x32x10xbf16, #tpu.memory_space<vmem>>, vector<2x32x10xbf16>,
    %cst_6 = arith.constant 0.000000e+00 : bf16
    %4 = vector.broadcast %cst_6 : bf16 to vector<32x10xbf16>
    %c0_7 = arith.constant 0 : index
    %c0_8 = arith.constant 0 : index
    %5 = vector.load %arg22[%c0_7, %c0_8] : memref<32x10xbf16, #tpu.memory_space<vmem>>, vector<32x10xbf16>
    tpu.vector_store %arg22[%c0_7, %c0_8], %4 {strides = array<i32>} : memref<32x10xbf16, #tpu.memory_space<vmem>>, vector<32x10xbf16>,
    %c0_9 = arith.constant 0 : index
    %c0_10 = arith.constant 0 : index
    %6 = vector.load %arg3[%c0_9, %c0_10] : memref<16x1xf32, #tpu.memory_space<vmem>>, vector<16x1xf32>
    %c0_11 = arith.constant 0 : index
    %c0_12 = arith.constant 0 : index
    %c0_13 = arith.constant 0 : index
    %7 = vector.load %arg2[%c0_11, %c0_12, %c0_13] : memref<7x16x16xbf16, #tpu.memory_space<vmem>>, vector<1x16x16xbf16>
    %8 = vector.shape_cast %7 : vector<1x16x16xbf16> to vector<16x16xbf16>
    %c0_14 = arith.constant 0 : index
    %c1 = arith.constant 1 : index
    %c0_15 = arith.constant 0 : index
    %c0_16 = arith.constant 0 : index
    %9 = vector.load %arg1[%c0_14, %c1, %c0_15, %c0_16] : memref<1x4x16x10xbf16, #tpu.memory_space<vmem>>, vector<1x1x16x8xbf16>
    %10 = vector.shape_cast %9 : vector<1x1x16x8xbf16> to vector<16x8xbf16>
    %cst_17 = arith.constant dense<0.000000e+00> : vector<16x8xf32>
    %11 = tpu.matmul %8, %10, %cst_17 {dimension_numbers = #tpu.dot_dimension_numbers<[1], [0], [0], [1], [0, 0, 1, 1], [], []>} : vector<16x16xbf16>, vector<16x8xbf16>, vector<16x8xf32> -> vector<16x8xf32>
    %c1_18 = arith.constant 1 : index
    %c0_19 = arith.constant 0 : index
    %c0_20 = arith.constant 0 : index
    %12 = vector.load %arg2[%c1_18, %c0_19, %c0_20] : memref<7x16x16xbf16, #tpu.memory_space<vmem>>, vector<1x16x16xbf16>
    %13 = vector.shape_cast %12 : vector<1x16x16xbf16> to vector<16x16xbf16>
    %c0_21 = arith.constant 0 : index
    %c2 = arith.constant 2 : index
    %c0_22 = arith.constant 0 : index
    %c0_23 = arith.constant 0 : index
    %14 = vector.load %arg1[%c0_21, %c2, %c0_22, %c0_23] : memref<1x4x16x10xbf16, #tpu.memory_space<vmem>>, vector<1x1x16x8xbf16>
    %15 = vector.shape_cast %14 : vector<1x1x16x8xbf16> to vector<16x8xbf16>
    %cst_24 = arith.constant dense<0.000000e+00> : vector<16x8xf32>
    %16 = tpu.matmul %13, %15, %cst_24 {dimension_numbers = #tpu.dot_dimension_numbers<[1], [0], [0], [1], [0, 0, 1, 1], [], []>} : vector<16x16xbf16>, vector<16x8xbf16>, vector<16x8xf32> -> vector<16x8xf32>
    %17 = arith.addf %11, %16 : vector<16x8xf32>
    %c2_25 = arith.constant 2 : index
    %c0_26 = arith.constant 0 : index
    %c0_27 = arith.constant 0 : index
    %18 = vector.load %arg2[%c2_25, %c0_26, %c0_27] : memref<7x16x16xbf16, #tpu.memory_space<vmem>>, vector<1x16x16xbf16>
    %19 = vector.shape_cast %18 : vector<1x16x16xbf16> to vector<16x16xbf16>
    %c0_28 = arith.constant 0 : index
    %c3 = arith.constant 3 : index
    %c0_29 = arith.constant 0 : index
    %c0_30 = arith.constant 0 : index
    %20 = vector.load %arg1[%c0_28, %c3, %c0_29, %c0_30] : memref<1x4x16x10xbf16, #tpu.memory_space<vmem>>, vector<1x1x16x8xbf16>
    %21 = vector.shape_cast %20 : vector<1x1x16x8xbf16> to vector<16x8xbf16>
    %cst_31 = arith.constant dense<0.000000e+00> : vector<16x8xf32>
    %22 = tpu.matmul %19, %21, %cst_31 {dimension_numbers = #tpu.dot_dimension_numbers<[1], [0], [0], [1], [0, 0, 1, 1], [], []>} : vector<16x16xbf16>, vector<16x8xbf16>, vector<16x8xf32> -> vector<16x8xf32>
    %23 = arith.addf %17, %22 : vector<16x8xf32>
    %c3_32 = arith.constant 3 : index
    %c0_33 = arith.constant 0 : index
    %c0_34 = arith.constant 0 : index
    %24 = vector.load %arg2[%c3_32, %c0_33, %c0_34] : memref<7x16x16xbf16, #tpu.memory_space<vmem>>, vector<1x16x16xbf16>
    %25 = vector.shape_cast %24 : vector<1x16x16xbf16> to vector<16x16xbf16>
    %c0_35 = arith.constant 0 : index
    %c0_36 = arith.constant 0 : index
    %c0_37 = arith.constant 0 : index
    %c1_38 = arith.constant 1 : index
    %26 = vector.load %arg1[%c0_35, %c0_36, %c0_37, %c1_38] : memref<1x4x16x10xbf16, #tpu.memory_space<vmem>>, vector<1x1x16x8xbf16>
    %27 = vector.shape_cast %26 : vector<1x1x16x8xbf16> to vector<16x8xbf16>
    %cst_39 = arith.constant dense<0.000000e+00> : vector<16x8xf32>
    %28 = tpu.matmul %25, %27, %cst_39 {dimension_numbers = #tpu.dot_dimension_numbers<[1], [0], [0], [1], [0, 0, 1, 1], [], []>} : vector<16x16xbf16>, vector<16x8xbf16>, vector<16x8xf32> -> vector<16x8xf32>
    %29 = arith.addf %23, %28 : vector<16x8xf32>
    %c4 = arith.constant 4 : index
    %c0_40 = arith.constant 0 : index
    %c0_41 = arith.constant 0 : index
    %30 = vector.load %arg2[%c4, %c0_40, %c0_41] : memref<7x16x16xbf16, #tpu.memory_space<vmem>>, vector<1x16x16xbf16>
    %31 = vector.shape_cast %30 : vector<1x16x16xbf16> to vector<16x16xbf16>
    %c0_42 = arith.constant 0 : index
    %c1_43 = arith.constant 1 : index
    %c0_44 = arith.constant 0 : index
    %c1_45 = arith.constant 1 : index
    %32 = vector.load %arg1[%c0_42, %c1_43, %c0_44, %c1_45] : memref<1x4x16x10xbf16, #tpu.memory_space<vmem>>, vector<1x1x16x8xbf16>
    %33 = vector.shape_cast %32 : vector<1x1x16x8xbf16> to vector<16x8xbf16>
    %cst_46 = arith.constant dense<0.000000e+00> : vector<16x8xf32>
    %34 = tpu.matmul %31, %33, %cst_46 {dimension_numbers = #tpu.dot_dimension_numbers<[1], [0], [0], [1], [0, 0, 1, 1], [], []>} : vector<16x16xbf16>, vector<16x8xbf16>, vector<16x8xf32> -> vector<16x8xf32>
    %35 = arith.addf %29, %34 : vector<16x8xf32>
    %c5 = arith.constant 5 : index
    %c0_47 = arith.constant 0 : index
    %c0_48 = arith.constant 0 : index
    %36 = vector.load %arg2[%c5, %c0_47, %c0_48] : memref<7x16x16xbf16, #tpu.memory_space<vmem>>, vector<1x16x16xbf16>
    %37 = vector.shape_cast %36 : vector<1x16x16xbf16> to vector<16x16xbf16>
    %c0_49 = arith.constant 0 : index
    %c2_50 = arith.constant 2 : index
    %c0_51 = arith.constant 0 : index
    %c1_52 = arith.constant 1 : index
    %38 = vector.load %arg1[%c0_49, %c2_50, %c0_51, %c1_52] : memref<1x4x16x10xbf16, #tpu.memory_space<vmem>>, vector<1x1x16x8xbf16>
    %39 = vector.shape_cast %38 : vector<1x1x16x8xbf16> to vector<16x8xbf16>
    %cst_53 = arith.constant dense<0.000000e+00> : vector<16x8xf32>
    %40 = tpu.matmul %37, %39, %cst_53 {dimension_numbers = #tpu.dot_dimension_numbers<[1], [0], [0], [1], [0, 0, 1, 1], [], []>} : vector<16x16xbf16>, vector<16x8xbf16>, vector<16x8xf32> -> vector<16x8xf32>
    %41 = arith.addf %35, %40 : vector<16x8xf32>
    %c6 = arith.constant 6 : index
    %c0_54 = arith.constant 0 : index
    %c0_55 = arith.constant 0 : index
    %42 = vector.load %arg2[%c6, %c0_54, %c0_55] : memref<7x16x16xbf16, #tpu.memory_space<vmem>>, vector<1x16x16xbf16>
    %43 = vector.shape_cast %42 : vector<1x16x16xbf16> to vector<16x16xbf16>
    %c0_56 = arith.constant 0 : index
    %c3_57 = arith.constant 3 : index
    %c0_58 = arith.constant 0 : index
    %c1_59 = arith.constant 1 : index
    %44 = vector.load %arg1[%c0_56, %c3_57, %c0_58, %c1_59] : memref<1x4x16x10xbf16, #tpu.memory_space<vmem>>, vector<1x1x16x8xbf16>
    %45 = vector.shape_cast %44 : vector<1x1x16x8xbf16> to vector<16x8xbf16>
    %cst_60 = arith.constant dense<0.000000e+00> : vector<16x8xf32>
    %46 = tpu.matmul %43, %45, %cst_60 {dimension_numbers = #tpu.dot_dimension_numbers<[1], [0], [0], [1], [0, 0, 1, 1], [], []>} : vector<16x16xbf16>, vector<16x8xbf16>, vector<16x8xf32> -> vector<16x8xf32>
    %47 = arith.addf %41, %46 : vector<16x8xf32>
    %48 = vector.broadcast %6 : vector<16x1xf32> to vector<16x8xf32>
    %49 = arith.addf %47, %48 : vector<16x8xf32>
    %cst_61 = arith.constant 0.000000e+00 : f32
    %50 = vector.broadcast %cst_61 : f32 to vector<16x8xf32>
    %51 = arith.maximumf %49, %50 : vector<16x8xf32>
    %c0_62 = arith.constant 0 : index
    %c0_63 = arith.constant 0 : index
    %c0_64 = arith.constant 0 : index
    %52 = vector.load %arg2[%c0_62, %c0_63, %c0_64] : memref<7x16x16xbf16, #tpu.memory_space<vmem>>, vector<1x16x16xbf16>
    %53 = vector.shape_cast %52 : vector<1x16x16xbf16> to vector<16x16xbf16>
    %c0_65 = arith.constant 0 : index
    %c2_66 = arith.constant 2 : index
    %c0_67 = arith.constant 0 : index
    %c0_68 = arith.constant 0 : index
    %54 = vector.load %arg1[%c0_65, %c2_66, %c0_67, %c0_68] : memref<1x4x16x10xbf16, #tpu.memory_space<vmem>>, vector<1x1x16x8xbf16>
    %55 = vector.shape_cast %54 : vector<1x1x16x8xbf16> to vector<16x8xbf16>
    %cst_69 = arith.constant dense<0.000000e+00> : vector<16x8xf32>
    %56 = tpu.matmul %53, %55, %cst_69 {dimension_numbers = #tpu.dot_dimension_numbers<[1], [0], [0], [1], [0, 0, 1, 1], [], []>} : vector<16x16xbf16>, vector<16x8xbf16>, vector<16x8xf32> -> vector<16x8xf32>
    %c1_70 = arith.constant 1 : index
    %c0_71 = arith.constant 0 : index
    %c0_72 = arith.constant 0 : index
    %57 = vector.load %arg2[%c1_70, %c0_71, %c0_72] : memref<7x16x16xbf16, #tpu.memory_space<vmem>>, vector<1x16x16xbf16>
    %58 = vector.shape_cast %57 : vector<1x16x16xbf16> to vector<16x16xbf16>
    %c0_73 = arith.constant 0 : index
    %c3_74 = arith.constant 3 : index
    %c0_75 = arith.constant 0 : index
    %c0_76 = arith.constant 0 : index
    %59 = vector.load %arg1[%c0_73, %c3_74, %c0_75, %c0_76] : memref<1x4x16x10xbf16, #tpu.memory_space<vmem>>, vector<1x1x16x8xbf16>
    %60 = vector.shape_cast %59 : vector<1x1x16x8xbf16> to vector<16x8xbf16>
    %cst_77 = arith.constant dense<0.000000e+00> : vector<16x8xf32>
    %61 = tpu.matmul %58, %60, %cst_77 {dimension_numbers = #tpu.dot_dimension_numbers<[1], [0], [0], [1], [0, 0, 1, 1], [], []>} : vector<16x16xbf16>, vector<16x8xbf16>, vector<16x8xf32> -> vector<16x8xf32>
    %62 = arith.addf %56, %61 : vector<16x8xf32>
    %c2_78 = arith.constant 2 : index
    %c0_79 = arith.constant 0 : index
    %c0_80 = arith.constant 0 : index
    %63 = vector.load %arg2[%c2_78, %c0_79, %c0_80] : memref<7x16x16xbf16, #tpu.memory_space<vmem>>, vector<1x16x16xbf16>
    %64 = vector.shape_cast %63 : vector<1x16x16xbf16> to vector<16x16xbf16>
    %c0_81 = arith.constant 0 : index
    %c0_82 = arith.constant 0 : index
    %c0_83 = arith.constant 0 : index
    %c1_84 = arith.constant 1 : index
    %65 = vector.load %arg1[%c0_81, %c0_82, %c0_83, %c1_84] : memref<1x4x16x10xbf16, #tpu.memory_space<vmem>>, vector<1x1x16x8xbf16>
    %66 = vector.shape_cast %65 : vector<1x1x16x8xbf16> to vector<16x8xbf16>
    %cst_85 = arith.constant dense<0.000000e+00> : vector<16x8xf32>
    %67 = tpu.matmul %64, %66, %cst_85 {dimension_numbers = #tpu.dot_dimension_numbers<[1], [0], [0], [1], [0, 0, 1, 1], [], []>} : vector<16x16xbf16>, vector<16x8xbf16>, vector<16x8xf32> -> vector<16x8xf32>
    %68 = arith.addf %62, %67 : vector<16x8xf32>
    %c3_86 = arith.constant 3 : index
    %c0_87 = arith.constant 0 : index
    %c0_88 = arith.constant 0 : index
    %69 = vector.load %arg2[%c3_86, %c0_87, %c0_88] : memref<7x16x16xbf16, #tpu.memory_space<vmem>>, vector<1x16x16xbf16>
    %70 = vector.shape_cast %69 : vector<1x16x16xbf16> to vector<16x16xbf16>
    %c0_89 = arith.constant 0 : index
    %c1_90 = arith.constant 1 : index
    %c0_91 = arith.constant 0 : index
    %c1_92 = arith.constant 1 : index
    %71 = vector.load %arg1[%c0_89, %c1_90, %c0_91, %c1_92] : memref<1x4x16x10xbf16, #tpu.memory_space<vmem>>, vector<1x1x16x8xbf16>
    %72 = vector.shape_cast %71 : vector<1x1x16x8xbf16> to vector<16x8xbf16>
    %cst_93 = arith.constant dense<0.000000e+00> : vector<16x8xf32>
    %73 = tpu.matmul %70, %72, %cst_93 {dimension_numbers = #tpu.dot_dimension_numbers<[1], [0], [0], [1], [0, 0, 1, 1], [], []>} : vector<16x16xbf16>, vector<16x8xbf16>, vector<16x8xf32> -> vector<16x8xf32>
    %74 = arith.addf %68, %73 : vector<16x8xf32>
    %c4_94 = arith.constant 4 : index
    %c0_95 = arith.constant 0 : index
    %c0_96 = arith.constant 0 : index
    %75 = vector.load %arg2[%c4_94, %c0_95, %c0_96] : memref<7x16x16xbf16, #tpu.memory_space<vmem>>, vector<1x16x16xbf16>
    %76 = vector.shape_cast %75 : vector<1x16x16xbf16> to vector<16x16xbf16>
    %c0_97 = arith.constant 0 : index
    %c2_98 = arith.constant 2 : index
    %c0_99 = arith.constant 0 : index
    %c1_100 = arith.constant 1 : index
    %77 = vector.load %arg1[%c0_97, %c2_98, %c0_99, %c1_100] : memref<1x4x16x10xbf16, #tpu.memory_space<vmem>>, vector<1x1x16x8xbf16>
    %78 = vector.shape_cast %77 : vector<1x1x16x8xbf16> to vector<16x8xbf16>
    %cst_101 = arith.constant dense<0.000000e+00> : vector<16x8xf32>
    %79 = tpu.matmul %76, %78, %cst_101 {dimension_numbers = #tpu.dot_dimension_numbers<[1], [0], [0], [1], [0, 0, 1, 1], [], []>} : vector<16x16xbf16>, vector<16x8xbf16>, vector<16x8xf32> -> vector<16x8xf32>
    %80 = arith.addf %74, %79 : vector<16x8xf32>
    %c5_102 = arith.constant 5 : index
    %c0_103 = arith.constant 0 : index
    %c0_104 = arith.constant 0 : index
    %81 = vector.load %arg2[%c5_102, %c0_103, %c0_104] : memref<7x16x16xbf16, #tpu.memory_space<vmem>>, vector<1x16x16xbf16>
    %82 = vector.shape_cast %81 : vector<1x16x16xbf16> to vector<16x16xbf16>
    %c0_105 = arith.constant 0 : index
    %c3_106 = arith.constant 3 : index
    %c0_107 = arith.constant 0 : index
    %c1_108 = arith.constant 1 : index
    %83 = vector.load %arg1[%c0_105, %c3_106, %c0_107, %c1_108] : memref<1x4x16x10xbf16, #tpu.memory_space<vmem>>, vector<1x1x16x8xbf16>
    %84 = vector.shape_cast %83 : vector<1x1x16x8xbf16> to vector<16x8xbf16>
    %cst_109 = arith.constant dense<0.000000e+00> : vector<16x8xf32>
    %85 = tpu.matmul %82, %84, %cst_109 {dimension_numbers = #tpu.dot_dimension_numbers<[1], [0], [0], [1], [0, 0, 1, 1], [], []>} : vector<16x16xbf16>, vector<16x8xbf16>, vector<16x8xf32> -> vector<16x8xf32>
    %86 = arith.addf %80, %85 : vector<16x8xf32>
    %c6_110 = arith.constant 6 : index
    %c0_111 = arith.constant 0 : index
    %c0_112 = arith.constant 0 : index
    %87 = vector.load %arg2[%c6_110, %c0_111, %c0_112] : memref<7x16x16xbf16, #tpu.memory_space<vmem>>, vector<1x16x16xbf16>
    %88 = vector.shape_cast %87 : vector<1x16x16xbf16> to vector<16x16xbf16>
    %c0_113 = arith.constant 0 : index
    %c0_114 = arith.constant 0 : index
    %c0_115 = arith.constant 0 : index
    %c2_116 = arith.constant 2 : index
    %89 = vector.load %arg1[%c0_113, %c0_114, %c0_115, %c2_116] : memref<1x4x16x10xbf16, #tpu.memory_space<vmem>>, vector<1x1x16x8xbf16>
    %90 = vector.shape_cast %89 : vector<1x1x16x8xbf16> to vector<16x8xbf16>
    %cst_117 = arith.constant dense<0.000000e+00> : vector<16x8xf32>
    %91 = tpu.matmul %88, %90, %cst_117 {dimension_numbers = #tpu.dot_dimension_numbers<[1], [0], [0], [1], [0, 0, 1, 1], [], []>} : vector<16x16xbf16>, vector<16x8xbf16>, vector<16x8xf32> -> vector<16x8xf32>
    %92 = arith.addf %86, %91 : vector<16x8xf32>
    %93 = vector.broadcast %6 : vector<16x1xf32> to vector<16x8xf32>
    %94 = arith.addf %92, %93 : vector<16x8xf32>
    %cst_118 = arith.constant 0.000000e+00 : f32
    %95 = vector.broadcast %cst_118 : f32 to vector<16x8xf32>
    %96 = arith.maximumf %94, %95 : vector<16x8xf32>
    %c0_119 = arith.constant 0 : index
    %c0_120 = arith.constant 0 : index
    %c0_121 = arith.constant 0 : index
    %97 = vector.load %arg2[%c0_119, %c0_120, %c0_121] : memref<7x16x16xbf16, #tpu.memory_space<vmem>>, vector<1x16x16xbf16>
    %98 = vector.shape_cast %97 : vector<1x16x16xbf16> to vector<16x16xbf16>
    %c0_122 = arith.constant 0 : index
    %c3_123 = arith.constant 3 : index
    %c0_124 = arith.constant 0 : index
    %c0_125 = arith.constant 0 : index
    %99 = vector.load %arg1[%c0_122, %c3_123, %c0_124, %c0_125] : memref<1x4x16x10xbf16, #tpu.memory_space<vmem>>, vector<1x1x16x8xbf16>
    %100 = vector.shape_cast %99 : vector<1x1x16x8xbf16> to vector<16x8xbf16>
    %cst_126 = arith.constant dense<0.000000e+00> : vector<16x8xf32>
    %101 = tpu.matmul %98, %100, %cst_126 {dimension_numbers = #tpu.dot_dimension_numbers<[1], [0], [0], [1], [0, 0, 1, 1], [], []>} : vector<16x16xbf16>, vector<16x8xbf16>, vector<16x8xf32> -> vector<16x8xf32>
    %c1_127 = arith.constant 1 : index
    %c0_128 = arith.constant 0 : index
    %c0_129 = arith.constant 0 : index
    %102 = vector.load %arg2[%c1_127, %c0_128, %c0_129] : memref<7x16x16xbf16, #tpu.memory_space<vmem>>, vector<1x16x16xbf16>
    %103 = vector.shape_cast %102 : vector<1x16x16xbf16> to vector<16x16xbf16>
    %c0_130 = arith.constant 0 : index
    %c0_131 = arith.constant 0 : index
    %c0_132 = arith.constant 0 : index
    %c1_133 = arith.constant 1 : index
    %104 = vector.load %arg1[%c0_130, %c0_131, %c0_132, %c1_133] : memref<1x4x16x10xbf16, #tpu.memory_space<vmem>>, vector<1x1x16x8xbf16>
    %105 = vector.shape_cast %104 : vector<1x1x16x8xbf16> to vector<16x8xbf16>
    %cst_134 = arith.constant dense<0.000000e+00> : vector<16x8xf32>
    %106 = tpu.matmul %103, %105, %cst_134 {dimension_numbers = #tpu.dot_dimension_numbers<[1], [0], [0], [1], [0, 0, 1, 1], [], []>} : vector<16x16xbf16>, vector<16x8xbf16>, vector<16x8xf32> -> vector<16x8xf32>
    %107 = arith.addf %101, %106 : vector<16x8xf32>
    %c2_135 = arith.constant 2 : index
    %c0_136 = arith.constant 0 : index
    %c0_137 = arith.constant 0 : index
    %108 = vector.load %arg2[%c2_135, %c0_136, %c0_137] : memref<7x16x16xbf16, #tpu.memory_space<vmem>>, vector<1x16x16xbf16>
    %109 = vector.shape_cast %108 : vector<1x16x16xbf16> to vector<16x16xbf16>
    %c0_138 = arith.constant 0 : index
    %c1_139 = arith.constant 1 : index
    %c0_140 = arith.constant 0 : index
    %c1_141 = arith.constant 1 : index
    %110 = vector.load %arg1[%c0_138, %c1_139, %c0_140, %c1_141] : memref<1x4x16x10xbf16, #tpu.memory_space<vmem>>, vector<1x1x16x8xbf16>
    %111 = vector.shape_cast %110 : vector<1x1x16x8xbf16> to vector<16x8xbf16>
    %cst_142 = arith.constant dense<0.000000e+00> : vector<16x8xf32>
    %112 = tpu.matmul %109, %111, %cst_142 {dimension_numbers = #tpu.dot_dimension_numbers<[1], [0], [0], [1], [0, 0, 1, 1], [], []>} : vector<16x16xbf16>, vector<16x8xbf16>, vector<16x8xf32> -> vector<16x8xf32>
    %113 = arith.addf %107, %112 : vector<16x8xf32>
    %c3_143 = arith.constant 3 : index
    %c0_144 = arith.constant 0 : index
    %c0_145 = arith.constant 0 : index
    %114 = vector.load %arg2[%c3_143, %c0_144, %c0_145] : memref<7x16x16xbf16, #tpu.memory_space<vmem>>, vector<1x16x16xbf16>
    %115 = vector.shape_cast %114 : vector<1x16x16xbf16> to vector<16x16xbf16>
    %c0_146 = arith.constant 0 : index
    %c2_147 = arith.constant 2 : index
    %c0_148 = arith.constant 0 : index
    %c1_149 = arith.constant 1 : index
    %116 = vector.load %arg1[%c0_146, %c2_147, %c0_148, %c1_149] : memref<1x4x16x10xbf16, #tpu.memory_space<vmem>>, vector<1x1x16x8xbf16>
    %117 = vector.shape_cast %116 : vector<1x1x16x8xbf16> to vector<16x8xbf16>
    %cst_150 = arith.constant dense<0.000000e+00> : vector<16x8xf32>
    %118 = tpu.matmul %115, %117, %cst_150 {dimension_numbers = #tpu.dot_dimension_numbers<[1], [0], [0], [1], [0, 0, 1, 1], [], []>} : vector<16x16xbf16>, vector<16x8xbf16>, vector<16x8xf32> -> vector<16x8xf32>
    %119 = arith.addf %113, %118 : vector<16x8xf32>
    %c4_151 = arith.constant 4 : index
    %c0_152 = arith.constant 0 : index
    %c0_153 = arith.constant 0 : index
    %120 = vector.load %arg2[%c4_151, %c0_152, %c0_153] : memref<7x16x16xbf16, #tpu.memory_space<vmem>>, vector<1x16x16xbf16>
    %121 = vector.shape_cast %120 : vector<1x16x16xbf16> to vector<16x16xbf16>
    %c0_154 = arith.constant 0 : index
    %c3_155 = arith.constant 3 : index
    %c0_156 = arith.constant 0 : index
    %c1_157 = arith.constant 1 : index
    %122 = vector.load %arg1[%c0_154, %c3_155, %c0_156, %c1_157] : memref<1x4x16x10xbf16, #tpu.memory_space<vmem>>, vector<1x1x16x8xbf16>
    %123 = vector.shape_cast %122 : vector<1x1x16x8xbf16> to vector<16x8xbf16>
    %cst_158 = arith.constant dense<0.000000e+00> : vector<16x8xf32>
    %124 = tpu.matmul %121, %123, %cst_158 {dimension_numbers = #tpu.dot_dimension_numbers<[1], [0], [0], [1], [0, 0, 1, 1], [], []>} : vector<16x16xbf16>, vector<16x8xbf16>, vector<16x8xf32> -> vector<16x8xf32>
    %125 = arith.addf %119, %124 : vector<16x8xf32>
    %c5_159 = arith.constant 5 : index
    %c0_160 = arith.constant 0 : index
    %c0_161 = arith.constant 0 : index
    %126 = vector.load %arg2[%c5_159, %c0_160, %c0_161] : memref<7x16x16xbf16, #tpu.memory_space<vmem>>, vector<1x16x16xbf16>
    %127 = vector.shape_cast %126 : vector<1x16x16xbf16> to vector<16x16xbf16>
    %c0_162 = arith.constant 0 : index
    %c0_163 = arith.constant 0 : index
    %c0_164 = arith.constant 0 : index
    %c2_165 = arith.constant 2 : index
    %128 = vector.load %arg1[%c0_162, %c0_163, %c0_164, %c2_165] : memref<1x4x16x10xbf16, #tpu.memory_space<vmem>>, vector<1x1x16x8xbf16>
    %129 = vector.shape_cast %128 : vector<1x1x16x8xbf16> to vector<16x8xbf16>
    %cst_166 = arith.constant dense<0.000000e+00> : vector<16x8xf32>
    %130 = tpu.matmul %127, %129, %cst_166 {dimension_numbers = #tpu.dot_dimension_numbers<[1], [0], [0], [1], [0, 0, 1, 1], [], []>} : vector<16x16xbf16>, vector<16x8xbf16>, vector<16x8xf32> -> vector<16x8xf32>
    %131 = arith.addf %125, %130 : vector<16x8xf32>
    %c6_167 = arith.constant 6 : index
    %c0_168 = arith.constant 0 : index
    %c0_169 = arith.constant 0 : index
    %132 = vector.load %arg2[%c6_167, %c0_168, %c0_169] : memref<7x16x16xbf16, #tpu.memory_space<vmem>>, vector<1x16x16xbf16>
    %133 = vector.shape_cast %132 : vector<1x16x16xbf16> to vector<16x16xbf16>
    %c0_170 = arith.constant 0 : index
    %c1_171 = arith.constant 1 : index
    %c0_172 = arith.constant 0 : index
    %c2_173 = arith.constant 2 : index
    %134 = vector.load %arg1[%c0_170, %c1_171, %c0_172, %c2_173] : memref<1x4x16x10xbf16, #tpu.memory_space<vmem>>, vector<1x1x16x8xbf16>
    %135 = vector.shape_cast %134 : vector<1x1x16x8xbf16> to vector<16x8xbf16>
    %cst_174 = arith.constant dense<0.000000e+00> : vector<16x8xf32>
    %136 = tpu.matmul %133, %135, %cst_174 {dimension_numbers = #tpu.dot_dimension_numbers<[1], [0], [0], [1], [0, 0, 1, 1], [], []>} : vector<16x16xbf16>, vector<16x8xbf16>, vector<16x8xf32> -> vector<16x8xf32>
    %137 = arith.addf %131, %136 : vector<16x8xf32>
    %138 = vector.broadcast %6 : vector<16x1xf32> to vector<16x8xf32>
    %139 = arith.addf %137, %138 : vector<16x8xf32>
    %cst_175 = arith.constant 0.000000e+00 : f32
    %140 = vector.broadcast %cst_175 : f32 to vector<16x8xf32>
    %141 = arith.maximumf %139, %140 : vector<16x8xf32>
    %c0_176 = arith.constant 0 : index
    %c0_177 = arith.constant 0 : index
    %c0_178 = arith.constant 0 : index
    %142 = vector.load %arg2[%c0_176, %c0_177, %c0_178] : memref<7x16x16xbf16, #tpu.memory_space<vmem>>, vector<1x16x16xbf16>
    %143 = vector.shape_cast %142 : vector<1x16x16xbf16> to vector<16x16xbf16>
    %c0_179 = arith.constant 0 : index
    %c0_180 = arith.constant 0 : index
    %c0_181 = arith.constant 0 : index
    %c1_182 = arith.constant 1 : index
    %144 = vector.load %arg1[%c0_179, %c0_180, %c0_181, %c1_182] : memref<1x4x16x10xbf16, #tpu.memory_space<vmem>>, vector<1x1x16x8xbf16>
    %145 = vector.shape_cast %144 : vector<1x1x16x8xbf16> to vector<16x8xbf16>
    %cst_183 = arith.constant dense<0.000000e+00> : vector<16x8xf32>
    %146 = tpu.matmul %143, %145, %cst_183 {dimension_numbers = #tpu.dot_dimension_numbers<[1], [0], [0], [1], [0, 0, 1, 1], [], []>} : vector<16x16xbf16>, vector<16x8xbf16>, vector<16x8xf32> -> vector<16x8xf32>
    %c1_184 = arith.constant 1 : index
    %c0_185 = arith.constant 0 : index
    %c0_186 = arith.constant 0 : index
    %147 = vector.load %arg2[%c1_184, %c0_185, %c0_186] : memref<7x16x16xbf16, #tpu.memory_space<vmem>>, vector<1x16x16xbf16>
    %148 = vector.shape_cast %147 : vector<1x16x16xbf16> to vector<16x16xbf16>
    %c0_187 = arith.constant 0 : index
    %c1_188 = arith.constant 1 : index
    %c0_189 = arith.constant 0 : index
    %c1_190 = arith.constant 1 : index
    %149 = vector.load %arg1[%c0_187, %c1_188, %c0_189, %c1_190] : memref<1x4x16x10xbf16, #tpu.memory_space<vmem>>, vector<1x1x16x8xbf16>
    %150 = vector.shape_cast %149 : vector<1x1x16x8xbf16> to vector<16x8xbf16>
    %cst_191 = arith.constant dense<0.000000e+00> : vector<16x8xf32>
    %151 = tpu.matmul %148, %150, %cst_191 {dimension_numbers = #tpu.dot_dimension_numbers<[1], [0], [0], [1], [0, 0, 1, 1], [], []>} : vector<16x16xbf16>, vector<16x8xbf16>, vector<16x8xf32> -> vector<16x8xf32>
    %152 = arith.addf %146, %151 : vector<16x8xf32>
    %c2_192 = arith.constant 2 : index
    %c0_193 = arith.constant 0 : index
    %c0_194 = arith.constant 0 : index
    %153 = vector.load %arg2[%c2_192, %c0_193, %c0_194] : memref<7x16x16xbf16, #tpu.memory_space<vmem>>, vector<1x16x16xbf16>
    %154 = vector.shape_cast %153 : vector<1x16x16xbf16> to vector<16x16xbf16>
    %c0_195 = arith.constant 0 : index
    %c2_196 = arith.constant 2 : index
    %c0_197 = arith.constant 0 : index
    %c1_198 = arith.constant 1 : index
    %155 = vector.load %arg1[%c0_195, %c2_196, %c0_197, %c1_198] : memref<1x4x16x10xbf16, #tpu.memory_space<vmem>>, vector<1x1x16x8xbf16>
    %156 = vector.shape_cast %155 : vector<1x1x16x8xbf16> to vector<16x8xbf16>
    %cst_199 = arith.constant dense<0.000000e+00> : vector<16x8xf32>
    %157 = tpu.matmul %154, %156, %cst_199 {dimension_numbers = #tpu.dot_dimension_numbers<[1], [0], [0], [1], [0, 0, 1, 1], [], []>} : vector<16x16xbf16>, vector<16x8xbf16>, vector<16x8xf32> -> vector<16x8xf32>
    %158 = arith.addf %152, %157 : vector<16x8xf32>
    %c3_200 = arith.constant 3 : index
    %c0_201 = arith.constant 0 : index
    %c0_202 = arith.constant 0 : index
    %159 = vector.load %arg2[%c3_200, %c0_201, %c0_202] : memref<7x16x16xbf16, #tpu.memory_space<vmem>>, vector<1x16x16xbf16>
    %160 = vector.shape_cast %159 : vector<1x16x16xbf16> to vector<16x16xbf16>
    %c0_203 = arith.constant 0 : index
    %c3_204 = arith.constant 3 : index
    %c0_205 = arith.constant 0 : index
    %c1_206 = arith.constant 1 : index
    %161 = vector.load %arg1[%c0_203, %c3_204, %c0_205, %c1_206] : memref<1x4x16x10xbf16, #tpu.memory_space<vmem>>, vector<1x1x16x8xbf16>
    %162 = vector.shape_cast %161 : vector<1x1x16x8xbf16> to vector<16x8xbf16>
    %cst_207 = arith.constant dense<0.000000e+00> : vector<16x8xf32>
    %163 = tpu.matmul %160, %162, %cst_207 {dimension_numbers = #tpu.dot_dimension_numbers<[1], [0], [0], [1], [0, 0, 1, 1], [], []>} : vector<16x16xbf16>, vector<16x8xbf16>, vector<16x8xf32> -> vector<16x8xf32>
    %164 = arith.addf %158, %163 : vector<16x8xf32>
    %c4_208 = arith.constant 4 : index
    %c0_209 = arith.constant 0 : index
    %c0_210 = arith.constant 0 : index
    %165 = vector.load %arg2[%c4_208, %c0_209, %c0_210] : memref<7x16x16xbf16, #tpu.memory_space<vmem>>, vector<1x16x16xbf16>
    %166 = vector.shape_cast %165 : vector<1x16x16xbf16> to vector<16x16xbf16>
    %c0_211 = arith.constant 0 : index
    %c0_212 = arith.constant 0 : index
    %c0_213 = arith.constant 0 : index
    %c2_214 = arith.constant 2 : index
    %167 = vector.load %arg1[%c0_211, %c0_212, %c0_213, %c2_214] : memref<1x4x16x10xbf16, #tpu.memory_space<vmem>>, vector<1x1x16x8xbf16>
    %168 = vector.shape_cast %167 : vector<1x1x16x8xbf16> to vector<16x8xbf16>
    %cst_215 = arith.constant dense<0.000000e+00> : vector<16x8xf32>
    %169 = tpu.matmul %166, %168, %cst_215 {dimension_numbers = #tpu.dot_dimension_numbers<[1], [0], [0], [1], [0, 0, 1, 1], [], []>} : vector<16x16xbf16>, vector<16x8xbf16>, vector<16x8xf32> -> vector<16x8xf32>
    %170 = arith.addf %164, %169 : vector<16x8xf32>
    %c5_216 = arith.constant 5 : index
    %c0_217 = arith.constant 0 : index
    %c0_218 = arith.constant 0 : index
    %171 = vector.load %arg2[%c5_216, %c0_217, %c0_218] : memref<7x16x16xbf16, #tpu.memory_space<vmem>>, vector<1x16x16xbf16>
    %172 = vector.shape_cast %171 : vector<1x16x16xbf16> to vector<16x16xbf16>
    %c0_219 = arith.constant 0 : index
    %c1_220 = arith.constant 1 : index
    %c0_221 = arith.constant 0 : index
    %c2_222 = arith.constant 2 : index
    %173 = vector.load %arg1[%c0_219, %c1_220, %c0_221, %c2_222] : memref<1x4x16x10xbf16, #tpu.memory_space<vmem>>, vector<1x1x16x8xbf16>
    %174 = vector.shape_cast %173 : vector<1x1x16x8xbf16> to vector<16x8xbf16>
    %cst_223 = arith.constant dense<0.000000e+00> : vector<16x8xf32>
    %175 = tpu.matmul %172, %174, %cst_223 {dimension_numbers = #tpu.dot_dimension_numbers<[1], [0], [0], [1], [0, 0, 1, 1], [], []>} : vector<16x16xbf16>, vector<16x8xbf16>, vector<16x8xf32> -> vector<16x8xf32>
    %176 = arith.addf %170, %175 : vector<16x8xf32>
    %c6_224 = arith.constant 6 : index
    %c0_225 = arith.constant 0 : index
    %c0_226 = arith.constant 0 : index
    %177 = vector.load %arg2[%c6_224, %c0_225, %c0_226] : memref<7x16x16xbf16, #tpu.memory_space<vmem>>, vector<1x16x16xbf16>
    %178 = vector.shape_cast %177 : vector<1x16x16xbf16> to vector<16x16xbf16>
    %c0_227 = arith.constant 0 : index
    %c2_228 = arith.constant 2 : index
    %c0_229 = arith.constant 0 : index
    %c2_230 = arith.constant 2 : index
    %179 = vector.load %arg1[%c0_227, %c2_228, %c0_229, %c2_230] : memref<1x4x16x10xbf16, #tpu.memory_space<vmem>>, vector<1x1x16x8xbf16>
    %180 = vector.shape_cast %179 : vector<1x1x16x8xbf16> to vector<16x8xbf16>
    %cst_231 = arith.constant dense<0.000000e+00> : vector<16x8xf32>
    %181 = tpu.matmul %178, %180, %cst_231 {dimension_numbers = #tpu.dot_dimension_numbers<[1], [0], [0], [1], [0, 0, 1, 1], [], []>} : vector<16x16xbf16>, vector<16x8xbf16>, vector<16x8xf32> -> vector<16x8xf32>
    %182 = arith.addf %176, %181 : vector<16x8xf32>
    %183 = vector.broadcast %6 : vector<16x1xf32> to vector<16x8xf32>
    %184 = arith.addf %182, %183 : vector<16x8xf32>
    %cst_232 = arith.constant 0.000000e+00 : f32
    %185 = vector.broadcast %cst_232 : f32 to vector<16x8xf32>
    %186 = arith.maximumf %184, %185 : vector<16x8xf32>
    %187 = arith.truncf %51 : vector<16x8xf32> to vector<16x8xbf16>
    %c0_233 = arith.constant 0 : index
    %c0_234 = arith.constant 0 : index
    %c1_235 = arith.constant 1 : index
    %188 = vector.load %arg20[%c0_233, %c0_234, %c1_235] : memref<4x16x10xbf16, #tpu.memory_space<vmem>>, vector<1x16x8xbf16>
    %189 = vector.shape_cast %188 : vector<1x16x8xbf16> to vector<16x8xbf16>
    %190 = vector.shape_cast %187 : vector<16x8xbf16> to vector<1x16x8xbf16>
    tpu.vector_store %arg20[%c0_233, %c0_234, %c1_235], %190 {strides = array<i32>} : memref<4x16x10xbf16, #tpu.memory_space<vmem>>, vector<1x16x8xbf16>,
    %191 = arith.truncf %96 : vector<16x8xf32> to vector<16x8xbf16>
    %c1_236 = arith.constant 1 : index
    %c0_237 = arith.constant 0 : index
    %c1_238 = arith.constant 1 : index
    %192 = vector.load %arg20[%c1_236, %c0_237, %c1_238] : memref<4x16x10xbf16, #tpu.memory_space<vmem>>, vector<1x16x8xbf16>
    %193 = vector.shape_cast %192 : vector<1x16x8xbf16> to vector<16x8xbf16>
    %194 = vector.shape_cast %191 : vector<16x8xbf16> to vector<1x16x8xbf16>
    tpu.vector_store %arg20[%c1_236, %c0_237, %c1_238], %194 {strides = array<i32>} : memref<4x16x10xbf16, #tpu.memory_space<vmem>>, vector<1x16x8xbf16>,
    %195 = arith.truncf %141 : vector<16x8xf32> to vector<16x8xbf16>
    %c2_239 = arith.constant 2 : index
    %c0_240 = arith.constant 0 : index
    %c1_241 = arith.constant 1 : index
    %196 = vector.load %arg20[%c2_239, %c0_240, %c1_241] : memref<4x16x10xbf16, #tpu.memory_space<vmem>>, vector<1x16x8xbf16>
    %197 = vector.shape_cast %196 : vector<1x16x8xbf16> to vector<16x8xbf16>
    %198 = vector.shape_cast %195 : vector<16x8xbf16> to vector<1x16x8xbf16>
    tpu.vector_store %arg20[%c2_239, %c0_240, %c1_241], %198 {strides = array<i32>} : memref<4x16x10xbf16, #tpu.memory_space<vmem>>, vector<1x16x8xbf16>,
    %199 = arith.truncf %186 : vector<16x8xf32> to vector<16x8xbf16>
    %c3_242 = arith.constant 3 : index
    %c0_243 = arith.constant 0 : index
    %c1_244 = arith.constant 1 : index
    %200 = vector.load %arg20[%c3_242, %c0_243, %c1_244] : memref<4x16x10xbf16, #tpu.memory_space<vmem>>, vector<1x16x8xbf16>
    %201 = vector.shape_cast %200 : vector<1x16x8xbf16> to vector<16x8xbf16>
    %202 = vector.shape_cast %199 : vector<16x8xbf16> to vector<1x16x8xbf16>
    tpu.vector_store %arg20[%c3_242, %c0_243, %c1_244], %202 {strides = array<i32>} : memref<4x16x10xbf16, #tpu.memory_space<vmem>>, vector<1x16x8xbf16>,
    %c0_245 = arith.constant 0 : index
    %c0_246 = arith.constant 0 : index
    %203 = vector.load %arg5[%c0_245, %c0_246] : memref<32x1xf32, #tpu.memory_space<vmem>>, vector<32x1xf32>
    %c0_247 = arith.constant 0 : index
    %c0_248 = arith.constant 0 : index
    %c0_249 = arith.constant 0 : index
    %204 = vector.load %arg4[%c0_247, %c0_248, %c0_249] : memref<5x32x16xbf16, #tpu.memory_space<vmem>>, vector<1x32x16xbf16>
    %205 = vector.shape_cast %204 : vector<1x32x16xbf16> to vector<32x16xbf16>
    %c2_250 = arith.constant 2 : index
    %c0_251 = arith.constant 0 : index
    %c0_252 = arith.constant 0 : index
    %206 = vector.load %arg20[%c2_250, %c0_251, %c0_252] : memref<4x16x10xbf16, #tpu.memory_space<vmem>>, vector<1x16x8xbf16>
    %207 = vector.shape_cast %206 : vector<1x16x8xbf16> to vector<16x8xbf16>
    %cst_253 = arith.constant dense<0.000000e+00> : vector<32x8xf32>
    %208 = tpu.matmul %205, %207, %cst_253 {dimension_numbers = #tpu.dot_dimension_numbers<[1], [0], [0], [1], [0, 0, 1, 1], [], []>} : vector<32x16xbf16>, vector<16x8xbf16>, vector<32x8xf32> -> vector<32x8xf32>
    %c1_254 = arith.constant 1 : index
    %c0_255 = arith.constant 0 : index
    %c0_256 = arith.constant 0 : index
    %209 = vector.load %arg4[%c1_254, %c0_255, %c0_256] : memref<5x32x16xbf16, #tpu.memory_space<vmem>>, vector<1x32x16xbf16>
    %210 = vector.shape_cast %209 : vector<1x32x16xbf16> to vector<32x16xbf16>
    %c3_257 = arith.constant 3 : index
    %c0_258 = arith.constant 0 : index
    %c0_259 = arith.constant 0 : index
    %211 = vector.load %arg20[%c3_257, %c0_258, %c0_259] : memref<4x16x10xbf16, #tpu.memory_space<vmem>>, vector<1x16x8xbf16>
    %212 = vector.shape_cast %211 : vector<1x16x8xbf16> to vector<16x8xbf16>
    %cst_260 = arith.constant dense<0.000000e+00> : vector<32x8xf32>
    %213 = tpu.matmul %210, %212, %cst_260 {dimension_numbers = #tpu.dot_dimension_numbers<[1], [0], [0], [1], [0, 0, 1, 1], [], []>} : vector<32x16xbf16>, vector<16x8xbf16>, vector<32x8xf32> -> vector<32x8xf32>
    %214 = arith.addf %208, %213 : vector<32x8xf32>
    %c2_261 = arith.constant 2 : index
    %c0_262 = arith.constant 0 : index
    %c0_263 = arith.constant 0 : index
    %215 = vector.load %arg4[%c2_261, %c0_262, %c0_263] : memref<5x32x16xbf16, #tpu.memory_space<vmem>>, vector<1x32x16xbf16>
    %216 = vector.shape_cast %215 : vector<1x32x16xbf16> to vector<32x16xbf16>
    %c0_264 = arith.constant 0 : index
    %c0_265 = arith.constant 0 : index
    %c1_266 = arith.constant 1 : index
    %217 = vector.load %arg20[%c0_264, %c0_265, %c1_266] : memref<4x16x10xbf16, #tpu.memory_space<vmem>>, vector<1x16x8xbf16>
    %218 = vector.shape_cast %217 : vector<1x16x8xbf16> to vector<16x8xbf16>
    %cst_267 = arith.constant dense<0.000000e+00> : vector<32x8xf32>
    %219 = tpu.matmul %216, %218, %cst_267 {dimension_numbers = #tpu.dot_dimension_numbers<[1], [0], [0], [1], [0, 0, 1, 1], [], []>} : vector<32x16xbf16>, vector<16x8xbf16>, vector<32x8xf32> -> vector<32x8xf32>
    %220 = arith.addf %214, %219 : vector<32x8xf32>
    %c3_268 = arith.constant 3 : index
    %c0_269 = arith.constant 0 : index
    %c0_270 = arith.constant 0 : index
    %221 = vector.load %arg4[%c3_268, %c0_269, %c0_270] : memref<5x32x16xbf16, #tpu.memory_space<vmem>>, vector<1x32x16xbf16>
    %222 = vector.shape_cast %221 : vector<1x32x16xbf16> to vector<32x16xbf16>
    %c1_271 = arith.constant 1 : index
    %c0_272 = arith.constant 0 : index
    %c1_273 = arith.constant 1 : index
    %223 = vector.load %arg20[%c1_271, %c0_272, %c1_273] : memref<4x16x10xbf16, #tpu.memory_space<vmem>>, vector<1x16x8xbf16>
    %224 = vector.shape_cast %223 : vector<1x16x8xbf16> to vector<16x8xbf16>
    %cst_274 = arith.constant dense<0.000000e+00> : vector<32x8xf32>
    %225 = tpu.matmul %222, %224, %cst_274 {dimension_numbers = #tpu.dot_dimension_numbers<[1], [0], [0], [1], [0, 0, 1, 1], [], []>} : vector<32x16xbf16>, vector<16x8xbf16>, vector<32x8xf32> -> vector<32x8xf32>
    %226 = arith.addf %220, %225 : vector<32x8xf32>
    %c4_275 = arith.constant 4 : index
    %c0_276 = arith.constant 0 : index
    %c0_277 = arith.constant 0 : index
    %227 = vector.load %arg4[%c4_275, %c0_276, %c0_277] : memref<5x32x16xbf16, #tpu.memory_space<vmem>>, vector<1x32x16xbf16>
    %228 = vector.shape_cast %227 : vector<1x32x16xbf16> to vector<32x16xbf16>
    %c2_278 = arith.constant 2 : index
    %c0_279 = arith.constant 0 : index
    %c1_280 = arith.constant 1 : index
    %229 = vector.load %arg20[%c2_278, %c0_279, %c1_280] : memref<4x16x10xbf16, #tpu.memory_space<vmem>>, vector<1x16x8xbf16>
    %230 = vector.shape_cast %229 : vector<1x16x8xbf16> to vector<16x8xbf16>
    %cst_281 = arith.constant dense<0.000000e+00> : vector<32x8xf32>
    %231 = tpu.matmul %228, %230, %cst_281 {dimension_numbers = #tpu.dot_dimension_numbers<[1], [0], [0], [1], [0, 0, 1, 1], [], []>} : vector<32x16xbf16>, vector<16x8xbf16>, vector<32x8xf32> -> vector<32x8xf32>
    %232 = arith.addf %226, %231 : vector<32x8xf32>
    %233 = vector.broadcast %203 : vector<32x1xf32> to vector<32x8xf32>
    %234 = arith.addf %232, %233 : vector<32x8xf32>
    %cst_282 = arith.constant 0.000000e+00 : f32
    %235 = vector.broadcast %cst_282 : f32 to vector<32x8xf32>
    %236 = arith.maximumf %234, %235 : vector<32x8xf32>
    %c0_283 = arith.constant 0 : index
    %c0_284 = arith.constant 0 : index
    %c0_285 = arith.constant 0 : index
    %237 = vector.load %arg4[%c0_283, %c0_284, %c0_285] : memref<5x32x16xbf16, #tpu.memory_space<vmem>>, vector<1x32x16xbf16>
    %238 = vector.shape_cast %237 : vector<1x32x16xbf16> to vector<32x16xbf16>
    %c0_286 = arith.constant 0 : index
    %c0_287 = arith.constant 0 : index
    %c1_288 = arith.constant 1 : index
    %239 = vector.load %arg20[%c0_286, %c0_287, %c1_288] : memref<4x16x10xbf16, #tpu.memory_space<vmem>>, vector<1x16x8xbf16>
    %240 = vector.shape_cast %239 : vector<1x16x8xbf16> to vector<16x8xbf16>
    %cst_289 = arith.constant dense<0.000000e+00> : vector<32x8xf32>
    %241 = tpu.matmul %238, %240, %cst_289 {dimension_numbers = #tpu.dot_dimension_numbers<[1], [0], [0], [1], [0, 0, 1, 1], [], []>} : vector<32x16xbf16>, vector<16x8xbf16>, vector<32x8xf32> -> vector<32x8xf32>
    %c1_290 = arith.constant 1 : index
    %c0_291 = arith.constant 0 : index
    %c0_292 = arith.constant 0 : index
    %242 = vector.load %arg4[%c1_290, %c0_291, %c0_292] : memref<5x32x16xbf16, #tpu.memory_space<vmem>>, vector<1x32x16xbf16>
    %243 = vector.shape_cast %242 : vector<1x32x16xbf16> to vector<32x16xbf16>
    %c1_293 = arith.constant 1 : index
    %c0_294 = arith.constant 0 : index
    %c1_295 = arith.constant 1 : index
    %244 = vector.load %arg20[%c1_293, %c0_294, %c1_295] : memref<4x16x10xbf16, #tpu.memory_space<vmem>>, vector<1x16x8xbf16>
    %245 = vector.shape_cast %244 : vector<1x16x8xbf16> to vector<16x8xbf16>
    %cst_296 = arith.constant dense<0.000000e+00> : vector<32x8xf32>
    %246 = tpu.matmul %243, %245, %cst_296 {dimension_numbers = #tpu.dot_dimension_numbers<[1], [0], [0], [1], [0, 0, 1, 1], [], []>} : vector<32x16xbf16>, vector<16x8xbf16>, vector<32x8xf32> -> vector<32x8xf32>
    %247 = arith.addf %241, %246 : vector<32x8xf32>
    %c2_297 = arith.constant 2 : index
    %c0_298 = arith.constant 0 : index
    %c0_299 = arith.constant 0 : index
    %248 = vector.load %arg4[%c2_297, %c0_298, %c0_299] : memref<5x32x16xbf16, #tpu.memory_space<vmem>>, vector<1x32x16xbf16>
    %249 = vector.shape_cast %248 : vector<1x32x16xbf16> to vector<32x16xbf16>
    %c2_300 = arith.constant 2 : index
    %c0_301 = arith.constant 0 : index
    %c1_302 = arith.constant 1 : index
    %250 = vector.load %arg20[%c2_300, %c0_301, %c1_302] : memref<4x16x10xbf16, #tpu.memory_space<vmem>>, vector<1x16x8xbf16>
    %251 = vector.shape_cast %250 : vector<1x16x8xbf16> to vector<16x8xbf16>
    %cst_303 = arith.constant dense<0.000000e+00> : vector<32x8xf32>
    %252 = tpu.matmul %249, %251, %cst_303 {dimension_numbers = #tpu.dot_dimension_numbers<[1], [0], [0], [1], [0, 0, 1, 1], [], []>} : vector<32x16xbf16>, vector<16x8xbf16>, vector<32x8xf32> -> vector<32x8xf32>
    %253 = arith.addf %247, %252 : vector<32x8xf32>
    %c3_304 = arith.constant 3 : index
    %c0_305 = arith.constant 0 : index
    %c0_306 = arith.constant 0 : index
    %254 = vector.load %arg4[%c3_304, %c0_305, %c0_306] : memref<5x32x16xbf16, #tpu.memory_space<vmem>>, vector<1x32x16xbf16>
    %255 = vector.shape_cast %254 : vector<1x32x16xbf16> to vector<32x16xbf16>
    %c3_307 = arith.constant 3 : index
    %c0_308 = arith.constant 0 : index
    %c1_309 = arith.constant 1 : index
    %256 = vector.load %arg20[%c3_307, %c0_308, %c1_309] : memref<4x16x10xbf16, #tpu.memory_space<vmem>>, vector<1x16x8xbf16>
    %257 = vector.shape_cast %256 : vector<1x16x8xbf16> to vector<16x8xbf16>
    %cst_310 = arith.constant dense<0.000000e+00> : vector<32x8xf32>
    %258 = tpu.matmul %255, %257, %cst_310 {dimension_numbers = #tpu.dot_dimension_numbers<[1], [0], [0], [1], [0, 0, 1, 1], [], []>} : vector<32x16xbf16>, vector<16x8xbf16>, vector<32x8xf32> -> vector<32x8xf32>
    %259 = arith.addf %253, %258 : vector<32x8xf32>
    %c4_311 = arith.constant 4 : index
    %c0_312 = arith.constant 0 : index
    %c0_313 = arith.constant 0 : index
    %260 = vector.load %arg4[%c4_311, %c0_312, %c0_313] : memref<5x32x16xbf16, #tpu.memory_space<vmem>>, vector<1x32x16xbf16>
    %261 = vector.shape_cast %260 : vector<1x32x16xbf16> to vector<32x16xbf16>
    %c0_314 = arith.constant 0 : index
    %c0_315 = arith.constant 0 : index
    %c2_316 = arith.constant 2 : index
    %262 = vector.load %arg20[%c0_314, %c0_315, %c2_316] : memref<4x16x10xbf16, #tpu.memory_space<vmem>>, vector<1x16x8xbf16>
    %263 = vector.shape_cast %262 : vector<1x16x8xbf16> to vector<16x8xbf16>
    %cst_317 = arith.constant dense<0.000000e+00> : vector<32x8xf32>
    %264 = tpu.matmul %261, %263, %cst_317 {dimension_numbers = #tpu.dot_dimension_numbers<[1], [0], [0], [1], [0, 0, 1, 1], [], []>} : vector<32x16xbf16>, vector<16x8xbf16>, vector<32x8xf32> -> vector<32x8xf32>
    %265 = arith.addf %259, %264 : vector<32x8xf32>
    %266 = vector.broadcast %203 : vector<32x1xf32> to vector<32x8xf32>
    %267 = arith.addf %265, %266 : vector<32x8xf32>
    %cst_318 = arith.constant 0.000000e+00 : f32
    %268 = vector.broadcast %cst_318 : f32 to vector<32x8xf32>
    %269 = arith.maximumf %267, %268 : vector<32x8xf32>
    %270 = arith.truncf %236 : vector<32x8xf32> to vector<32x8xbf16>
    %c0_319 = arith.constant 0 : index
    %c0_320 = arith.constant 0 : index
    %c1_321 = arith.constant 1 : index
    %271 = vector.load %arg21[%c0_319, %c0_320, %c1_321] : memref<2x32x10xbf16, #tpu.memory_space<vmem>>, vector<1x32x8xbf16>
    %272 = vector.shape_cast %271 : vector<1x32x8xbf16> to vector<32x8xbf16>
    %273 = vector.shape_cast %270 : vector<32x8xbf16> to vector<1x32x8xbf16>
    tpu.vector_store %arg21[%c0_319, %c0_320, %c1_321], %273 {strides = array<i32>} : memref<2x32x10xbf16, #tpu.memory_space<vmem>>, vector<1x32x8xbf16>,
    %274 = arith.truncf %269 : vector<32x8xf32> to vector<32x8xbf16>
    %c1_322 = arith.constant 1 : index
    %c0_323 = arith.constant 0 : index
    %c1_324 = arith.constant 1 : index
    %275 = vector.load %arg21[%c1_322, %c0_323, %c1_324] : memref<2x32x10xbf16, #tpu.memory_space<vmem>>, vector<1x32x8xbf16>
    %276 = vector.shape_cast %275 : vector<1x32x8xbf16> to vector<32x8xbf16>
    %277 = vector.shape_cast %274 : vector<32x8xbf16> to vector<1x32x8xbf16>
    tpu.vector_store %arg21[%c1_322, %c0_323, %c1_324], %277 {strides = array<i32>} : memref<2x32x10xbf16, #tpu.memory_space<vmem>>, vector<1x32x8xbf16>,
    %c0_325 = arith.constant 0 : index
    %c0_326 = arith.constant 0 : index
    %278 = vector.load %arg7[%c0_325, %c0_326] : memref<32x1xf32, #tpu.memory_space<vmem>>, vector<32x1xf32>
    %c0_327 = arith.constant 0 : index
    %c0_328 = arith.constant 0 : index
    %c0_329 = arith.constant 0 : index
    %279 = vector.load %arg6[%c0_327, %c0_328, %c0_329] : memref<3x32x32xbf16, #tpu.memory_space<vmem>>, vector<1x32x32xbf16>
    %280 = vector.shape_cast %279 : vector<1x32x32xbf16> to vector<32x32xbf16>
    %c1_330 = arith.constant 1 : index
    %c0_331 = arith.constant 0 : index
    %c0_332 = arith.constant 0 : index
    %281 = vector.load %arg21[%c1_330, %c0_331, %c0_332] : memref<2x32x10xbf16, #tpu.memory_space<vmem>>, vector<1x32x8xbf16>
    %282 = vector.shape_cast %281 : vector<1x32x8xbf16> to vector<32x8xbf16>
    %cst_333 = arith.constant dense<0.000000e+00> : vector<32x8xf32>
    %283 = tpu.matmul %280, %282, %cst_333 {dimension_numbers = #tpu.dot_dimension_numbers<[1], [0], [0], [1], [0, 0, 1, 1], [], []>} : vector<32x32xbf16>, vector<32x8xbf16>, vector<32x8xf32> -> vector<32x8xf32>
    %c1_334 = arith.constant 1 : index
    %c0_335 = arith.constant 0 : index
    %c0_336 = arith.constant 0 : index
    %284 = vector.load %arg6[%c1_334, %c0_335, %c0_336] : memref<3x32x32xbf16, #tpu.memory_space<vmem>>, vector<1x32x32xbf16>
    %285 = vector.shape_cast %284 : vector<1x32x32xbf16> to vector<32x32xbf16>
    %c0_337 = arith.constant 0 : index
    %c0_338 = arith.constant 0 : index
    %c1_339 = arith.constant 1 : index
    %286 = vector.load %arg21[%c0_337, %c0_338, %c1_339] : memref<2x32x10xbf16, #tpu.memory_space<vmem>>, vector<1x32x8xbf16>
    %287 = vector.shape_cast %286 : vector<1x32x8xbf16> to vector<32x8xbf16>
    %cst_340 = arith.constant dense<0.000000e+00> : vector<32x8xf32>
    %288 = tpu.matmul %285, %287, %cst_340 {dimension_numbers = #tpu.dot_dimension_numbers<[1], [0], [0], [1], [0, 0, 1, 1], [], []>} : vector<32x32xbf16>, vector<32x8xbf16>, vector<32x8xf32> -> vector<32x8xf32>
    %289 = arith.addf %283, %288 : vector<32x8xf32>
    %c2_341 = arith.constant 2 : index
    %c0_342 = arith.constant 0 : index
    %c0_343 = arith.constant 0 : index
    %290 = vector.load %arg6[%c2_341, %c0_342, %c0_343] : memref<3x32x32xbf16, #tpu.memory_space<vmem>>, vector<1x32x32xbf16>
    %291 = vector.shape_cast %290 : vector<1x32x32xbf16> to vector<32x32xbf16>
    %c1_344 = arith.constant 1 : index
    %c0_345 = arith.constant 0 : index
    %c1_346 = arith.constant 1 : index
    %292 = vector.load %arg21[%c1_344, %c0_345, %c1_346] : memref<2x32x10xbf16, #tpu.memory_space<vmem>>, vector<1x32x8xbf16>
    %293 = vector.shape_cast %292 : vector<1x32x8xbf16> to vector<32x8xbf16>
    %cst_347 = arith.constant dense<0.000000e+00> : vector<32x8xf32>
    %294 = tpu.matmul %291, %293, %cst_347 {dimension_numbers = #tpu.dot_dimension_numbers<[1], [0], [0], [1], [0, 0, 1, 1], [], []>} : vector<32x32xbf16>, vector<32x8xbf16>, vector<32x8xf32> -> vector<32x8xf32>
    %295 = arith.addf %289, %294 : vector<32x8xf32>
    %296 = vector.broadcast %278 : vector<32x1xf32> to vector<32x8xf32>
    %297 = arith.addf %295, %296 : vector<32x8xf32>
    %cst_348 = arith.constant 0.000000e+00 : f32
    %298 = vector.broadcast %cst_348 : f32 to vector<32x8xf32>
    %299 = arith.maximumf %297, %298 : vector<32x8xf32>
    %300 = arith.truncf %299 : vector<32x8xf32> to vector<32x8xbf16>
    %c0_349 = arith.constant 0 : index
    %c1_350 = arith.constant 1 : index
    %301 = vector.load %arg22[%c0_349, %c1_350] : memref<32x10xbf16, #tpu.memory_space<vmem>>, vector<32x8xbf16>
    tpu.vector_store %arg22[%c0_349, %c1_350], %300 {strides = array<i32>} : memref<32x10xbf16, #tpu.memory_space<vmem>>, vector<32x8xbf16>,
    %c0_351 = arith.constant 0 : index
    %c0_352 = arith.constant 0 : index
    %c0_353 = arith.constant 0 : index
    %302 = vector.load %arg9[%c0_351, %c0_352, %c0_353] : memref<2x8x1xf32, #tpu.memory_space<vmem>>, vector<1x8x1xf32>
    %303 = vector.shape_cast %302 : vector<1x8x1xf32> to vector<8x1xf32>
    %c0_354 = arith.constant 0 : index
    %c0_355 = arith.constant 0 : index
    %c0_356 = arith.constant 0 : index
    %c0_357 = arith.constant 0 : index
    %304 = vector.load %arg8[%c0_354, %c0_355, %c0_356, %c0_357] : memref<2x3x8x32xbf16, #tpu.memory_space<vmem>>, vector<1x1x8x32xbf16>
    %305 = vector.shape_cast %304 : vector<1x1x8x32xbf16> to vector<8x32xbf16>
    %c0_358 = arith.constant 0 : index
    %c0_359 = arith.constant 0 : index
    %306 = vector.load %arg22[%c0_358, %c0_359] : memref<32x10xbf16, #tpu.memory_space<vmem>>, vector<32x8xbf16>
    %cst_360 = arith.constant dense<0.000000e+00> : vector<8x8xf32>
    %307 = tpu.matmul %305, %306, %cst_360 {dimension_numbers = #tpu.dot_dimension_numbers<[1], [0], [0], [1], [0, 0, 1, 1], [], []>} : vector<8x32xbf16>, vector<32x8xbf16>, vector<8x8xf32> -> vector<8x8xf32>
    %c0_361 = arith.constant 0 : index
    %c1_362 = arith.constant 1 : index
    %c0_363 = arith.constant 0 : index
    %c0_364 = arith.constant 0 : index
    %308 = vector.load %arg8[%c0_361, %c1_362, %c0_363, %c0_364] : memref<2x3x8x32xbf16, #tpu.memory_space<vmem>>, vector<1x1x8x32xbf16>
    %309 = vector.shape_cast %308 : vector<1x1x8x32xbf16> to vector<8x32xbf16>
    %c0_365 = arith.constant 0 : index
    %c1_366 = arith.constant 1 : index
    %310 = vector.load %arg22[%c0_365, %c1_366] : memref<32x10xbf16, #tpu.memory_space<vmem>>, vector<32x8xbf16>
    %cst_367 = arith.constant dense<0.000000e+00> : vector<8x8xf32>
    %311 = tpu.matmul %309, %310, %cst_367 {dimension_numbers = #tpu.dot_dimension_numbers<[1], [0], [0], [1], [0, 0, 1, 1], [], []>} : vector<8x32xbf16>, vector<32x8xbf16>, vector<8x8xf32> -> vector<8x8xf32>
    %312 = arith.addf %307, %311 : vector<8x8xf32>
    %c0_368 = arith.constant 0 : index
    %c2_369 = arith.constant 2 : index
    %c0_370 = arith.constant 0 : index
    %c0_371 = arith.constant 0 : index
    %313 = vector.load %arg8[%c0_368, %c2_369, %c0_370, %c0_371] : memref<2x3x8x32xbf16, #tpu.memory_space<vmem>>, vector<1x1x8x32xbf16>
    %314 = vector.shape_cast %313 : vector<1x1x8x32xbf16> to vector<8x32xbf16>
    %c0_372 = arith.constant 0 : index
    %c2_373 = arith.constant 2 : index
    %315 = vector.load %arg22[%c0_372, %c2_373] : memref<32x10xbf16, #tpu.memory_space<vmem>>, vector<32x8xbf16>
    %cst_374 = arith.constant dense<0.000000e+00> : vector<8x8xf32>
    %316 = tpu.matmul %314, %315, %cst_374 {dimension_numbers = #tpu.dot_dimension_numbers<[1], [0], [0], [1], [0, 0, 1, 1], [], []>} : vector<8x32xbf16>, vector<32x8xbf16>, vector<8x8xf32> -> vector<8x8xf32>
    %317 = arith.addf %312, %316 : vector<8x8xf32>
    %318 = vector.broadcast %303 : vector<8x1xf32> to vector<8x8xf32>
    %319 = arith.addf %317, %318 : vector<8x8xf32>
    %cst_375 = arith.constant 0.000000e+00 : f32
    %320 = vector.broadcast %cst_375 : f32 to vector<8x8xf32>
    %321 = arith.maximumf %319, %320 : vector<8x8xf32>
    %322 = arith.truncf %321 : vector<8x8xf32> to vector<8x8xbf16>
    %c0_376 = arith.constant 0 : index
    %c0_377 = arith.constant 0 : index
    %c0_378 = arith.constant 0 : index
    %c0_379 = arith.constant 0 : index
    %323 = vector.load %arg10[%c0_376, %c0_377, %c0_378, %c0_379] : memref<2x1x32x8xbf16, #tpu.memory_space<vmem>>, vector<1x1x32x8xbf16>
    %324 = vector.shape_cast %323 : vector<1x1x32x8xbf16> to vector<32x8xbf16>
    %cst_380 = arith.constant dense<0.000000e+00> : vector<32x8xf32>
    %325 = tpu.matmul %324, %322, %cst_380 {dimension_numbers = #tpu.dot_dimension_numbers<[1], [0], [0], [1], [0, 0, 1, 1], [], []>} : vector<32x8xbf16>, vector<8x8xbf16>, vector<32x8xf32> -> vector<32x8xf32>
    %c0_381 = arith.constant 0 : index
    %c0_382 = arith.constant 0 : index
    %c0_383 = arith.constant 0 : index
    %326 = vector.load %arg11[%c0_381, %c0_382, %c0_383] : memref<2x32x1xf32, #tpu.memory_space<vmem>>, vector<1x32x1xf32>
    %327 = vector.shape_cast %326 : vector<1x32x1xf32> to vector<32x1xf32>
    %328 = vector.broadcast %327 : vector<32x1xf32> to vector<32x8xf32>
    %329 = arith.addf %325, %328 : vector<32x8xf32>
    %330 = arith.addf %297, %329 : vector<32x8xf32>
    %cst_384 = arith.constant 0.000000e+00 : f32
    %331 = vector.broadcast %cst_384 : f32 to vector<32x8xf32>
    %332 = arith.maximumf %330, %331 : vector<32x8xf32>
    %333 = arith.truncf %332 : vector<32x8xf32> to vector<32x8xbf16>
    %c0_385 = arith.constant 0 : index
    %c1_386 = arith.constant 1 : index
    %334 = vector.load %arg22[%c0_385, %c1_386] : memref<32x10xbf16, #tpu.memory_space<vmem>>, vector<32x8xbf16>
    tpu.vector_store %arg22[%c0_385, %c1_386], %333 {strides = array<i32>} : memref<32x10xbf16, #tpu.memory_space<vmem>>, vector<32x8xbf16>,
    %c1_387 = arith.constant 1 : index
    %c0_388 = arith.constant 0 : index
    %c0_389 = arith.constant 0 : index
    %335 = vector.load %arg9[%c1_387, %c0_388, %c0_389] : memref<2x8x1xf32, #tpu.memory_space<vmem>>, vector<1x8x1xf32>
    %336 = vector.shape_cast %335 : vector<1x8x1xf32> to vector<8x1xf32>
    %c1_390 = arith.constant 1 : index
    %c0_391 = arith.constant 0 : index
    %c0_392 = arith.constant 0 : index
    %c0_393 = arith.constant 0 : index
    %337 = vector.load %arg8[%c1_390, %c0_391, %c0_392, %c0_393] : memref<2x3x8x32xbf16, #tpu.memory_space<vmem>>, vector<1x1x8x32xbf16>
    %338 = vector.shape_cast %337 : vector<1x1x8x32xbf16> to vector<8x32xbf16>
    %c0_394 = arith.constant 0 : index
    %c0_395 = arith.constant 0 : index
    %339 = vector.load %arg22[%c0_394, %c0_395] : memref<32x10xbf16, #tpu.memory_space<vmem>>, vector<32x8xbf16>
    %cst_396 = arith.constant dense<0.000000e+00> : vector<8x8xf32>
    %340 = tpu.matmul %338, %339, %cst_396 {dimension_numbers = #tpu.dot_dimension_numbers<[1], [0], [0], [1], [0, 0, 1, 1], [], []>} : vector<8x32xbf16>, vector<32x8xbf16>, vector<8x8xf32> -> vector<8x8xf32>
    %c1_397 = arith.constant 1 : index
    %c1_398 = arith.constant 1 : index
    %c0_399 = arith.constant 0 : index
    %c0_400 = arith.constant 0 : index
    %341 = vector.load %arg8[%c1_397, %c1_398, %c0_399, %c0_400] : memref<2x3x8x32xbf16, #tpu.memory_space<vmem>>, vector<1x1x8x32xbf16>
    %342 = vector.shape_cast %341 : vector<1x1x8x32xbf16> to vector<8x32xbf16>
    %c0_401 = arith.constant 0 : index
    %c1_402 = arith.constant 1 : index
    %343 = vector.load %arg22[%c0_401, %c1_402] : memref<32x10xbf16, #tpu.memory_space<vmem>>, vector<32x8xbf16>
    %cst_403 = arith.constant dense<0.000000e+00> : vector<8x8xf32>
    %344 = tpu.matmul %342, %343, %cst_403 {dimension_numbers = #tpu.dot_dimension_numbers<[1], [0], [0], [1], [0, 0, 1, 1], [], []>} : vector<8x32xbf16>, vector<32x8xbf16>, vector<8x8xf32> -> vector<8x8xf32>
    %345 = arith.addf %340, %344 : vector<8x8xf32>
    %c1_404 = arith.constant 1 : index
    %c2_405 = arith.constant 2 : index
    %c0_406 = arith.constant 0 : index
    %c0_407 = arith.constant 0 : index
    %346 = vector.load %arg8[%c1_404, %c2_405, %c0_406, %c0_407] : memref<2x3x8x32xbf16, #tpu.memory_space<vmem>>, vector<1x1x8x32xbf16>
    %347 = vector.shape_cast %346 : vector<1x1x8x32xbf16> to vector<8x32xbf16>
    %c0_408 = arith.constant 0 : index
    %c2_409 = arith.constant 2 : index
    %348 = vector.load %arg22[%c0_408, %c2_409] : memref<32x10xbf16, #tpu.memory_space<vmem>>, vector<32x8xbf16>
    %cst_410 = arith.constant dense<0.000000e+00> : vector<8x8xf32>
    %349 = tpu.matmul %347, %348, %cst_410 {dimension_numbers = #tpu.dot_dimension_numbers<[1], [0], [0], [1], [0, 0, 1, 1], [], []>} : vector<8x32xbf16>, vector<32x8xbf16>, vector<8x8xf32> -> vector<8x8xf32>
    %350 = arith.addf %345, %349 : vector<8x8xf32>
    %351 = vector.broadcast %336 : vector<8x1xf32> to vector<8x8xf32>
    %352 = arith.addf %350, %351 : vector<8x8xf32>
    %cst_411 = arith.constant 0.000000e+00 : f32
    %353 = vector.broadcast %cst_411 : f32 to vector<8x8xf32>
    %354 = arith.maximumf %352, %353 : vector<8x8xf32>
    %355 = arith.truncf %354 : vector<8x8xf32> to vector<8x8xbf16>
    %c1_412 = arith.constant 1 : index
    %c0_413 = arith.constant 0 : index
    %c0_414 = arith.constant 0 : index
    %c0_415 = arith.constant 0 : index
    %356 = vector.load %arg10[%c1_412, %c0_413, %c0_414, %c0_415] : memref<2x1x32x8xbf16, #tpu.memory_space<vmem>>, vector<1x1x32x8xbf16>
    %357 = vector.shape_cast %356 : vector<1x1x32x8xbf16> to vector<32x8xbf16>
    %cst_416 = arith.constant dense<0.000000e+00> : vector<32x8xf32>
    %358 = tpu.matmul %357, %355, %cst_416 {dimension_numbers = #tpu.dot_dimension_numbers<[1], [0], [0], [1], [0, 0, 1, 1], [], []>} : vector<32x8xbf16>, vector<8x8xbf16>, vector<32x8xf32> -> vector<32x8xf32>
    %c1_417 = arith.constant 1 : index
    %c0_418 = arith.constant 0 : index
    %c0_419 = arith.constant 0 : index
    %359 = vector.load %arg11[%c1_417, %c0_418, %c0_419] : memref<2x32x1xf32, #tpu.memory_space<vmem>>, vector<1x32x1xf32>
    %360 = vector.shape_cast %359 : vector<1x32x1xf32> to vector<32x1xf32>
    %361 = vector.broadcast %360 : vector<32x1xf32> to vector<32x8xf32>
    %362 = arith.addf %358, %361 : vector<32x8xf32>
    %363 = arith.addf %330, %362 : vector<32x8xf32>
    %c0_420 = arith.constant 0 : index
    %c0_421 = arith.constant 0 : index
    %364 = vector.load %arg12[%c0_420, %c0_421] : memref<16x32xbf16, #tpu.memory_space<vmem>>, vector<16x32xbf16>
    %365 = arith.truncf %363 : vector<32x8xf32> to vector<32x8xbf16>
    %cst_422 = arith.constant dense<0.000000e+00> : vector<16x8xf32>
    %366 = tpu.matmul %364, %365, %cst_422 {dimension_numbers = #tpu.dot_dimension_numbers<[1], [0], [0], [1], [0, 0, 1, 1], [], []>} : vector<16x32xbf16>, vector<32x8xbf16>, vector<16x8xf32> -> vector<16x8xf32>
    %c0_423 = arith.constant 0 : index
    %c0_424 = arith.constant 0 : index
    %367 = vector.load %arg13[%c0_423, %c0_424] : memref<16x1xf32, #tpu.memory_space<vmem>>, vector<16x1xf32>
    %368 = vector.broadcast %367 : vector<16x1xf32> to vector<16x8xf32>
    %369 = arith.addf %366, %368 : vector<16x8xf32>
    %370 = arith.mulf %369, %369 : vector<16x8xf32>
    %cst_425 = arith.constant dense<0.000000e+00> : vector<8xf32>
    %371 = vector.multi_reduction <add>, %370, %cst_425 [0] : vector<16x8xf32> to vector<8xf32>
    %372 = vector.shape_cast %371 : vector<8xf32> to vector<1x8xf32>
    %c0_426 = arith.constant 0 : index
    %c0_427 = arith.constant 0 : index
    %373 = vector.load %arg14[%c0_426, %c0_427] : memref<32x16xf32, #tpu.memory_space<vmem>>, vector<32x16xf32>
    %cst_428 = arith.constant dense<0.000000e+00> : vector<32x8xf32>
    %374 = tpu.matmul %373, %369, %cst_428 {dimension_numbers = #tpu.dot_dimension_numbers<[1], [0], [0], [1], [0, 0, 1, 1], [], []>} : vector<32x16xf32>, vector<16x8xf32>, vector<32x8xf32> -> vector<32x8xf32>
    %c0_429 = arith.constant 0 : index
    %c0_430 = arith.constant 0 : index
    %375 = vector.load %arg16[%c0_429, %c0_430] : memref<32x1xf32, #tpu.memory_space<vmem>>, vector<32x1xf32>
    %cst_431 = arith.constant 2.000000e+00 : f32
    %376 = vector.broadcast %cst_431 : f32 to vector<32x8xf32>
    %377 = arith.mulf %376, %374 : vector<32x8xf32>
    %378 = vector.broadcast %375 : vector<32x1xf32> to vector<32x8xf32>
    %379 = arith.subf %378, %377 : vector<32x8xf32>
    %380 = vector.broadcast %372 : vector<1x8xf32> to vector<32x8xf32>
    %381 = arith.addf %379, %380 : vector<32x8xf32>
    %cst_432 = arith.constant dense<0x7F800000> : vector<8xf32>
    %382 = vector.multi_reduction <minimumf>, %381, %cst_432 [0] : vector<32x8xf32> to vector<8xf32>
    %383 = vector.shape_cast %382 : vector<8xf32> to vector<1x8xf32>
    %384 = tpu.iota {dimensions = array<i32: 0>} : vector<32x8xi32>
    %385 = vector.broadcast %383 : vector<1x8xf32> to vector<32x8xf32>
    %386 = arith.cmpf ole, %381, %385 : vector<32x8xf32>
    %c32_i32 = arith.constant 32 : i32
    %387 = vector.broadcast %c32_i32 : i32 to vector<32x8xi32>
    %388 = arith.select %386, %384, %387 : vector<32x8xi1>, vector<32x8xi32>
    %cst_433 = arith.constant dense<2147483647> : vector<8xi32>
    %389 = vector.multi_reduction <minsi>, %388, %cst_433 [0] : vector<32x8xi32> to vector<8xi32>
    %390 = vector.shape_cast %389 : vector<8xi32> to vector<1x8xi32>
    %391 = vector.broadcast %390 : vector<1x8xi32> to vector<32x8xi32>
    %392 = arith.cmpi eq, %384, %391 : vector<32x8xi32>
    %393 = arith.extui %392 : vector<32x8xi1> to vector<32x8xi32>
    %394 = arith.sitofp %393 : vector<32x8xi32> to vector<32x8xf32>
    %c0_434 = arith.constant 0 : index
    %c0_435 = arith.constant 0 : index
    %395 = vector.load %arg15[%c0_434, %c0_435] : memref<16x32xf32, #tpu.memory_space<vmem>>, vector<16x32xf32>
    %cst_436 = arith.constant dense<0.000000e+00> : vector<16x8xf32>
    %396 = tpu.matmul %395, %394, %cst_436 {dimension_numbers = #tpu.dot_dimension_numbers<[1], [0], [0], [1], [0, 0, 1, 1], [], []>} : vector<16x32xf32>, vector<32x8xf32>, vector<16x8xf32> -> vector<16x8xf32>
    %c0_437 = arith.constant 0 : index
    %c0_438 = arith.constant 0 : index
    %c0_439 = arith.constant 0 : index
    %397 = vector.load %arg17[%c0_437, %c0_438, %c0_439] : memref<1x16x8xf32, #tpu.memory_space<vmem>>, vector<1x16x8xf32>
    %398 = vector.shape_cast %397 : vector<1x16x8xf32> to vector<16x8xf32>
    %399 = vector.shape_cast %369 : vector<16x8xf32> to vector<1x16x8xf32>
    tpu.vector_store %arg17[%c0_437, %c0_438, %c0_439], %399 {strides = array<i32>} : memref<1x16x8xf32, #tpu.memory_space<vmem>>, vector<1x16x8xf32>,
    %c0_440 = arith.constant 0 : index
    %c0_441 = arith.constant 0 : index
    %c0_442 = arith.constant 0 : index
    %400 = vector.load %arg18[%c0_440, %c0_441, %c0_442] : memref<1x16x8xf32, #tpu.memory_space<vmem>>, vector<1x16x8xf32>
    %401 = vector.shape_cast %400 : vector<1x16x8xf32> to vector<16x8xf32>
    %402 = vector.shape_cast %396 : vector<16x8xf32> to vector<1x16x8xf32>
    tpu.vector_store %arg18[%c0_440, %c0_441, %c0_442], %402 {strides = array<i32>} : memref<1x16x8xf32, #tpu.memory_space<vmem>>, vector<1x16x8xf32>,
    %c0_443 = arith.constant 0 : index
    %c0_444 = arith.constant 0 : index
    %c0_445 = arith.constant 0 : index
    %403 = vector.load %arg19[%c0_443, %c0_444, %c0_445] : memref<1x1x8xi32, #tpu.memory_space<vmem>>, vector<1x1x8xi32>
    %404 = vector.shape_cast %403 : vector<1x1x8xi32> to vector<1x8xi32>
    %405 = vector.shape_cast %390 : vector<1x8xi32> to vector<1x1x8xi32>
    tpu.vector_store %arg19[%c0_443, %c0_444, %c0_445], %405 {strides = array<i32>} : memref<1x1x8xi32, #tpu.memory_space<vmem>>, vector<1x1x8xi32>,
    return
  }
  func.func @transform_0(%arg0: i32) -> (i32, i32, i32, i32) {
    %c0_i32 = arith.constant 0 : i32
    %c0_i32_0 = arith.constant 0 : i32
    %c0_i32_1 = arith.constant 0 : i32
    %c0_i32_2 = arith.constant 0 : i32
    return %arg0, %c0_i32, %c0_i32_0, %c0_i32_1 : i32, i32, i32, i32
  }
  func.func @transform_1(%arg0: i32) -> (i32, i32, i32) {
    %c0_i32 = arith.constant 0 : i32
    %c0_i32_0 = arith.constant 0 : i32
    %c0_i32_1 = arith.constant 0 : i32
    %c0_i32_2 = arith.constant 0 : i32
    return %c0_i32, %c0_i32_0, %c0_i32_1 : i32, i32, i32
  }
  func.func @transform_2(%arg0: i32) -> (i32, i32) {
    %c0_i32 = arith.constant 0 : i32
    %c0_i32_0 = arith.constant 0 : i32
    %c0_i32_1 = arith.constant 0 : i32
    return %c0_i32, %c0_i32_0 : i32, i32
  }
  func.func @transform_3(%arg0: i32) -> (i32, i32, i32) {
    %c0_i32 = arith.constant 0 : i32
    %c0_i32_0 = arith.constant 0 : i32
    %c0_i32_1 = arith.constant 0 : i32
    %c0_i32_2 = arith.constant 0 : i32
    return %c0_i32, %c0_i32_0, %c0_i32_1 : i32, i32, i32
  }
  func.func @transform_4(%arg0: i32) -> (i32, i32) {
    %c0_i32 = arith.constant 0 : i32
    %c0_i32_0 = arith.constant 0 : i32
    %c0_i32_1 = arith.constant 0 : i32
    return %c0_i32, %c0_i32_0 : i32, i32
  }
  func.func @transform_5(%arg0: i32) -> (i32, i32, i32) {
    %c0_i32 = arith.constant 0 : i32
    %c0_i32_0 = arith.constant 0 : i32
    %c0_i32_1 = arith.constant 0 : i32
    %c0_i32_2 = arith.constant 0 : i32
    return %c0_i32, %c0_i32_0, %c0_i32_1 : i32, i32, i32
  }
  func.func @transform_6(%arg0: i32) -> (i32, i32) {
    %c0_i32 = arith.constant 0 : i32
    %c0_i32_0 = arith.constant 0 : i32
    %c0_i32_1 = arith.constant 0 : i32
    return %c0_i32, %c0_i32_0 : i32, i32
  }
  func.func @transform_7(%arg0: i32) -> (i32, i32, i32, i32) {
    %c0_i32 = arith.constant 0 : i32
    %c0_i32_0 = arith.constant 0 : i32
    %c0_i32_1 = arith.constant 0 : i32
    %c0_i32_2 = arith.constant 0 : i32
    %c0_i32_3 = arith.constant 0 : i32
    return %c0_i32, %c0_i32_0, %c0_i32_1, %c0_i32_2 : i32, i32, i32, i32
  }
  func.func @transform_8(%arg0: i32) -> (i32, i32, i32) {
    %c0_i32 = arith.constant 0 : i32
    %c0_i32_0 = arith.constant 0 : i32
    %c0_i32_1 = arith.constant 0 : i32
    %c0_i32_2 = arith.constant 0 : i32
    return %c0_i32, %c0_i32_0, %c0_i32_1 : i32, i32, i32
  }
  func.func @transform_9(%arg0: i32) -> (i32, i32, i32, i32) {
    %c0_i32 = arith.constant 0 : i32
    %c0_i32_0 = arith.constant 0 : i32
    %c0_i32_1 = arith.constant 0 : i32
    %c0_i32_2 = arith.constant 0 : i32
    %c0_i32_3 = arith.constant 0 : i32
    return %c0_i32, %c0_i32_0, %c0_i32_1, %c0_i32_2 : i32, i32, i32, i32
  }
  func.func @transform_10(%arg0: i32) -> (i32, i32, i32) {
    %c0_i32 = arith.constant 0 : i32
    %c0_i32_0 = arith.constant 0 : i32
    %c0_i32_1 = arith.constant 0 : i32
    %c0_i32_2 = arith.constant 0 : i32
    return %c0_i32, %c0_i32_0, %c0_i32_1 : i32, i32, i32
  }
  func.func @transform_11(%arg0: i32) -> (i32, i32) {
    %c0_i32 = arith.constant 0 : i32
    %c0_i32_0 = arith.constant 0 : i32
    %c0_i32_1 = arith.constant 0 : i32
    return %c0_i32, %c0_i32_0 : i32, i32
  }
  func.func @transform_12(%arg0: i32) -> (i32, i32) {
    %c0_i32 = arith.constant 0 : i32
    %c0_i32_0 = arith.constant 0 : i32
    %c0_i32_1 = arith.constant 0 : i32
    return %c0_i32, %c0_i32_0 : i32, i32
  }
  func.func @transform_13(%arg0: i32) -> (i32, i32) {
    %c0_i32 = arith.constant 0 : i32
    %c0_i32_0 = arith.constant 0 : i32
    %c0_i32_1 = arith.constant 0 : i32
    return %c0_i32, %c0_i32_0 : i32, i32
  }
  func.func @transform_14(%arg0: i32) -> (i32, i32) {
    %c0_i32 = arith.constant 0 : i32
    %c0_i32_0 = arith.constant 0 : i32
    %c0_i32_1 = arith.constant 0 : i32
    return %c0_i32, %c0_i32_0 : i32, i32
  }
  func.func @transform_15(%arg0: i32) -> (i32, i32) {
    %c0_i32 = arith.constant 0 : i32
    %c0_i32_0 = arith.constant 0 : i32
    %c0_i32_1 = arith.constant 0 : i32
    return %c0_i32, %c0_i32_0 : i32, i32
  }
  func.func @transform_16(%arg0: i32) -> (i32, i32, i32) {
    %c0_i32 = arith.constant 0 : i32
    %c0_i32_0 = arith.constant 0 : i32
    %c0_i32_1 = arith.constant 0 : i32
    return %arg0, %c0_i32, %c0_i32_0 : i32, i32, i32
  }
  func.func @transform_17(%arg0: i32) -> (i32, i32, i32) {
    %c0_i32 = arith.constant 0 : i32
    %c0_i32_0 = arith.constant 0 : i32
    %c0_i32_1 = arith.constant 0 : i32
    return %arg0, %c0_i32, %c0_i32_0 : i32, i32, i32
  }
  func.func @transform_18(%arg0: i32) -> (i32, i32, i32) {
    %c0_i32 = arith.constant 0 : i32
    %c0_i32_0 = arith.constant 0 : i32
    %c0_i32_1 = arith.constant 0 : i32
    return %arg0, %c0_i32, %c0_i32_0 : i32, i32, i32
  }
}

module attributes {stable_mosaic.version = 11 : i64} {
  func.func @_dec_kernel(%arg0: i32, %arg1: memref<1x16x8xf32, #tpu.memory_space<vmem>>, %arg2: memref<2x3x8x16xbf16, #tpu.memory_space<vmem>>, %arg3: memref<2x8x1xf32, #tpu.memory_space<vmem>>, %arg4: memref<2x1x16x8xbf16, #tpu.memory_space<vmem>>, %arg5: memref<2x16x1xf32, #tpu.memory_space<vmem>>, %arg6: memref<3x32x16xbf16, #tpu.memory_space<vmem>>, %arg7: memref<32x1xf32, #tpu.memory_space<vmem>>, %arg8: memref<5x16x32xbf16, #tpu.memory_space<vmem>>, %arg9: memref<16x1xf32, #tpu.memory_space<vmem>>, %arg10: memref<7x16x16xbf16, #tpu.memory_space<vmem>>, %arg11: memref<16x1xf32, #tpu.memory_space<vmem>>, %arg12: memref<1x4x16x8xf32, #tpu.memory_space<vmem>>, %arg13: memref<16x10xbf16, #tpu.memory_space<vmem>>, %arg14: memref<2x32x10xbf16, #tpu.memory_space<vmem>>, %arg15: memref<4x16x10xbf16, #tpu.memory_space<vmem>>) attributes {dimension_semantics = [#tpu.dimension_semantics<parallel>], iteration_bounds = array<i64: 2>, scalar_prefetch = 0 : i64, scratch_operands = 3 : i64, tpu.core_type = #tpu.core_type<tc>, window_params = [{transform_indices = @transform_0, window_bounds = array<i64: 1, 16, 8>}, {pipeline_mode = #tpu.pipeline_mode<synchronous>, transform_indices = @transform_1, window_bounds = array<i64: 2, 3, 8, 16>}, {pipeline_mode = #tpu.pipeline_mode<synchronous>, transform_indices = @transform_2, window_bounds = array<i64: 2, 8, 1>}, {pipeline_mode = #tpu.pipeline_mode<synchronous>, transform_indices = @transform_3, window_bounds = array<i64: 2, 1, 16, 8>}, {pipeline_mode = #tpu.pipeline_mode<synchronous>, transform_indices = @transform_4, window_bounds = array<i64: 2, 16, 1>}, {pipeline_mode = #tpu.pipeline_mode<synchronous>, transform_indices = @transform_5, window_bounds = array<i64: 3, 32, 16>}, {pipeline_mode = #tpu.pipeline_mode<synchronous>, transform_indices = @transform_6, window_bounds = array<i64: 32, 1>}, {pipeline_mode = #tpu.pipeline_mode<synchronous>, transform_indices = @transform_7, window_bounds = array<i64: 5, 16, 32>}, {pipeline_mode = #tpu.pipeline_mode<synchronous>, transform_indices = @transform_8, window_bounds = array<i64: 16, 1>}, {pipeline_mode = #tpu.pipeline_mode<synchronous>, transform_indices = @transform_9, window_bounds = array<i64: 7, 16, 16>}, {pipeline_mode = #tpu.pipeline_mode<synchronous>, transform_indices = @transform_10, window_bounds = array<i64: 16, 1>}, {transform_indices = @transform_11, window_bounds = array<i64: 1, 4, 16, 8>}]} {
    %cst = arith.constant 0.000000e+00 : bf16
    %0 = vector.broadcast %cst : bf16 to vector<16x10xbf16>
    %c0 = arith.constant 0 : index
    %c0_0 = arith.constant 0 : index
    %1 = vector.load %arg13[%c0, %c0_0] : memref<16x10xbf16, #tpu.memory_space<vmem>>, vector<16x10xbf16>
    tpu.vector_store %arg13[%c0, %c0_0], %0 {strides = array<i32>} : memref<16x10xbf16, #tpu.memory_space<vmem>>, vector<16x10xbf16>,
    %cst_1 = arith.constant 0.000000e+00 : bf16
    %2 = vector.broadcast %cst_1 : bf16 to vector<2x32x10xbf16>
    %c0_2 = arith.constant 0 : index
    %c0_3 = arith.constant 0 : index
    %c0_4 = arith.constant 0 : index
    %3 = vector.load %arg14[%c0_2, %c0_3, %c0_4] : memref<2x32x10xbf16, #tpu.memory_space<vmem>>, vector<2x32x10xbf16>
    tpu.vector_store %arg14[%c0_2, %c0_3, %c0_4], %2 {strides = array<i32>} : memref<2x32x10xbf16, #tpu.memory_space<vmem>>, vector<2x32x10xbf16>,
    %cst_5 = arith.constant 0.000000e+00 : bf16
    %4 = vector.broadcast %cst_5 : bf16 to vector<4x16x10xbf16>
    %c0_6 = arith.constant 0 : index
    %c0_7 = arith.constant 0 : index
    %c0_8 = arith.constant 0 : index
    %5 = vector.load %arg15[%c0_6, %c0_7, %c0_8] : memref<4x16x10xbf16, #tpu.memory_space<vmem>>, vector<4x16x10xbf16>
    tpu.vector_store %arg15[%c0_6, %c0_7, %c0_8], %4 {strides = array<i32>} : memref<4x16x10xbf16, #tpu.memory_space<vmem>>, vector<4x16x10xbf16>,
    %c0_9 = arith.constant 0 : index
    %c0_10 = arith.constant 0 : index
    %c0_11 = arith.constant 0 : index
    %6 = vector.load %arg1[%c0_9, %c0_10, %c0_11] : memref<1x16x8xf32, #tpu.memory_space<vmem>>, vector<1x16x8xf32>
    %7 = vector.shape_cast %6 : vector<1x16x8xf32> to vector<16x8xf32>
    %cst_12 = arith.constant 0.000000e+00 : f32
    %8 = vector.broadcast %cst_12 : f32 to vector<16x8xf32>
    %9 = arith.maximumf %7, %8 : vector<16x8xf32>
    %10 = arith.truncf %9 : vector<16x8xf32> to vector<16x8xbf16>
    %c0_13 = arith.constant 0 : index
    %c1 = arith.constant 1 : index
    %11 = vector.load %arg13[%c0_13, %c1] : memref<16x10xbf16, #tpu.memory_space<vmem>>, vector<16x8xbf16>
    tpu.vector_store %arg13[%c0_13, %c1], %10 {strides = array<i32>} : memref<16x10xbf16, #tpu.memory_space<vmem>>, vector<16x8xbf16>,
    %c0_14 = arith.constant 0 : index
    %c0_15 = arith.constant 0 : index
    %c0_16 = arith.constant 0 : index
    %12 = vector.load %arg3[%c0_14, %c0_15, %c0_16] : memref<2x8x1xf32, #tpu.memory_space<vmem>>, vector<1x8x1xf32>
    %13 = vector.shape_cast %12 : vector<1x8x1xf32> to vector<8x1xf32>
    %c0_17 = arith.constant 0 : index
    %c0_18 = arith.constant 0 : index
    %c0_19 = arith.constant 0 : index
    %c0_20 = arith.constant 0 : index
    %14 = vector.load %arg2[%c0_17, %c0_18, %c0_19, %c0_20] : memref<2x3x8x16xbf16, #tpu.memory_space<vmem>>, vector<1x1x8x16xbf16>
    %15 = vector.shape_cast %14 : vector<1x1x8x16xbf16> to vector<8x16xbf16>
    %c0_21 = arith.constant 0 : index
    %c0_22 = arith.constant 0 : index
    %16 = vector.load %arg13[%c0_21, %c0_22] : memref<16x10xbf16, #tpu.memory_space<vmem>>, vector<16x8xbf16>
    %cst_23 = arith.constant dense<0.000000e+00> : vector<8x8xf32>
    %17 = tpu.matmul %15, %16, %cst_23 {dimension_numbers = #tpu.dot_dimension_numbers<[1], [0], [0], [1], [0, 0, 1, 1], [], []>} : vector<8x16xbf16>, vector<16x8xbf16>, vector<8x8xf32> -> vector<8x8xf32>
    %c0_24 = arith.constant 0 : index
    %c1_25 = arith.constant 1 : index
    %c0_26 = arith.constant 0 : index
    %c0_27 = arith.constant 0 : index
    %18 = vector.load %arg2[%c0_24, %c1_25, %c0_26, %c0_27] : memref<2x3x8x16xbf16, #tpu.memory_space<vmem>>, vector<1x1x8x16xbf16>
    %19 = vector.shape_cast %18 : vector<1x1x8x16xbf16> to vector<8x16xbf16>
    %c0_28 = arith.constant 0 : index
    %c1_29 = arith.constant 1 : index
    %20 = vector.load %arg13[%c0_28, %c1_29] : memref<16x10xbf16, #tpu.memory_space<vmem>>, vector<16x8xbf16>
    %cst_30 = arith.constant dense<0.000000e+00> : vector<8x8xf32>
    %21 = tpu.matmul %19, %20, %cst_30 {dimension_numbers = #tpu.dot_dimension_numbers<[1], [0], [0], [1], [0, 0, 1, 1], [], []>} : vector<8x16xbf16>, vector<16x8xbf16>, vector<8x8xf32> -> vector<8x8xf32>
    %22 = arith.addf %17, %21 : vector<8x8xf32>
    %c0_31 = arith.constant 0 : index
    %c2 = arith.constant 2 : index
    %c0_32 = arith.constant 0 : index
    %c0_33 = arith.constant 0 : index
    %23 = vector.load %arg2[%c0_31, %c2, %c0_32, %c0_33] : memref<2x3x8x16xbf16, #tpu.memory_space<vmem>>, vector<1x1x8x16xbf16>
    %24 = vector.shape_cast %23 : vector<1x1x8x16xbf16> to vector<8x16xbf16>
    %c0_34 = arith.constant 0 : index
    %c2_35 = arith.constant 2 : index
    %25 = vector.load %arg13[%c0_34, %c2_35] : memref<16x10xbf16, #tpu.memory_space<vmem>>, vector<16x8xbf16>
    %cst_36 = arith.constant dense<0.000000e+00> : vector<8x8xf32>
    %26 = tpu.matmul %24, %25, %cst_36 {dimension_numbers = #tpu.dot_dimension_numbers<[1], [0], [0], [1], [0, 0, 1, 1], [], []>} : vector<8x16xbf16>, vector<16x8xbf16>, vector<8x8xf32> -> vector<8x8xf32>
    %27 = arith.addf %22, %26 : vector<8x8xf32>
    %28 = vector.broadcast %13 : vector<8x1xf32> to vector<8x8xf32>
    %29 = arith.addf %27, %28 : vector<8x8xf32>
    %cst_37 = arith.constant 0.000000e+00 : f32
    %30 = vector.broadcast %cst_37 : f32 to vector<8x8xf32>
    %31 = arith.maximumf %29, %30 : vector<8x8xf32>
    %32 = arith.truncf %31 : vector<8x8xf32> to vector<8x8xbf16>
    %c0_38 = arith.constant 0 : index
    %c0_39 = arith.constant 0 : index
    %c0_40 = arith.constant 0 : index
    %c0_41 = arith.constant 0 : index
    %33 = vector.load %arg4[%c0_38, %c0_39, %c0_40, %c0_41] : memref<2x1x16x8xbf16, #tpu.memory_space<vmem>>, vector<1x1x16x8xbf16>
    %34 = vector.shape_cast %33 : vector<1x1x16x8xbf16> to vector<16x8xbf16>
    %cst_42 = arith.constant dense<0.000000e+00> : vector<16x8xf32>
    %35 = tpu.matmul %34, %32, %cst_42 {dimension_numbers = #tpu.dot_dimension_numbers<[1], [0], [0], [1], [0, 0, 1, 1], [], []>} : vector<16x8xbf16>, vector<8x8xbf16>, vector<16x8xf32> -> vector<16x8xf32>
    %c0_43 = arith.constant 0 : index
    %c0_44 = arith.constant 0 : index
    %c0_45 = arith.constant 0 : index
    %36 = vector.load %arg5[%c0_43, %c0_44, %c0_45] : memref<2x16x1xf32, #tpu.memory_space<vmem>>, vector<1x16x1xf32>
    %37 = vector.shape_cast %36 : vector<1x16x1xf32> to vector<16x1xf32>
    %38 = vector.broadcast %37 : vector<16x1xf32> to vector<16x8xf32>
    %39 = arith.addf %35, %38 : vector<16x8xf32>
    %40 = arith.addf %7, %39 : vector<16x8xf32>
    %cst_46 = arith.constant 0.000000e+00 : f32
    %41 = vector.broadcast %cst_46 : f32 to vector<16x8xf32>
    %42 = arith.maximumf %40, %41 : vector<16x8xf32>
    %43 = arith.truncf %42 : vector<16x8xf32> to vector<16x8xbf16>
    %c0_47 = arith.constant 0 : index
    %c1_48 = arith.constant 1 : index
    %44 = vector.load %arg13[%c0_47, %c1_48] : memref<16x10xbf16, #tpu.memory_space<vmem>>, vector<16x8xbf16>
    tpu.vector_store %arg13[%c0_47, %c1_48], %43 {strides = array<i32>} : memref<16x10xbf16, #tpu.memory_space<vmem>>, vector<16x8xbf16>,
    %c1_49 = arith.constant 1 : index
    %c0_50 = arith.constant 0 : index
    %c0_51 = arith.constant 0 : index
    %45 = vector.load %arg3[%c1_49, %c0_50, %c0_51] : memref<2x8x1xf32, #tpu.memory_space<vmem>>, vector<1x8x1xf32>
    %46 = vector.shape_cast %45 : vector<1x8x1xf32> to vector<8x1xf32>
    %c1_52 = arith.constant 1 : index
    %c0_53 = arith.constant 0 : index
    %c0_54 = arith.constant 0 : index
    %c0_55 = arith.constant 0 : index
    %47 = vector.load %arg2[%c1_52, %c0_53, %c0_54, %c0_55] : memref<2x3x8x16xbf16, #tpu.memory_space<vmem>>, vector<1x1x8x16xbf16>
    %48 = vector.shape_cast %47 : vector<1x1x8x16xbf16> to vector<8x16xbf16>
    %c0_56 = arith.constant 0 : index
    %c0_57 = arith.constant 0 : index
    %49 = vector.load %arg13[%c0_56, %c0_57] : memref<16x10xbf16, #tpu.memory_space<vmem>>, vector<16x8xbf16>
    %cst_58 = arith.constant dense<0.000000e+00> : vector<8x8xf32>
    %50 = tpu.matmul %48, %49, %cst_58 {dimension_numbers = #tpu.dot_dimension_numbers<[1], [0], [0], [1], [0, 0, 1, 1], [], []>} : vector<8x16xbf16>, vector<16x8xbf16>, vector<8x8xf32> -> vector<8x8xf32>
    %c1_59 = arith.constant 1 : index
    %c1_60 = arith.constant 1 : index
    %c0_61 = arith.constant 0 : index
    %c0_62 = arith.constant 0 : index
    %51 = vector.load %arg2[%c1_59, %c1_60, %c0_61, %c0_62] : memref<2x3x8x16xbf16, #tpu.memory_space<vmem>>, vector<1x1x8x16xbf16>
    %52 = vector.shape_cast %51 : vector<1x1x8x16xbf16> to vector<8x16xbf16>
    %c0_63 = arith.constant 0 : index
    %c1_64 = arith.constant 1 : index
    %53 = vector.load %arg13[%c0_63, %c1_64] : memref<16x10xbf16, #tpu.memory_space<vmem>>, vector<16x8xbf16>
    %cst_65 = arith.constant dense<0.000000e+00> : vector<8x8xf32>
    %54 = tpu.matmul %52, %53, %cst_65 {dimension_numbers = #tpu.dot_dimension_numbers<[1], [0], [0], [1], [0, 0, 1, 1], [], []>} : vector<8x16xbf16>, vector<16x8xbf16>, vector<8x8xf32> -> vector<8x8xf32>
    %55 = arith.addf %50, %54 : vector<8x8xf32>
    %c1_66 = arith.constant 1 : index
    %c2_67 = arith.constant 2 : index
    %c0_68 = arith.constant 0 : index
    %c0_69 = arith.constant 0 : index
    %56 = vector.load %arg2[%c1_66, %c2_67, %c0_68, %c0_69] : memref<2x3x8x16xbf16, #tpu.memory_space<vmem>>, vector<1x1x8x16xbf16>
    %57 = vector.shape_cast %56 : vector<1x1x8x16xbf16> to vector<8x16xbf16>
    %c0_70 = arith.constant 0 : index
    %c2_71 = arith.constant 2 : index
    %58 = vector.load %arg13[%c0_70, %c2_71] : memref<16x10xbf16, #tpu.memory_space<vmem>>, vector<16x8xbf16>
    %cst_72 = arith.constant dense<0.000000e+00> : vector<8x8xf32>
    %59 = tpu.matmul %57, %58, %cst_72 {dimension_numbers = #tpu.dot_dimension_numbers<[1], [0], [0], [1], [0, 0, 1, 1], [], []>} : vector<8x16xbf16>, vector<16x8xbf16>, vector<8x8xf32> -> vector<8x8xf32>
    %60 = arith.addf %55, %59 : vector<8x8xf32>
    %61 = vector.broadcast %46 : vector<8x1xf32> to vector<8x8xf32>
    %62 = arith.addf %60, %61 : vector<8x8xf32>
    %cst_73 = arith.constant 0.000000e+00 : f32
    %63 = vector.broadcast %cst_73 : f32 to vector<8x8xf32>
    %64 = arith.maximumf %62, %63 : vector<8x8xf32>
    %65 = arith.truncf %64 : vector<8x8xf32> to vector<8x8xbf16>
    %c1_74 = arith.constant 1 : index
    %c0_75 = arith.constant 0 : index
    %c0_76 = arith.constant 0 : index
    %c0_77 = arith.constant 0 : index
    %66 = vector.load %arg4[%c1_74, %c0_75, %c0_76, %c0_77] : memref<2x1x16x8xbf16, #tpu.memory_space<vmem>>, vector<1x1x16x8xbf16>
    %67 = vector.shape_cast %66 : vector<1x1x16x8xbf16> to vector<16x8xbf16>
    %cst_78 = arith.constant dense<0.000000e+00> : vector<16x8xf32>
    %68 = tpu.matmul %67, %65, %cst_78 {dimension_numbers = #tpu.dot_dimension_numbers<[1], [0], [0], [1], [0, 0, 1, 1], [], []>} : vector<16x8xbf16>, vector<8x8xbf16>, vector<16x8xf32> -> vector<16x8xf32>
    %c1_79 = arith.constant 1 : index
    %c0_80 = arith.constant 0 : index
    %c0_81 = arith.constant 0 : index
    %69 = vector.load %arg5[%c1_79, %c0_80, %c0_81] : memref<2x16x1xf32, #tpu.memory_space<vmem>>, vector<1x16x1xf32>
    %70 = vector.shape_cast %69 : vector<1x16x1xf32> to vector<16x1xf32>
    %71 = vector.broadcast %70 : vector<16x1xf32> to vector<16x8xf32>
    %72 = arith.addf %68, %71 : vector<16x8xf32>
    %73 = arith.addf %40, %72 : vector<16x8xf32>
    %74 = arith.truncf %73 : vector<16x8xf32> to vector<16x8xbf16>
    %c0_82 = arith.constant 0 : index
    %c1_83 = arith.constant 1 : index
    %75 = vector.load %arg13[%c0_82, %c1_83] : memref<16x10xbf16, #tpu.memory_space<vmem>>, vector<16x8xbf16>
    tpu.vector_store %arg13[%c0_82, %c1_83], %74 {strides = array<i32>} : memref<16x10xbf16, #tpu.memory_space<vmem>>, vector<16x8xbf16>,
    %c0_84 = arith.constant 0 : index
    %c0_85 = arith.constant 0 : index
    %76 = vector.load %arg7[%c0_84, %c0_85] : memref<32x1xf32, #tpu.memory_space<vmem>>, vector<32x1xf32>
    %c1_86 = arith.constant 1 : index
    %c0_87 = arith.constant 0 : index
    %c0_88 = arith.constant 0 : index
    %77 = vector.load %arg6[%c1_86, %c0_87, %c0_88] : memref<3x32x16xbf16, #tpu.memory_space<vmem>>, vector<1x32x16xbf16>
    %78 = vector.shape_cast %77 : vector<1x32x16xbf16> to vector<32x16xbf16>
    %c0_89 = arith.constant 0 : index
    %c1_90 = arith.constant 1 : index
    %79 = vector.load %arg13[%c0_89, %c1_90] : memref<16x10xbf16, #tpu.memory_space<vmem>>, vector<16x8xbf16>
    %cst_91 = arith.constant dense<0.000000e+00> : vector<32x8xf32>
    %80 = tpu.matmul %78, %79, %cst_91 {dimension_numbers = #tpu.dot_dimension_numbers<[1], [0], [0], [1], [0, 0, 1, 1], [], []>} : vector<32x16xbf16>, vector<16x8xbf16>, vector<32x8xf32> -> vector<32x8xf32>
    %81 = vector.broadcast %76 : vector<32x1xf32> to vector<32x8xf32>
    %82 = arith.addf %80, %81 : vector<32x8xf32>
    %cst_92 = arith.constant 0.000000e+00 : f32
    %83 = vector.broadcast %cst_92 : f32 to vector<32x8xf32>
    %84 = arith.maximumf %82, %83 : vector<32x8xf32>
    %c0_93 = arith.constant 0 : index
    %c0_94 = arith.constant 0 : index
    %c0_95 = arith.constant 0 : index
    %85 = vector.load %arg6[%c0_93, %c0_94, %c0_95] : memref<3x32x16xbf16, #tpu.memory_space<vmem>>, vector<1x32x16xbf16>
    %86 = vector.shape_cast %85 : vector<1x32x16xbf16> to vector<32x16xbf16>
    %c0_96 = arith.constant 0 : index
    %c2_97 = arith.constant 2 : index
    %87 = vector.load %arg13[%c0_96, %c2_97] : memref<16x10xbf16, #tpu.memory_space<vmem>>, vector<16x8xbf16>
    %cst_98 = arith.constant dense<0.000000e+00> : vector<32x8xf32>
    %88 = tpu.matmul %86, %87, %cst_98 {dimension_numbers = #tpu.dot_dimension_numbers<[1], [0], [0], [1], [0, 0, 1, 1], [], []>} : vector<32x16xbf16>, vector<16x8xbf16>, vector<32x8xf32> -> vector<32x8xf32>
    %c2_99 = arith.constant 2 : index
    %c0_100 = arith.constant 0 : index
    %c0_101 = arith.constant 0 : index
    %89 = vector.load %arg6[%c2_99, %c0_100, %c0_101] : memref<3x32x16xbf16, #tpu.memory_space<vmem>>, vector<1x32x16xbf16>
    %90 = vector.shape_cast %89 : vector<1x32x16xbf16> to vector<32x16xbf16>
    %c0_102 = arith.constant 0 : index
    %c1_103 = arith.constant 1 : index
    %91 = vector.load %arg13[%c0_102, %c1_103] : memref<16x10xbf16, #tpu.memory_space<vmem>>, vector<16x8xbf16>
    %cst_104 = arith.constant dense<0.000000e+00> : vector<32x8xf32>
    %92 = tpu.matmul %90, %91, %cst_104 {dimension_numbers = #tpu.dot_dimension_numbers<[1], [0], [0], [1], [0, 0, 1, 1], [], []>} : vector<32x16xbf16>, vector<16x8xbf16>, vector<32x8xf32> -> vector<32x8xf32>
    %93 = arith.addf %88, %92 : vector<32x8xf32>
    %94 = vector.broadcast %76 : vector<32x1xf32> to vector<32x8xf32>
    %95 = arith.addf %93, %94 : vector<32x8xf32>
    %cst_105 = arith.constant 0.000000e+00 : f32
    %96 = vector.broadcast %cst_105 : f32 to vector<32x8xf32>
    %97 = arith.maximumf %95, %96 : vector<32x8xf32>
    %98 = arith.truncf %84 : vector<32x8xf32> to vector<32x8xbf16>
    %c0_106 = arith.constant 0 : index
    %c0_107 = arith.constant 0 : index
    %c1_108 = arith.constant 1 : index
    %99 = vector.load %arg14[%c0_106, %c0_107, %c1_108] : memref<2x32x10xbf16, #tpu.memory_space<vmem>>, vector<1x32x8xbf16>
    %100 = vector.shape_cast %99 : vector<1x32x8xbf16> to vector<32x8xbf16>
    %101 = vector.shape_cast %98 : vector<32x8xbf16> to vector<1x32x8xbf16>
    tpu.vector_store %arg14[%c0_106, %c0_107, %c1_108], %101 {strides = array<i32>} : memref<2x32x10xbf16, #tpu.memory_space<vmem>>, vector<1x32x8xbf16>,
    %102 = arith.truncf %97 : vector<32x8xf32> to vector<32x8xbf16>
    %c1_109 = arith.constant 1 : index
    %c0_110 = arith.constant 0 : index
    %c1_111 = arith.constant 1 : index
    %103 = vector.load %arg14[%c1_109, %c0_110, %c1_111] : memref<2x32x10xbf16, #tpu.memory_space<vmem>>, vector<1x32x8xbf16>
    %104 = vector.shape_cast %103 : vector<1x32x8xbf16> to vector<32x8xbf16>
    %105 = vector.shape_cast %102 : vector<32x8xbf16> to vector<1x32x8xbf16>
    tpu.vector_store %arg14[%c1_109, %c0_110, %c1_111], %105 {strides = array<i32>} : memref<2x32x10xbf16, #tpu.memory_space<vmem>>, vector<1x32x8xbf16>,
    %c0_112 = arith.constant 0 : index
    %c0_113 = arith.constant 0 : index
    %106 = vector.load %arg9[%c0_112, %c0_113] : memref<16x1xf32, #tpu.memory_space<vmem>>, vector<16x1xf32>
    %c0_114 = arith.constant 0 : index
    %c0_115 = arith.constant 0 : index
    %c0_116 = arith.constant 0 : index
    %107 = vector.load %arg8[%c0_114, %c0_115, %c0_116] : memref<5x16x32xbf16, #tpu.memory_space<vmem>>, vector<1x16x32xbf16>
    %108 = vector.shape_cast %107 : vector<1x16x32xbf16> to vector<16x32xbf16>
    %c1_117 = arith.constant 1 : index
    %c0_118 = arith.constant 0 : index
    %c1_119 = arith.constant 1 : index
    %109 = vector.load %arg14[%c1_117, %c0_118, %c1_119] : memref<2x32x10xbf16, #tpu.memory_space<vmem>>, vector<1x32x8xbf16>
    %110 = vector.shape_cast %109 : vector<1x32x8xbf16> to vector<32x8xbf16>
    %cst_120 = arith.constant dense<0.000000e+00> : vector<16x8xf32>
    %111 = tpu.matmul %108, %110, %cst_120 {dimension_numbers = #tpu.dot_dimension_numbers<[1], [0], [0], [1], [0, 0, 1, 1], [], []>} : vector<16x32xbf16>, vector<32x8xbf16>, vector<16x8xf32> -> vector<16x8xf32>
    %c2_121 = arith.constant 2 : index
    %c0_122 = arith.constant 0 : index
    %c0_123 = arith.constant 0 : index
    %112 = vector.load %arg8[%c2_121, %c0_122, %c0_123] : memref<5x16x32xbf16, #tpu.memory_space<vmem>>, vector<1x16x32xbf16>
    %113 = vector.shape_cast %112 : vector<1x16x32xbf16> to vector<16x32xbf16>
    %c0_124 = arith.constant 0 : index
    %c0_125 = arith.constant 0 : index
    %c1_126 = arith.constant 1 : index
    %114 = vector.load %arg14[%c0_124, %c0_125, %c1_126] : memref<2x32x10xbf16, #tpu.memory_space<vmem>>, vector<1x32x8xbf16>
    %115 = vector.shape_cast %114 : vector<1x32x8xbf16> to vector<32x8xbf16>
    %cst_127 = arith.constant dense<0.000000e+00> : vector<16x8xf32>
    %116 = tpu.matmul %113, %115, %cst_127 {dimension_numbers = #tpu.dot_dimension_numbers<[1], [0], [0], [1], [0, 0, 1, 1], [], []>} : vector<16x32xbf16>, vector<32x8xbf16>, vector<16x8xf32> -> vector<16x8xf32>
    %117 = arith.addf %111, %116 : vector<16x8xf32>
    %c4 = arith.constant 4 : index
    %c0_128 = arith.constant 0 : index
    %c0_129 = arith.constant 0 : index
    %118 = vector.load %arg8[%c4, %c0_128, %c0_129] : memref<5x16x32xbf16, #tpu.memory_space<vmem>>, vector<1x16x32xbf16>
    %119 = vector.shape_cast %118 : vector<1x16x32xbf16> to vector<16x32xbf16>
    %c1_130 = arith.constant 1 : index
    %c0_131 = arith.constant 0 : index
    %c0_132 = arith.constant 0 : index
    %120 = vector.load %arg14[%c1_130, %c0_131, %c0_132] : memref<2x32x10xbf16, #tpu.memory_space<vmem>>, vector<1x32x8xbf16>
    %121 = vector.shape_cast %120 : vector<1x32x8xbf16> to vector<32x8xbf16>
    %cst_133 = arith.constant dense<0.000000e+00> : vector<16x8xf32>
    %122 = tpu.matmul %119, %121, %cst_133 {dimension_numbers = #tpu.dot_dimension_numbers<[1], [0], [0], [1], [0, 0, 1, 1], [], []>} : vector<16x32xbf16>, vector<32x8xbf16>, vector<16x8xf32> -> vector<16x8xf32>
    %123 = arith.addf %117, %122 : vector<16x8xf32>
    %124 = vector.broadcast %106 : vector<16x1xf32> to vector<16x8xf32>
    %125 = arith.addf %123, %124 : vector<16x8xf32>
    %cst_134 = arith.constant 0.000000e+00 : f32
    %126 = vector.broadcast %cst_134 : f32 to vector<16x8xf32>
    %127 = arith.maximumf %125, %126 : vector<16x8xf32>
    %c1_135 = arith.constant 1 : index
    %c0_136 = arith.constant 0 : index
    %c0_137 = arith.constant 0 : index
    %128 = vector.load %arg8[%c1_135, %c0_136, %c0_137] : memref<5x16x32xbf16, #tpu.memory_space<vmem>>, vector<1x16x32xbf16>
    %129 = vector.shape_cast %128 : vector<1x16x32xbf16> to vector<16x32xbf16>
    %c1_138 = arith.constant 1 : index
    %c0_139 = arith.constant 0 : index
    %c1_140 = arith.constant 1 : index
    %130 = vector.load %arg14[%c1_138, %c0_139, %c1_140] : memref<2x32x10xbf16, #tpu.memory_space<vmem>>, vector<1x32x8xbf16>
    %131 = vector.shape_cast %130 : vector<1x32x8xbf16> to vector<32x8xbf16>
    %cst_141 = arith.constant dense<0.000000e+00> : vector<16x8xf32>
    %132 = tpu.matmul %129, %131, %cst_141 {dimension_numbers = #tpu.dot_dimension_numbers<[1], [0], [0], [1], [0, 0, 1, 1], [], []>} : vector<16x32xbf16>, vector<32x8xbf16>, vector<16x8xf32> -> vector<16x8xf32>
    %c3 = arith.constant 3 : index
    %c0_142 = arith.constant 0 : index
    %c0_143 = arith.constant 0 : index
    %133 = vector.load %arg8[%c3, %c0_142, %c0_143] : memref<5x16x32xbf16, #tpu.memory_space<vmem>>, vector<1x16x32xbf16>
    %134 = vector.shape_cast %133 : vector<1x16x32xbf16> to vector<16x32xbf16>
    %c0_144 = arith.constant 0 : index
    %c0_145 = arith.constant 0 : index
    %c1_146 = arith.constant 1 : index
    %135 = vector.load %arg14[%c0_144, %c0_145, %c1_146] : memref<2x32x10xbf16, #tpu.memory_space<vmem>>, vector<1x32x8xbf16>
    %136 = vector.shape_cast %135 : vector<1x32x8xbf16> to vector<32x8xbf16>
    %cst_147 = arith.constant dense<0.000000e+00> : vector<16x8xf32>
    %137 = tpu.matmul %134, %136, %cst_147 {dimension_numbers = #tpu.dot_dimension_numbers<[1], [0], [0], [1], [0, 0, 1, 1], [], []>} : vector<16x32xbf16>, vector<32x8xbf16>, vector<16x8xf32> -> vector<16x8xf32>
    %138 = arith.addf %132, %137 : vector<16x8xf32>
    %139 = vector.broadcast %106 : vector<16x1xf32> to vector<16x8xf32>
    %140 = arith.addf %138, %139 : vector<16x8xf32>
    %cst_148 = arith.constant 0.000000e+00 : f32
    %141 = vector.broadcast %cst_148 : f32 to vector<16x8xf32>
    %142 = arith.maximumf %140, %141 : vector<16x8xf32>
    %c0_149 = arith.constant 0 : index
    %c0_150 = arith.constant 0 : index
    %c0_151 = arith.constant 0 : index
    %143 = vector.load %arg8[%c0_149, %c0_150, %c0_151] : memref<5x16x32xbf16, #tpu.memory_space<vmem>>, vector<1x16x32xbf16>
    %144 = vector.shape_cast %143 : vector<1x16x32xbf16> to vector<16x32xbf16>
    %c0_152 = arith.constant 0 : index
    %c0_153 = arith.constant 0 : index
    %c2_154 = arith.constant 2 : index
    %145 = vector.load %arg14[%c0_152, %c0_153, %c2_154] : memref<2x32x10xbf16, #tpu.memory_space<vmem>>, vector<1x32x8xbf16>
    %146 = vector.shape_cast %145 : vector<1x32x8xbf16> to vector<32x8xbf16>
    %cst_155 = arith.constant dense<0.000000e+00> : vector<16x8xf32>
    %147 = tpu.matmul %144, %146, %cst_155 {dimension_numbers = #tpu.dot_dimension_numbers<[1], [0], [0], [1], [0, 0, 1, 1], [], []>} : vector<16x32xbf16>, vector<32x8xbf16>, vector<16x8xf32> -> vector<16x8xf32>
    %c2_156 = arith.constant 2 : index
    %c0_157 = arith.constant 0 : index
    %c0_158 = arith.constant 0 : index
    %148 = vector.load %arg8[%c2_156, %c0_157, %c0_158] : memref<5x16x32xbf16, #tpu.memory_space<vmem>>, vector<1x16x32xbf16>
    %149 = vector.shape_cast %148 : vector<1x16x32xbf16> to vector<16x32xbf16>
    %c1_159 = arith.constant 1 : index
    %c0_160 = arith.constant 0 : index
    %c1_161 = arith.constant 1 : index
    %150 = vector.load %arg14[%c1_159, %c0_160, %c1_161] : memref<2x32x10xbf16, #tpu.memory_space<vmem>>, vector<1x32x8xbf16>
    %151 = vector.shape_cast %150 : vector<1x32x8xbf16> to vector<32x8xbf16>
    %cst_162 = arith.constant dense<0.000000e+00> : vector<16x8xf32>
    %152 = tpu.matmul %149, %151, %cst_162 {dimension_numbers = #tpu.dot_dimension_numbers<[1], [0], [0], [1], [0, 0, 1, 1], [], []>} : vector<16x32xbf16>, vector<32x8xbf16>, vector<16x8xf32> -> vector<16x8xf32>
    %153 = arith.addf %147, %152 : vector<16x8xf32>
    %c4_163 = arith.constant 4 : index
    %c0_164 = arith.constant 0 : index
    %c0_165 = arith.constant 0 : index
    %154 = vector.load %arg8[%c4_163, %c0_164, %c0_165] : memref<5x16x32xbf16, #tpu.memory_space<vmem>>, vector<1x16x32xbf16>
    %155 = vector.shape_cast %154 : vector<1x16x32xbf16> to vector<16x32xbf16>
    %c0_166 = arith.constant 0 : index
    %c0_167 = arith.constant 0 : index
    %c1_168 = arith.constant 1 : index
    %156 = vector.load %arg14[%c0_166, %c0_167, %c1_168] : memref<2x32x10xbf16, #tpu.memory_space<vmem>>, vector<1x32x8xbf16>
    %157 = vector.shape_cast %156 : vector<1x32x8xbf16> to vector<32x8xbf16>
    %cst_169 = arith.constant dense<0.000000e+00> : vector<16x8xf32>
    %158 = tpu.matmul %155, %157, %cst_169 {dimension_numbers = #tpu.dot_dimension_numbers<[1], [0], [0], [1], [0, 0, 1, 1], [], []>} : vector<16x32xbf16>, vector<32x8xbf16>, vector<16x8xf32> -> vector<16x8xf32>
    %159 = arith.addf %153, %158 : vector<16x8xf32>
    %160 = vector.broadcast %106 : vector<16x1xf32> to vector<16x8xf32>
    %161 = arith.addf %159, %160 : vector<16x8xf32>
    %cst_170 = arith.constant 0.000000e+00 : f32
    %162 = vector.broadcast %cst_170 : f32 to vector<16x8xf32>
    %163 = arith.maximumf %161, %162 : vector<16x8xf32>
    %c1_171 = arith.constant 1 : index
    %c0_172 = arith.constant 0 : index
    %c0_173 = arith.constant 0 : index
    %164 = vector.load %arg8[%c1_171, %c0_172, %c0_173] : memref<5x16x32xbf16, #tpu.memory_space<vmem>>, vector<1x16x32xbf16>
    %165 = vector.shape_cast %164 : vector<1x16x32xbf16> to vector<16x32xbf16>
    %c0_174 = arith.constant 0 : index
    %c0_175 = arith.constant 0 : index
    %c2_176 = arith.constant 2 : index
    %166 = vector.load %arg14[%c0_174, %c0_175, %c2_176] : memref<2x32x10xbf16, #tpu.memory_space<vmem>>, vector<1x32x8xbf16>
    %167 = vector.shape_cast %166 : vector<1x32x8xbf16> to vector<32x8xbf16>
    %cst_177 = arith.constant dense<0.000000e+00> : vector<16x8xf32>
    %168 = tpu.matmul %165, %167, %cst_177 {dimension_numbers = #tpu.dot_dimension_numbers<[1], [0], [0], [1], [0, 0, 1, 1], [], []>} : vector<16x32xbf16>, vector<32x8xbf16>, vector<16x8xf32> -> vector<16x8xf32>
    %c3_178 = arith.constant 3 : index
    %c0_179 = arith.constant 0 : index
    %c0_180 = arith.constant 0 : index
    %169 = vector.load %arg8[%c3_178, %c0_179, %c0_180] : memref<5x16x32xbf16, #tpu.memory_space<vmem>>, vector<1x16x32xbf16>
    %170 = vector.shape_cast %169 : vector<1x16x32xbf16> to vector<16x32xbf16>
    %c1_181 = arith.constant 1 : index
    %c0_182 = arith.constant 0 : index
    %c1_183 = arith.constant 1 : index
    %171 = vector.load %arg14[%c1_181, %c0_182, %c1_183] : memref<2x32x10xbf16, #tpu.memory_space<vmem>>, vector<1x32x8xbf16>
    %172 = vector.shape_cast %171 : vector<1x32x8xbf16> to vector<32x8xbf16>
    %cst_184 = arith.constant dense<0.000000e+00> : vector<16x8xf32>
    %173 = tpu.matmul %170, %172, %cst_184 {dimension_numbers = #tpu.dot_dimension_numbers<[1], [0], [0], [1], [0, 0, 1, 1], [], []>} : vector<16x32xbf16>, vector<32x8xbf16>, vector<16x8xf32> -> vector<16x8xf32>
    %174 = arith.addf %168, %173 : vector<16x8xf32>
    %175 = vector.broadcast %106 : vector<16x1xf32> to vector<16x8xf32>
    %176 = arith.addf %174, %175 : vector<16x8xf32>
    %cst_185 = arith.constant 0.000000e+00 : f32
    %177 = vector.broadcast %cst_185 : f32 to vector<16x8xf32>
    %178 = arith.maximumf %176, %177 : vector<16x8xf32>
    %179 = arith.truncf %127 : vector<16x8xf32> to vector<16x8xbf16>
    %c0_186 = arith.constant 0 : index
    %c0_187 = arith.constant 0 : index
    %c1_188 = arith.constant 1 : index
    %180 = vector.load %arg15[%c0_186, %c0_187, %c1_188] : memref<4x16x10xbf16, #tpu.memory_space<vmem>>, vector<1x16x8xbf16>
    %181 = vector.shape_cast %180 : vector<1x16x8xbf16> to vector<16x8xbf16>
    %182 = vector.shape_cast %179 : vector<16x8xbf16> to vector<1x16x8xbf16>
    tpu.vector_store %arg15[%c0_186, %c0_187, %c1_188], %182 {strides = array<i32>} : memref<4x16x10xbf16, #tpu.memory_space<vmem>>, vector<1x16x8xbf16>,
    %183 = arith.truncf %142 : vector<16x8xf32> to vector<16x8xbf16>
    %c1_189 = arith.constant 1 : index
    %c0_190 = arith.constant 0 : index
    %c1_191 = arith.constant 1 : index
    %184 = vector.load %arg15[%c1_189, %c0_190, %c1_191] : memref<4x16x10xbf16, #tpu.memory_space<vmem>>, vector<1x16x8xbf16>
    %185 = vector.shape_cast %184 : vector<1x16x8xbf16> to vector<16x8xbf16>
    %186 = vector.shape_cast %183 : vector<16x8xbf16> to vector<1x16x8xbf16>
    tpu.vector_store %arg15[%c1_189, %c0_190, %c1_191], %186 {strides = array<i32>} : memref<4x16x10xbf16, #tpu.memory_space<vmem>>, vector<1x16x8xbf16>,
    %187 = arith.truncf %163 : vector<16x8xf32> to vector<16x8xbf16>
    %c2_192 = arith.constant 2 : index
    %c0_193 = arith.constant 0 : index
    %c1_194 = arith.constant 1 : index
    %188 = vector.load %arg15[%c2_192, %c0_193, %c1_194] : memref<4x16x10xbf16, #tpu.memory_space<vmem>>, vector<1x16x8xbf16>
    %189 = vector.shape_cast %188 : vector<1x16x8xbf16> to vector<16x8xbf16>
    %190 = vector.shape_cast %187 : vector<16x8xbf16> to vector<1x16x8xbf16>
    tpu.vector_store %arg15[%c2_192, %c0_193, %c1_194], %190 {strides = array<i32>} : memref<4x16x10xbf16, #tpu.memory_space<vmem>>, vector<1x16x8xbf16>,
    %191 = arith.truncf %178 : vector<16x8xf32> to vector<16x8xbf16>
    %c3_195 = arith.constant 3 : index
    %c0_196 = arith.constant 0 : index
    %c1_197 = arith.constant 1 : index
    %192 = vector.load %arg15[%c3_195, %c0_196, %c1_197] : memref<4x16x10xbf16, #tpu.memory_space<vmem>>, vector<1x16x8xbf16>
    %193 = vector.shape_cast %192 : vector<1x16x8xbf16> to vector<16x8xbf16>
    %194 = vector.shape_cast %191 : vector<16x8xbf16> to vector<1x16x8xbf16>
    tpu.vector_store %arg15[%c3_195, %c0_196, %c1_197], %194 {strides = array<i32>} : memref<4x16x10xbf16, #tpu.memory_space<vmem>>, vector<1x16x8xbf16>,
    %c0_198 = arith.constant 0 : index
    %c0_199 = arith.constant 0 : index
    %195 = vector.load %arg11[%c0_198, %c0_199] : memref<16x1xf32, #tpu.memory_space<vmem>>, vector<16x1xf32>
    %c0_200 = arith.constant 0 : index
    %c0_201 = arith.constant 0 : index
    %c0_202 = arith.constant 0 : index
    %196 = vector.load %arg10[%c0_200, %c0_201, %c0_202] : memref<7x16x16xbf16, #tpu.memory_space<vmem>>, vector<1x16x16xbf16>
    %197 = vector.shape_cast %196 : vector<1x16x16xbf16> to vector<16x16xbf16>
    %c1_203 = arith.constant 1 : index
    %c0_204 = arith.constant 0 : index
    %c0_205 = arith.constant 0 : index
    %198 = vector.load %arg15[%c1_203, %c0_204, %c0_205] : memref<4x16x10xbf16, #tpu.memory_space<vmem>>, vector<1x16x8xbf16>
    %199 = vector.shape_cast %198 : vector<1x16x8xbf16> to vector<16x8xbf16>
    %cst_206 = arith.constant dense<0.000000e+00> : vector<16x8xf32>
    %200 = tpu.matmul %197, %199, %cst_206 {dimension_numbers = #tpu.dot_dimension_numbers<[1], [0], [0], [1], [0, 0, 1, 1], [], []>} : vector<16x16xbf16>, vector<16x8xbf16>, vector<16x8xf32> -> vector<16x8xf32>
    %c1_207 = arith.constant 1 : index
    %c0_208 = arith.constant 0 : index
    %c0_209 = arith.constant 0 : index
    %201 = vector.load %arg10[%c1_207, %c0_208, %c0_209] : memref<7x16x16xbf16, #tpu.memory_space<vmem>>, vector<1x16x16xbf16>
    %202 = vector.shape_cast %201 : vector<1x16x16xbf16> to vector<16x16xbf16>
    %c2_210 = arith.constant 2 : index
    %c0_211 = arith.constant 0 : index
    %c0_212 = arith.constant 0 : index
    %203 = vector.load %arg15[%c2_210, %c0_211, %c0_212] : memref<4x16x10xbf16, #tpu.memory_space<vmem>>, vector<1x16x8xbf16>
    %204 = vector.shape_cast %203 : vector<1x16x8xbf16> to vector<16x8xbf16>
    %cst_213 = arith.constant dense<0.000000e+00> : vector<16x8xf32>
    %205 = tpu.matmul %202, %204, %cst_213 {dimension_numbers = #tpu.dot_dimension_numbers<[1], [0], [0], [1], [0, 0, 1, 1], [], []>} : vector<16x16xbf16>, vector<16x8xbf16>, vector<16x8xf32> -> vector<16x8xf32>
    %206 = arith.addf %200, %205 : vector<16x8xf32>
    %c2_214 = arith.constant 2 : index
    %c0_215 = arith.constant 0 : index
    %c0_216 = arith.constant 0 : index
    %207 = vector.load %arg10[%c2_214, %c0_215, %c0_216] : memref<7x16x16xbf16, #tpu.memory_space<vmem>>, vector<1x16x16xbf16>
    %208 = vector.shape_cast %207 : vector<1x16x16xbf16> to vector<16x16xbf16>
    %c3_217 = arith.constant 3 : index
    %c0_218 = arith.constant 0 : index
    %c0_219 = arith.constant 0 : index
    %209 = vector.load %arg15[%c3_217, %c0_218, %c0_219] : memref<4x16x10xbf16, #tpu.memory_space<vmem>>, vector<1x16x8xbf16>
    %210 = vector.shape_cast %209 : vector<1x16x8xbf16> to vector<16x8xbf16>
    %cst_220 = arith.constant dense<0.000000e+00> : vector<16x8xf32>
    %211 = tpu.matmul %208, %210, %cst_220 {dimension_numbers = #tpu.dot_dimension_numbers<[1], [0], [0], [1], [0, 0, 1, 1], [], []>} : vector<16x16xbf16>, vector<16x8xbf16>, vector<16x8xf32> -> vector<16x8xf32>
    %212 = arith.addf %206, %211 : vector<16x8xf32>
    %c3_221 = arith.constant 3 : index
    %c0_222 = arith.constant 0 : index
    %c0_223 = arith.constant 0 : index
    %213 = vector.load %arg10[%c3_221, %c0_222, %c0_223] : memref<7x16x16xbf16, #tpu.memory_space<vmem>>, vector<1x16x16xbf16>
    %214 = vector.shape_cast %213 : vector<1x16x16xbf16> to vector<16x16xbf16>
    %c0_224 = arith.constant 0 : index
    %c0_225 = arith.constant 0 : index
    %c1_226 = arith.constant 1 : index
    %215 = vector.load %arg15[%c0_224, %c0_225, %c1_226] : memref<4x16x10xbf16, #tpu.memory_space<vmem>>, vector<1x16x8xbf16>
    %216 = vector.shape_cast %215 : vector<1x16x8xbf16> to vector<16x8xbf16>
    %cst_227 = arith.constant dense<0.000000e+00> : vector<16x8xf32>
    %217 = tpu.matmul %214, %216, %cst_227 {dimension_numbers = #tpu.dot_dimension_numbers<[1], [0], [0], [1], [0, 0, 1, 1], [], []>} : vector<16x16xbf16>, vector<16x8xbf16>, vector<16x8xf32> -> vector<16x8xf32>
    %218 = arith.addf %212, %217 : vector<16x8xf32>
    %c4_228 = arith.constant 4 : index
    %c0_229 = arith.constant 0 : index
    %c0_230 = arith.constant 0 : index
    %219 = vector.load %arg10[%c4_228, %c0_229, %c0_230] : memref<7x16x16xbf16, #tpu.memory_space<vmem>>, vector<1x16x16xbf16>
    %220 = vector.shape_cast %219 : vector<1x16x16xbf16> to vector<16x16xbf16>
    %c1_231 = arith.constant 1 : index
    %c0_232 = arith.constant 0 : index
    %c1_233 = arith.constant 1 : index
    %221 = vector.load %arg15[%c1_231, %c0_232, %c1_233] : memref<4x16x10xbf16, #tpu.memory_space<vmem>>, vector<1x16x8xbf16>
    %222 = vector.shape_cast %221 : vector<1x16x8xbf16> to vector<16x8xbf16>
    %cst_234 = arith.constant dense<0.000000e+00> : vector<16x8xf32>
    %223 = tpu.matmul %220, %222, %cst_234 {dimension_numbers = #tpu.dot_dimension_numbers<[1], [0], [0], [1], [0, 0, 1, 1], [], []>} : vector<16x16xbf16>, vector<16x8xbf16>, vector<16x8xf32> -> vector<16x8xf32>
    %224 = arith.addf %218, %223 : vector<16x8xf32>
    %c5 = arith.constant 5 : index
    %c0_235 = arith.constant 0 : index
    %c0_236 = arith.constant 0 : index
    %225 = vector.load %arg10[%c5, %c0_235, %c0_236] : memref<7x16x16xbf16, #tpu.memory_space<vmem>>, vector<1x16x16xbf16>
    %226 = vector.shape_cast %225 : vector<1x16x16xbf16> to vector<16x16xbf16>
    %c2_237 = arith.constant 2 : index
    %c0_238 = arith.constant 0 : index
    %c1_239 = arith.constant 1 : index
    %227 = vector.load %arg15[%c2_237, %c0_238, %c1_239] : memref<4x16x10xbf16, #tpu.memory_space<vmem>>, vector<1x16x8xbf16>
    %228 = vector.shape_cast %227 : vector<1x16x8xbf16> to vector<16x8xbf16>
    %cst_240 = arith.constant dense<0.000000e+00> : vector<16x8xf32>
    %229 = tpu.matmul %226, %228, %cst_240 {dimension_numbers = #tpu.dot_dimension_numbers<[1], [0], [0], [1], [0, 0, 1, 1], [], []>} : vector<16x16xbf16>, vector<16x8xbf16>, vector<16x8xf32> -> vector<16x8xf32>
    %230 = arith.addf %224, %229 : vector<16x8xf32>
    %c6 = arith.constant 6 : index
    %c0_241 = arith.constant 0 : index
    %c0_242 = arith.constant 0 : index
    %231 = vector.load %arg10[%c6, %c0_241, %c0_242] : memref<7x16x16xbf16, #tpu.memory_space<vmem>>, vector<1x16x16xbf16>
    %232 = vector.shape_cast %231 : vector<1x16x16xbf16> to vector<16x16xbf16>
    %c3_243 = arith.constant 3 : index
    %c0_244 = arith.constant 0 : index
    %c1_245 = arith.constant 1 : index
    %233 = vector.load %arg15[%c3_243, %c0_244, %c1_245] : memref<4x16x10xbf16, #tpu.memory_space<vmem>>, vector<1x16x8xbf16>
    %234 = vector.shape_cast %233 : vector<1x16x8xbf16> to vector<16x8xbf16>
    %cst_246 = arith.constant dense<0.000000e+00> : vector<16x8xf32>
    %235 = tpu.matmul %232, %234, %cst_246 {dimension_numbers = #tpu.dot_dimension_numbers<[1], [0], [0], [1], [0, 0, 1, 1], [], []>} : vector<16x16xbf16>, vector<16x8xbf16>, vector<16x8xf32> -> vector<16x8xf32>
    %236 = arith.addf %230, %235 : vector<16x8xf32>
    %237 = vector.broadcast %195 : vector<16x1xf32> to vector<16x8xf32>
    %238 = arith.addf %236, %237 : vector<16x8xf32>
    %c0_247 = arith.constant 0 : index
    %c0_248 = arith.constant 0 : index
    %c0_249 = arith.constant 0 : index
    %239 = vector.load %arg10[%c0_247, %c0_248, %c0_249] : memref<7x16x16xbf16, #tpu.memory_space<vmem>>, vector<1x16x16xbf16>
    %240 = vector.shape_cast %239 : vector<1x16x16xbf16> to vector<16x16xbf16>
    %c2_250 = arith.constant 2 : index
    %c0_251 = arith.constant 0 : index
    %c0_252 = arith.constant 0 : index
    %241 = vector.load %arg15[%c2_250, %c0_251, %c0_252] : memref<4x16x10xbf16, #tpu.memory_space<vmem>>, vector<1x16x8xbf16>
    %242 = vector.shape_cast %241 : vector<1x16x8xbf16> to vector<16x8xbf16>
    %cst_253 = arith.constant dense<0.000000e+00> : vector<16x8xf32>
    %243 = tpu.matmul %240, %242, %cst_253 {dimension_numbers = #tpu.dot_dimension_numbers<[1], [0], [0], [1], [0, 0, 1, 1], [], []>} : vector<16x16xbf16>, vector<16x8xbf16>, vector<16x8xf32> -> vector<16x8xf32>
    %c1_254 = arith.constant 1 : index
    %c0_255 = arith.constant 0 : index
    %c0_256 = arith.constant 0 : index
    %244 = vector.load %arg10[%c1_254, %c0_255, %c0_256] : memref<7x16x16xbf16, #tpu.memory_space<vmem>>, vector<1x16x16xbf16>
    %245 = vector.shape_cast %244 : vector<1x16x16xbf16> to vector<16x16xbf16>
    %c3_257 = arith.constant 3 : index
    %c0_258 = arith.constant 0 : index
    %c0_259 = arith.constant 0 : index
    %246 = vector.load %arg15[%c3_257, %c0_258, %c0_259] : memref<4x16x10xbf16, #tpu.memory_space<vmem>>, vector<1x16x8xbf16>
    %247 = vector.shape_cast %246 : vector<1x16x8xbf16> to vector<16x8xbf16>
    %cst_260 = arith.constant dense<0.000000e+00> : vector<16x8xf32>
    %248 = tpu.matmul %245, %247, %cst_260 {dimension_numbers = #tpu.dot_dimension_numbers<[1], [0], [0], [1], [0, 0, 1, 1], [], []>} : vector<16x16xbf16>, vector<16x8xbf16>, vector<16x8xf32> -> vector<16x8xf32>
    %249 = arith.addf %243, %248 : vector<16x8xf32>
    %c2_261 = arith.constant 2 : index
    %c0_262 = arith.constant 0 : index
    %c0_263 = arith.constant 0 : index
    %250 = vector.load %arg10[%c2_261, %c0_262, %c0_263] : memref<7x16x16xbf16, #tpu.memory_space<vmem>>, vector<1x16x16xbf16>
    %251 = vector.shape_cast %250 : vector<1x16x16xbf16> to vector<16x16xbf16>
    %c0_264 = arith.constant 0 : index
    %c0_265 = arith.constant 0 : index
    %c1_266 = arith.constant 1 : index
    %252 = vector.load %arg15[%c0_264, %c0_265, %c1_266] : memref<4x16x10xbf16, #tpu.memory_space<vmem>>, vector<1x16x8xbf16>
    %253 = vector.shape_cast %252 : vector<1x16x8xbf16> to vector<16x8xbf16>
    %cst_267 = arith.constant dense<0.000000e+00> : vector<16x8xf32>
    %254 = tpu.matmul %251, %253, %cst_267 {dimension_numbers = #tpu.dot_dimension_numbers<[1], [0], [0], [1], [0, 0, 1, 1], [], []>} : vector<16x16xbf16>, vector<16x8xbf16>, vector<16x8xf32> -> vector<16x8xf32>
    %255 = arith.addf %249, %254 : vector<16x8xf32>
    %c3_268 = arith.constant 3 : index
    %c0_269 = arith.constant 0 : index
    %c0_270 = arith.constant 0 : index
    %256 = vector.load %arg10[%c3_268, %c0_269, %c0_270] : memref<7x16x16xbf16, #tpu.memory_space<vmem>>, vector<1x16x16xbf16>
    %257 = vector.shape_cast %256 : vector<1x16x16xbf16> to vector<16x16xbf16>
    %c1_271 = arith.constant 1 : index
    %c0_272 = arith.constant 0 : index
    %c1_273 = arith.constant 1 : index
    %258 = vector.load %arg15[%c1_271, %c0_272, %c1_273] : memref<4x16x10xbf16, #tpu.memory_space<vmem>>, vector<1x16x8xbf16>
    %259 = vector.shape_cast %258 : vector<1x16x8xbf16> to vector<16x8xbf16>
    %cst_274 = arith.constant dense<0.000000e+00> : vector<16x8xf32>
    %260 = tpu.matmul %257, %259, %cst_274 {dimension_numbers = #tpu.dot_dimension_numbers<[1], [0], [0], [1], [0, 0, 1, 1], [], []>} : vector<16x16xbf16>, vector<16x8xbf16>, vector<16x8xf32> -> vector<16x8xf32>
    %261 = arith.addf %255, %260 : vector<16x8xf32>
    %c4_275 = arith.constant 4 : index
    %c0_276 = arith.constant 0 : index
    %c0_277 = arith.constant 0 : index
    %262 = vector.load %arg10[%c4_275, %c0_276, %c0_277] : memref<7x16x16xbf16, #tpu.memory_space<vmem>>, vector<1x16x16xbf16>
    %263 = vector.shape_cast %262 : vector<1x16x16xbf16> to vector<16x16xbf16>
    %c2_278 = arith.constant 2 : index
    %c0_279 = arith.constant 0 : index
    %c1_280 = arith.constant 1 : index
    %264 = vector.load %arg15[%c2_278, %c0_279, %c1_280] : memref<4x16x10xbf16, #tpu.memory_space<vmem>>, vector<1x16x8xbf16>
    %265 = vector.shape_cast %264 : vector<1x16x8xbf16> to vector<16x8xbf16>
    %cst_281 = arith.constant dense<0.000000e+00> : vector<16x8xf32>
    %266 = tpu.matmul %263, %265, %cst_281 {dimension_numbers = #tpu.dot_dimension_numbers<[1], [0], [0], [1], [0, 0, 1, 1], [], []>} : vector<16x16xbf16>, vector<16x8xbf16>, vector<16x8xf32> -> vector<16x8xf32>
    %267 = arith.addf %261, %266 : vector<16x8xf32>
    %c5_282 = arith.constant 5 : index
    %c0_283 = arith.constant 0 : index
    %c0_284 = arith.constant 0 : index
    %268 = vector.load %arg10[%c5_282, %c0_283, %c0_284] : memref<7x16x16xbf16, #tpu.memory_space<vmem>>, vector<1x16x16xbf16>
    %269 = vector.shape_cast %268 : vector<1x16x16xbf16> to vector<16x16xbf16>
    %c3_285 = arith.constant 3 : index
    %c0_286 = arith.constant 0 : index
    %c1_287 = arith.constant 1 : index
    %270 = vector.load %arg15[%c3_285, %c0_286, %c1_287] : memref<4x16x10xbf16, #tpu.memory_space<vmem>>, vector<1x16x8xbf16>
    %271 = vector.shape_cast %270 : vector<1x16x8xbf16> to vector<16x8xbf16>
    %cst_288 = arith.constant dense<0.000000e+00> : vector<16x8xf32>
    %272 = tpu.matmul %269, %271, %cst_288 {dimension_numbers = #tpu.dot_dimension_numbers<[1], [0], [0], [1], [0, 0, 1, 1], [], []>} : vector<16x16xbf16>, vector<16x8xbf16>, vector<16x8xf32> -> vector<16x8xf32>
    %273 = arith.addf %267, %272 : vector<16x8xf32>
    %c6_289 = arith.constant 6 : index
    %c0_290 = arith.constant 0 : index
    %c0_291 = arith.constant 0 : index
    %274 = vector.load %arg10[%c6_289, %c0_290, %c0_291] : memref<7x16x16xbf16, #tpu.memory_space<vmem>>, vector<1x16x16xbf16>
    %275 = vector.shape_cast %274 : vector<1x16x16xbf16> to vector<16x16xbf16>
    %c0_292 = arith.constant 0 : index
    %c0_293 = arith.constant 0 : index
    %c2_294 = arith.constant 2 : index
    %276 = vector.load %arg15[%c0_292, %c0_293, %c2_294] : memref<4x16x10xbf16, #tpu.memory_space<vmem>>, vector<1x16x8xbf16>
    %277 = vector.shape_cast %276 : vector<1x16x8xbf16> to vector<16x8xbf16>
    %cst_295 = arith.constant dense<0.000000e+00> : vector<16x8xf32>
    %278 = tpu.matmul %275, %277, %cst_295 {dimension_numbers = #tpu.dot_dimension_numbers<[1], [0], [0], [1], [0, 0, 1, 1], [], []>} : vector<16x16xbf16>, vector<16x8xbf16>, vector<16x8xf32> -> vector<16x8xf32>
    %279 = arith.addf %273, %278 : vector<16x8xf32>
    %280 = vector.broadcast %195 : vector<16x1xf32> to vector<16x8xf32>
    %281 = arith.addf %279, %280 : vector<16x8xf32>
    %c0_296 = arith.constant 0 : index
    %c0_297 = arith.constant 0 : index
    %c0_298 = arith.constant 0 : index
    %282 = vector.load %arg10[%c0_296, %c0_297, %c0_298] : memref<7x16x16xbf16, #tpu.memory_space<vmem>>, vector<1x16x16xbf16>
    %283 = vector.shape_cast %282 : vector<1x16x16xbf16> to vector<16x16xbf16>
    %c3_299 = arith.constant 3 : index
    %c0_300 = arith.constant 0 : index
    %c0_301 = arith.constant 0 : index
    %284 = vector.load %arg15[%c3_299, %c0_300, %c0_301] : memref<4x16x10xbf16, #tpu.memory_space<vmem>>, vector<1x16x8xbf16>
    %285 = vector.shape_cast %284 : vector<1x16x8xbf16> to vector<16x8xbf16>
    %cst_302 = arith.constant dense<0.000000e+00> : vector<16x8xf32>
    %286 = tpu.matmul %283, %285, %cst_302 {dimension_numbers = #tpu.dot_dimension_numbers<[1], [0], [0], [1], [0, 0, 1, 1], [], []>} : vector<16x16xbf16>, vector<16x8xbf16>, vector<16x8xf32> -> vector<16x8xf32>
    %c1_303 = arith.constant 1 : index
    %c0_304 = arith.constant 0 : index
    %c0_305 = arith.constant 0 : index
    %287 = vector.load %arg10[%c1_303, %c0_304, %c0_305] : memref<7x16x16xbf16, #tpu.memory_space<vmem>>, vector<1x16x16xbf16>
    %288 = vector.shape_cast %287 : vector<1x16x16xbf16> to vector<16x16xbf16>
    %c0_306 = arith.constant 0 : index
    %c0_307 = arith.constant 0 : index
    %c1_308 = arith.constant 1 : index
    %289 = vector.load %arg15[%c0_306, %c0_307, %c1_308] : memref<4x16x10xbf16, #tpu.memory_space<vmem>>, vector<1x16x8xbf16>
    %290 = vector.shape_cast %289 : vector<1x16x8xbf16> to vector<16x8xbf16>
    %cst_309 = arith.constant dense<0.000000e+00> : vector<16x8xf32>
    %291 = tpu.matmul %288, %290, %cst_309 {dimension_numbers = #tpu.dot_dimension_numbers<[1], [0], [0], [1], [0, 0, 1, 1], [], []>} : vector<16x16xbf16>, vector<16x8xbf16>, vector<16x8xf32> -> vector<16x8xf32>
    %292 = arith.addf %286, %291 : vector<16x8xf32>
    %c2_310 = arith.constant 2 : index
    %c0_311 = arith.constant 0 : index
    %c0_312 = arith.constant 0 : index
    %293 = vector.load %arg10[%c2_310, %c0_311, %c0_312] : memref<7x16x16xbf16, #tpu.memory_space<vmem>>, vector<1x16x16xbf16>
    %294 = vector.shape_cast %293 : vector<1x16x16xbf16> to vector<16x16xbf16>
    %c1_313 = arith.constant 1 : index
    %c0_314 = arith.constant 0 : index
    %c1_315 = arith.constant 1 : index
    %295 = vector.load %arg15[%c1_313, %c0_314, %c1_315] : memref<4x16x10xbf16, #tpu.memory_space<vmem>>, vector<1x16x8xbf16>
    %296 = vector.shape_cast %295 : vector<1x16x8xbf16> to vector<16x8xbf16>
    %cst_316 = arith.constant dense<0.000000e+00> : vector<16x8xf32>
    %297 = tpu.matmul %294, %296, %cst_316 {dimension_numbers = #tpu.dot_dimension_numbers<[1], [0], [0], [1], [0, 0, 1, 1], [], []>} : vector<16x16xbf16>, vector<16x8xbf16>, vector<16x8xf32> -> vector<16x8xf32>
    %298 = arith.addf %292, %297 : vector<16x8xf32>
    %c3_317 = arith.constant 3 : index
    %c0_318 = arith.constant 0 : index
    %c0_319 = arith.constant 0 : index
    %299 = vector.load %arg10[%c3_317, %c0_318, %c0_319] : memref<7x16x16xbf16, #tpu.memory_space<vmem>>, vector<1x16x16xbf16>
    %300 = vector.shape_cast %299 : vector<1x16x16xbf16> to vector<16x16xbf16>
    %c2_320 = arith.constant 2 : index
    %c0_321 = arith.constant 0 : index
    %c1_322 = arith.constant 1 : index
    %301 = vector.load %arg15[%c2_320, %c0_321, %c1_322] : memref<4x16x10xbf16, #tpu.memory_space<vmem>>, vector<1x16x8xbf16>
    %302 = vector.shape_cast %301 : vector<1x16x8xbf16> to vector<16x8xbf16>
    %cst_323 = arith.constant dense<0.000000e+00> : vector<16x8xf32>
    %303 = tpu.matmul %300, %302, %cst_323 {dimension_numbers = #tpu.dot_dimension_numbers<[1], [0], [0], [1], [0, 0, 1, 1], [], []>} : vector<16x16xbf16>, vector<16x8xbf16>, vector<16x8xf32> -> vector<16x8xf32>
    %304 = arith.addf %298, %303 : vector<16x8xf32>
    %c4_324 = arith.constant 4 : index
    %c0_325 = arith.constant 0 : index
    %c0_326 = arith.constant 0 : index
    %305 = vector.load %arg10[%c4_324, %c0_325, %c0_326] : memref<7x16x16xbf16, #tpu.memory_space<vmem>>, vector<1x16x16xbf16>
    %306 = vector.shape_cast %305 : vector<1x16x16xbf16> to vector<16x16xbf16>
    %c3_327 = arith.constant 3 : index
    %c0_328 = arith.constant 0 : index
    %c1_329 = arith.constant 1 : index
    %307 = vector.load %arg15[%c3_327, %c0_328, %c1_329] : memref<4x16x10xbf16, #tpu.memory_space<vmem>>, vector<1x16x8xbf16>
    %308 = vector.shape_cast %307 : vector<1x16x8xbf16> to vector<16x8xbf16>
    %cst_330 = arith.constant dense<0.000000e+00> : vector<16x8xf32>
    %309 = tpu.matmul %306, %308, %cst_330 {dimension_numbers = #tpu.dot_dimension_numbers<[1], [0], [0], [1], [0, 0, 1, 1], [], []>} : vector<16x16xbf16>, vector<16x8xbf16>, vector<16x8xf32> -> vector<16x8xf32>
    %310 = arith.addf %304, %309 : vector<16x8xf32>
    %c5_331 = arith.constant 5 : index
    %c0_332 = arith.constant 0 : index
    %c0_333 = arith.constant 0 : index
    %311 = vector.load %arg10[%c5_331, %c0_332, %c0_333] : memref<7x16x16xbf16, #tpu.memory_space<vmem>>, vector<1x16x16xbf16>
    %312 = vector.shape_cast %311 : vector<1x16x16xbf16> to vector<16x16xbf16>
    %c0_334 = arith.constant 0 : index
    %c0_335 = arith.constant 0 : index
    %c2_336 = arith.constant 2 : index
    %313 = vector.load %arg15[%c0_334, %c0_335, %c2_336] : memref<4x16x10xbf16, #tpu.memory_space<vmem>>, vector<1x16x8xbf16>
    %314 = vector.shape_cast %313 : vector<1x16x8xbf16> to vector<16x8xbf16>
    %cst_337 = arith.constant dense<0.000000e+00> : vector<16x8xf32>
    %315 = tpu.matmul %312, %314, %cst_337 {dimension_numbers = #tpu.dot_dimension_numbers<[1], [0], [0], [1], [0, 0, 1, 1], [], []>} : vector<16x16xbf16>, vector<16x8xbf16>, vector<16x8xf32> -> vector<16x8xf32>
    %316 = arith.addf %310, %315 : vector<16x8xf32>
    %c6_338 = arith.constant 6 : index
    %c0_339 = arith.constant 0 : index
    %c0_340 = arith.constant 0 : index
    %317 = vector.load %arg10[%c6_338, %c0_339, %c0_340] : memref<7x16x16xbf16, #tpu.memory_space<vmem>>, vector<1x16x16xbf16>
    %318 = vector.shape_cast %317 : vector<1x16x16xbf16> to vector<16x16xbf16>
    %c1_341 = arith.constant 1 : index
    %c0_342 = arith.constant 0 : index
    %c2_343 = arith.constant 2 : index
    %319 = vector.load %arg15[%c1_341, %c0_342, %c2_343] : memref<4x16x10xbf16, #tpu.memory_space<vmem>>, vector<1x16x8xbf16>
    %320 = vector.shape_cast %319 : vector<1x16x8xbf16> to vector<16x8xbf16>
    %cst_344 = arith.constant dense<0.000000e+00> : vector<16x8xf32>
    %321 = tpu.matmul %318, %320, %cst_344 {dimension_numbers = #tpu.dot_dimension_numbers<[1], [0], [0], [1], [0, 0, 1, 1], [], []>} : vector<16x16xbf16>, vector<16x8xbf16>, vector<16x8xf32> -> vector<16x8xf32>
    %322 = arith.addf %316, %321 : vector<16x8xf32>
    %323 = vector.broadcast %195 : vector<16x1xf32> to vector<16x8xf32>
    %324 = arith.addf %322, %323 : vector<16x8xf32>
    %c0_345 = arith.constant 0 : index
    %c0_346 = arith.constant 0 : index
    %c0_347 = arith.constant 0 : index
    %325 = vector.load %arg10[%c0_345, %c0_346, %c0_347] : memref<7x16x16xbf16, #tpu.memory_space<vmem>>, vector<1x16x16xbf16>
    %326 = vector.shape_cast %325 : vector<1x16x16xbf16> to vector<16x16xbf16>
    %c0_348 = arith.constant 0 : index
    %c0_349 = arith.constant 0 : index
    %c1_350 = arith.constant 1 : index
    %327 = vector.load %arg15[%c0_348, %c0_349, %c1_350] : memref<4x16x10xbf16, #tpu.memory_space<vmem>>, vector<1x16x8xbf16>
    %328 = vector.shape_cast %327 : vector<1x16x8xbf16> to vector<16x8xbf16>
    %cst_351 = arith.constant dense<0.000000e+00> : vector<16x8xf32>
    %329 = tpu.matmul %326, %328, %cst_351 {dimension_numbers = #tpu.dot_dimension_numbers<[1], [0], [0], [1], [0, 0, 1, 1], [], []>} : vector<16x16xbf16>, vector<16x8xbf16>, vector<16x8xf32> -> vector<16x8xf32>
    %c1_352 = arith.constant 1 : index
    %c0_353 = arith.constant 0 : index
    %c0_354 = arith.constant 0 : index
    %330 = vector.load %arg10[%c1_352, %c0_353, %c0_354] : memref<7x16x16xbf16, #tpu.memory_space<vmem>>, vector<1x16x16xbf16>
    %331 = vector.shape_cast %330 : vector<1x16x16xbf16> to vector<16x16xbf16>
    %c1_355 = arith.constant 1 : index
    %c0_356 = arith.constant 0 : index
    %c1_357 = arith.constant 1 : index
    %332 = vector.load %arg15[%c1_355, %c0_356, %c1_357] : memref<4x16x10xbf16, #tpu.memory_space<vmem>>, vector<1x16x8xbf16>
    %333 = vector.shape_cast %332 : vector<1x16x8xbf16> to vector<16x8xbf16>
    %cst_358 = arith.constant dense<0.000000e+00> : vector<16x8xf32>
    %334 = tpu.matmul %331, %333, %cst_358 {dimension_numbers = #tpu.dot_dimension_numbers<[1], [0], [0], [1], [0, 0, 1, 1], [], []>} : vector<16x16xbf16>, vector<16x8xbf16>, vector<16x8xf32> -> vector<16x8xf32>
    %335 = arith.addf %329, %334 : vector<16x8xf32>
    %c2_359 = arith.constant 2 : index
    %c0_360 = arith.constant 0 : index
    %c0_361 = arith.constant 0 : index
    %336 = vector.load %arg10[%c2_359, %c0_360, %c0_361] : memref<7x16x16xbf16, #tpu.memory_space<vmem>>, vector<1x16x16xbf16>
    %337 = vector.shape_cast %336 : vector<1x16x16xbf16> to vector<16x16xbf16>
    %c2_362 = arith.constant 2 : index
    %c0_363 = arith.constant 0 : index
    %c1_364 = arith.constant 1 : index
    %338 = vector.load %arg15[%c2_362, %c0_363, %c1_364] : memref<4x16x10xbf16, #tpu.memory_space<vmem>>, vector<1x16x8xbf16>
    %339 = vector.shape_cast %338 : vector<1x16x8xbf16> to vector<16x8xbf16>
    %cst_365 = arith.constant dense<0.000000e+00> : vector<16x8xf32>
    %340 = tpu.matmul %337, %339, %cst_365 {dimension_numbers = #tpu.dot_dimension_numbers<[1], [0], [0], [1], [0, 0, 1, 1], [], []>} : vector<16x16xbf16>, vector<16x8xbf16>, vector<16x8xf32> -> vector<16x8xf32>
    %341 = arith.addf %335, %340 : vector<16x8xf32>
    %c3_366 = arith.constant 3 : index
    %c0_367 = arith.constant 0 : index
    %c0_368 = arith.constant 0 : index
    %342 = vector.load %arg10[%c3_366, %c0_367, %c0_368] : memref<7x16x16xbf16, #tpu.memory_space<vmem>>, vector<1x16x16xbf16>
    %343 = vector.shape_cast %342 : vector<1x16x16xbf16> to vector<16x16xbf16>
    %c3_369 = arith.constant 3 : index
    %c0_370 = arith.constant 0 : index
    %c1_371 = arith.constant 1 : index
    %344 = vector.load %arg15[%c3_369, %c0_370, %c1_371] : memref<4x16x10xbf16, #tpu.memory_space<vmem>>, vector<1x16x8xbf16>
    %345 = vector.shape_cast %344 : vector<1x16x8xbf16> to vector<16x8xbf16>
    %cst_372 = arith.constant dense<0.000000e+00> : vector<16x8xf32>
    %346 = tpu.matmul %343, %345, %cst_372 {dimension_numbers = #tpu.dot_dimension_numbers<[1], [0], [0], [1], [0, 0, 1, 1], [], []>} : vector<16x16xbf16>, vector<16x8xbf16>, vector<16x8xf32> -> vector<16x8xf32>
    %347 = arith.addf %341, %346 : vector<16x8xf32>
    %c4_373 = arith.constant 4 : index
    %c0_374 = arith.constant 0 : index
    %c0_375 = arith.constant 0 : index
    %348 = vector.load %arg10[%c4_373, %c0_374, %c0_375] : memref<7x16x16xbf16, #tpu.memory_space<vmem>>, vector<1x16x16xbf16>
    %349 = vector.shape_cast %348 : vector<1x16x16xbf16> to vector<16x16xbf16>
    %c0_376 = arith.constant 0 : index
    %c0_377 = arith.constant 0 : index
    %c2_378 = arith.constant 2 : index
    %350 = vector.load %arg15[%c0_376, %c0_377, %c2_378] : memref<4x16x10xbf16, #tpu.memory_space<vmem>>, vector<1x16x8xbf16>
    %351 = vector.shape_cast %350 : vector<1x16x8xbf16> to vector<16x8xbf16>
    %cst_379 = arith.constant dense<0.000000e+00> : vector<16x8xf32>
    %352 = tpu.matmul %349, %351, %cst_379 {dimension_numbers = #tpu.dot_dimension_numbers<[1], [0], [0], [1], [0, 0, 1, 1], [], []>} : vector<16x16xbf16>, vector<16x8xbf16>, vector<16x8xf32> -> vector<16x8xf32>
    %353 = arith.addf %347, %352 : vector<16x8xf32>
    %c5_380 = arith.constant 5 : index
    %c0_381 = arith.constant 0 : index
    %c0_382 = arith.constant 0 : index
    %354 = vector.load %arg10[%c5_380, %c0_381, %c0_382] : memref<7x16x16xbf16, #tpu.memory_space<vmem>>, vector<1x16x16xbf16>
    %355 = vector.shape_cast %354 : vector<1x16x16xbf16> to vector<16x16xbf16>
    %c1_383 = arith.constant 1 : index
    %c0_384 = arith.constant 0 : index
    %c2_385 = arith.constant 2 : index
    %356 = vector.load %arg15[%c1_383, %c0_384, %c2_385] : memref<4x16x10xbf16, #tpu.memory_space<vmem>>, vector<1x16x8xbf16>
    %357 = vector.shape_cast %356 : vector<1x16x8xbf16> to vector<16x8xbf16>
    %cst_386 = arith.constant dense<0.000000e+00> : vector<16x8xf32>
    %358 = tpu.matmul %355, %357, %cst_386 {dimension_numbers = #tpu.dot_dimension_numbers<[1], [0], [0], [1], [0, 0, 1, 1], [], []>} : vector<16x16xbf16>, vector<16x8xbf16>, vector<16x8xf32> -> vector<16x8xf32>
    %359 = arith.addf %353, %358 : vector<16x8xf32>
    %c6_387 = arith.constant 6 : index
    %c0_388 = arith.constant 0 : index
    %c0_389 = arith.constant 0 : index
    %360 = vector.load %arg10[%c6_387, %c0_388, %c0_389] : memref<7x16x16xbf16, #tpu.memory_space<vmem>>, vector<1x16x16xbf16>
    %361 = vector.shape_cast %360 : vector<1x16x16xbf16> to vector<16x16xbf16>
    %c2_390 = arith.constant 2 : index
    %c0_391 = arith.constant 0 : index
    %c2_392 = arith.constant 2 : index
    %362 = vector.load %arg15[%c2_390, %c0_391, %c2_392] : memref<4x16x10xbf16, #tpu.memory_space<vmem>>, vector<1x16x8xbf16>
    %363 = vector.shape_cast %362 : vector<1x16x8xbf16> to vector<16x8xbf16>
    %cst_393 = arith.constant dense<0.000000e+00> : vector<16x8xf32>
    %364 = tpu.matmul %361, %363, %cst_393 {dimension_numbers = #tpu.dot_dimension_numbers<[1], [0], [0], [1], [0, 0, 1, 1], [], []>} : vector<16x16xbf16>, vector<16x8xbf16>, vector<16x8xf32> -> vector<16x8xf32>
    %365 = arith.addf %359, %364 : vector<16x8xf32>
    %366 = vector.broadcast %195 : vector<16x1xf32> to vector<16x8xf32>
    %367 = arith.addf %365, %366 : vector<16x8xf32>
    %c0_394 = arith.constant 0 : index
    %c0_395 = arith.constant 0 : index
    %c0_396 = arith.constant 0 : index
    %c0_397 = arith.constant 0 : index
    %368 = vector.load %arg12[%c0_394, %c0_395, %c0_396, %c0_397] : memref<1x4x16x8xf32, #tpu.memory_space<vmem>>, vector<1x1x16x8xf32>
    %369 = vector.shape_cast %368 : vector<1x1x16x8xf32> to vector<16x8xf32>
    %370 = vector.shape_cast %238 : vector<16x8xf32> to vector<1x1x16x8xf32>
    tpu.vector_store %arg12[%c0_394, %c0_395, %c0_396, %c0_397], %370 {strides = array<i32>} : memref<1x4x16x8xf32, #tpu.memory_space<vmem>>, vector<1x1x16x8xf32>,
    %c0_398 = arith.constant 0 : index
    %c1_399 = arith.constant 1 : index
    %c0_400 = arith.constant 0 : index
    %c0_401 = arith.constant 0 : index
    %371 = vector.load %arg12[%c0_398, %c1_399, %c0_400, %c0_401] : memref<1x4x16x8xf32, #tpu.memory_space<vmem>>, vector<1x1x16x8xf32>
    %372 = vector.shape_cast %371 : vector<1x1x16x8xf32> to vector<16x8xf32>
    %373 = vector.shape_cast %281 : vector<16x8xf32> to vector<1x1x16x8xf32>
    tpu.vector_store %arg12[%c0_398, %c1_399, %c0_400, %c0_401], %373 {strides = array<i32>} : memref<1x4x16x8xf32, #tpu.memory_space<vmem>>, vector<1x1x16x8xf32>,
    %c0_402 = arith.constant 0 : index
    %c2_403 = arith.constant 2 : index
    %c0_404 = arith.constant 0 : index
    %c0_405 = arith.constant 0 : index
    %374 = vector.load %arg12[%c0_402, %c2_403, %c0_404, %c0_405] : memref<1x4x16x8xf32, #tpu.memory_space<vmem>>, vector<1x1x16x8xf32>
    %375 = vector.shape_cast %374 : vector<1x1x16x8xf32> to vector<16x8xf32>
    %376 = vector.shape_cast %324 : vector<16x8xf32> to vector<1x1x16x8xf32>
    tpu.vector_store %arg12[%c0_402, %c2_403, %c0_404, %c0_405], %376 {strides = array<i32>} : memref<1x4x16x8xf32, #tpu.memory_space<vmem>>, vector<1x1x16x8xf32>,
    %c0_406 = arith.constant 0 : index
    %c3_407 = arith.constant 3 : index
    %c0_408 = arith.constant 0 : index
    %c0_409 = arith.constant 0 : index
    %377 = vector.load %arg12[%c0_406, %c3_407, %c0_408, %c0_409] : memref<1x4x16x8xf32, #tpu.memory_space<vmem>>, vector<1x1x16x8xf32>
    %378 = vector.shape_cast %377 : vector<1x1x16x8xf32> to vector<16x8xf32>
    %379 = vector.shape_cast %367 : vector<16x8xf32> to vector<1x1x16x8xf32>
    tpu.vector_store %arg12[%c0_406, %c3_407, %c0_408, %c0_409], %379 {strides = array<i32>} : memref<1x4x16x8xf32, #tpu.memory_space<vmem>>, vector<1x1x16x8xf32>,
    return
  }
  func.func @transform_0(%arg0: i32) -> (i32, i32, i32) {
    %c0_i32 = arith.constant 0 : i32
    %c0_i32_0 = arith.constant 0 : i32
    %c0_i32_1 = arith.constant 0 : i32
    return %arg0, %c0_i32, %c0_i32_0 : i32, i32, i32
  }
  func.func @transform_1(%arg0: i32) -> (i32, i32, i32, i32) {
    %c0_i32 = arith.constant 0 : i32
    %c0_i32_0 = arith.constant 0 : i32
    %c0_i32_1 = arith.constant 0 : i32
    %c0_i32_2 = arith.constant 0 : i32
    %c0_i32_3 = arith.constant 0 : i32
    return %c0_i32, %c0_i32_0, %c0_i32_1, %c0_i32_2 : i32, i32, i32, i32
  }
  func.func @transform_2(%arg0: i32) -> (i32, i32, i32) {
    %c0_i32 = arith.constant 0 : i32
    %c0_i32_0 = arith.constant 0 : i32
    %c0_i32_1 = arith.constant 0 : i32
    %c0_i32_2 = arith.constant 0 : i32
    return %c0_i32, %c0_i32_0, %c0_i32_1 : i32, i32, i32
  }
  func.func @transform_3(%arg0: i32) -> (i32, i32, i32, i32) {
    %c0_i32 = arith.constant 0 : i32
    %c0_i32_0 = arith.constant 0 : i32
    %c0_i32_1 = arith.constant 0 : i32
    %c0_i32_2 = arith.constant 0 : i32
    %c0_i32_3 = arith.constant 0 : i32
    return %c0_i32, %c0_i32_0, %c0_i32_1, %c0_i32_2 : i32, i32, i32, i32
  }
  func.func @transform_4(%arg0: i32) -> (i32, i32, i32) {
    %c0_i32 = arith.constant 0 : i32
    %c0_i32_0 = arith.constant 0 : i32
    %c0_i32_1 = arith.constant 0 : i32
    %c0_i32_2 = arith.constant 0 : i32
    return %c0_i32, %c0_i32_0, %c0_i32_1 : i32, i32, i32
  }
  func.func @transform_5(%arg0: i32) -> (i32, i32, i32) {
    %c0_i32 = arith.constant 0 : i32
    %c0_i32_0 = arith.constant 0 : i32
    %c0_i32_1 = arith.constant 0 : i32
    %c0_i32_2 = arith.constant 0 : i32
    return %c0_i32, %c0_i32_0, %c0_i32_1 : i32, i32, i32
  }
  func.func @transform_6(%arg0: i32) -> (i32, i32) {
    %c0_i32 = arith.constant 0 : i32
    %c0_i32_0 = arith.constant 0 : i32
    %c0_i32_1 = arith.constant 0 : i32
    return %c0_i32, %c0_i32_0 : i32, i32
  }
  func.func @transform_7(%arg0: i32) -> (i32, i32, i32) {
    %c0_i32 = arith.constant 0 : i32
    %c0_i32_0 = arith.constant 0 : i32
    %c0_i32_1 = arith.constant 0 : i32
    %c0_i32_2 = arith.constant 0 : i32
    return %c0_i32, %c0_i32_0, %c0_i32_1 : i32, i32, i32
  }
  func.func @transform_8(%arg0: i32) -> (i32, i32) {
    %c0_i32 = arith.constant 0 : i32
    %c0_i32_0 = arith.constant 0 : i32
    %c0_i32_1 = arith.constant 0 : i32
    return %c0_i32, %c0_i32_0 : i32, i32
  }
  func.func @transform_9(%arg0: i32) -> (i32, i32, i32) {
    %c0_i32 = arith.constant 0 : i32
    %c0_i32_0 = arith.constant 0 : i32
    %c0_i32_1 = arith.constant 0 : i32
    %c0_i32_2 = arith.constant 0 : i32
    return %c0_i32, %c0_i32_0, %c0_i32_1 : i32, i32, i32
  }
  func.func @transform_10(%arg0: i32) -> (i32, i32) {
    %c0_i32 = arith.constant 0 : i32
    %c0_i32_0 = arith.constant 0 : i32
    %c0_i32_1 = arith.constant 0 : i32
    return %c0_i32, %c0_i32_0 : i32, i32
  }
  func.func @transform_11(%arg0: i32) -> (i32, i32, i32, i32) {
    %c0_i32 = arith.constant 0 : i32
    %c0_i32_0 = arith.constant 0 : i32
    %c0_i32_1 = arith.constant 0 : i32
    %c0_i32_2 = arith.constant 0 : i32
    return %arg0, %c0_i32, %c0_i32_0, %c0_i32_1 : i32, i32, i32, i32
  }
}

</mosaic_0001>

<llo_original>
// kernel: eq.1
$region0: #{eq.1}
  %s0 = inlined_call_operand.vmem [shape: s32[2,8], index: 0, kind: input, shape index: {}]
  %s1 = inlined_call_operand.vmem [shape: s32[16], index: 1, kind: output, shape index: {}]
  $region1: #{eq.1} parent=0
    #allocation0 [shape = 'u8[4096]{0}', space=vmem, size = 0x1000, scoped, tag = 'scoped mem for output reshape']
    #allocation1 [shape = 'u8[4096]{0}', space=vmem, size = 0x1000, scoped, tag = 'scoped mem for input reshape']
    %s3 = sshll.u32 1, 2
    %s4 = ssub.s32 %s3, 1
    %v5 = vld [vmem:[%s0] sm:%s4]
    %6 = vst [vmem:[#allocation1] sm:%s4] %v5
    %v7 = vld [vmem:[#allocation1] sm:$0x1]
    %vm8 = vcmask 64512
    %9 = vst.msk [vmem:[#allocation0] sm:$0x1] %vm8, %v7
    %s10 = scalar_lea.vmem [#allocation1], 1
    %v11 = vld [vmem:[%s10] sm:$0x1]
    %12 = vrot.lane.b32.xlu0 %v11, 8
    %v13 = vpop.permute.xlu0 %12
    %vm14 = vcmask 130112
    %15 = vst.msk [vmem:[#allocation0] sm:$0x1] %vm14, %v13
    %s17 = sshll.u32 1, 1
    %s18 = ssub.s32 %s17, 1
    %v20 = vld [vmem:[#allocation0] sm:%s18]
    %s21 = sshll.u32 1, 1
    %s22 = ssub.s32 %s21, 1
    %23 = vst [vmem:[%s1] sm:%s22] %v20

// kernel: calcium_vqvae_forward.3
$region0: #{calcium_vqvae_forward.3}
  #allocation0 [shape = 'u32[]', space=smem, size = 0x4, offset = 0x4, fixed_abs, tag = 'smem constant byte address 0x4 - core index']
  #allocation1 [shape = 'u32[144,128]{1,0:T(1,128)}', space=vmem, size = 0x12000, scoped, tag = 'internal scratch']
  #allocation2 [shape = 'bf16[16,10]{1,0:T(8,128)(2,1)}', space=vmem, size = 0x1000, scoped, tag = 'scratch operand']
  #allocation3 [shape = 'bf16[2,32,10]{2,1,0:T(8,128)(2,1)}', space=vmem, size = 0x4000, scoped, tag = 'scratch operand']
  #allocation4 [shape = 'bf16[4,16,10]{2,1,0:T(8,128)(2,1)}', space=vmem, size = 0x4000, scoped, tag = 'scratch operand']
  %s0 = inlined_call_operand.vmem [shape: f32[2,16,8], index: 0, kind: input, shape index: {}]
  %s1 = inlined_call_operand.vmem [shape: bf16[2,3,8,16], index: 1, kind: input, shape index: {}]
  %s2 = inlined_call_operand.vmem [shape: f32[2,8,1], index: 2, kind: input, shape index: {}]
  %s3 = inlined_call_operand.vmem [shape: bf16[2,1,16,8], index: 3, kind: input, shape index: {}]
  %s4 = inlined_call_operand.vmem [shape: f32[2,16,1], index: 4, kind: input, shape index: {}]
  %s5 = inlined_call_operand.vmem [shape: bf16[3,32,16], index: 5, kind: input, shape index: {}]
  %s6 = inlined_call_operand.vmem [shape: f32[32,1], index: 6, kind: input, shape index: {}]
  %s7 = inlined_call_operand.vmem [shape: bf16[5,16,32], index: 7, kind: input, shape index: {}]
  %s8 = inlined_call_operand.vmem [shape: f32[16,1], index: 8, kind: input, shape index: {}]
  %s9 = inlined_call_operand.vmem [shape: bf16[7,16,16], index: 9, kind: input, shape index: {}]
  %s10 = inlined_call_operand.vmem [shape: f32[16,1], index: 10, kind: input, shape index: {}]
  %s11 = inlined_call_operand.vmem [shape: f32[2,4,16,8], index: 11, kind: output, shape index: {}]
  %s12 = sld [smem:[#allocation0]]
  $region77: #{calcium_vqvae_forward.3} parent=0
    _
  %s14 = ssub.s32 1, %s12
  %s15 = scalar_select 0, %s14, %s12
  loop: start=0, step=1, limit=4
  $region2: #{calcium_vqvae_forward.3} parent=0 // loop_pre_header
    _
  $region3: #{calcium_vqvae_forward.3} parent=0 // loop_header
    %s17 = sphi 0, %s21
    %p18 = scmp.ge.s32.totalorder %s17, 4
    %s27 = sphi 0, %s29
    %s30 = sphi 0, %s27
    %s31 = sphi 0, %s30
    %s47 = sphi 0, %s31
    %s51 = sphi 0, %s51
    %s53 = sphi 0, %s51
    %s54 = sphi 0, %s53
    %s68 = sphi 0, %s54
    %s72 = sphi 0, %s72
    %s74 = sphi 0, %s72
    %s75 = sphi 0, %s74
    %s89 = sphi 0, %s75
    %s93 = sphi 0, %s93
    %s95 = sphi 0, %s93
    %s96 = sphi 0, %s95
    %s110 = sphi 0, %s96
    %s114 = sphi 0, %s114
    %s116 = sphi 0, %s114
    %s117 = sphi 0, %s116
    %s131 = sphi 0, %s117
    %s135 = sphi 0, %s135
    %s137 = sphi 0, %s135
    %s138 = sphi 0, %s137
    %s152 = sphi 0, %s138
    %s156 = sphi 0, %s156
    %s158 = sphi 0, %s156
    %s159 = sphi 0, %s158
    %s173 = sphi 0, %s159
    %s177 = sphi 0, %s177
    %s179 = sphi 0, %s177
    %s180 = sphi 0, %s179
    %s194 = sphi 0, %s180
    %s198 = sphi 0, %s198
    %s200 = sphi 0, %s198
    %s201 = sphi 0, %s200
    %s215 = sphi 0, %s201
    %s219 = sphi 0, %s219
    %s221 = sphi 0, %s219
    %s222 = sphi 0, %s221
    %s236 = sphi 0, %s222
    %s240 = sphi 0, %s240
    %s242 = sphi 0, %s240
    %s243 = sphi 0, %s242
    %s257 = sphi 0, %s243
    %s263 = sphi 0, %s265
    %s266 = sphi 0, %s263
    %s267 = sphi 0, %s266
    %s283 = sphi 0, %s267
  $region4: #{calcium_vqvae_forward.3} parent=0 // loop_header_branch
    %20 = sbr.rel (%p18) target = $region8
  $region5: #{calcium_vqvae_forward.3} parent=0 // loop_body
    %s22 = ssub.s32 %s17, 1
    %s23 = ssub.s32 %s17, 2
    %s24 = sadd.s32 %s17, 1
    %s25 = ssub.s32 %s17, %s24
    %p26 = scmp.eq.s32.totalorder %s25, 0
    %s28 = sadd.s32 %s27, 1
    %s29 = scalar_select %p26, %s27, %s28
    %p32 = pneg %p26
    %p33 = scmp.eq.s32.totalorder %s17, 1
    %p34 = por %p32, %p33
    %p35 = scmp.ne.s32.totalorder %s27, %s30
    %p36 = scmp.eq.s32.totalorder %s17, 0
    %p37 = por %p35, %p36
    %p38 = scmp.ne.s32.totalorder %s27, %s30
    %p39 = scmp.eq.s32.totalorder %s22, 1
    %p40 = por %p38, %p39
    %p41 = scmp.ne.s32.totalorder %s30, %s31
    %p42 = scmp.eq.s32.totalorder %s22, 0
    %p43 = por %p41, %p42
    %p44 = scmp.ne.s32.totalorder %s30, %s31
    %p45 = scmp.eq.s32.totalorder %s23, 1
    %p46 = por %p44, %p45
    %p48 = scmp.ne.s32.totalorder %s31, %s47
    %p49 = scmp.eq.s32.totalorder %s23, 0
    %p50 = por %p48, %p49
    %s52 = sadd.s32 %s51, 1
    %p55 = scmp.eq.s32.totalorder %s17, 1
    %p56 = scmp.ne.s32.totalorder %s51, %s53
    %p57 = scmp.eq.s32.totalorder %s17, 0
    %p58 = por %p56, %p57
    %p59 = scmp.ne.s32.totalorder %s51, %s53
    %p60 = scmp.eq.s32.totalorder %s22, 1
    %p61 = por %p59, %p60
    %p62 = scmp.ne.s32.totalorder %s53, %s54
    %p63 = scmp.eq.s32.totalorder %s22, 0
    %p64 = por %p62, %p63
    %p65 = scmp.ne.s32.totalorder %s53, %s54
    %p66 = scmp.eq.s32.totalorder %s23, 1
    %p67 = por %p65, %p66
    %p69 = scmp.ne.s32.totalorder %s54, %s68
    %p70 = scmp.eq.s32.totalorder %s23, 0
    %p71 = por %p69, %p70
    %s73 = sadd.s32 %s72, 1
    %p76 = scmp.eq.s32.totalorder %s17, 1
    %p77 = scmp.ne.s32.totalorder %s72, %s74
    %p78 = scmp.eq.s32.totalorder %s17, 0
    %p79 = por %p77, %p78
    %p80 = scmp.ne.s32.totalorder %s72, %s74
    %p81 = scmp.eq.s32.totalorder %s22, 1
    %p82 = por %p80, %p81
    %p83 = scmp.ne.s32.totalorder %s74, %s75
    %p84 = scmp.eq.s32.totalorder %s22, 0
    %p85 = por %p83, %p84
    %p86 = scmp.ne.s32.totalorder %s74, %s75
    %p87 = scmp.eq.s32.totalorder %s23, 1
    %p88 = por %p86, %p87
    %p90 = scmp.ne.s32.totalorder %s75, %s89
    %p91 = scmp.eq.s32.totalorder %s23, 0
    %p92 = por %p90, %p91
    %s94 = sadd.s32 %s93, 1
    %p97 = scmp.eq.s32.totalorder %s17, 1
    %p98 = scmp.ne.s32.totalorder %s93, %s95
    %p99 = scmp.eq.s32.totalorder %s17, 0
    %p100 = por %p98, %p99
    %p101 = scmp.ne.s32.totalorder %s93, %s95
    %p102 = scmp.eq.s32.totalorder %s22, 1
    %p103 = por %p101, %p102
    %p104 = scmp.ne.s32.totalorder %s95, %s96
    %p105 = scmp.eq.s32.totalorder %s22, 0
    %p106 = por %p104, %p105
    %p107 = scmp.ne.s32.totalorder %s95, %s96
    %p108 = scmp.eq.s32.totalorder %s23, 1
    %p109 = por %p107, %p108
    %p111 = scmp.ne.s32.totalorder %s96, %s110
    %p112 = scmp.eq.s32.totalorder %s23, 0
    %p113 = por %p111, %p112
    %s115 = sadd.s32 %s114, 1
    %p118 = scmp.eq.s32.totalorder %s17, 1
    %p119 = scmp.ne.s32.totalorder %s114, %s116
    %p120 = scmp.eq.s32.totalorder %s17, 0
    %p121 = por %p119, %p120
    %p122 = scmp.ne.s32.totalorder %s114, %s116
    %p123 = scmp.eq.s32.totalorder %s22, 1
    %p124 = por %p122, %p123
    %p125 = scmp.ne.s32.totalorder %s116, %s117
    %p126 = scmp.eq.s32.totalorder %s22, 0
    %p127 = por %p125, %p126
    %p128 = scmp.ne.s32.totalorder %s116, %s117
    %p129 = scmp.eq.s32.totalorder %s23, 1
    %p130 = por %p128, %p129
    %p132 = scmp.ne.s32.totalorder %s117, %s131
    %p133 = scmp.eq.s32.totalorder %s23, 0
    %p134 = por %p132, %p133
    %s136 = sadd.s32 %s135, 1
    %p139 = scmp.eq.s32.totalorder %s17, 1
    %p140 = scmp.ne.s32.totalorder %s135, %s137
    %p141 = scmp.eq.s32.totalorder %s17, 0
    %p142 = por %p140, %p141
    %p143 = scmp.ne.s32.totalorder %s135, %s137
    %p144 = scmp.eq.s32.totalorder %s22, 1
    %p145 = por %p143, %p144
    %p146 = scmp.ne.s32.totalorder %s137, %s138
    %p147 = scmp.eq.s32.totalorder %s22, 0
    %p148 = por %p146, %p147
    %p149 = scmp.ne.s32.totalorder %s137, %s138
    %p150 = scmp.eq.s32.totalorder %s23, 1
    %p151 = por %p149, %p150
    %p153 = scmp.ne.s32.totalorder %s138, %s152
    %p154 = scmp.eq.s32.totalorder %s23, 0
    %p155 = por %p153, %p154
    %s157 = sadd.s32 %s156, 1
    %p160 = scmp.eq.s32.totalorder %s17, 1
    %p161 = scmp.ne.s32.totalorder %s156, %s158
    %p162 = scmp.eq.s32.totalorder %s17, 0
    %p163 = por %p161, %p162
    %p164 = scmp.ne.s32.totalorder %s156, %s158
    %p165 = scmp.eq.s32.totalorder %s22, 1
    %p166 = por %p164, %p165
    %p167 = scmp.ne.s32.totalorder %s158, %s159
    %p168 = scmp.eq.s32.totalorder %s22, 0
    %p169 = por %p167, %p168
    %p170 = scmp.ne.s32.totalorder %s158, %s159
    %p171 = scmp.eq.s32.totalorder %s23, 1
    %p172 = por %p170, %p171
    %p174 = scmp.ne.s32.totalorder %s159, %s173
    %p175 = scmp.eq.s32.totalorder %s23, 0
    %p176 = por %p174, %p175
    %s178 = sadd.s32 %s177, 1
    %p181 = scmp.eq.s32.totalorder %s17, 1
    %p182 = scmp.ne.s32.totalorder %s177, %s179
    %p183 = scmp.eq.s32.totalorder %s17, 0
    %p184 = por %p182, %p183
    %p185 = scmp.ne.s32.totalorder %s177, %s179
    %p186 = scmp.eq.s32.totalorder %s22, 1
    %p187 = por %p185, %p186
    %p188 = scmp.ne.s32.totalorder %s179, %s180
    %p189 = scmp.eq.s32.totalorder %s22, 0
    %p190 = por %p188, %p189
    %p191 = scmp.ne.s32.totalorder %s179, %s180
    %p192 = scmp.eq.s32.totalorder %s23, 1
    %p193 = por %p191, %p192
    %p195 = scmp.ne.s32.totalorder %s180, %s194
    %p196 = scmp.eq.s32.totalorder %s23, 0
    %p197 = por %p195, %p196
    %s199 = sadd.s32 %s198, 1
    %p202 = scmp.eq.s32.totalorder %s17, 1
    %p203 = scmp.ne.s32.totalorder %s198, %s200
    %p204 = scmp.eq.s32.totalorder %s17, 0
    %p205 = por %p203, %p204
    %p206 = scmp.ne.s32.totalorder %s198, %s200
    %p207 = scmp.eq.s32.totalorder %s22, 1
    %p208 = por %p206, %p207
    %p209 = scmp.ne.s32.totalorder %s200, %s201
    %p210 = scmp.eq.s32.totalorder %s22, 0
    %p211 = por %p209, %p210
    %p212 = scmp.ne.s32.totalorder %s200, %s201
    %p213 = scmp.eq.s32.totalorder %s23, 1
    %p214 = por %p212, %p213
    %p216 = scmp.ne.s32.totalorder %s201, %s215
    %p217 = scmp.eq.s32.totalorder %s23, 0
    %p218 = por %p216, %p217
    %s220 = sadd.s32 %s219, 1
    %p223 = scmp.eq.s32.totalorder %s17, 1
    %p224 = scmp.ne.s32.totalorder %s219, %s221
    %p225 = scmp.eq.s32.totalorder %s17, 0
    %p226 = por %p224, %p225
    %p227 = scmp.ne.s32.totalorder %s219, %s221
    %p228 = scmp.eq.s32.totalorder %s22, 1
    %p229 = por %p227, %p228
    %p230 = scmp.ne.s32.totalorder %s221, %s222
    %p231 = scmp.eq.s32.totalorder %s22, 0
    %p232 = por %p230, %p231
    %p233 = scmp.ne.s32.totalorder %s221, %s222
    %p234 = scmp.eq.s32.totalorder %s23, 1
    %p235 = por %p233, %p234
    %p237 = scmp.ne.s32.totalorder %s222, %s236
    %p238 = scmp.eq.s32.totalorder %s23, 0
    %p239 = por %p237, %p238
    %s241 = sadd.s32 %s240, 1
    %p244 = scmp.eq.s32.totalorder %s17, 1
    %p245 = scmp.ne.s32.totalorder %s240, %s242
    %p246 = scmp.eq.s32.totalorder %s17, 0
    %p247 = por %p245, %p246
    %p248 = scmp.ne.s32.totalorder %s240, %s242
    %p249 = scmp.eq.s32.totalorder %s22, 1
    %p250 = por %p248, %p249
    %p251 = scmp.ne.s32.totalorder %s242, %s243
    %p252 = scmp.eq.s32.totalorder %s22, 0
    %p253 = por %p251, %p252
    %p254 = scmp.ne.s32.totalorder %s242, %s243
    %p255 = scmp.eq.s32.totalorder %s23, 1
    %p256 = por %p254, %p255
    %p258 = scmp.ne.s32.totalorder %s243, %s257
    %p259 = scmp.eq.s32.totalorder %s23, 0
    %p260 = por %p258, %p259
    %s261 = ssub.s32 %s17, %s24
    %p262 = scmp.eq.s32.totalorder %s261, 0
    %s264 = sadd.s32 %s263, 1
    %s265 = scalar_select %p262, %s263, %s264
    %p268 = pneg %p262
    %p269 = scmp.eq.s32.totalorder %s17, 1
    %p270 = por %p268, %p269
    %p271 = scmp.ne.s32.totalorder %s263, %s266
    %p272 = scmp.eq.s32.totalorder %s17, 0
    %p273 = por %p271, %p272
    %p274 = scmp.ne.s32.totalorder %s263, %s266
    %p275 = scmp.eq.s32.totalorder %s22, 1
    %p276 = por %p274, %p275
    %p277 = scmp.ne.s32.totalorder %s266, %s267
    %p278 = scmp.eq.s32.totalorder %s22, 0
    %p279 = por %p277, %p278
    %p280 = scmp.ne.s32.totalorder %s266, %s267
    %p281 = scmp.eq.s32.totalorder %s23, 1
    %p282 = por %p280, %p281
    %p284 = scmp.ne.s32.totalorder %s267, %s283
    %p285 = scmp.eq.s32.totalorder %s23, 0
    %p286 = por %p284, %p285
    %p287 = scmp.le.s32.totalorder 1, %s17
    %p288 = scmp.lt.s32.totalorder %s17, 3
    %p289 = pnand %p287, %p288
    %p290 = pneg %p289
    // Predicated region
    $region9: #{calcium_vqvae_forward.3} parent=5 // pred_check
      _
    $region10: #{calcium_vqvae_forward.3} parent=5 // pred_check_branch
      %292 = sbr.rel (%p289) target = $region12
    $region11: #{calcium_vqvae_forward.3} parent=5 // pred_region
      %s293 = ssub.s32 %s17, 1
      // Predicated region
      $region13: #{calcium_vqvae_forward.3} parent=11 // pred_check
        %p294 = pneg %p64
      $region14: #{calcium_vqvae_forward.3} parent=11 // pred_check_branch
        %296 = sbr.rel (%p294) target = $region16
      $region15: #{calcium_vqvae_forward.3} parent=11 // pred_region
        _
      $region16: #{calcium_vqvae_forward.3} parent=11 // pred_fallthru
        _
      // Predicated region
      $region17: #{calcium_vqvae_forward.3} parent=11 // pred_check
        %p297 = pneg %p85
      $region18: #{calcium_vqvae_forward.3} parent=11 // pred_check_branch
        %299 = sbr.rel (%p297) target = $region20
      $region19: #{calcium_vqvae_forward.3} parent=11 // pred_region
        _
      $region20: #{calcium_vqvae_forward.3} parent=11 // pred_fallthru
        _
      // Predicated region
      $region21: #{calcium_vqvae_forward.3} parent=11 // pred_check
        %p300 = pneg %p106
      $region22: #{calcium_vqvae_forward.3} parent=11 // pred_check_branch
        %302 = sbr.rel (%p300) target = $region24
      $region23: #{calcium_vqvae_forward.3} parent=11 // pred_region
        _
      $region24: #{calcium_vqvae_forward.3} parent=11 // pred_fallthru
        _
      // Predicated region
      $region25: #{calcium_vqvae_forward.3} parent=11 // pred_check
        %p303 = pneg %p127
      $region26: #{calcium_vqvae_forward.3} parent=11 // pred_check_branch
        %305 = sbr.rel (%p303) target = $region28
      $region27: #{calcium_vqvae_forward.3} parent=11 // pred_region
        _
      $region28: #{calcium_vqvae_forward.3} parent=11 // pred_fallthru
        _
      // Predicated region
      $region29: #{calcium_vqvae_forward.3} parent=11 // pred_check
        %p306 = pneg %p148
      $region30: #{calcium_vqvae_forward.3} parent=11 // pred_check_branch
        %308 = sbr.rel (%p306) target = $region32
      $region31: #{calcium_vqvae_forward.3} parent=11 // pred_region
        _
      $region32: #{calcium_vqvae_forward.3} parent=11 // pred_fallthru
        _
      // Predicated region
      $region33: #{calcium_vqvae_forward.3} parent=11 // pred_check
        %p309 = pneg %p169
      $region34: #{calcium_vqvae_forward.3} parent=11 // pred_check_branch
        %311 = sbr.rel (%p309) target = $region36
      $region35: #{calcium_vqvae_forward.3} parent=11 // pred_region
        _
      $region36: #{calcium_vqvae_forward.3} parent=11 // pred_fallthru
        _
      // Predicated region
      $region37: #{calcium_vqvae_forward.3} parent=11 // pred_check
        %p312 = pneg %p190
      $region38: #{calcium_vqvae_forward.3} parent=11 // pred_check_branch
        %314 = sbr.rel (%p312) target = $region40
      $region39: #{calcium_vqvae_forward.3} parent=11 // pred_region
        _
      $region40: #{calcium_vqvae_forward.3} parent=11 // pred_fallthru
        _
      // Predicated region
      $region41: #{calcium_vqvae_forward.3} parent=11 // pred_check
        %p315 = pneg %p211
      $region42: #{calcium_vqvae_forward.3} parent=11 // pred_check_branch
        %317 = sbr.rel (%p315) target = $region44
      $region43: #{calcium_vqvae_forward.3} parent=11 // pred_region
        _
      $region44: #{calcium_vqvae_forward.3} parent=11 // pred_fallthru
        _
      // Predicated region
      $region45: #{calcium_vqvae_forward.3} parent=11 // pred_check
        %p318 = pneg %p232
      $region46: #{calcium_vqvae_forward.3} parent=11 // pred_check_branch
        %320 = sbr.rel (%p318) target = $region48
      $region47: #{calcium_vqvae_forward.3} parent=11 // pred_region
        _
      $region48: #{calcium_vqvae_forward.3} parent=11 // pred_fallthru
        _
      // Predicated region
      $region49: #{calcium_vqvae_forward.3} parent=11 // pred_check
        %p321 = pneg %p253
      $region50: #{calcium_vqvae_forward.3} parent=11 // pred_check_branch
        %323 = sbr.rel (%p321) target = $region52
      $region51: #{calcium_vqvae_forward.3} parent=11 // pred_region
        _
      $region52: #{calcium_vqvae_forward.3} parent=11 // pred_fallthru
        _
    $region12: #{calcium_vqvae_forward.3} parent=5 // pred_fallthru
      _
    %p324 = scmp.lt.s32.totalorder %s17, 2
    // Predicated region
    $region53: #{calcium_vqvae_forward.3} parent=5 // pred_check
      %p325 = pneg %p324
    $region54: #{calcium_vqvae_forward.3} parent=5 // pred_check_branch
      %327 = sbr.rel (%p325) target = $region56
    $region55: #{calcium_vqvae_forward.3} parent=5 // pred_region
      // Predicated region
      $region57: #{calcium_vqvae_forward.3} parent=55 // pred_check
        %p328 = pneg %p37
      $region58: #{calcium_vqvae_forward.3} parent=55 // pred_check_branch
        %330 = sbr.rel (%p328) target = $region60
      $region59: #{calcium_vqvae_forward.3} parent=55 // pred_region
        %p331 = scmp.lt.s32.totalorder %s17, 1
        %s332 = scalar_select %p331, %s17, 1
        %s333 = smul.addr %s332, 2
        %s334 = smul.addr %s333, 8
        %s335 = scalar_lea.vmem %s0, %s334
      $region60: #{calcium_vqvae_forward.3} parent=55 // pred_fallthru
        _
    $region56: #{calcium_vqvae_forward.3} parent=5 // pred_fallthru
      _
    %p336 = scmp.le.s32.totalorder 1, %s17
    %p337 = scmp.lt.s32.totalorder %s17, 3
    %p338 = pnand %p336, %p337
    %p339 = pneg %p338
    // Predicated region
    $region61: #{calcium_vqvae_forward.3} parent=5 // pred_check
      _
    $region62: #{calcium_vqvae_forward.3} parent=5 // pred_check_branch
      %341 = sbr.rel (%p338) target = $region64
    $region63: #{calcium_vqvae_forward.3} parent=5 // pred_region
      %s342 = ssub.s32 %s17, 1
      %p343 = scmp.lt.s32.totalorder %s22, 1
      %s344 = scalar_select %p343, %s22, 1
      %s345 = smul.addr %s344, 2
      %s346 = smul.addr %s345, 8
      %s347 = scalar_lea.vmem %s0, %s346
      %p348 = pneg %p43
      %p349 = pneg %p40
      %p350 = pneg %p64
      %p351 = pneg %p61
      %p352 = pneg %p85
      %p353 = pneg %p82
      %p354 = pneg %p106
      %p355 = pneg %p103
      %p356 = pneg %p127
      %p357 = pneg %p124
      %p358 = pneg %p148
      %p359 = pneg %p145
      %p360 = pneg %p169
      %p361 = pneg %p166
      %p362 = pneg %p190
      %p363 = pneg %p187
      %p364 = pneg %p211
      %p365 = pneg %p208
      %p366 = pneg %p232
      %p367 = pneg %p229
      %p368 = pneg %p253
      %p369 = pneg %p250
      %p370 = pneg %p279
      %p371 = pneg %p276
      %p372 = scmp.lt.s32.totalorder %s22, 1
      %s373 = scalar_select %p372, %s22, 1
      %s374 = smul.addr %s373, 8
      %s375 = smul.addr %s374, 8
      %s376 = scalar_lea.vmem %s11, %s375
      %p377 = scmp.lt.s32.totalorder %s22, 1
      %s378 = scalar_select %p377, %s22, 1
      %s379 = smul.addr %s378, 2
      %s380 = smul.addr %s379, 8
      %s381 = scalar_lea.vmem %s0, %s380
      %p382 = scmp.lt.s32.totalorder %s22, 1
      %s383 = scalar_select %p382, %s22, 1
      %s384 = smul.addr %s383, 8
      %s385 = smul.addr %s384, 8
      %s386 = scalar_lea.vmem %s11, %s385
      %vm388 = vcmask 76800
      %389 = vst.msk [vmem:[#allocation2] sm:$0xf] %vm388, 0
      %390 = vst.msk [vmem:[#allocation2 + $0x4] sm:$0xf] %vm388, 0
      %391 = vst.msk [vmem:[#allocation3] sm:$0xf] %vm388, 0
      %392 = vst.msk [vmem:[#allocation3 + $0x4] sm:$0xf] %vm388, 0
      %393 = vst.msk [vmem:[#allocation3 + $0x8] sm:$0xf] %vm388, 0
      %394 = vst.msk [vmem:[#allocation3 + $0xc] sm:$0xf] %vm388, 0
      %395 = vst.msk [vmem:[#allocation3 + $0x10] sm:$0xf] %vm388, 0
      %396 = vst.msk [vmem:[#allocation3 + $0x14] sm:$0xf] %vm388, 0
      %397 = vst.msk [vmem:[#allocation3 + $0x18] sm:$0xf] %vm388, 0
      %398 = vst.msk [vmem:[#allocation3 + $0x1c] sm:$0xf] %vm388, 0
      %399 = vst.msk [vmem:[#allocation4] sm:$0xf] %vm388, 0
      %400 = vst.msk [vmem:[#allocation4 + $0x4] sm:$0xf] %vm388, 0
      %401 = vst.msk [vmem:[#allocation4 + $0x8] sm:$0xf] %vm388, 0
      %402 = vst.msk [vmem:[#allocation4 + $0xc] sm:$0xf] %vm388, 0
      %403 = vst.msk [vmem:[#allocation4 + $0x10] sm:$0xf] %vm388, 0
      %404 = vst.msk [vmem:[#allocation4 + $0x14] sm:$0xf] %vm388, 0
      %405 = vst.msk [vmem:[#allocation4 + $0x18] sm:$0xf] %vm388, 0
      %406 = vst.msk [vmem:[#allocation4 + $0x1c] sm:$0xf] %vm388, 0
      %v407 = vld [vmem:[%s381] sm:$0xff]
      %v408 = vld [vmem:[%s381 + $0x8] sm:$0xff]
      %v409 = vmax.f32 %v407, 0.0
      %v410 = vmax.f32 %v408, 0.0
      %v411 = vpack.c.bf16 %v410, %v409
      %v413 = vunpack.c.l.b16 %v411
      %v414 = vunpack.c.h.b16 %v411
      %v415 = vpack.c.b16 %v413, %v413
      %v416 = vpack.c.b16 %v414, %v414
      %417 = vrot.lane.b32.xlu0 %v415, 1
      %v418 = vpop.permute.xlu0 %417
      %419 = vrot.lane.b32.xlu0 %v416, 1
      %v420 = vpop.permute.xlu0 %419
      %vm423 = vcmask 68616
      %424 = vst.msk [vmem:[#allocation2] sm:$0xf] %vm423, %v418
      %425 = vst.msk [vmem:[#allocation2 + $0x4] sm:$0xf] %vm423, %v420
      %v426 = vld [vmem:[%s2] sm:$0xff]
      %v427 = vld [vmem:[%s1] sm:$0xf]
      %v428 = vld [vmem:[#allocation2] sm:$0xf]
      %v429 = vld [vmem:[#allocation2 + $0x4] sm:$0xf]
      %s430 = scalar_lea.vmem %s1, 4
      %v431 = vld [vmem:[%s430] sm:$0xf]
      %v434 = vunpack.c.l.b16 %v428
      %v435 = vunpack.c.l.b16 %v429
      %v436 = vpack.c.b16 %v435, %v434
      %437 = vrot.lane.b32.xlu0 %v436, 127
      %v438 = vpop.permute.xlu0 %437
      %vm440 = vcmask 130048
      %v442 = vsel %vm440, %v431, 0
      %444 = vmatprep.subr.bf16.mxu0 0
      %445 = vmatpush1.bf16.msra.mxu0 0
      %446 = vmatprep.subr.bf16.mxu0 0
      %447 = vmatpush1.bf16.msra.mxu0 0
      %448 = vmatprep.subr.bf16.mxu0 0
      %449 = vmatpush1.bf16.msra.mxu0 0
      %450 = vmatprep.subr.bf16.mxu0 0
      %451 = vmatpush1.bf16.msra.mxu0 0
      %452 = vmatprep.subr.bf16.mxu0 0
      %453 = vmatpush1.bf16.msra.mxu0 0
      %454 = vmatprep.subr.bf16.mxu0 0
      %455 = vmatpush1.bf16.msra.mxu0 0
      %456 = vmatprep.subr.bf16.mxu0 0
      %457 = vmatpush1.bf16.msra.mxu0 0
      %458 = vmatprep.subr.bf16.mxu0 0
      %459 = vmatpush1.bf16.msra.mxu0 %v438
      %460 = vmatprep.subr.bf16.mxu0 0
      %461 = vmatpush2.bf16.msra.mxu0 0
      %462 = vmatprep.subr.bf16.mxu0 0
      %463 = vmatpush2.bf16.msra.mxu0 0
      %464 = vmatprep.subr.bf16.mxu0 0
      %465 = vmatpush2.bf16.msra.mxu0 0
      %466 = vmatprep.subr.bf16.mxu0 0
      %467 = vmatpush2.bf16.msra.mxu0 0
      %468 = vmatprep.subr.bf16.mxu0 0
      %469 = vmatpush2.bf16.msra.mxu0 0
      %470 = vmatprep.subr.bf16.mxu0 0
      %471 = vmatpush2.bf16.msra.mxu0 0
      %472 = vmatprep.subr.bf16.mxu0 0
      %473 = vmatpush2.bf16.msra.mxu0 0
      %474 = vmatprep.subr.bf16.mxu0 0
      %475 = vmatpush2.bf16.msra.mxu0 0
      %476 = vmatprep.mubr.bf16.mxu0 0
      %477 = vmatmul.mubr.bf16.gmra.mxu0 %v442
      %v478 = vpop.f32.mrf.mxu0
      %v479 = vadd.f32 0.0, %v478
      %v480 = vpop.f32.mrf.mxu0
      %v481 = vpop.f32.mrf.mxu0
      %v482 = vpop.f32.mrf.mxu0
      %483 = vdwg.mxu0
      %v486 = vsel %vm440, %v427, 0
      %488 = vmatprep.subr.bf16.mxu0 0
      %489 = vmatpush1.bf16.msra.mxu0 0
      %490 = vmatprep.subr.bf16.mxu0 0
      %491 = vmatpush1.bf16.msra.mxu0 0
      %492 = vmatprep.subr.bf16.mxu0 0
      %493 = vmatpush1.bf16.msra.mxu0 0
      %494 = vmatprep.subr.bf16.mxu0 0
      %495 = vmatpush1.bf16.msra.mxu0 0
      %496 = vmatprep.subr.bf16.mxu0 0
      %497 = vmatpush1.bf16.msra.mxu0 0
      %498 = vmatprep.subr.bf16.mxu0 0
      %499 = vmatpush1.bf16.msra.mxu0 0
      %500 = vmatprep.subr.bf16.mxu0 0
      %501 = vmatpush1.bf16.msra.mxu0 0
      %502 = vmatprep.subr.bf16.mxu0 0
      %503 = vmatpush1.bf16.msra.mxu0 %v436
      %504 = vmatprep.subr.bf16.mxu0 0
      %505 = vmatpush2.bf16.msra.mxu0 0
      %506 = vmatprep.subr.bf16.mxu0 0
      %507 = vmatpush2.bf16.msra.mxu0 0
      %508 = vmatprep.subr.bf16.mxu0 0
      %509 = vmatpush2.bf16.msra.mxu0 0
      %510 = vmatprep.subr.bf16.mxu0 0
      %511 = vmatpush2.bf16.msra.mxu0 0
      %512 = vmatprep.subr.bf16.mxu0 0
      %513 = vmatpush2.bf16.msra.mxu0 0
      %514 = vmatprep.subr.bf16.mxu0 0
      %515 = vmatpush2.bf16.msra.mxu0 0
      %516 = vmatprep.subr.bf16.mxu0 0
      %517 = vmatpush2.bf16.msra.mxu0 0
      %518 = vmatprep.subr.bf16.mxu0 0
      %519 = vmatpush2.bf16.msra.mxu0 0
      %520 = vmatprep.mubr.bf16.mxu0 0
      %521 = vmatmul.mubr.bf16.gmra.mxu0 %v486
      %v522 = vpop.f32.mrf.mxu0
      %v523 = vadd.f32 %v479, %v522
      %v524 = vpop.f32.mrf.mxu0
      %v525 = vpop.f32.mrf.mxu0
      %v526 = vpop.f32.mrf.mxu0
      %527 = vdwg.mxu0
      %s528 = scalar_lea.vmem %s1, 8
      %v529 = vld [vmem:[%s528] sm:$0xf]
      %530 = vrot.lane.b32.xlu0 %v436, 126
      %v531 = vpop.permute.xlu0 %530
      %v534 = vsel %vm440, %v529, 0
      %536 = vmatprep.subr.bf16.mxu0 0
      %537 = vmatpush1.bf16.msra.mxu0 0
      %538 = vmatprep.subr.bf16.mxu0 0
      %539 = vmatpush1.bf16.msra.mxu0 0
      %540 = vmatprep.subr.bf16.mxu0 0
      %541 = vmatpush1.bf16.msra.mxu0 0
      %542 = vmatprep.subr.bf16.mxu0 0
      %543 = vmatpush1.bf16.msra.mxu0 0
      %544 = vmatprep.subr.bf16.mxu0 0
      %545 = vmatpush1.bf16.msra.mxu0 0
      %546 = vmatprep.subr.bf16.mxu0 0
      %547 = vmatpush1.bf16.msra.mxu0 0
      %548 = vmatprep.subr.bf16.mxu0 0
      %549 = vmatpush1.bf16.msra.mxu0 0
      %550 = vmatprep.subr.bf16.mxu0 0
      %551 = vmatpush1.bf16.msra.mxu0 %v531
      %552 = vmatprep.subr.bf16.mxu0 0
      %553 = vmatpush2.bf16.msra.mxu0 0
      %554 = vmatprep.subr.bf16.mxu0 0
      %555 = vmatpush2.bf16.msra.mxu0 0
      %556 = vmatprep.subr.bf16.mxu0 0
      %557 = vmatpush2.bf16.msra.mxu0 0
      %558 = vmatprep.subr.bf16.mxu0 0
      %559 = vmatpush2.bf16.msra.mxu0 0
      %560 = vmatprep.subr.bf16.mxu0 0
      %561 = vmatpush2.bf16.msra.mxu0 0
      %562 = vmatprep.subr.bf16.mxu0 0
      %563 = vmatpush2.bf16.msra.mxu0 0
      %564 = vmatprep.subr.bf16.mxu0 0
      %565 = vmatpush2.bf16.msra.mxu0 0
      %566 = vmatprep.subr.bf16.mxu0 0
      %567 = vmatpush2.bf16.msra.mxu0 0
      %568 = vmatprep.mubr.bf16.mxu0 0
      %569 = vmatmul.mubr.bf16.gmra.mxu0 %v534
      %v570 = vpop.f32.mrf.mxu0
      %v571 = vadd.f32 0.0, %v570
      %v572 = vpop.f32.mrf.mxu0
      %v573 = vpop.f32.mrf.mxu0
      %v574 = vpop.f32.mrf.mxu0
      %575 = vdwg.mxu0
      %v576 = vadd.f32 %v523, %v571
      %578 = vset.pattern.permute.xlu0 0
      %579 = vperm.xlu0 %578, %v426
      %v580 = vpop.permute.xlu0 %579
      %v582 = vadd.f32 %v576, %v580
      %v583 = vmax.f32 %v582, 0.0
      %v584 = vpack.c.bf16 %v583, %v583
      %v585 = vld [vmem:[%s3] sm:$0xf]
      %v586 = vld [vmem:[%s3 + $0x4] sm:$0xf]
      %v587 = vld [vmem:[%s4] sm:$0xff]
      %v588 = vld [vmem:[%s4 + $0x8] sm:$0xff]
      %590 = vset.pattern.permute.xlu0 0
      %591 = vperm.xlu0 %590, %v587
      %v592 = vpop.permute.xlu0 %591
      %595 = vset.pattern.permute.xlu0 0
      %596 = vperm.xlu0 %595, %v588
      %v597 = vpop.permute.xlu0 %596
      %v601 = vunpack.c.l.b16 %v585
      %v602 = vunpack.c.l.b16 %v586
      %v603 = vpack.c.b16 %v602, %v601
      %vm604 = vcmask 64512
      %v606 = vsel %vm604, %v603, 0
      %vm608 = vcmask 1043456
      %v610 = vsel %vm608, %v584, 0
      %612 = vmatprep.subr.bf16.mxu0 0
      %613 = vmatpush1.bf16.msra.mxu0 0
      %614 = vmatprep.subr.bf16.mxu0 0
      %615 = vmatpush1.bf16.msra.mxu0 0
      %616 = vmatprep.subr.bf16.mxu0 0
      %617 = vmatpush1.bf16.msra.mxu0 0
      %618 = vmatprep.subr.bf16.mxu0 0
      %619 = vmatpush1.bf16.msra.mxu0 0
      %620 = vmatprep.subr.bf16.mxu0 0
      %621 = vmatpush1.bf16.msra.mxu0 0
      %622 = vmatprep.subr.bf16.mxu0 0
      %623 = vmatpush1.bf16.msra.mxu0 0
      %624 = vmatprep.subr.bf16.mxu0 0
      %625 = vmatpush1.bf16.msra.mxu0 0
      %626 = vmatprep.subr.bf16.mxu0 0
      %627 = vmatpush1.bf16.msra.mxu0 %v610
      %628 = vmatprep.subr.bf16.mxu0 0
      %629 = vmatpush2.bf16.msra.mxu0 0
      %630 = vmatprep.subr.bf16.mxu0 0
      %631 = vmatpush2.bf16.msra.mxu0 0
      %632 = vmatprep.subr.bf16.mxu0 0
      %633 = vmatpush2.bf16.msra.mxu0 0
      %634 = vmatprep.subr.bf16.mxu0 0
      %635 = vmatpush2.bf16.msra.mxu0 0
      %636 = vmatprep.subr.bf16.mxu0 0
      %637 = vmatpush2.bf16.msra.mxu0 0
      %638 = vmatprep.subr.bf16.mxu0 0
      %639 = vmatpush2.bf16.msra.mxu0 0
      %640 = vmatprep.subr.bf16.mxu0 0
      %641 = vmatpush2.bf16.msra.mxu0 0
      %642 = vmatprep.subr.bf16.mxu0 0
      %643 = vmatpush2.bf16.msra.mxu0 0
      %644 = vmatprep.mubr.bf16.mxu0 0
      %645 = vmatmul.mubr.bf16.gmra.mxu0 %v606
      %v646 = vpop.f32.mrf.mxu0
      %v647 = vadd.f32 %v592, %v646
      %v648 = vpop.f32.mrf.mxu0
      %v649 = vpop.f32.mrf.mxu0
      %v650 = vadd.f32 %v597, %v649
      %v651 = vpop.f32.mrf.mxu0
      %652 = vdwg.mxu0
      %v653 = vadd.f32 %v407, %v647
      %v654 = vadd.f32 %v408, %v650
      %v655 = vmax.f32 %v653, 0.0
      %v656 = vmax.f32 %v654, 0.0
      %v657 = vpack.c.bf16 %v656, %v655
      %v659 = vunpack.c.l.b16 %v657
      %v660 = vunpack.c.h.b16 %v657
      %v661 = vpack.c.b16 %v659, %v659
      %v662 = vpack.c.b16 %v660, %v660
      %663 = vrot.lane.b32.xlu0 %v661, 1
      %v664 = vpop.permute.xlu0 %663
      %665 = vrot.lane.b32.xlu0 %v662, 1
      %v666 = vpop.permute.xlu0 %665
      %669 = vst.msk [vmem:[#allocation2] sm:$0xf] %vm423, %v664
      %670 = vst.msk [vmem:[#allocation2 + $0x4] sm:$0xf] %vm423, %v666
      %s671 = scalar_lea.vmem %s2, 8
      %v672 = vld [vmem:[%s671] sm:$0xff]
      %s673 = scalar_lea.vmem %s1, 12
      %v674 = vld [vmem:[%s673] sm:$0xf]
      %v675 = vld [vmem:[#allocation2] sm:$0xf]
      %v676 = vld [vmem:[#allocation2 + $0x4] sm:$0xf]
      %s677 = scalar_lea.vmem %s1, 16
      %v678 = vld [vmem:[%s677] sm:$0xf]
      %v681 = vunpack.c.l.b16 %v675
      %v682 = vunpack.c.l.b16 %v676
      %v683 = vpack.c.b16 %v682, %v681
      %684 = vrot.lane.b32.xlu0 %v683, 127
      %v685 = vpop.permute.xlu0 %684
      %v688 = vsel %vm440, %v678, 0
      %690 = vmatprep.subr.bf16.mxu0 0
      %691 = vmatpush1.bf16.msra.mxu0 0
      %692 = vmatprep.subr.bf16.mxu0 0
      %693 = vmatpush1.bf16.msra.mxu0 0
      %694 = vmatprep.subr.bf16.mxu0 0
      %695 = vmatpush1.bf16.msra.mxu0 0
      %696 = vmatprep.subr.bf16.mxu0 0
      %697 = vmatpush1.bf16.msra.mxu0 0
      %698 = vmatprep.subr.bf16.mxu0 0
      %699 = vmatpush1.bf16.msra.mxu0 0
      %700 = vmatprep.subr.bf16.mxu0 0
      %701 = vmatpush1.bf16.msra.mxu0 0
      %702 = vmatprep.subr.bf16.mxu0 0
      %703 = vmatpush1.bf16.msra.mxu0 0
      %704 = vmatprep.subr.bf16.mxu0 0
      %705 = vmatpush1.bf16.msra.mxu0 %v685
      %706 = vmatprep.subr.bf16.mxu0 0
      %707 = vmatpush2.bf16.msra.mxu0 0
      %708 = vmatprep.subr.bf16.mxu0 0
      %709 = vmatpush2.bf16.msra.mxu0 0
      %710 = vmatprep.subr.bf16.mxu0 0
      %711 = vmatpush2.bf16.msra.mxu0 0
      %712 = vmatprep.subr.bf16.mxu0 0
      %713 = vmatpush2.bf16.msra.mxu0 0
      %714 = vmatprep.subr.bf16.mxu0 0
      %715 = vmatpush2.bf16.msra.mxu0 0
      %716 = vmatprep.subr.bf16.mxu0 0
      %717 = vmatpush2.bf16.msra.mxu0 0
      %718 = vmatprep.subr.bf16.mxu0 0
      %719 = vmatpush2.bf16.msra.mxu0 0
      %720 = vmatprep.subr.bf16.mxu0 0
      %721 = vmatpush2.bf16.msra.mxu0 0
      %722 = vmatprep.mubr.bf16.mxu0 0
      %723 = vmatmul.mubr.bf16.gmra.mxu0 %v688
      %v724 = vpop.f32.mrf.mxu0
      %v725 = vadd.f32 0.0, %v724
      %v726 = vpop.f32.mrf.mxu0
      %v727 = vpop.f32.mrf.mxu0
      %v728 = vpop.f32.mrf.mxu0
      %729 = vdwg.mxu0
      %v732 = vsel %vm440, %v674, 0
      %734 = vmatprep.subr.bf16.mxu0 0
      %735 = vmatpush1.bf16.msra.mxu0 0
      %736 = vmatprep.subr.bf16.mxu0 0
      %737 = vmatpush1.bf16.msra.mxu0 0
      %738 = vmatprep.subr.bf16.mxu0 0
      %739 = vmatpush1.bf16.msra.mxu0 0
      %740 = vmatprep.subr.bf16.mxu0 0
      %741 = vmatpush1.bf16.msra.mxu0 0
      %742 = vmatprep.subr.bf16.mxu0 0
      %743 = vmatpush1.bf16.msra.mxu0 0
      %744 = vmatprep.subr.bf16.mxu0 0
      %745 = vmatpush1.bf16.msra.mxu0 0
      %746 = vmatprep.subr.bf16.mxu0 0
      %747 = vmatpush1.bf16.msra.mxu0 0
      %748 = vmatprep.subr.bf16.mxu0 0
      %749 = vmatpush1.bf16.msra.mxu0 %v683
      %750 = vmatprep.subr.bf16.mxu0 0
      %751 = vmatpush2.bf16.msra.mxu0 0
      %752 = vmatprep.subr.bf16.mxu0 0
      %753 = vmatpush2.bf16.msra.mxu0 0
      %754 = vmatprep.subr.bf16.mxu0 0
      %755 = vmatpush2.bf16.msra.mxu0 0
      %756 = vmatprep.subr.bf16.mxu0 0
      %757 = vmatpush2.bf16.msra.mxu0 0
      %758 = vmatprep.subr.bf16.mxu0 0
      %759 = vmatpush2.bf16.msra.mxu0 0
      %760 = vmatprep.subr.bf16.mxu0 0
      %761 = vmatpush2.bf16.msra.mxu0 0
      %762 = vmatprep.subr.bf16.mxu0 0
      %763 = vmatpush2.bf16.msra.mxu0 0
      %764 = vmatprep.subr.bf16.mxu0 0
      %765 = vmatpush2.bf16.msra.mxu0 0
      %766 = vmatprep.mubr.bf16.mxu0 0
      %767 = vmatmul.mubr.bf16.gmra.mxu0 %v732
      %v768 = vpop.f32.mrf.mxu0
      %v769 = vadd.f32 %v725, %v768
      %v770 = vpop.f32.mrf.mxu0
      %v771 = vpop.f32.mrf.mxu0
      %v772 = vpop.f32.mrf.mxu0
      %773 = vdwg.mxu0
      %s774 = scalar_lea.vmem %s1, 20
      %v775 = vld [vmem:[%s774] sm:$0xf]
      %776 = vrot.lane.b32.xlu0 %v683, 126
      %v777 = vpop.permute.xlu0 %776
      %v780 = vsel %vm440, %v775, 0
      %782 = vmatprep.subr.bf16.mxu0 0
      %783 = vmatpush1.bf16.msra.mxu0 0
      %784 = vmatprep.subr.bf16.mxu0 0
      %785 = vmatpush1.bf16.msra.mxu0 0
      %786 = vmatprep.subr.bf16.mxu0 0
      %787 = vmatpush1.bf16.msra.mxu0 0
      %788 = vmatprep.subr.bf16.mxu0 0
      %789 = vmatpush1.bf16.msra.mxu0 0
      %790 = vmatprep.subr.bf16.mxu0 0
      %791 = vmatpush1.bf16.msra.mxu0 0
      %792 = vmatprep.subr.bf16.mxu0 0
      %793 = vmatpush1.bf16.msra.mxu0 0
      %794 = vmatprep.subr.bf16.mxu0 0
      %795 = vmatpush1.bf16.msra.mxu0 0
      %796 = vmatprep.subr.bf16.mxu0 0
      %797 = vmatpush1.bf16.msra.mxu0 %v777
      %798 = vmatprep.subr.bf16.mxu0 0
      %799 = vmatpush2.bf16.msra.mxu0 0
      %800 = vmatprep.subr.bf16.mxu0 0
      %801 = vmatpush2.bf16.msra.mxu0 0
      %802 = vmatprep.subr.bf16.mxu0 0
      %803 = vmatpush2.bf16.msra.mxu0 0
      %804 = vmatprep.subr.bf16.mxu0 0
      %805 = vmatpush2.bf16.msra.mxu0 0
      %806 = vmatprep.subr.bf16.mxu0 0
      %807 = vmatpush2.bf16.msra.mxu0 0
      %808 = vmatprep.subr.bf16.mxu0 0
      %809 = vmatpush2.bf16.msra.mxu0 0
      %810 = vmatprep.subr.bf16.mxu0 0
      %811 = vmatpush2.bf16.msra.mxu0 0
      %812 = vmatprep.subr.bf16.mxu0 0
      %813 = vmatpush2.bf16.msra.mxu0 0
      %814 = vmatprep.mubr.bf16.mxu0 0
      %815 = vmatmul.mubr.bf16.gmra.mxu0 %v780
      %v816 = vpop.f32.mrf.mxu0
      %v817 = vadd.f32 0.0, %v816
      %v818 = vpop.f32.mrf.mxu0
      %v819 = vpop.f32.mrf.mxu0
      %v820 = vpop.f32.mrf.mxu0
      %821 = vdwg.mxu0
      %v822 = vadd.f32 %v769, %v817
      %824 = vset.pattern.permute.xlu0 0
      %825 = vperm.xlu0 %824, %v672
      %v826 = vpop.permute.xlu0 %825
      %v828 = vadd.f32 %v822, %v826
      %v829 = vmax.f32 %v828, 0.0
      %v830 = vpack.c.bf16 %v829, %v829
      %s831 = scalar_lea.vmem %s3, 8
      %v832 = vld [vmem:[%s831] sm:$0xf]
      %v833 = vld [vmem:[%s831 + $0x4] sm:$0xf]
      %s834 = scalar_lea.vmem %s4, 16
      %v835 = vld [vmem:[%s834] sm:$0xff]
      %v836 = vld [vmem:[%s834 + $0x8] sm:$0xff]
      %838 = vset.pattern.permute.xlu0 0
      %839 = vperm.xlu0 %838, %v835
      %v840 = vpop.permute.xlu0 %839
      %843 = vset.pattern.permute.xlu0 0
      %844 = vperm.xlu0 %843, %v836
      %v845 = vpop.permute.xlu0 %844
      %v849 = vunpack.c.l.b16 %v832
      %v850 = vunpack.c.l.b16 %v833
      %v851 = vpack.c.b16 %v850, %v849
      %v853 = vsel %vm604, %v851, 0
      %v856 = vsel %vm608, %v830, 0
      %858 = vmatprep.subr.bf16.mxu0 0
      %859 = vmatpush1.bf16.msra.mxu0 0
      %860 = vmatprep.subr.bf16.mxu0 0
      %861 = vmatpush1.bf16.msra.mxu0 0
      %862 = vmatprep.subr.bf16.mxu0 0
      %863 = vmatpush1.bf16.msra.mxu0 0
      %864 = vmatprep.subr.bf16.mxu0 0
      %865 = vmatpush1.bf16.msra.mxu0 0
      %866 = vmatprep.subr.bf16.mxu0 0
      %867 = vmatpush1.bf16.msra.mxu0 0
      %868 = vmatprep.subr.bf16.mxu0 0
      %869 = vmatpush1.bf16.msra.mxu0 0
      %870 = vmatprep.subr.bf16.mxu0 0
      %871 = vmatpush1.bf16.msra.mxu0 0
      %872 = vmatprep.subr.bf16.mxu0 0
      %873 = vmatpush1.bf16.msra.mxu0 %v856
      %874 = vmatprep.subr.bf16.mxu0 0
      %875 = vmatpush2.bf16.msra.mxu0 0
      %876 = vmatprep.subr.bf16.mxu0 0
      %877 = vmatpush2.bf16.msra.mxu0 0
      %878 = vmatprep.subr.bf16.mxu0 0
      %879 = vmatpush2.bf16.msra.mxu0 0
      %880 = vmatprep.subr.bf16.mxu0 0
      %881 = vmatpush2.bf16.msra.mxu0 0
      %882 = vmatprep.subr.bf16.mxu0 0
      %883 = vmatpush2.bf16.msra.mxu0 0
      %884 = vmatprep.subr.bf16.mxu0 0
      %885 = vmatpush2.bf16.msra.mxu0 0
      %886 = vmatprep.subr.bf16.mxu0 0
      %887 = vmatpush2.bf16.msra.mxu0 0
      %888 = vmatprep.subr.bf16.mxu0 0
      %889 = vmatpush2.bf16.msra.mxu0 0
      %890 = vmatprep.mubr.bf16.mxu0 0
      %891 = vmatmul.mubr.bf16.gmra.mxu0 %v853
      %v892 = vpop.f32.mrf.mxu0
      %v893 = vadd.f32 %v840, %v892
      %v894 = vpop.f32.mrf.mxu0
      %v895 = vpop.f32.mrf.mxu0
      %v896 = vadd.f32 %v845, %v895
      %v897 = vpop.f32.mrf.mxu0
      %898 = vdwg.mxu0
      %v899 = vadd.f32 %v653, %v893
      %v900 = vadd.f32 %v654, %v896
      %v901 = vpack.c.bf16 %v900, %v899
      %v903 = vunpack.c.l.b16 %v901
      %v904 = vunpack.c.h.b16 %v901
      %v905 = vpack.c.b16 %v903, %v903
      %v906 = vpack.c.b16 %v904, %v904
      %907 = vrot.lane.b32.xlu0 %v905, 1
      %v908 = vpop.permute.xlu0 %907
      %909 = vrot.lane.b32.xlu0 %v906, 1
      %v910 = vpop.permute.xlu0 %909
      %913 = vst.msk [vmem:[#allocation2] sm:$0xf] %vm423, %v908
      %914 = vst.msk [vmem:[#allocation2 + $0x4] sm:$0xf] %vm423, %v910
      %v915 = vld [vmem:[%s6] sm:$0xff]
      %v916 = vld [vmem:[%s6 + $0x8] sm:$0xff]
      %v917 = vld [vmem:[%s6 + $0x10] sm:$0xff]
      %v918 = vld [vmem:[%s6 + $0x18] sm:$0xff]
      %s919 = scalar_lea.vmem %s5, 16
      %v920 = vld [vmem:[%s919] sm:$0xf]
      %v921 = vld [vmem:[%s919 + $0x4] sm:$0xf]
      %v922 = vld [vmem:[%s919 + $0x8] sm:$0xf]
      %v923 = vld [vmem:[%s919 + $0xc] sm:$0xf]
      %v924 = vld [vmem:[#allocation2] sm:$0xf]
      %v925 = vld [vmem:[#allocation2 + $0x4] sm:$0xf]
      %927 = vset.pattern.permute.xlu0 0
      %928 = vperm.xlu0 %927, %v915
      %v929 = vpop.permute.xlu0 %928
      %932 = vset.pattern.permute.xlu0 0
      %933 = vperm.xlu0 %932, %v916
      %v934 = vpop.permute.xlu0 %933
      %937 = vset.pattern.permute.xlu0 0
      %938 = vperm.xlu0 %937, %v917
      %v939 = vpop.permute.xlu0 %938
      %942 = vset.pattern.permute.xlu0 0
      %943 = vperm.xlu0 %942, %v918
      %v944 = vpop.permute.xlu0 %943
      %v950 = vunpack.c.l.b16 %v920
      %v951 = vunpack.c.l.b16 %v921
      %v952 = vunpack.c.l.b16 %v922
      %v953 = vunpack.c.l.b16 %v923
      %v954 = vpack.c.b16 %v951, %v950
      %v955 = vpack.c.b16 %v953, %v952
      %v958 = vunpack.c.l.b16 %v924
      %v959 = vunpack.c.l.b16 %v925
      %v960 = vpack.c.b16 %v959, %v958
      %961 = vrot.lane.b32.xlu0 %v960, 127
      %v962 = vpop.permute.xlu0 %961
      %v965 = vsel %vm440, %v954, 0
      %v968 = vsel %vm440, %v955, 0
      %970 = vmatprep.subr.bf16.mxu0 0
      %971 = vmatpush1.bf16.msra.mxu0 0
      %972 = vmatprep.subr.bf16.mxu0 0
      %973 = vmatpush1.bf16.msra.mxu0 0
      %974 = vmatprep.subr.bf16.mxu0 0
      %975 = vmatpush1.bf16.msra.mxu0 0
      %976 = vmatprep.subr.bf16.mxu0 0
      %977 = vmatpush1.bf16.msra.mxu0 0
      %978 = vmatprep.subr.bf16.mxu0 0
      %979 = vmatpush1.bf16.msra.mxu0 0
      %980 = vmatprep.subr.bf16.mxu0 0
      %981 = vmatpush1.bf16.msra.mxu0 0
      %982 = vmatprep.subr.bf16.mxu0 0
      %983 = vmatpush1.bf16.msra.mxu0 0
      %984 = vmatprep.subr.bf16.mxu0 0
      %985 = vmatpush1.bf16.msra.mxu0 %v962
      %986 = vmatprep.subr.bf16.mxu0 0
      %987 = vmatpush2.bf16.msra.mxu0 0
      %988 = vmatprep.subr.bf16.mxu0 0
      %989 = vmatpush2.bf16.msra.mxu0 0
      %990 = vmatprep.subr.bf16.mxu0 0
      %991 = vmatpush2.bf16.msra.mxu0 0
      %992 = vmatprep.subr.bf16.mxu0 0
      %993 = vmatpush2.bf16.msra.mxu0 0
      %994 = vmatprep.subr.bf16.mxu0 0
      %995 = vmatpush2.bf16.msra.mxu0 0
      %996 = vmatprep.subr.bf16.mxu0 0
      %997 = vmatpush2.bf16.msra.mxu0 0
      %998 = vmatprep.subr.bf16.mxu0 0
      %999 = vmatpush2.bf16.msra.mxu0 0
      %1000 = vmatprep.subr.bf16.mxu0 0
      %1001 = vmatpush2.bf16.msra.mxu0 0
      %1002 = vmatprep.mubr.bf16.mxu0 0
      %1003 = vmatmul.mubr.bf16.gmra.mxu0 %v965
      %v1004 = vpop.f32.mrf.mxu0
      %v1005 = vadd.f32 %v929, %v1004
      %v1006 = vpop.f32.mrf.mxu0
      %v1007 = vpop.f32.mrf.mxu0
      %v1008 = vadd.f32 %v934, %v1007
      %v1009 = vpop.f32.mrf.mxu0
      %1010 = vmatprep.mubr.bf16.mxu0 0
      %1011 = vmatmul.mubr.bf16.gmra.mxu0 %v968
      %v1012 = vpop.f32.mrf.mxu0
      %v1013 = vadd.f32 %v939, %v1012
      %v1014 = vpop.f32.mrf.mxu0
      %v1015 = vpop.f32.mrf.mxu0
      %v1016 = vadd.f32 %v944, %v1015
      %v1017 = vpop.f32.mrf.mxu0
      %1018 = vdwg.mxu0
      %v1019 = vmax.f32 %v1005, 0.0
      %v1020 = vmax.f32 %v1008, 0.0
      %v1021 = vmax.f32 %v1013, 0.0
      %v1022 = vmax.f32 %v1016, 0.0
      %v1023 = vld [vmem:[%s5] sm:$0xf]
      %v1024 = vld [vmem:[%s5 + $0x4] sm:$0xf]
      %v1025 = vld [vmem:[%s5 + $0x8] sm:$0xf]
      %v1026 = vld [vmem:[%s5 + $0xc] sm:$0xf]
      %s1027 = scalar_lea.vmem %s5, 32
      %v1028 = vld [vmem:[%s1027] sm:$0xf]
      %v1029 = vld [vmem:[%s1027 + $0x4] sm:$0xf]
      %v1030 = vld [vmem:[%s1027 + $0x8] sm:$0xf]
      %v1031 = vld [vmem:[%s1027 + $0xc] sm:$0xf]
      %v1036 = vunpack.c.l.b16 %v1028
      %v1037 = vunpack.c.l.b16 %v1029
      %v1038 = vunpack.c.l.b16 %v1030
      %v1039 = vunpack.c.l.b16 %v1031
      %v1040 = vpack.c.b16 %v1037, %v1036
      %v1041 = vpack.c.b16 %v1039, %v1038
      %v1043 = vsel %vm440, %v1040, 0
      %v1046 = vsel %vm440, %v1041, 0
      %1048 = vmatprep.subr.bf16.mxu0 0
      %1049 = vmatpush1.bf16.msra.mxu0 0
      %1050 = vmatprep.subr.bf16.mxu0 0
      %1051 = vmatpush1.bf16.msra.mxu0 0
      %1052 = vmatprep.subr.bf16.mxu0 0
      %1053 = vmatpush1.bf16.msra.mxu0 0
      %1054 = vmatprep.subr.bf16.mxu0 0
      %1055 = vmatpush1.bf16.msra.mxu0 0
      %1056 = vmatprep.subr.bf16.mxu0 0
      %1057 = vmatpush1.bf16.msra.mxu0 0
      %1058 = vmatprep.subr.bf16.mxu0 0
      %1059 = vmatpush1.bf16.msra.mxu0 0
      %1060 = vmatprep.subr.bf16.mxu0 0
      %1061 = vmatpush1.bf16.msra.mxu0 0
      %1062 = vmatprep.subr.bf16.mxu0 0
      %1063 = vmatpush1.bf16.msra.mxu0 %v962
      %1064 = vmatprep.subr.bf16.mxu0 0
      %1065 = vmatpush2.bf16.msra.mxu0 0
      %1066 = vmatprep.subr.bf16.mxu0 0
      %1067 = vmatpush2.bf16.msra.mxu0 0
      %1068 = vmatprep.subr.bf16.mxu0 0
      %1069 = vmatpush2.bf16.msra.mxu0 0
      %1070 = vmatprep.subr.bf16.mxu0 0
      %1071 = vmatpush2.bf16.msra.mxu0 0
      %1072 = vmatprep.subr.bf16.mxu0 0
      %1073 = vmatpush2.bf16.msra.mxu0 0
      %1074 = vmatprep.subr.bf16.mxu0 0
      %1075 = vmatpush2.bf16.msra.mxu0 0
      %1076 = vmatprep.subr.bf16.mxu0 0
      %1077 = vmatpush2.bf16.msra.mxu0 0
      %1078 = vmatprep.subr.bf16.mxu0 0
      %1079 = vmatpush2.bf16.msra.mxu0 0
      %1080 = vmatprep.mubr.bf16.mxu0 0
      %1081 = vmatmul.mubr.bf16.gmra.mxu0 %v1043
      %v1082 = vpop.f32.mrf.mxu0
      %v1083 = vadd.f32 0.0, %v1082
      %v1084 = vpop.f32.mrf.mxu0
      %v1085 = vpop.f32.mrf.mxu0
      %v1086 = vadd.f32 0.0, %v1085
      %v1087 = vpop.f32.mrf.mxu0
      %1088 = vmatprep.mubr.bf16.mxu0 0
      %1089 = vmatmul.mubr.bf16.gmra.mxu0 %v1046
      %v1090 = vpop.f32.mrf.mxu0
      %v1091 = vadd.f32 0.0, %v1090
      %v1092 = vpop.f32.mrf.mxu0
      %v1093 = vpop.f32.mrf.mxu0
      %v1094 = vadd.f32 0.0, %v1093
      %v1095 = vpop.f32.mrf.mxu0
      %1096 = vdwg.mxu0
      %v1101 = vunpack.c.l.b16 %v1023
      %v1102 = vunpack.c.l.b16 %v1024
      %v1103 = vunpack.c.l.b16 %v1025
      %v1104 = vunpack.c.l.b16 %v1026
      %v1105 = vpack.c.b16 %v1102, %v1101
      %v1106 = vpack.c.b16 %v1104, %v1103
      %1107 = vrot.lane.b32.xlu0 %v960, 126
      %v1108 = vpop.permute.xlu0 %1107
      %v1111 = vsel %vm440, %v1105, 0
      %v1114 = vsel %vm440, %v1106, 0
      %1116 = vmatprep.subr.bf16.mxu0 0
      %1117 = vmatpush1.bf16.msra.mxu0 0
      %1118 = vmatprep.subr.bf16.mxu0 0
      %1119 = vmatpush1.bf16.msra.mxu0 0
      %1120 = vmatprep.subr.bf16.mxu0 0
      %1121 = vmatpush1.bf16.msra.mxu0 0
      %1122 = vmatprep.subr.bf16.mxu0 0
      %1123 = vmatpush1.bf16.msra.mxu0 0
      %1124 = vmatprep.subr.bf16.mxu0 0
      %1125 = vmatpush1.bf16.msra.mxu0 0
      %1126 = vmatprep.subr.bf16.mxu0 0
      %1127 = vmatpush1.bf16.msra.mxu0 0
      %1128 = vmatprep.subr.bf16.mxu0 0
      %1129 = vmatpush1.bf16.msra.mxu0 0
      %1130 = vmatprep.subr.bf16.mxu0 0
      %1131 = vmatpush1.bf16.msra.mxu0 %v1108
      %1132 = vmatprep.subr.bf16.mxu0 0
      %1133 = vmatpush2.bf16.msra.mxu0 0
      %1134 = vmatprep.subr.bf16.mxu0 0
      %1135 = vmatpush2.bf16.msra.mxu0 0
      %1136 = vmatprep.subr.bf16.mxu0 0
      %1137 = vmatpush2.bf16.msra.mxu0 0
      %1138 = vmatprep.subr.bf16.mxu0 0
      %1139 = vmatpush2.bf16.msra.mxu0 0
      %1140 = vmatprep.subr.bf16.mxu0 0
      %1141 = vmatpush2.bf16.msra.mxu0 0
      %1142 = vmatprep.subr.bf16.mxu0 0
      %1143 = vmatpush2.bf16.msra.mxu0 0
      %1144 = vmatprep.subr.bf16.mxu0 0
      %1145 = vmatpush2.bf16.msra.mxu0 0
      %1146 = vmatprep.subr.bf16.mxu0 0
      %1147 = vmatpush2.bf16.msra.mxu0 0
      %1148 = vmatprep.mubr.bf16.mxu0 0
      %1149 = vmatmul.mubr.bf16.gmra.mxu0 %v1111
      %v1150 = vpop.f32.mrf.mxu0
      %v1151 = vadd.f32 %v1083, %v1150
      %v1152 = vpop.f32.mrf.mxu0
      %v1153 = vpop.f32.mrf.mxu0
      %v1154 = vadd.f32 %v1086, %v1153
      %v1155 = vpop.f32.mrf.mxu0
      %1156 = vmatprep.mubr.bf16.mxu0 0
      %1157 = vmatmul.mubr.bf16.gmra.mxu0 %v1114
      %v1158 = vpop.f32.mrf.mxu0
      %v1159 = vadd.f32 %v1091, %v1158
      %v1160 = vpop.f32.mrf.mxu0
      %v1161 = vpop.f32.mrf.mxu0
      %v1162 = vadd.f32 %v1094, %v1161
      %v1163 = vpop.f32.mrf.mxu0
      %1164 = vdwg.mxu0
      %v1165 = vadd.f32 %v1151, %v929
      %v1166 = vadd.f32 %v1154, %v934
      %v1167 = vadd.f32 %v1159, %v939
      %v1168 = vadd.f32 %v1162, %v944
      %v1169 = vmax.f32 %v1165, 0.0
      %v1170 = vmax.f32 %v1166, 0.0
      %v1171 = vmax.f32 %v1167, 0.0
      %v1172 = vmax.f32 %v1168, 0.0
      %v1173 = vpack.c.bf16 %v1020, %v1019
      %v1174 = vpack.c.bf16 %v1022, %v1021
      %v1177 = vunpack.c.l.b16 %v1173
      %v1178 = vunpack.c.h.b16 %v1173
      %v1179 = vunpack.c.l.b16 %v1174
      %v1180 = vunpack.c.h.b16 %v1174
      %v1181 = vpack.c.b16 %v1177, %v1177
      %v1182 = vpack.c.b16 %v1178, %v1178
      %v1183 = vpack.c.b16 %v1179, %v1179
      %v1184 = vpack.c.b16 %v1180, %v1180
      %1185 = vrot.lane.b32.xlu0 %v1181, 1
      %v1186 = vpop.permute.xlu0 %1185
      %1187 = vrot.lane.b32.xlu0 %v1182, 1
      %v1188 = vpop.permute.xlu0 %1187
      %1189 = vrot.lane.b32.xlu0 %v1183, 1
      %v1190 = vpop.permute.xlu0 %1189
      %1191 = vrot.lane.b32.xlu0 %v1184, 1
      %v1192 = vpop.permute.xlu0 %1191
      %1197 = vst.msk [vmem:[#allocation3] sm:$0xf] %vm423, %v1186
      %1198 = vst.msk [vmem:[#allocation3 + $0x4] sm:$0xf] %vm423, %v1188
      %1199 = vst.msk [vmem:[#allocation3 + $0x8] sm:$0xf] %vm423, %v1190
      %1200 = vst.msk [vmem:[#allocation3 + $0xc] sm:$0xf] %vm423, %v1192
      %v1201 = vpack.c.bf16 %v1170, %v1169
      %v1202 = vpack.c.bf16 %v1172, %v1171
      %v1205 = vunpack.c.l.b16 %v1201
      %v1206 = vunpack.c.h.b16 %v1201
      %v1207 = vunpack.c.l.b16 %v1202
      %v1208 = vunpack.c.h.b16 %v1202
      %v1209 = vpack.c.b16 %v1205, %v1205
      %v1210 = vpack.c.b16 %v1206, %v1206
      %v1211 = vpack.c.b16 %v1207, %v1207
      %v1212 = vpack.c.b16 %v1208, %v1208
      %1213 = vrot.lane.b32.xlu0 %v1209, 1
      %v1214 = vpop.permute.xlu0 %1213
      %1215 = vrot.lane.b32.xlu0 %v1210, 1
      %v1216 = vpop.permute.xlu0 %1215
      %1217 = vrot.lane.b32.xlu0 %v1211, 1
      %v1218 = vpop.permute.xlu0 %1217
      %1219 = vrot.lane.b32.xlu0 %v1212, 1
      %v1220 = vpop.permute.xlu0 %1219
      %s1225 = scalar_lea.vmem [#allocation3], 16
      %1226 = vst.msk [vmem:[%s1225] sm:$0xf] %vm423, %v1214
      %1227 = vst.msk [vmem:[%s1225 + $0x4] sm:$0xf] %vm423, %v1216
      %1228 = vst.msk [vmem:[%s1225 + $0x8] sm:$0xf] %vm423, %v1218
      %1229 = vst.msk [vmem:[%s1225 + $0xc] sm:$0xf] %vm423, %v1220
      %v1230 = vld [vmem:[%s8] sm:$0xff]
      %v1231 = vld [vmem:[%s8 + $0x8] sm:$0xff]
      %v1232 = vld [vmem:[%s7] sm:$0xf]
      %v1233 = vld [vmem:[%s7 + $0x4] sm:$0xf]
      %v1234 = vld [vmem:[%s1225] sm:$0xf]
      %v1235 = vld [vmem:[%s1225 + $0x4] sm:$0xf]
      %v1236 = vld [vmem:[%s1225 + $0x8] sm:$0xf]
      %v1237 = vld [vmem:[%s1225 + $0xc] sm:$0xf]
      %s1238 = scalar_lea.vmem %s7, 16
      %v1239 = vld [vmem:[%s1238] sm:$0xf]
      %v1240 = vld [vmem:[%s1238 + $0x4] sm:$0xf]
      %v1241 = vld [vmem:[#allocation3] sm:$0xf]
      %v1242 = vld [vmem:[#allocation3 + $0x4] sm:$0xf]
      %v1243 = vld [vmem:[#allocation3 + $0x8] sm:$0xf]
      %v1244 = vld [vmem:[#allocation3 + $0xc] sm:$0xf]
      %v1247 = vunpack.c.l.b16 %v1239
      %v1248 = vunpack.c.l.b16 %v1240
      %v1249 = vpack.c.b16 %v1248, %v1247
      %v1254 = vunpack.c.l.b16 %v1241
      %v1255 = vunpack.c.l.b16 %v1242
      %v1256 = vunpack.c.l.b16 %v1243
      %v1257 = vunpack.c.l.b16 %v1244
      %v1258 = vpack.c.b16 %v1255, %v1254
      %v1259 = vpack.c.b16 %v1257, %v1256
      %1260 = vrot.lane.b32.xlu0 %v1258, 127
      %v1261 = vpop.permute.xlu0 %1260
      %1262 = vrot.lane.b32.xlu0 %v1259, 127
      %v1263 = vpop.permute.xlu0 %1262
      %vm1266 = vcmask 261120
      %v1268 = vsel %vm1266, %v1249, 0
      %1270 = vmatprep.subr.bf16.mxu0 0
      %1271 = vmatpush1.bf16.msra.mxu0 0
      %1272 = vmatprep.subr.bf16.mxu0 0
      %1273 = vmatpush1.bf16.msra.mxu0 0
      %1274 = vmatprep.subr.bf16.mxu0 0
      %1275 = vmatpush1.bf16.msra.mxu0 0
      %1276 = vmatprep.subr.bf16.mxu0 0
      %1277 = vmatpush1.bf16.msra.mxu0 0
      %1278 = vmatprep.subr.bf16.mxu0 0
      %1279 = vmatpush1.bf16.msra.mxu0 0
      %1280 = vmatprep.subr.bf16.mxu0 0
      %1281 = vmatpush1.bf16.msra.mxu0 0
      %1282 = vmatprep.subr.bf16.mxu0 0
      %1283 = vmatpush1.bf16.msra.mxu0 %v1263
      %1284 = vmatprep.subr.bf16.mxu0 0
      %1285 = vmatpush1.bf16.msra.mxu0 %v1261
      %1286 = vmatprep.subr.bf16.mxu0 0
      %1287 = vmatpush2.bf16.msra.mxu0 0
      %1288 = vmatprep.subr.bf16.mxu0 0
      %1289 = vmatpush2.bf16.msra.mxu0 0
      %1290 = vmatprep.subr.bf16.mxu0 0
      %1291 = vmatpush2.bf16.msra.mxu0 0
      %1292 = vmatprep.subr.bf16.mxu0 0
      %1293 = vmatpush2.bf16.msra.mxu0 0
      %1294 = vmatprep.subr.bf16.mxu0 0
      %1295 = vmatpush2.bf16.msra.mxu0 0
      %1296 = vmatprep.subr.bf16.mxu0 0
      %1297 = vmatpush2.bf16.msra.mxu0 0
      %1298 = vmatprep.subr.bf16.mxu0 0
      %1299 = vmatpush2.bf16.msra.mxu0 0
      %1300 = vmatprep.subr.bf16.mxu0 0
      %1301 = vmatpush2.bf16.msra.mxu0 0
      %1302 = vmatprep.mubr.bf16.mxu0 0
      %1303 = vmatmul.mubr.bf16.gmra.mxu0 %v1268
      %v1304 = vpop.f32.mrf.mxu0
      %v1305 = vadd.f32 0.0, %v1304
      %v1306 = vpop.f32.mrf.mxu0
      %v1307 = vpop.f32.mrf.mxu0
      %v1308 = vadd.f32 0.0, %v1307
      %v1309 = vpop.f32.mrf.mxu0
      %1310 = vdwg.mxu0
      %v1313 = vunpack.c.l.b16 %v1232
      %v1314 = vunpack.c.l.b16 %v1233
      %v1315 = vpack.c.b16 %v1314, %v1313
      %v1320 = vunpack.c.l.b16 %v1234
      %v1321 = vunpack.c.l.b16 %v1235
      %v1322 = vunpack.c.l.b16 %v1236
      %v1323 = vunpack.c.l.b16 %v1237
      %v1324 = vpack.c.b16 %v1321, %v1320
      %v1325 = vpack.c.b16 %v1323, %v1322
      %1326 = vrot.lane.b32.xlu0 %v1324, 127
      %v1327 = vpop.permute.xlu0 %1326
      %1328 = vrot.lane.b32.xlu0 %v1325, 127
      %v1329 = vpop.permute.xlu0 %1328
      %v1333 = vsel %vm1266, %v1315, 0
      %1335 = vmatprep.subr.bf16.mxu0 0
      %1336 = vmatpush1.bf16.msra.mxu0 0
      %1337 = vmatprep.subr.bf16.mxu0 0
      %1338 = vmatpush1.bf16.msra.mxu0 0
      %1339 = vmatprep.subr.bf16.mxu0 0
      %1340 = vmatpush1.bf16.msra.mxu0 0
      %1341 = vmatprep.subr.bf16.mxu0 0
      %1342 = vmatpush1.bf16.msra.mxu0 0
      %1343 = vmatprep.subr.bf16.mxu0 0
      %1344 = vmatpush1.bf16.msra.mxu0 0
      %1345 = vmatprep.subr.bf16.mxu0 0
      %1346 = vmatpush1.bf16.msra.mxu0 0
      %1347 = vmatprep.subr.bf16.mxu0 0
      %1348 = vmatpush1.bf16.msra.mxu0 %v1329
      %1349 = vmatprep.subr.bf16.mxu0 0
      %1350 = vmatpush1.bf16.msra.mxu0 %v1327
      %1351 = vmatprep.subr.bf16.mxu0 0
      %1352 = vmatpush2.bf16.msra.mxu0 0
      %1353 = vmatprep.subr.bf16.mxu0 0
      %1354 = vmatpush2.bf16.msra.mxu0 0
      %1355 = vmatprep.subr.bf16.mxu0 0
      %1356 = vmatpush2.bf16.msra.mxu0 0
      %1357 = vmatprep.subr.bf16.mxu0 0
      %1358 = vmatpush2.bf16.msra.mxu0 0
      %1359 = vmatprep.subr.bf16.mxu0 0
      %1360 = vmatpush2.bf16.msra.mxu0 0
      %1361 = vmatprep.subr.bf16.mxu0 0
      %1362 = vmatpush2.bf16.msra.mxu0 0
      %1363 = vmatprep.subr.bf16.mxu0 0
      %1364 = vmatpush2.bf16.msra.mxu0 0
      %1365 = vmatprep.subr.bf16.mxu0 0
      %1366 = vmatpush2.bf16.msra.mxu0 0
      %1367 = vmatprep.mubr.bf16.mxu0 0
      %1368 = vmatmul.mubr.bf16.gmra.mxu0 %v1333
      %v1369 = vpop.f32.mrf.mxu0
      %v1370 = vadd.f32 %v1305, %v1369
      %v1371 = vpop.f32.mrf.mxu0
      %v1372 = vpop.f32.mrf.mxu0
      %v1373 = vadd.f32 %v1308, %v1372
      %v1374 = vpop.f32.mrf.mxu0
      %1375 = vdwg.mxu0
      %s1376 = scalar_lea.vmem %s7, 32
      %v1377 = vld [vmem:[%s1376] sm:$0xf]
      %v1378 = vld [vmem:[%s1376 + $0x4] sm:$0xf]
      %v1381 = vunpack.c.l.b16 %v1377
      %v1382 = vunpack.c.l.b16 %v1378
      %v1383 = vpack.c.b16 %v1382, %v1381
      %v1387 = vsel %vm1266, %v1383, 0
      %1389 = vmatprep.subr.bf16.mxu0 0
      %1390 = vmatpush1.bf16.msra.mxu0 0
      %1391 = vmatprep.subr.bf16.mxu0 0
      %1392 = vmatpush1.bf16.msra.mxu0 0
      %1393 = vmatprep.subr.bf16.mxu0 0
      %1394 = vmatpush1.bf16.msra.mxu0 0
      %1395 = vmatprep.subr.bf16.mxu0 0
      %1396 = vmatpush1.bf16.msra.mxu0 0
      %1397 = vmatprep.subr.bf16.mxu0 0
      %1398 = vmatpush1.bf16.msra.mxu0 0
      %1399 = vmatprep.subr.bf16.mxu0 0
      %1400 = vmatpush1.bf16.msra.mxu0 0
      %1401 = vmatprep.subr.bf16.mxu0 0
      %1402 = vmatpush1.bf16.msra.mxu0 %v1325
      %1403 = vmatprep.subr.bf16.mxu0 0
      %1404 = vmatpush1.bf16.msra.mxu0 %v1324
      %1405 = vmatprep.subr.bf16.mxu0 0
      %1406 = vmatpush2.bf16.msra.mxu0 0
      %1407 = vmatprep.subr.bf16.mxu0 0
      %1408 = vmatpush2.bf16.msra.mxu0 0
      %1409 = vmatprep.subr.bf16.mxu0 0
      %1410 = vmatpush2.bf16.msra.mxu0 0
      %1411 = vmatprep.subr.bf16.mxu0 0
      %1412 = vmatpush2.bf16.msra.mxu0 0
      %1413 = vmatprep.subr.bf16.mxu0 0
      %1414 = vmatpush2.bf16.msra.mxu0 0
      %1415 = vmatprep.subr.bf16.mxu0 0
      %1416 = vmatpush2.bf16.msra.mxu0 0
      %1417 = vmatprep.subr.bf16.mxu0 0
      %1418 = vmatpush2.bf16.msra.mxu0 0
      %1419 = vmatprep.subr.bf16.mxu0 0
      %1420 = vmatpush2.bf16.msra.mxu0 0
      %1421 = vmatprep.mubr.bf16.mxu0 0
      %1422 = vmatmul.mubr.bf16.gmra.mxu0 %v1387
      %v1423 = vpop.f32.mrf.mxu0
      %v1424 = vadd.f32 0.0, %v1423
      %v1425 = vpop.f32.mrf.mxu0
      %v1426 = vpop.f32.mrf.mxu0
      %v1427 = vadd.f32 0.0, %v1426
      %v1428 = vpop.f32.mrf.mxu0
      %1429 = vdwg.mxu0
      %v1430 = vadd.f32 %v1370, %v1424
      %v1431 = vadd.f32 %v1373, %v1427
      %1433 = vset.pattern.permute.xlu0 0
      %1434 = vperm.xlu0 %1433, %v1230
      %v1435 = vpop.permute.xlu0 %1434
      %1438 = vset.pattern.permute.xlu0 0
      %1439 = vperm.xlu0 %1438, %v1231
      %v1440 = vpop.permute.xlu0 %1439
      %v1442 = vadd.f32 %v1430, %v1435
      %v1443 = vadd.f32 %v1431, %v1440
      %v1444 = vmax.f32 %v1442, 0.0
      %v1445 = vmax.f32 %v1443, 0.0
      %s1446 = scalar_lea.vmem %s7, 8
      %v1447 = vld [vmem:[%s1446] sm:$0xf]
      %v1448 = vld [vmem:[%s1446 + $0x4] sm:$0xf]
      %s1449 = scalar_lea.vmem %s7, 24
      %v1450 = vld [vmem:[%s1449] sm:$0xf]
      %v1451 = vld [vmem:[%s1449 + $0x4] sm:$0xf]
      %v1454 = vunpack.c.l.b16 %v1450
      %v1455 = vunpack.c.l.b16 %v1451
      %v1456 = vpack.c.b16 %v1455, %v1454
      %v1458 = vsel %vm1266, %v1456, 0
      %1460 = vmatprep.subr.bf16.mxu0 0
      %1461 = vmatpush1.bf16.msra.mxu0 0
      %1462 = vmatprep.subr.bf16.mxu0 0
      %1463 = vmatpush1.bf16.msra.mxu0 0
      %1464 = vmatprep.subr.bf16.mxu0 0
      %1465 = vmatpush1.bf16.msra.mxu0 0
      %1466 = vmatprep.subr.bf16.mxu0 0
      %1467 = vmatpush1.bf16.msra.mxu0 0
      %1468 = vmatprep.subr.bf16.mxu0 0
      %1469 = vmatpush1.bf16.msra.mxu0 0
      %1470 = vmatprep.subr.bf16.mxu0 0
      %1471 = vmatpush1.bf16.msra.mxu0 0
      %1472 = vmatprep.subr.bf16.mxu0 0
      %1473 = vmatpush1.bf16.msra.mxu0 %v1263
      %1474 = vmatprep.subr.bf16.mxu0 0
      %1475 = vmatpush1.bf16.msra.mxu0 %v1261
      %1476 = vmatprep.subr.bf16.mxu0 0
      %1477 = vmatpush2.bf16.msra.mxu0 0
      %1478 = vmatprep.subr.bf16.mxu0 0
      %1479 = vmatpush2.bf16.msra.mxu0 0
      %1480 = vmatprep.subr.bf16.mxu0 0
      %1481 = vmatpush2.bf16.msra.mxu0 0
      %1482 = vmatprep.subr.bf16.mxu0 0
      %1483 = vmatpush2.bf16.msra.mxu0 0
      %1484 = vmatprep.subr.bf16.mxu0 0
      %1485 = vmatpush2.bf16.msra.mxu0 0
      %1486 = vmatprep.subr.bf16.mxu0 0
      %1487 = vmatpush2.bf16.msra.mxu0 0
      %1488 = vmatprep.subr.bf16.mxu0 0
      %1489 = vmatpush2.bf16.msra.mxu0 0
      %1490 = vmatprep.subr.bf16.mxu0 0
      %1491 = vmatpush2.bf16.msra.mxu0 0
      %1492 = vmatprep.mubr.bf16.mxu0 0
      %1493 = vmatmul.mubr.bf16.gmra.mxu0 %v1458
      %v1494 = vpop.f32.mrf.mxu0
      %v1495 = vadd.f32 0.0, %v1494
      %v1496 = vpop.f32.mrf.mxu0
      %v1497 = vpop.f32.mrf.mxu0
      %v1498 = vadd.f32 0.0, %v1497
      %v1499 = vpop.f32.mrf.mxu0
      %1500 = vdwg.mxu0
      %v1503 = vunpack.c.l.b16 %v1447
      %v1504 = vunpack.c.l.b16 %v1448
      %v1505 = vpack.c.b16 %v1504, %v1503
      %v1507 = vsel %vm1266, %v1505, 0
      %1509 = vmatprep.subr.bf16.mxu0 0
      %1510 = vmatpush1.bf16.msra.mxu0 0
      %1511 = vmatprep.subr.bf16.mxu0 0
      %1512 = vmatpush1.bf16.msra.mxu0 0
      %1513 = vmatprep.subr.bf16.mxu0 0
      %1514 = vmatpush1.bf16.msra.mxu0 0
      %1515 = vmatprep.subr.bf16.mxu0 0
      %1516 = vmatpush1.bf16.msra.mxu0 0
      %1517 = vmatprep.subr.bf16.mxu0 0
      %1518 = vmatpush1.bf16.msra.mxu0 0
      %1519 = vmatprep.subr.bf16.mxu0 0
      %1520 = vmatpush1.bf16.msra.mxu0 0
      %1521 = vmatprep.subr.bf16.mxu0 0
      %1522 = vmatpush1.bf16.msra.mxu0 %v1329
      %1523 = vmatprep.subr.bf16.mxu0 0
      %1524 = vmatpush1.bf16.msra.mxu0 %v1327
      %1525 = vmatprep.subr.bf16.mxu0 0
      %1526 = vmatpush2.bf16.msra.mxu0 0
      %1527 = vmatprep.subr.bf16.mxu0 0
      %1528 = vmatpush2.bf16.msra.mxu0 0
      %1529 = vmatprep.subr.bf16.mxu0 0
      %1530 = vmatpush2.bf16.msra.mxu0 0
      %1531 = vmatprep.subr.bf16.mxu0 0
      %1532 = vmatpush2.bf16.msra.mxu0 0
      %1533 = vmatprep.subr.bf16.mxu0 0
      %1534 = vmatpush2.bf16.msra.mxu0 0
      %1535 = vmatprep.subr.bf16.mxu0 0
      %1536 = vmatpush2.bf16.msra.mxu0 0
      %1537 = vmatprep.subr.bf16.mxu0 0
      %1538 = vmatpush2.bf16.msra.mxu0 0
      %1539 = vmatprep.subr.bf16.mxu0 0
      %1540 = vmatpush2.bf16.msra.mxu0 0
      %1541 = vmatprep.mubr.bf16.mxu0 0
      %1542 = vmatmul.mubr.bf16.gmra.mxu0 %v1507
      %v1543 = vpop.f32.mrf.mxu0
      %v1544 = vadd.f32 %v1495, %v1543
      %v1545 = vpop.f32.mrf.mxu0
      %v1546 = vpop.f32.mrf.mxu0
      %v1547 = vadd.f32 %v1498, %v1546
      %v1548 = vpop.f32.mrf.mxu0
      %1549 = vdwg.mxu0
      %v1550 = vadd.f32 %v1544, %v1435
      %v1551 = vadd.f32 %v1547, %v1440
      %v1552 = vmax.f32 %v1550, 0.0
      %v1553 = vmax.f32 %v1551, 0.0
      %1554 = vmatprep.subr.bf16.mxu0 0
      %1555 = vmatpush1.bf16.msra.mxu0 0
      %1556 = vmatprep.subr.bf16.mxu0 0
      %1557 = vmatpush1.bf16.msra.mxu0 0
      %1558 = vmatprep.subr.bf16.mxu0 0
      %1559 = vmatpush1.bf16.msra.mxu0 0
      %1560 = vmatprep.subr.bf16.mxu0 0
      %1561 = vmatpush1.bf16.msra.mxu0 0
      %1562 = vmatprep.subr.bf16.mxu0 0
      %1563 = vmatpush1.bf16.msra.mxu0 0
      %1564 = vmatprep.subr.bf16.mxu0 0
      %1565 = vmatpush1.bf16.msra.mxu0 0
      %1566 = vmatprep.subr.bf16.mxu0 0
      %1567 = vmatpush1.bf16.msra.mxu0 %v1329
      %1568 = vmatprep.subr.bf16.mxu0 0
      %1569 = vmatpush1.bf16.msra.mxu0 %v1327
      %1570 = vmatprep.subr.bf16.mxu0 0
      %1571 = vmatpush2.bf16.msra.mxu0 0
      %1572 = vmatprep.subr.bf16.mxu0 0
      %1573 = vmatpush2.bf16.msra.mxu0 0
      %1574 = vmatprep.subr.bf16.mxu0 0
      %1575 = vmatpush2.bf16.msra.mxu0 0
      %1576 = vmatprep.subr.bf16.mxu0 0
      %1577 = vmatpush2.bf16.msra.mxu0 0
      %1578 = vmatprep.subr.bf16.mxu0 0
      %1579 = vmatpush2.bf16.msra.mxu0 0
      %1580 = vmatprep.subr.bf16.mxu0 0
      %1581 = vmatpush2.bf16.msra.mxu0 0
      %1582 = vmatprep.subr.bf16.mxu0 0
      %1583 = vmatpush2.bf16.msra.mxu0 0
      %1584 = vmatprep.subr.bf16.mxu0 0
      %1585 = vmatpush2.bf16.msra.mxu0 0
      %1586 = vmatprep.mubr.bf16.mxu0 0
      %1587 = vmatmul.mubr.bf16.gmra.mxu0 %v1268
      %v1588 = vpop.f32.mrf.mxu0
      %v1589 = vadd.f32 0.0, %v1588
      %v1590 = vpop.f32.mrf.mxu0
      %v1591 = vpop.f32.mrf.mxu0
      %v1592 = vadd.f32 0.0, %v1591
      %v1593 = vpop.f32.mrf.mxu0
      %1594 = vdwg.mxu0
      %1595 = vrot.lane.b32.xlu0 %v1258, 126
      %v1596 = vpop.permute.xlu0 %1595
      %1597 = vrot.lane.b32.xlu0 %v1259, 126
      %v1598 = vpop.permute.xlu0 %1597
      %1601 = vmatprep.subr.bf16.mxu0 0
      %1602 = vmatpush1.bf16.msra.mxu0 0
      %1603 = vmatprep.subr.bf16.mxu0 0
      %1604 = vmatpush1.bf16.msra.mxu0 0
      %1605 = vmatprep.subr.bf16.mxu0 0
      %1606 = vmatpush1.bf16.msra.mxu0 0
      %1607 = vmatprep.subr.bf16.mxu0 0
      %1608 = vmatpush1.bf16.msra.mxu0 0
      %1609 = vmatprep.subr.bf16.mxu0 0
      %1610 = vmatpush1.bf16.msra.mxu0 0
      %1611 = vmatprep.subr.bf16.mxu0 0
      %1612 = vmatpush1.bf16.msra.mxu0 0
      %1613 = vmatprep.subr.bf16.mxu0 0
      %1614 = vmatpush1.bf16.msra.mxu0 %v1598
      %1615 = vmatprep.subr.bf16.mxu0 0
      %1616 = vmatpush1.bf16.msra.mxu0 %v1596
      %1617 = vmatprep.subr.bf16.mxu0 0
      %1618 = vmatpush2.bf16.msra.mxu0 0
      %1619 = vmatprep.subr.bf16.mxu0 0
      %1620 = vmatpush2.bf16.msra.mxu0 0
      %1621 = vmatprep.subr.bf16.mxu0 0
      %1622 = vmatpush2.bf16.msra.mxu0 0
      %1623 = vmatprep.subr.bf16.mxu0 0
      %1624 = vmatpush2.bf16.msra.mxu0 0
      %1625 = vmatprep.subr.bf16.mxu0 0
      %1626 = vmatpush2.bf16.msra.mxu0 0
      %1627 = vmatprep.subr.bf16.mxu0 0
      %1628 = vmatpush2.bf16.msra.mxu0 0
      %1629 = vmatprep.subr.bf16.mxu0 0
      %1630 = vmatpush2.bf16.msra.mxu0 0
      %1631 = vmatprep.subr.bf16.mxu0 0
      %1632 = vmatpush2.bf16.msra.mxu0 0
      %1633 = vmatprep.mubr.bf16.mxu0 0
      %1634 = vmatmul.mubr.bf16.gmra.mxu0 %v1333
      %v1635 = vpop.f32.mrf.mxu0
      %v1636 = vadd.f32 %v1589, %v1635
      %v1637 = vpop.f32.mrf.mxu0
      %v1638 = vpop.f32.mrf.mxu0
      %v1639 = vadd.f32 %v1592, %v1638
      %v1640 = vpop.f32.mrf.mxu0
      %1641 = vdwg.mxu0
      %1642 = vmatprep.subr.bf16.mxu0 0
      %1643 = vmatpush1.bf16.msra.mxu0 0
      %1644 = vmatprep.subr.bf16.mxu0 0
      %1645 = vmatpush1.bf16.msra.mxu0 0
      %1646 = vmatprep.subr.bf16.mxu0 0
      %1647 = vmatpush1.bf16.msra.mxu0 0
      %1648 = vmatprep.subr.bf16.mxu0 0
      %1649 = vmatpush1.bf16.msra.mxu0 0
      %1650 = vmatprep.subr.bf16.mxu0 0
      %1651 = vmatpush1.bf16.msra.mxu0 0
      %1652 = vmatprep.subr.bf16.mxu0 0
      %1653 = vmatpush1.bf16.msra.mxu0 0
      %1654 = vmatprep.subr.bf16.mxu0 0
      %1655 = vmatpush1.bf16.msra.mxu0 %v1263
      %1656 = vmatprep.subr.bf16.mxu0 0
      %1657 = vmatpush1.bf16.msra.mxu0 %v1261
      %1658 = vmatprep.subr.bf16.mxu0 0
      %1659 = vmatpush2.bf16.msra.mxu0 0
      %1660 = vmatprep.subr.bf16.mxu0 0
      %1661 = vmatpush2.bf16.msra.mxu0 0
      %1662 = vmatprep.subr.bf16.mxu0 0
      %1663 = vmatpush2.bf16.msra.mxu0 0
      %1664 = vmatprep.subr.bf16.mxu0 0
      %1665 = vmatpush2.bf16.msra.mxu0 0
      %1666 = vmatprep.subr.bf16.mxu0 0
      %1667 = vmatpush2.bf16.msra.mxu0 0
      %1668 = vmatprep.subr.bf16.mxu0 0
      %1669 = vmatpush2.bf16.msra.mxu0 0
      %1670 = vmatprep.subr.bf16.mxu0 0
      %1671 = vmatpush2.bf16.msra.mxu0 0
      %1672 = vmatprep.subr.bf16.mxu0 0
      %1673 = vmatpush2.bf16.msra.mxu0 0
      %1674 = vmatprep.mubr.bf16.mxu0 0
      %1675 = vmatmul.mubr.bf16.gmra.mxu0 %v1387
      %v1676 = vpop.f32.mrf.mxu0
      %v1677 = vadd.f32 0.0, %v1676
      %v1678 = vpop.f32.mrf.mxu0
      %v1679 = vpop.f32.mrf.mxu0
      %v1680 = vadd.f32 0.0, %v1679
      %v1681 = vpop.f32.mrf.mxu0
      %1682 = vdwg.mxu0
      %v1683 = vadd.f32 %v1636, %v1677
      %v1684 = vadd.f32 %v1639, %v1680
      %v1685 = vadd.f32 %v1683, %v1435
      %v1686 = vadd.f32 %v1684, %v1440
      %v1687 = vmax.f32 %v1685, 0.0
      %v1688 = vmax.f32 %v1686, 0.0
      %1689 = vmatprep.subr.bf16.mxu0 0
      %1690 = vmatpush1.bf16.msra.mxu0 0
      %1691 = vmatprep.subr.bf16.mxu0 0
      %1692 = vmatpush1.bf16.msra.mxu0 0
      %1693 = vmatprep.subr.bf16.mxu0 0
      %1694 = vmatpush1.bf16.msra.mxu0 0
      %1695 = vmatprep.subr.bf16.mxu0 0
      %1696 = vmatpush1.bf16.msra.mxu0 0
      %1697 = vmatprep.subr.bf16.mxu0 0
      %1698 = vmatpush1.bf16.msra.mxu0 0
      %1699 = vmatprep.subr.bf16.mxu0 0
      %1700 = vmatpush1.bf16.msra.mxu0 0
      %1701 = vmatprep.subr.bf16.mxu0 0
      %1702 = vmatpush1.bf16.msra.mxu0 %v1329
      %1703 = vmatprep.subr.bf16.mxu0 0
      %1704 = vmatpush1.bf16.msra.mxu0 %v1327
      %1705 = vmatprep.subr.bf16.mxu0 0
      %1706 = vmatpush2.bf16.msra.mxu0 0
      %1707 = vmatprep.subr.bf16.mxu0 0
      %1708 = vmatpush2.bf16.msra.mxu0 0
      %1709 = vmatprep.subr.bf16.mxu0 0
      %1710 = vmatpush2.bf16.msra.mxu0 0
      %1711 = vmatprep.subr.bf16.mxu0 0
      %1712 = vmatpush2.bf16.msra.mxu0 0
      %1713 = vmatprep.subr.bf16.mxu0 0
      %1714 = vmatpush2.bf16.msra.mxu0 0
      %1715 = vmatprep.subr.bf16.mxu0 0
      %1716 = vmatpush2.bf16.msra.mxu0 0
      %1717 = vmatprep.subr.bf16.mxu0 0
      %1718 = vmatpush2.bf16.msra.mxu0 0
      %1719 = vmatprep.subr.bf16.mxu0 0
      %1720 = vmatpush2.bf16.msra.mxu0 0
      %1721 = vmatprep.mubr.bf16.mxu0 0
      %1722 = vmatmul.mubr.bf16.gmra.mxu0 %v1458
      %v1723 = vpop.f32.mrf.mxu0
      %v1724 = vadd.f32 0.0, %v1723
      %v1725 = vpop.f32.mrf.mxu0
      %v1726 = vpop.f32.mrf.mxu0
      %v1727 = vadd.f32 0.0, %v1726
      %v1728 = vpop.f32.mrf.mxu0
      %1729 = vdwg.mxu0
      %1730 = vmatprep.subr.bf16.mxu0 0
      %1731 = vmatpush1.bf16.msra.mxu0 0
      %1732 = vmatprep.subr.bf16.mxu0 0
      %1733 = vmatpush1.bf16.msra.mxu0 0
      %1734 = vmatprep.subr.bf16.mxu0 0
      %1735 = vmatpush1.bf16.msra.mxu0 0
      %1736 = vmatprep.subr.bf16.mxu0 0
      %1737 = vmatpush1.bf16.msra.mxu0 0
      %1738 = vmatprep.subr.bf16.mxu0 0
      %1739 = vmatpush1.bf16.msra.mxu0 0
      %1740 = vmatprep.subr.bf16.mxu0 0
      %1741 = vmatpush1.bf16.msra.mxu0 0
      %1742 = vmatprep.subr.bf16.mxu0 0
      %1743 = vmatpush1.bf16.msra.mxu0 %v1598
      %1744 = vmatprep.subr.bf16.mxu0 0
      %1745 = vmatpush1.bf16.msra.mxu0 %v1596
      %1746 = vmatprep.subr.bf16.mxu0 0
      %1747 = vmatpush2.bf16.msra.mxu0 0
      %1748 = vmatprep.subr.bf16.mxu0 0
      %1749 = vmatpush2.bf16.msra.mxu0 0
      %1750 = vmatprep.subr.bf16.mxu0 0
      %1751 = vmatpush2.bf16.msra.mxu0 0
      %1752 = vmatprep.subr.bf16.mxu0 0
      %1753 = vmatpush2.bf16.msra.mxu0 0
      %1754 = vmatprep.subr.bf16.mxu0 0
      %1755 = vmatpush2.bf16.msra.mxu0 0
      %1756 = vmatprep.subr.bf16.mxu0 0
      %1757 = vmatpush2.bf16.msra.mxu0 0
      %1758 = vmatprep.subr.bf16.mxu0 0
      %1759 = vmatpush2.bf16.msra.mxu0 0
      %1760 = vmatprep.subr.bf16.mxu0 0
      %1761 = vmatpush2.bf16.msra.mxu0 0
      %1762 = vmatprep.mubr.bf16.mxu0 0
      %1763 = vmatmul.mubr.bf16.gmra.mxu0 %v1507
      %v1764 = vpop.f32.mrf.mxu0
      %v1765 = vadd.f32 %v1724, %v1764
      %v1766 = vpop.f32.mrf.mxu0
      %v1767 = vpop.f32.mrf.mxu0
      %v1768 = vadd.f32 %v1727, %v1767
      %v1769 = vpop.f32.mrf.mxu0
      %1770 = vdwg.mxu0
      %v1771 = vadd.f32 %v1765, %v1435
      %v1772 = vadd.f32 %v1768, %v1440
      %v1773 = vmax.f32 %v1771, 0.0
      %v1774 = vmax.f32 %v1772, 0.0
      %v1775 = vpack.c.bf16 %v1445, %v1444
      %v1777 = vunpack.c.l.b16 %v1775
      %v1778 = vunpack.c.h.b16 %v1775
      %v1779 = vpack.c.b16 %v1777, %v1777
      %v1780 = vpack.c.b16 %v1778, %v1778
      %1781 = vrot.lane.b32.xlu0 %v1779, 1
      %v1782 = vpop.permute.xlu0 %1781
      %1783 = vrot.lane.b32.xlu0 %v1780, 1
      %v1784 = vpop.permute.xlu0 %1783
      %1787 = vst.msk [vmem:[#allocation4] sm:$0xf] %vm423, %v1782
      %1788 = vst.msk [vmem:[#allocation4 + $0x4] sm:$0xf] %vm423, %v1784
      %v1789 = vpack.c.bf16 %v1553, %v1552
      %v1791 = vunpack.c.l.b16 %v1789
      %v1792 = vunpack.c.h.b16 %v1789
      %v1793 = vpack.c.b16 %v1791, %v1791
      %v1794 = vpack.c.b16 %v1792, %v1792
      %1795 = vrot.lane.b32.xlu0 %v1793, 1
      %v1796 = vpop.permute.xlu0 %1795
      %1797 = vrot.lane.b32.xlu0 %v1794, 1
      %v1798 = vpop.permute.xlu0 %1797
      %s1801 = scalar_lea.vmem [#allocation4], 8
      %1802 = vst.msk [vmem:[%s1801] sm:$0xf] %vm423, %v1796
      %1803 = vst.msk [vmem:[%s1801 + $0x4] sm:$0xf] %vm423, %v1798
      %v1804 = vpack.c.bf16 %v1688, %v1687
      %v1806 = vunpack.c.l.b16 %v1804
      %v1807 = vunpack.c.h.b16 %v1804
      %v1808 = vpack.c.b16 %v1806, %v1806
      %v1809 = vpack.c.b16 %v1807, %v1807
      %1810 = vrot.lane.b32.xlu0 %v1808, 1
      %v1811 = vpop.permute.xlu0 %1810
      %1812 = vrot.lane.b32.xlu0 %v1809, 1
      %v1813 = vpop.permute.xlu0 %1812
      %s1816 = scalar_lea.vmem [#allocation4], 16
      %1817 = vst.msk [vmem:[%s1816] sm:$0xf] %vm423, %v1811
      %1818 = vst.msk [vmem:[%s1816 + $0x4] sm:$0xf] %vm423, %v1813
      %v1819 = vpack.c.bf16 %v1774, %v1773
      %v1821 = vunpack.c.l.b16 %v1819
      %v1822 = vunpack.c.h.b16 %v1819
      %v1823 = vpack.c.b16 %v1821, %v1821
      %v1824 = vpack.c.b16 %v1822, %v1822
      %1825 = vrot.lane.b32.xlu0 %v1823, 1
      %v1826 = vpop.permute.xlu0 %1825
      %1827 = vrot.lane.b32.xlu0 %v1824, 1
      %v1828 = vpop.permute.xlu0 %1827
      %s1831 = scalar_lea.vmem [#allocation4], 24
      %1832 = vst.msk [vmem:[%s1831] sm:$0xf] %vm423, %v1826
      %1833 = vst.msk [vmem:[%s1831 + $0x4] sm:$0xf] %vm423, %v1828
      %v1834 = vld [vmem:[%s10] sm:$0xff]
      %v1835 = vld [vmem:[%s10 + $0x8] sm:$0xff]
      %v1836 = vld [vmem:[%s9] sm:$0xf]
      %v1837 = vld [vmem:[%s9 + $0x4] sm:$0xf]
      %v1838 = vld [vmem:[%s1801] sm:$0xf]
      %v1839 = vld [vmem:[%s1801 + $0x4] sm:$0xf]
      %s1840 = scalar_lea.vmem %s9, 8
      %v1841 = vld [vmem:[%s1840] sm:$0xf]
      %v1842 = vld [vmem:[%s1840 + $0x4] sm:$0xf]
      %v1843 = vld [vmem:[%s1816] sm:$0xf]
      %v1844 = vld [vmem:[%s1816 + $0x4] sm:$0xf]
      %v1847 = vunpack.c.l.b16 %v1841
      %v1848 = vunpack.c.l.b16 %v1842
      %v1849 = vpack.c.b16 %v1848, %v1847
      %v1852 = vunpack.c.l.b16 %v1843
      %v1853 = vunpack.c.l.b16 %v1844
      %v1854 = vpack.c.b16 %v1853, %v1852
      %v1857 = vsel %vm440, %v1849, 0
      %1859 = vmatprep.subr.bf16.mxu0 0
      %1860 = vmatpush1.bf16.msra.mxu0 0
      %1861 = vmatprep.subr.bf16.mxu0 0
      %1862 = vmatpush1.bf16.msra.mxu0 0
      %1863 = vmatprep.subr.bf16.mxu0 0
      %1864 = vmatpush1.bf16.msra.mxu0 0
      %1865 = vmatprep.subr.bf16.mxu0 0
      %1866 = vmatpush1.bf16.msra.mxu0 0
      %1867 = vmatprep.subr.bf16.mxu0 0
      %1868 = vmatpush1.bf16.msra.mxu0 0
      %1869 = vmatprep.subr.bf16.mxu0 0
      %1870 = vmatpush1.bf16.msra.mxu0 0
      %1871 = vmatprep.subr.bf16.mxu0 0
      %1872 = vmatpush1.bf16.msra.mxu0 0
      %1873 = vmatprep.subr.bf16.mxu0 0
      %1874 = vmatpush1.bf16.msra.mxu0 %v1854
      %1875 = vmatprep.subr.bf16.mxu0 0
      %1876 = vmatpush2.bf16.msra.mxu0 0
      %1877 = vmatprep.subr.bf16.mxu0 0
      %1878 = vmatpush2.bf16.msra.mxu0 0
      %1879 = vmatprep.subr.bf16.mxu0 0
      %1880 = vmatpush2.bf16.msra.mxu0 0
      %1881 = vmatprep.subr.bf16.mxu0 0
      %1882 = vmatpush2.bf16.msra.mxu0 0
      %1883 = vmatprep.subr.bf16.mxu0 0
      %1884 = vmatpush2.bf16.msra.mxu0 0
      %1885 = vmatprep.subr.bf16.mxu0 0
      %1886 = vmatpush2.bf16.msra.mxu0 0
      %1887 = vmatprep.subr.bf16.mxu0 0
      %1888 = vmatpush2.bf16.msra.mxu0 0
      %1889 = vmatprep.subr.bf16.mxu0 0
      %1890 = vmatpush2.bf16.msra.mxu0 0
      %1891 = vmatprep.mubr.bf16.mxu0 0
      %1892 = vmatmul.mubr.bf16.gmra.mxu0 %v1857
      %v1893 = vpop.f32.mrf.mxu0
      %v1894 = vadd.f32 0.0, %v1893
      %v1895 = vpop.f32.mrf.mxu0
      %v1896 = vpop.f32.mrf.mxu0
      %v1897 = vadd.f32 0.0, %v1896
      %v1898 = vpop.f32.mrf.mxu0
      %1899 = vdwg.mxu0
      %v1902 = vunpack.c.l.b16 %v1836
      %v1903 = vunpack.c.l.b16 %v1837
      %v1904 = vpack.c.b16 %v1903, %v1902
      %v1907 = vunpack.c.l.b16 %v1838
      %v1908 = vunpack.c.l.b16 %v1839
      %v1909 = vpack.c.b16 %v1908, %v1907
      %v1912 = vsel %vm440, %v1904, 0
      %1914 = vmatprep.subr.bf16.mxu0 0
      %1915 = vmatpush1.bf16.msra.mxu0 0
      %1916 = vmatprep.subr.bf16.mxu0 0
      %1917 = vmatpush1.bf16.msra.mxu0 0
      %1918 = vmatprep.subr.bf16.mxu0 0
      %1919 = vmatpush1.bf16.msra.mxu0 0
      %1920 = vmatprep.subr.bf16.mxu0 0
      %1921 = vmatpush1.bf16.msra.mxu0 0
      %1922 = vmatprep.subr.bf16.mxu0 0
      %1923 = vmatpush1.bf16.msra.mxu0 0
      %1924 = vmatprep.subr.bf16.mxu0 0
      %1925 = vmatpush1.bf16.msra.mxu0 0
      %1926 = vmatprep.subr.bf16.mxu0 0
      %1927 = vmatpush1.bf16.msra.mxu0 0
      %1928 = vmatprep.subr.bf16.mxu0 0
      %1929 = vmatpush1.bf16.msra.mxu0 %v1909
      %1930 = vmatprep.subr.bf16.mxu0 0
      %1931 = vmatpush2.bf16.msra.mxu0 0
      %1932 = vmatprep.subr.bf16.mxu0 0
      %1933 = vmatpush2.bf16.msra.mxu0 0
      %1934 = vmatprep.subr.bf16.mxu0 0
      %1935 = vmatpush2.bf16.msra.mxu0 0
      %1936 = vmatprep.subr.bf16.mxu0 0
      %1937 = vmatpush2.bf16.msra.mxu0 0
      %1938 = vmatprep.subr.bf16.mxu0 0
      %1939 = vmatpush2.bf16.msra.mxu0 0
      %1940 = vmatprep.subr.bf16.mxu0 0
      %1941 = vmatpush2.bf16.msra.mxu0 0
      %1942 = vmatprep.subr.bf16.mxu0 0
      %1943 = vmatpush2.bf16.msra.mxu0 0
      %1944 = vmatprep.subr.bf16.mxu0 0
      %1945 = vmatpush2.bf16.msra.mxu0 0
      %1946 = vmatprep.mubr.bf16.mxu0 0
      %1947 = vmatmul.mubr.bf16.gmra.mxu0 %v1912
      %v1948 = vpop.f32.mrf.mxu0
      %v1949 = vadd.f32 %v1894, %v1948
      %v1950 = vpop.f32.mrf.mxu0
      %v1951 = vpop.f32.mrf.mxu0
      %v1952 = vadd.f32 %v1897, %v1951
      %v1953 = vpop.f32.mrf.mxu0
      %1954 = vdwg.mxu0
      %s1955 = scalar_lea.vmem %s9, 16
      %v1956 = vld [vmem:[%s1955] sm:$0xf]
      %v1957 = vld [vmem:[%s1955 + $0x4] sm:$0xf]
      %v1958 = vld [vmem:[%s1831] sm:$0xf]
      %v1959 = vld [vmem:[%s1831 + $0x4] sm:$0xf]
      %v1962 = vunpack.c.l.b16 %v1956
      %v1963 = vunpack.c.l.b16 %v1957
      %v1964 = vpack.c.b16 %v1963, %v1962
      %v1967 = vunpack.c.l.b16 %v1958
      %v1968 = vunpack.c.l.b16 %v1959
      %v1969 = vpack.c.b16 %v1968, %v1967
      %v1972 = vsel %vm440, %v1964, 0
      %1974 = vmatprep.subr.bf16.mxu0 0
      %1975 = vmatpush1.bf16.msra.mxu0 0
      %1976 = vmatprep.subr.bf16.mxu0 0
      %1977 = vmatpush1.bf16.msra.mxu0 0
      %1978 = vmatprep.subr.bf16.mxu0 0
      %1979 = vmatpush1.bf16.msra.mxu0 0
      %1980 = vmatprep.subr.bf16.mxu0 0
      %1981 = vmatpush1.bf16.msra.mxu0 0
      %1982 = vmatprep.subr.bf16.mxu0 0
      %1983 = vmatpush1.bf16.msra.mxu0 0
      %1984 = vmatprep.subr.bf16.mxu0 0
      %1985 = vmatpush1.bf16.msra.mxu0 0
      %1986 = vmatprep.subr.bf16.mxu0 0
      %1987 = vmatpush1.bf16.msra.mxu0 0
      %1988 = vmatprep.subr.bf16.mxu0 0
      %1989 = vmatpush1.bf16.msra.mxu0 %v1969
      %1990 = vmatprep.subr.bf16.mxu0 0
      %1991 = vmatpush2.bf16.msra.mxu0 0
      %1992 = vmatprep.subr.bf16.mxu0 0
      %1993 = vmatpush2.bf16.msra.mxu0 0
      %1994 = vmatprep.subr.bf16.mxu0 0
      %1995 = vmatpush2.bf16.msra.mxu0 0
      %1996 = vmatprep.subr.bf16.mxu0 0
      %1997 = vmatpush2.bf16.msra.mxu0 0
      %1998 = vmatprep.subr.bf16.mxu0 0
      %1999 = vmatpush2.bf16.msra.mxu0 0
      %2000 = vmatprep.subr.bf16.mxu0 0
      %2001 = vmatpush2.bf16.msra.mxu0 0
      %2002 = vmatprep.subr.bf16.mxu0 0
      %2003 = vmatpush2.bf16.msra.mxu0 0
      %2004 = vmatprep.subr.bf16.mxu0 0
      %2005 = vmatpush2.bf16.msra.mxu0 0
      %2006 = vmatprep.mubr.bf16.mxu0 0
      %2007 = vmatmul.mubr.bf16.gmra.mxu0 %v1972
      %v2008 = vpop.f32.mrf.mxu0
      %v2009 = vadd.f32 0.0, %v2008
      %v2010 = vpop.f32.mrf.mxu0
      %v2011 = vpop.f32.mrf.mxu0
      %v2012 = vadd.f32 0.0, %v2011
      %v2013 = vpop.f32.mrf.mxu0
      %2014 = vdwg.mxu0
      %v2015 = vadd.f32 %v1949, %v2009
      %v2016 = vadd.f32 %v1952, %v2012
      %s2017 = scalar_lea.vmem %s9, 24
      %v2018 = vld [vmem:[%s2017] sm:$0xf]
      %v2019 = vld [vmem:[%s2017 + $0x4] sm:$0xf]
      %v2020 = vld [vmem:[#allocation4] sm:$0xf]
      %v2021 = vld [vmem:[#allocation4 + $0x4] sm:$0xf]
      %v2024 = vunpack.c.l.b16 %v2018
      %v2025 = vunpack.c.l.b16 %v2019
      %v2026 = vpack.c.b16 %v2025, %v2024
      %v2029 = vunpack.c.l.b16 %v2020
      %v2030 = vunpack.c.l.b16 %v2021
      %v2031 = vpack.c.b16 %v2030, %v2029
      %2032 = vrot.lane.b32.xlu0 %v2031, 127
      %v2033 = vpop.permute.xlu0 %2032
      %v2036 = vsel %vm440, %v2026, 0
      %2038 = vmatprep.subr.bf16.mxu0 0
      %2039 = vmatpush1.bf16.msra.mxu0 0
      %2040 = vmatprep.subr.bf16.mxu0 0
      %2041 = vmatpush1.bf16.msra.mxu0 0
      %2042 = vmatprep.subr.bf16.mxu0 0
      %2043 = vmatpush1.bf16.msra.mxu0 0
      %2044 = vmatprep.subr.bf16.mxu0 0
      %2045 = vmatpush1.bf16.msra.mxu0 0
      %2046 = vmatprep.subr.bf16.mxu0 0
      %2047 = vmatpush1.bf16.msra.mxu0 0
      %2048 = vmatprep.subr.bf16.mxu0 0
      %2049 = vmatpush1.bf16.msra.mxu0 0
      %2050 = vmatprep.subr.bf16.mxu0 0
      %2051 = vmatpush1.bf16.msra.mxu0 0
      %2052 = vmatprep.subr.bf16.mxu0 0
      %2053 = vmatpush1.bf16.msra.mxu0 %v2033
      %2054 = vmatprep.subr.bf16.mxu0 0
      %2055 = vmatpush2.bf16.msra.mxu0 0
      %2056 = vmatprep.subr.bf16.mxu0 0
      %2057 = vmatpush2.bf16.msra.mxu0 0
      %2058 = vmatprep.subr.bf16.mxu0 0
      %2059 = vmatpush2.bf16.msra.mxu0 0
      %2060 = vmatprep.subr.bf16.mxu0 0
      %2061 = vmatpush2.bf16.msra.mxu0 0
      %2062 = vmatprep.subr.bf16.mxu0 0
      %2063 = vmatpush2.bf16.msra.mxu0 0
      %2064 = vmatprep.subr.bf16.mxu0 0
      %2065 = vmatpush2.bf16.msra.mxu0 0
      %2066 = vmatprep.subr.bf16.mxu0 0
      %2067 = vmatpush2.bf16.msra.mxu0 0
      %2068 = vmatprep.subr.bf16.mxu0 0
      %2069 = vmatpush2.bf16.msra.mxu0 0
      %2070 = vmatprep.mubr.bf16.mxu0 0
      %2071 = vmatmul.mubr.bf16.gmra.mxu0 %v2036
      %v2072 = vpop.f32.mrf.mxu0
      %v2073 = vadd.f32 0.0, %v2072
      %v2074 = vpop.f32.mrf.mxu0
      %v2075 = vpop.f32.mrf.mxu0
      %v2076 = vadd.f32 0.0, %v2075
      %v2077 = vpop.f32.mrf.mxu0
      %2078 = vdwg.mxu0
      %v2079 = vadd.f32 %v2015, %v2073
      %v2080 = vadd.f32 %v2016, %v2076
      %s2081 = scalar_lea.vmem %s9, 32
      %v2082 = vld [vmem:[%s2081] sm:$0xf]
      %v2083 = vld [vmem:[%s2081 + $0x4] sm:$0xf]
      %v2086 = vunpack.c.l.b16 %v2082
      %v2087 = vunpack.c.l.b16 %v2083
      %v2088 = vpack.c.b16 %v2087, %v2086
      %2089 = vrot.lane.b32.xlu0 %v1909, 127
      %v2090 = vpop.permute.xlu0 %2089
      %v2093 = vsel %vm440, %v2088, 0
      %2095 = vmatprep.subr.bf16.mxu0 0
      %2096 = vmatpush1.bf16.msra.mxu0 0
      %2097 = vmatprep.subr.bf16.mxu0 0
      %2098 = vmatpush1.bf16.msra.mxu0 0
      %2099 = vmatprep.subr.bf16.mxu0 0
      %2100 = vmatpush1.bf16.msra.mxu0 0
      %2101 = vmatprep.subr.bf16.mxu0 0
      %2102 = vmatpush1.bf16.msra.mxu0 0
      %2103 = vmatprep.subr.bf16.mxu0 0
      %2104 = vmatpush1.bf16.msra.mxu0 0
      %2105 = vmatprep.subr.bf16.mxu0 0
      %2106 = vmatpush1.bf16.msra.mxu0 0
      %2107 = vmatprep.subr.bf16.mxu0 0
      %2108 = vmatpush1.bf16.msra.mxu0 0
      %2109 = vmatprep.subr.bf16.mxu0 0
      %2110 = vmatpush1.bf16.msra.mxu0 %v2090
      %2111 = vmatprep.subr.bf16.mxu0 0
      %2112 = vmatpush2.bf16.msra.mxu0 0
      %2113 = vmatprep.subr.bf16.mxu0 0
      %2114 = vmatpush2.bf16.msra.mxu0 0
      %2115 = vmatprep.subr.bf16.mxu0 0
      %2116 = vmatpush2.bf16.msra.mxu0 0
      %2117 = vmatprep.subr.bf16.mxu0 0
      %2118 = vmatpush2.bf16.msra.mxu0 0
      %2119 = vmatprep.subr.bf16.mxu0 0
      %2120 = vmatpush2.bf16.msra.mxu0 0
      %2121 = vmatprep.subr.bf16.mxu0 0
      %2122 = vmatpush2.bf16.msra.mxu0 0
      %2123 = vmatprep.subr.bf16.mxu0 0
      %2124 = vmatpush2.bf16.msra.mxu0 0
      %2125 = vmatprep.subr.bf16.mxu0 0
      %2126 = vmatpush2.bf16.msra.mxu0 0
      %2127 = vmatprep.mubr.bf16.mxu0 0
      %2128 = vmatmul.mubr.bf16.gmra.mxu0 %v2093
      %v2129 = vpop.f32.mrf.mxu0
      %v2130 = vadd.f32 0.0, %v2129
      %v2131 = vpop.f32.mrf.mxu0
      %v2132 = vpop.f32.mrf.mxu0
      %v2133 = vadd.f32 0.0, %v2132
      %v2134 = vpop.f32.mrf.mxu0
      %2135 = vdwg.mxu0
      %v2136 = vadd.f32 %v2079, %v2130
      %v2137 = vadd.f32 %v2080, %v2133
      %s2138 = scalar_lea.vmem %s9, 40
      %v2139 = vld [vmem:[%s2138] sm:$0xf]
      %v2140 = vld [vmem:[%s2138 + $0x4] sm:$0xf]
      %v2143 = vunpack.c.l.b16 %v2139
      %v2144 = vunpack.c.l.b16 %v2140
      %v2145 = vpack.c.b16 %v2144, %v2143
      %2146 = vrot.lane.b32.xlu0 %v1854, 127
      %v2147 = vpop.permute.xlu0 %2146
      %v2150 = vsel %vm440, %v2145, 0
      %2152 = vmatprep.subr.bf16.mxu0 0
      %2153 = vmatpush1.bf16.msra.mxu0 0
      %2154 = vmatprep.subr.bf16.mxu0 0
      %2155 = vmatpush1.bf16.msra.mxu0 0
      %2156 = vmatprep.subr.bf16.mxu0 0
      %2157 = vmatpush1.bf16.msra.mxu0 0
      %2158 = vmatprep.subr.bf16.mxu0 0
      %2159 = vmatpush1.bf16.msra.mxu0 0
      %2160 = vmatprep.subr.bf16.mxu0 0
      %2161 = vmatpush1.bf16.msra.mxu0 0
      %2162 = vmatprep.subr.bf16.mxu0 0
      %2163 = vmatpush1.bf16.msra.mxu0 0
      %2164 = vmatprep.subr.bf16.mxu0 0
      %2165 = vmatpush1.bf16.msra.mxu0 0
      %2166 = vmatprep.subr.bf16.mxu0 0
      %2167 = vmatpush1.bf16.msra.mxu0 %v2147
      %2168 = vmatprep.subr.bf16.mxu0 0
      %2169 = vmatpush2.bf16.msra.mxu0 0
      %2170 = vmatprep.subr.bf16.mxu0 0
      %2171 = vmatpush2.bf16.msra.mxu0 0
      %2172 = vmatprep.subr.bf16.mxu0 0
      %2173 = vmatpush2.bf16.msra.mxu0 0
      %2174 = vmatprep.subr.bf16.mxu0 0
      %2175 = vmatpush2.bf16.msra.mxu0 0
      %2176 = vmatprep.subr.bf16.mxu0 0
      %2177 = vmatpush2.bf16.msra.mxu0 0
      %2178 = vmatprep.subr.bf16.mxu0 0
      %2179 = vmatpush2.bf16.msra.mxu0 0
      %2180 = vmatprep.subr.bf16.mxu0 0
      %2181 = vmatpush2.bf16.msra.mxu0 0
      %2182 = vmatprep.subr.bf16.mxu0 0
      %2183 = vmatpush2.bf16.msra.mxu0 0
      %2184 = vmatprep.mubr.bf16.mxu0 0
      %2185 = vmatmul.mubr.bf16.gmra.mxu0 %v2150
      %v2186 = vpop.f32.mrf.mxu0
      %v2187 = vadd.f32 0.0, %v2186
      %v2188 = vpop.f32.mrf.mxu0
      %v2189 = vpop.f32.mrf.mxu0
      %v2190 = vadd.f32 0.0, %v2189
      %v2191 = vpop.f32.mrf.mxu0
      %2192 = vdwg.mxu0
      %v2193 = vadd.f32 %v2136, %v2187
      %v2194 = vadd.f32 %v2137, %v2190
      %s2195 = scalar_lea.vmem %s9, 48
      %v2196 = vld [vmem:[%s2195] sm:$0xf]
      %v2197 = vld [vmem:[%s2195 + $0x4] sm:$0xf]
      %v2200 = vunpack.c.l.b16 %v2196
      %v2201 = vunpack.c.l.b16 %v2197
      %v2202 = vpack.c.b16 %v2201, %v2200
      %2203 = vrot.lane.b32.xlu0 %v1969, 127
      %v2204 = vpop.permute.xlu0 %2203
      %v2207 = vsel %vm440, %v2202, 0
      %2209 = vmatprep.subr.bf16.mxu0 0
      %2210 = vmatpush1.bf16.msra.mxu0 0
      %2211 = vmatprep.subr.bf16.mxu0 0
      %2212 = vmatpush1.bf16.msra.mxu0 0
      %2213 = vmatprep.subr.bf16.mxu0 0
      %2214 = vmatpush1.bf16.msra.mxu0 0
      %2215 = vmatprep.subr.bf16.mxu0 0
      %2216 = vmatpush1.bf16.msra.mxu0 0
      %2217 = vmatprep.subr.bf16.mxu0 0
      %2218 = vmatpush1.bf16.msra.mxu0 0
      %2219 = vmatprep.subr.bf16.mxu0 0
      %2220 = vmatpush1.bf16.msra.mxu0 0
      %2221 = vmatprep.subr.bf16.mxu0 0
      %2222 = vmatpush1.bf16.msra.mxu0 0
      %2223 = vmatprep.subr.bf16.mxu0 0
      %2224 = vmatpush1.bf16.msra.mxu0 %v2204
      %2225 = vmatprep.subr.bf16.mxu0 0
      %2226 = vmatpush2.bf16.msra.mxu0 0
      %2227 = vmatprep.subr.bf16.mxu0 0
      %2228 = vmatpush2.bf16.msra.mxu0 0
      %2229 = vmatprep.subr.bf16.mxu0 0
      %2230 = vmatpush2.bf16.msra.mxu0 0
      %2231 = vmatprep.subr.bf16.mxu0 0
      %2232 = vmatpush2.bf16.msra.mxu0 0
      %2233 = vmatprep.subr.bf16.mxu0 0
      %2234 = vmatpush2.bf16.msra.mxu0 0
      %2235 = vmatprep.subr.bf16.mxu0 0
      %2236 = vmatpush2.bf16.msra.mxu0 0
      %2237 = vmatprep.subr.bf16.mxu0 0
      %2238 = vmatpush2.bf16.msra.mxu0 0
      %2239 = vmatprep.subr.bf16.mxu0 0
      %2240 = vmatpush2.bf16.msra.mxu0 0
      %2241 = vmatprep.mubr.bf16.mxu0 0
      %2242 = vmatmul.mubr.bf16.gmra.mxu0 %v2207
      %v2243 = vpop.f32.mrf.mxu0
      %v2244 = vadd.f32 0.0, %v2243
      %v2245 = vpop.f32.mrf.mxu0
      %v2246 = vpop.f32.mrf.mxu0
      %v2247 = vadd.f32 0.0, %v2246
      %v2248 = vpop.f32.mrf.mxu0
      %2249 = vdwg.mxu0
      %v2250 = vadd.f32 %v2193, %v2244
      %v2251 = vadd.f32 %v2194, %v2247
      %2253 = vset.pattern.permute.xlu0 0
      %2254 = vperm.xlu0 %2253, %v1834
      %v2255 = vpop.permute.xlu0 %2254
      %2258 = vset.pattern.permute.xlu0 0
      %2259 = vperm.xlu0 %2258, %v1835
      %v2260 = vpop.permute.xlu0 %2259
      %v2262 = vadd.f32 %v2250, %v2255
      %v2263 = vadd.f32 %v2251, %v2260
      %2264 = vmatprep.subr.bf16.mxu0 0
      %2265 = vmatpush1.bf16.msra.mxu0 0
      %2266 = vmatprep.subr.bf16.mxu0 0
      %2267 = vmatpush1.bf16.msra.mxu0 0
      %2268 = vmatprep.subr.bf16.mxu0 0
      %2269 = vmatpush1.bf16.msra.mxu0 0
      %2270 = vmatprep.subr.bf16.mxu0 0
      %2271 = vmatpush1.bf16.msra.mxu0 0
      %2272 = vmatprep.subr.bf16.mxu0 0
      %2273 = vmatpush1.bf16.msra.mxu0 0
      %2274 = vmatprep.subr.bf16.mxu0 0
      %2275 = vmatpush1.bf16.msra.mxu0 0
      %2276 = vmatprep.subr.bf16.mxu0 0
      %2277 = vmatpush1.bf16.msra.mxu0 0
      %2278 = vmatprep.subr.bf16.mxu0 0
      %2279 = vmatpush1.bf16.msra.mxu0 %v1969
      %2280 = vmatprep.subr.bf16.mxu0 0
      %2281 = vmatpush2.bf16.msra.mxu0 0
      %2282 = vmatprep.subr.bf16.mxu0 0
      %2283 = vmatpush2.bf16.msra.mxu0 0
      %2284 = vmatprep.subr.bf16.mxu0 0
      %2285 = vmatpush2.bf16.msra.mxu0 0
      %2286 = vmatprep.subr.bf16.mxu0 0
      %2287 = vmatpush2.bf16.msra.mxu0 0
      %2288 = vmatprep.subr.bf16.mxu0 0
      %2289 = vmatpush2.bf16.msra.mxu0 0
      %2290 = vmatprep.subr.bf16.mxu0 0
      %2291 = vmatpush2.bf16.msra.mxu0 0
      %2292 = vmatprep.subr.bf16.mxu0 0
      %2293 = vmatpush2.bf16.msra.mxu0 0
      %2294 = vmatprep.subr.bf16.mxu0 0
      %2295 = vmatpush2.bf16.msra.mxu0 0
      %2296 = vmatprep.mubr.bf16.mxu0 0
      %2297 = vmatmul.mubr.bf16.gmra.mxu0 %v1857
      %v2298 = vpop.f32.mrf.mxu0
      %v2299 = vadd.f32 0.0, %v2298
      %v2300 = vpop.f32.mrf.mxu0
      %v2301 = vpop.f32.mrf.mxu0
      %v2302 = vadd.f32 0.0, %v2301
      %v2303 = vpop.f32.mrf.mxu0
      %2304 = vdwg.mxu0
      %2305 = vmatprep.subr.bf16.mxu0 0
      %2306 = vmatpush1.bf16.msra.mxu0 0
      %2307 = vmatprep.subr.bf16.mxu0 0
      %2308 = vmatpush1.bf16.msra.mxu0 0
      %2309 = vmatprep.subr.bf16.mxu0 0
      %2310 = vmatpush1.bf16.msra.mxu0 0
      %2311 = vmatprep.subr.bf16.mxu0 0
      %2312 = vmatpush1.bf16.msra.mxu0 0
      %2313 = vmatprep.subr.bf16.mxu0 0
      %2314 = vmatpush1.bf16.msra.mxu0 0
      %2315 = vmatprep.subr.bf16.mxu0 0
      %2316 = vmatpush1.bf16.msra.mxu0 0
      %2317 = vmatprep.subr.bf16.mxu0 0
      %2318 = vmatpush1.bf16.msra.mxu0 0
      %2319 = vmatprep.subr.bf16.mxu0 0
      %2320 = vmatpush1.bf16.msra.mxu0 %v1854
      %2321 = vmatprep.subr.bf16.mxu0 0
      %2322 = vmatpush2.bf16.msra.mxu0 0
      %2323 = vmatprep.subr.bf16.mxu0 0
      %2324 = vmatpush2.bf16.msra.mxu0 0
      %2325 = vmatprep.subr.bf16.mxu0 0
      %2326 = vmatpush2.bf16.msra.mxu0 0
      %2327 = vmatprep.subr.bf16.mxu0 0
      %2328 = vmatpush2.bf16.msra.mxu0 0
      %2329 = vmatprep.subr.bf16.mxu0 0
      %2330 = vmatpush2.bf16.msra.mxu0 0
      %2331 = vmatprep.subr.bf16.mxu0 0
      %2332 = vmatpush2.bf16.msra.mxu0 0
      %2333 = vmatprep.subr.bf16.mxu0 0
      %2334 = vmatpush2.bf16.msra.mxu0 0
      %2335 = vmatprep.subr.bf16.mxu0 0
      %2336 = vmatpush2.bf16.msra.mxu0 0
      %2337 = vmatprep.mubr.bf16.mxu0 0
      %2338 = vmatmul.mubr.bf16.gmra.mxu0 %v1912
      %v2339 = vpop.f32.mrf.mxu0
      %v2340 = vadd.f32 %v2299, %v2339
      %v2341 = vpop.f32.mrf.mxu0
      %v2342 = vpop.f32.mrf.mxu0
      %v2343 = vadd.f32 %v2302, %v2342
      %v2344 = vpop.f32.mrf.mxu0
      %2345 = vdwg.mxu0
      %2346 = vmatprep.subr.bf16.mxu0 0
      %2347 = vmatpush1.bf16.msra.mxu0 0
      %2348 = vmatprep.subr.bf16.mxu0 0
      %2349 = vmatpush1.bf16.msra.mxu0 0
      %2350 = vmatprep.subr.bf16.mxu0 0
      %2351 = vmatpush1.bf16.msra.mxu0 0
      %2352 = vmatprep.subr.bf16.mxu0 0
      %2353 = vmatpush1.bf16.msra.mxu0 0
      %2354 = vmatprep.subr.bf16.mxu0 0
      %2355 = vmatpush1.bf16.msra.mxu0 0
      %2356 = vmatprep.subr.bf16.mxu0 0
      %2357 = vmatpush1.bf16.msra.mxu0 0
      %2358 = vmatprep.subr.bf16.mxu0 0
      %2359 = vmatpush1.bf16.msra.mxu0 0
      %2360 = vmatprep.subr.bf16.mxu0 0
      %2361 = vmatpush1.bf16.msra.mxu0 %v2033
      %2362 = vmatprep.subr.bf16.mxu0 0
      %2363 = vmatpush2.bf16.msra.mxu0 0
      %2364 = vmatprep.subr.bf16.mxu0 0
      %2365 = vmatpush2.bf16.msra.mxu0 0
      %2366 = vmatprep.subr.bf16.mxu0 0
      %2367 = vmatpush2.bf16.msra.mxu0 0
      %2368 = vmatprep.subr.bf16.mxu0 0
      %2369 = vmatpush2.bf16.msra.mxu0 0
      %2370 = vmatprep.subr.bf16.mxu0 0
      %2371 = vmatpush2.bf16.msra.mxu0 0
      %2372 = vmatprep.subr.bf16.mxu0 0
      %2373 = vmatpush2.bf16.msra.mxu0 0
      %2374 = vmatprep.subr.bf16.mxu0 0
      %2375 = vmatpush2.bf16.msra.mxu0 0
      %2376 = vmatprep.subr.bf16.mxu0 0
      %2377 = vmatpush2.bf16.msra.mxu0 0
      %2378 = vmatprep.mubr.bf16.mxu0 0
      %2379 = vmatmul.mubr.bf16.gmra.mxu0 %v1972
      %v2380 = vpop.f32.mrf.mxu0
      %v2381 = vadd.f32 0.0, %v2380
      %v2382 = vpop.f32.mrf.mxu0
      %v2383 = vpop.f32.mrf.mxu0
      %v2384 = vadd.f32 0.0, %v2383
      %v2385 = vpop.f32.mrf.mxu0
      %2386 = vdwg.mxu0
      %v2387 = vadd.f32 %v2340, %v2381
      %v2388 = vadd.f32 %v2343, %v2384
      %2389 = vmatprep.subr.bf16.mxu0 0
      %2390 = vmatpush1.bf16.msra.mxu0 0
      %2391 = vmatprep.subr.bf16.mxu0 0
      %2392 = vmatpush1.bf16.msra.mxu0 0
      %2393 = vmatprep.subr.bf16.mxu0 0
      %2394 = vmatpush1.bf16.msra.mxu0 0
      %2395 = vmatprep.subr.bf16.mxu0 0
      %2396 = vmatpush1.bf16.msra.mxu0 0
      %2397 = vmatprep.subr.bf16.mxu0 0
      %2398 = vmatpush1.bf16.msra.mxu0 0
      %2399 = vmatprep.subr.bf16.mxu0 0
      %2400 = vmatpush1.bf16.msra.mxu0 0
      %2401 = vmatprep.subr.bf16.mxu0 0
      %2402 = vmatpush1.bf16.msra.mxu0 0
      %2403 = vmatprep.subr.bf16.mxu0 0
      %2404 = vmatpush1.bf16.msra.mxu0 %v2090
      %2405 = vmatprep.subr.bf16.mxu0 0
      %2406 = vmatpush2.bf16.msra.mxu0 0
      %2407 = vmatprep.subr.bf16.mxu0 0
      %2408 = vmatpush2.bf16.msra.mxu0 0
      %2409 = vmatprep.subr.bf16.mxu0 0
      %2410 = vmatpush2.bf16.msra.mxu0 0
      %2411 = vmatprep.subr.bf16.mxu0 0
      %2412 = vmatpush2.bf16.msra.mxu0 0
      %2413 = vmatprep.subr.bf16.mxu0 0
      %2414 = vmatpush2.bf16.msra.mxu0 0
      %2415 = vmatprep.subr.bf16.mxu0 0
      %2416 = vmatpush2.bf16.msra.mxu0 0
      %2417 = vmatprep.subr.bf16.mxu0 0
      %2418 = vmatpush2.bf16.msra.mxu0 0
      %2419 = vmatprep.subr.bf16.mxu0 0
      %2420 = vmatpush2.bf16.msra.mxu0 0
      %2421 = vmatprep.mubr.bf16.mxu0 0
      %2422 = vmatmul.mubr.bf16.gmra.mxu0 %v2036
      %v2423 = vpop.f32.mrf.mxu0
      %v2424 = vadd.f32 0.0, %v2423
      %v2425 = vpop.f32.mrf.mxu0
      %v2426 = vpop.f32.mrf.mxu0
      %v2427 = vadd.f32 0.0, %v2426
      %v2428 = vpop.f32.mrf.mxu0
      %2429 = vdwg.mxu0
      %v2430 = vadd.f32 %v2387, %v2424
      %v2431 = vadd.f32 %v2388, %v2427
      %2432 = vmatprep.subr.bf16.mxu0 0
      %2433 = vmatpush1.bf16.msra.mxu0 0
      %2434 = vmatprep.subr.bf16.mxu0 0
      %2435 = vmatpush1.bf16.msra.mxu0 0
      %2436 = vmatprep.subr.bf16.mxu0 0
      %2437 = vmatpush1.bf16.msra.mxu0 0
      %2438 = vmatprep.subr.bf16.mxu0 0
      %2439 = vmatpush1.bf16.msra.mxu0 0
      %2440 = vmatprep.subr.bf16.mxu0 0
      %2441 = vmatpush1.bf16.msra.mxu0 0
      %2442 = vmatprep.subr.bf16.mxu0 0
      %2443 = vmatpush1.bf16.msra.mxu0 0
      %2444 = vmatprep.subr.bf16.mxu0 0
      %2445 = vmatpush1.bf16.msra.mxu0 0
      %2446 = vmatprep.subr.bf16.mxu0 0
      %2447 = vmatpush1.bf16.msra.mxu0 %v2147
      %2448 = vmatprep.subr.bf16.mxu0 0
      %2449 = vmatpush2.bf16.msra.mxu0 0
      %2450 = vmatprep.subr.bf16.mxu0 0
      %2451 = vmatpush2.bf16.msra.mxu0 0
      %2452 = vmatprep.subr.bf16.mxu0 0
      %2453 = vmatpush2.bf16.msra.mxu0 0
      %2454 = vmatprep.subr.bf16.mxu0 0
      %2455 = vmatpush2.bf16.msra.mxu0 0
      %2456 = vmatprep.subr.bf16.mxu0 0
      %2457 = vmatpush2.bf16.msra.mxu0 0
      %2458 = vmatprep.subr.bf16.mxu0 0
      %2459 = vmatpush2.bf16.msra.mxu0 0
      %2460 = vmatprep.subr.bf16.mxu0 0
      %2461 = vmatpush2.bf16.msra.mxu0 0
      %2462 = vmatprep.subr.bf16.mxu0 0
      %2463 = vmatpush2.bf16.msra.mxu0 0
      %2464 = vmatprep.mubr.bf16.mxu0 0
      %2465 = vmatmul.mubr.bf16.gmra.mxu0 %v2093
      %v2466 = vpop.f32.mrf.mxu0
      %v2467 = vadd.f32 0.0, %v2466
      %v2468 = vpop.f32.mrf.mxu0
      %v2469 = vpop.f32.mrf.mxu0
      %v2470 = vadd.f32 0.0, %v2469
      %v2471 = vpop.f32.mrf.mxu0
      %2472 = vdwg.mxu0
      %v2473 = vadd.f32 %v2430, %v2467
      %v2474 = vadd.f32 %v2431, %v2470
      %2475 = vmatprep.subr.bf16.mxu0 0
      %2476 = vmatpush1.bf16.msra.mxu0 0
      %2477 = vmatprep.subr.bf16.mxu0 0
      %2478 = vmatpush1.bf16.msra.mxu0 0
      %2479 = vmatprep.subr.bf16.mxu0 0
      %2480 = vmatpush1.bf16.msra.mxu0 0
      %2481 = vmatprep.subr.bf16.mxu0 0
      %2482 = vmatpush1.bf16.msra.mxu0 0
      %2483 = vmatprep.subr.bf16.mxu0 0
      %2484 = vmatpush1.bf16.msra.mxu0 0
      %2485 = vmatprep.subr.bf16.mxu0 0
      %2486 = vmatpush1.bf16.msra.mxu0 0
      %2487 = vmatprep.subr.bf16.mxu0 0
      %2488 = vmatpush1.bf16.msra.mxu0 0
      %2489 = vmatprep.subr.bf16.mxu0 0
      %2490 = vmatpush1.bf16.msra.mxu0 %v2204
      %2491 = vmatprep.subr.bf16.mxu0 0
      %2492 = vmatpush2.bf16.msra.mxu0 0
      %2493 = vmatprep.subr.bf16.mxu0 0
      %2494 = vmatpush2.bf16.msra.mxu0 0
      %2495 = vmatprep.subr.bf16.mxu0 0
      %2496 = vmatpush2.bf16.msra.mxu0 0
      %2497 = vmatprep.subr.bf16.mxu0 0
      %2498 = vmatpush2.bf16.msra.mxu0 0
      %2499 = vmatprep.subr.bf16.mxu0 0
      %2500 = vmatpush2.bf16.msra.mxu0 0
      %2501 = vmatprep.subr.bf16.mxu0 0
      %2502 = vmatpush2.bf16.msra.mxu0 0
      %2503 = vmatprep.subr.bf16.mxu0 0
      %2504 = vmatpush2.bf16.msra.mxu0 0
      %2505 = vmatprep.subr.bf16.mxu0 0
      %2506 = vmatpush2.bf16.msra.mxu0 0
      %2507 = vmatprep.mubr.bf16.mxu0 0
      %2508 = vmatmul.mubr.bf16.gmra.mxu0 %v2150
      %v2509 = vpop.f32.mrf.mxu0
      %v2510 = vadd.f32 0.0, %v2509
      %v2511 = vpop.f32.mrf.mxu0
      %v2512 = vpop.f32.mrf.mxu0
      %v2513 = vadd.f32 0.0, %v2512
      %v2514 = vpop.f32.mrf.mxu0
      %2515 = vdwg.mxu0
      %v2516 = vadd.f32 %v2473, %v2510
      %v2517 = vadd.f32 %v2474, %v2513
      %2518 = vrot.lane.b32.xlu0 %v2031, 126
      %v2519 = vpop.permute.xlu0 %2518
      %2521 = vmatprep.subr.bf16.mxu0 0
      %2522 = vmatpush1.bf16.msra.mxu0 0
      %2523 = vmatprep.subr.bf16.mxu0 0
      %2524 = vmatpush1.bf16.msra.mxu0 0
      %2525 = vmatprep.subr.bf16.mxu0 0
      %2526 = vmatpush1.bf16.msra.mxu0 0
      %2527 = vmatprep.subr.bf16.mxu0 0
      %2528 = vmatpush1.bf16.msra.mxu0 0
      %2529 = vmatprep.subr.bf16.mxu0 0
      %2530 = vmatpush1.bf16.msra.mxu0 0
      %2531 = vmatprep.subr.bf16.mxu0 0
      %2532 = vmatpush1.bf16.msra.mxu0 0
      %2533 = vmatprep.subr.bf16.mxu0 0
      %2534 = vmatpush1.bf16.msra.mxu0 0
      %2535 = vmatprep.subr.bf16.mxu0 0
      %2536 = vmatpush1.bf16.msra.mxu0 %v2519
      %2537 = vmatprep.subr.bf16.mxu0 0
      %2538 = vmatpush2.bf16.msra.mxu0 0
      %2539 = vmatprep.subr.bf16.mxu0 0
      %2540 = vmatpush2.bf16.msra.mxu0 0
      %2541 = vmatprep.subr.bf16.mxu0 0
      %2542 = vmatpush2.bf16.msra.mxu0 0
      %2543 = vmatprep.subr.bf16.mxu0 0
      %2544 = vmatpush2.bf16.msra.mxu0 0
      %2545 = vmatprep.subr.bf16.mxu0 0
      %2546 = vmatpush2.bf16.msra.mxu0 0
      %2547 = vmatprep.subr.bf16.mxu0 0
      %2548 = vmatpush2.bf16.msra.mxu0 0
      %2549 = vmatprep.subr.bf16.mxu0 0
      %2550 = vmatpush2.bf16.msra.mxu0 0
      %2551 = vmatprep.subr.bf16.mxu0 0
      %2552 = vmatpush2.bf16.msra.mxu0 0
      %2553 = vmatprep.mubr.bf16.mxu0 0
      %2554 = vmatmul.mubr.bf16.gmra.mxu0 %v2207
      %v2555 = vpop.f32.mrf.mxu0
      %v2556 = vadd.f32 0.0, %v2555
      %v2557 = vpop.f32.mrf.mxu0
      %v2558 = vpop.f32.mrf.mxu0
      %v2559 = vadd.f32 0.0, %v2558
      %v2560 = vpop.f32.mrf.mxu0
      %2561 = vdwg.mxu0
      %v2562 = vadd.f32 %v2516, %v2556
      %v2563 = vadd.f32 %v2517, %v2559
      %v2564 = vadd.f32 %v2562, %v2255
      %v2565 = vadd.f32 %v2563, %v2260
      %2566 = vmatprep.subr.bf16.mxu0 0
      %2567 = vmatpush1.bf16.msra.mxu0 0
      %2568 = vmatprep.subr.bf16.mxu0 0
      %2569 = vmatpush1.bf16.msra.mxu0 0
      %2570 = vmatprep.subr.bf16.mxu0 0
      %2571 = vmatpush1.bf16.msra.mxu0 0
      %2572 = vmatprep.subr.bf16.mxu0 0
      %2573 = vmatpush1.bf16.msra.mxu0 0
      %2574 = vmatprep.subr.bf16.mxu0 0
      %2575 = vmatpush1.bf16.msra.mxu0 0
      %2576 = vmatprep.subr.bf16.mxu0 0
      %2577 = vmatpush1.bf16.msra.mxu0 0
      %2578 = vmatprep.subr.bf16.mxu0 0
      %2579 = vmatpush1.bf16.msra.mxu0 0
      %2580 = vmatprep.subr.bf16.mxu0 0
      %2581 = vmatpush1.bf16.msra.mxu0 %v2033
      %2582 = vmatprep.subr.bf16.mxu0 0
      %2583 = vmatpush2.bf16.msra.mxu0 0
      %2584 = vmatprep.subr.bf16.mxu0 0
      %2585 = vmatpush2.bf16.msra.mxu0 0
      %2586 = vmatprep.subr.bf16.mxu0 0
      %2587 = vmatpush2.bf16.msra.mxu0 0
      %2588 = vmatprep.subr.bf16.mxu0 0
      %2589 = vmatpush2.bf16.msra.mxu0 0
      %2590 = vmatprep.subr.bf16.mxu0 0
      %2591 = vmatpush2.bf16.msra.mxu0 0
      %2592 = vmatprep.subr.bf16.mxu0 0
      %2593 = vmatpush2.bf16.msra.mxu0 0
      %2594 = vmatprep.subr.bf16.mxu0 0
      %2595 = vmatpush2.bf16.msra.mxu0 0
      %2596 = vmatprep.subr.bf16.mxu0 0
      %2597 = vmatpush2.bf16.msra.mxu0 0
      %2598 = vmatprep.mubr.bf16.mxu0 0
      %2599 = vmatmul.mubr.bf16.gmra.mxu0 %v1857
      %v2600 = vpop.f32.mrf.mxu0
      %v2601 = vadd.f32 0.0, %v2600
      %v2602 = vpop.f32.mrf.mxu0
      %v2603 = vpop.f32.mrf.mxu0
      %v2604 = vadd.f32 0.0, %v2603
      %v2605 = vpop.f32.mrf.mxu0
      %2606 = vdwg.mxu0
      %2607 = vmatprep.subr.bf16.mxu0 0
      %2608 = vmatpush1.bf16.msra.mxu0 0
      %2609 = vmatprep.subr.bf16.mxu0 0
      %2610 = vmatpush1.bf16.msra.mxu0 0
      %2611 = vmatprep.subr.bf16.mxu0 0
      %2612 = vmatpush1.bf16.msra.mxu0 0
      %2613 = vmatprep.subr.bf16.mxu0 0
      %2614 = vmatpush1.bf16.msra.mxu0 0
      %2615 = vmatprep.subr.bf16.mxu0 0
      %2616 = vmatpush1.bf16.msra.mxu0 0
      %2617 = vmatprep.subr.bf16.mxu0 0
      %2618 = vmatpush1.bf16.msra.mxu0 0
      %2619 = vmatprep.subr.bf16.mxu0 0
      %2620 = vmatpush1.bf16.msra.mxu0 0
      %2621 = vmatprep.subr.bf16.mxu0 0
      %2622 = vmatpush1.bf16.msra.mxu0 %v1969
      %2623 = vmatprep.subr.bf16.mxu0 0
      %2624 = vmatpush2.bf16.msra.mxu0 0
      %2625 = vmatprep.subr.bf16.mxu0 0
      %2626 = vmatpush2.bf16.msra.mxu0 0
      %2627 = vmatprep.subr.bf16.mxu0 0
      %2628 = vmatpush2.bf16.msra.mxu0 0
      %2629 = vmatprep.subr.bf16.mxu0 0
      %2630 = vmatpush2.bf16.msra.mxu0 0
      %2631 = vmatprep.subr.bf16.mxu0 0
      %2632 = vmatpush2.bf16.msra.mxu0 0
      %2633 = vmatprep.subr.bf16.mxu0 0
      %2634 = vmatpush2.bf16.msra.mxu0 0
      %2635 = vmatprep.subr.bf16.mxu0 0
      %2636 = vmatpush2.bf16.msra.mxu0 0
      %2637 = vmatprep.subr.bf16.mxu0 0
      %2638 = vmatpush2.bf16.msra.mxu0 0
      %2639 = vmatprep.mubr.bf16.mxu0 0
      %2640 = vmatmul.mubr.bf16.gmra.mxu0 %v1912
      %v2641 = vpop.f32.mrf.mxu0
      %v2642 = vadd.f32 %v2601, %v2641
      %v2643 = vpop.f32.mrf.mxu0
      %v2644 = vpop.f32.mrf.mxu0
      %v2645 = vadd.f32 %v2604, %v2644
      %v2646 = vpop.f32.mrf.mxu0
      %2647 = vdwg.mxu0
      %2648 = vmatprep.subr.bf16.mxu0 0
      %2649 = vmatpush1.bf16.msra.mxu0 0
      %2650 = vmatprep.subr.bf16.mxu0 0
      %2651 = vmatpush1.bf16.msra.mxu0 0
      %2652 = vmatprep.subr.bf16.mxu0 0
      %2653 = vmatpush1.bf16.msra.mxu0 0
      %2654 = vmatprep.subr.bf16.mxu0 0
      %2655 = vmatpush1.bf16.msra.mxu0 0
      %2656 = vmatprep.subr.bf16.mxu0 0
      %2657 = vmatpush1.bf16.msra.mxu0 0
      %2658 = vmatprep.subr.bf16.mxu0 0
      %2659 = vmatpush1.bf16.msra.mxu0 0
      %2660 = vmatprep.subr.bf16.mxu0 0
      %2661 = vmatpush1.bf16.msra.mxu0 0
      %2662 = vmatprep.subr.bf16.mxu0 0
      %2663 = vmatpush1.bf16.msra.mxu0 %v2090
      %2664 = vmatprep.subr.bf16.mxu0 0
      %2665 = vmatpush2.bf16.msra.mxu0 0
      %2666 = vmatprep.subr.bf16.mxu0 0
      %2667 = vmatpush2.bf16.msra.mxu0 0
      %2668 = vmatprep.subr.bf16.mxu0 0
      %2669 = vmatpush2.bf16.msra.mxu0 0
      %2670 = vmatprep.subr.bf16.mxu0 0
      %2671 = vmatpush2.bf16.msra.mxu0 0
      %2672 = vmatprep.subr.bf16.mxu0 0
      %2673 = vmatpush2.bf16.msra.mxu0 0
      %2674 = vmatprep.subr.bf16.mxu0 0
      %2675 = vmatpush2.bf16.msra.mxu0 0
      %2676 = vmatprep.subr.bf16.mxu0 0
      %2677 = vmatpush2.bf16.msra.mxu0 0
      %2678 = vmatprep.subr.bf16.mxu0 0
      %2679 = vmatpush2.bf16.msra.mxu0 0
      %2680 = vmatprep.mubr.bf16.mxu0 0
      %2681 = vmatmul.mubr.bf16.gmra.mxu0 %v1972
      %v2682 = vpop.f32.mrf.mxu0
      %v2683 = vadd.f32 0.0, %v2682
      %v2684 = vpop.f32.mrf.mxu0
      %v2685 = vpop.f32.mrf.mxu0
      %v2686 = vadd.f32 0.0, %v2685
      %v2687 = vpop.f32.mrf.mxu0
      %2688 = vdwg.mxu0
      %v2689 = vadd.f32 %v2642, %v2683
      %v2690 = vadd.f32 %v2645, %v2686
      %2691 = vmatprep.subr.bf16.mxu0 0
      %2692 = vmatpush1.bf16.msra.mxu0 0
      %2693 = vmatprep.subr.bf16.mxu0 0
      %2694 = vmatpush1.bf16.msra.mxu0 0
      %2695 = vmatprep.subr.bf16.mxu0 0
      %2696 = vmatpush1.bf16.msra.mxu0 0
      %2697 = vmatprep.subr.bf16.mxu0 0
      %2698 = vmatpush1.bf16.msra.mxu0 0
      %2699 = vmatprep.subr.bf16.mxu0 0
      %2700 = vmatpush1.bf16.msra.mxu0 0
      %2701 = vmatprep.subr.bf16.mxu0 0
      %2702 = vmatpush1.bf16.msra.mxu0 0
      %2703 = vmatprep.subr.bf16.mxu0 0
      %2704 = vmatpush1.bf16.msra.mxu0 0
      %2705 = vmatprep.subr.bf16.mxu0 0
      %2706 = vmatpush1.bf16.msra.mxu0 %v2147
      %2707 = vmatprep.subr.bf16.mxu0 0
      %2708 = vmatpush2.bf16.msra.mxu0 0
      %2709 = vmatprep.subr.bf16.mxu0 0
      %2710 = vmatpush2.bf16.msra.mxu0 0
      %2711 = vmatprep.subr.bf16.mxu0 0
      %2712 = vmatpush2.bf16.msra.mxu0 0
      %2713 = vmatprep.subr.bf16.mxu0 0
      %2714 = vmatpush2.bf16.msra.mxu0 0
      %2715 = vmatprep.subr.bf16.mxu0 0
      %2716 = vmatpush2.bf16.msra.mxu0 0
      %2717 = vmatprep.subr.bf16.mxu0 0
      %2718 = vmatpush2.bf16.msra.mxu0 0
      %2719 = vmatprep.subr.bf16.mxu0 0
      %2720 = vmatpush2.bf16.msra.mxu0 0
      %2721 = vmatprep.subr.bf16.mxu0 0
      %2722 = vmatpush2.bf16.msra.mxu0 0
      %2723 = vmatprep.mubr.bf16.mxu0 0
      %2724 = vmatmul.mubr.bf16.gmra.mxu0 %v2036
      %v2725 = vpop.f32.mrf.mxu0
      %v2726 = vadd.f32 0.0, %v2725
      %v2727 = vpop.f32.mrf.mxu0
      %v2728 = vpop.f32.mrf.mxu0
      %v2729 = vadd.f32 0.0, %v2728
      %v2730 = vpop.f32.mrf.mxu0
      %2731 = vdwg.mxu0
      %v2732 = vadd.f32 %v2689, %v2726
      %v2733 = vadd.f32 %v2690, %v2729
      %2734 = vmatprep.subr.bf16.mxu0 0
      %2735 = vmatpush1.bf16.msra.mxu0 0
      %2736 = vmatprep.subr.bf16.mxu0 0
      %2737 = vmatpush1.bf16.msra.mxu0 0
      %2738 = vmatprep.subr.bf16.mxu0 0
      %2739 = vmatpush1.bf16.msra.mxu0 0
      %2740 = vmatprep.subr.bf16.mxu0 0
      %2741 = vmatpush1.bf16.msra.mxu0 0
      %2742 = vmatprep.subr.bf16.mxu0 0
      %2743 = vmatpush1.bf16.msra.mxu0 0
      %2744 = vmatprep.subr.bf16.mxu0 0
      %2745 = vmatpush1.bf16.msra.mxu0 0
      %2746 = vmatprep.subr.bf16.mxu0 0
      %2747 = vmatpush1.bf16.msra.mxu0 0
      %2748 = vmatprep.subr.bf16.mxu0 0
      %2749 = vmatpush1.bf16.msra.mxu0 %v2204
      %2750 = vmatprep.subr.bf16.mxu0 0
      %2751 = vmatpush2.bf16.msra.mxu0 0
      %2752 = vmatprep.subr.bf16.mxu0 0
      %2753 = vmatpush2.bf16.msra.mxu0 0
      %2754 = vmatprep.subr.bf16.mxu0 0
      %2755 = vmatpush2.bf16.msra.mxu0 0
      %2756 = vmatprep.subr.bf16.mxu0 0
      %2757 = vmatpush2.bf16.msra.mxu0 0
      %2758 = vmatprep.subr.bf16.mxu0 0
      %2759 = vmatpush2.bf16.msra.mxu0 0
      %2760 = vmatprep.subr.bf16.mxu0 0
      %2761 = vmatpush2.bf16.msra.mxu0 0
      %2762 = vmatprep.subr.bf16.mxu0 0
      %2763 = vmatpush2.bf16.msra.mxu0 0
      %2764 = vmatprep.subr.bf16.mxu0 0
      %2765 = vmatpush2.bf16.msra.mxu0 0
      %2766 = vmatprep.mubr.bf16.mxu0 0
      %2767 = vmatmul.mubr.bf16.gmra.mxu0 %v2093
      %v2768 = vpop.f32.mrf.mxu0
      %v2769 = vadd.f32 0.0, %v2768
      %v2770 = vpop.f32.mrf.mxu0
      %v2771 = vpop.f32.mrf.mxu0
      %v2772 = vadd.f32 0.0, %v2771
      %v2773 = vpop.f32.mrf.mxu0
      %2774 = vdwg.mxu0
      %v2775 = vadd.f32 %v2732, %v2769
      %v2776 = vadd.f32 %v2733, %v2772
      %2777 = vmatprep.subr.bf16.mxu0 0
      %2778 = vmatpush1.bf16.msra.mxu0 0
      %2779 = vmatprep.subr.bf16.mxu0 0
      %2780 = vmatpush1.bf16.msra.mxu0 0
      %2781 = vmatprep.subr.bf16.mxu0 0
      %2782 = vmatpush1.bf16.msra.mxu0 0
      %2783 = vmatprep.subr.bf16.mxu0 0
      %2784 = vmatpush1.bf16.msra.mxu0 0
      %2785 = vmatprep.subr.bf16.mxu0 0
      %2786 = vmatpush1.bf16.msra.mxu0 0
      %2787 = vmatprep.subr.bf16.mxu0 0
      %2788 = vmatpush1.bf16.msra.mxu0 0
      %2789 = vmatprep.subr.bf16.mxu0 0
      %2790 = vmatpush1.bf16.msra.mxu0 0
      %2791 = vmatprep.subr.bf16.mxu0 0
      %2792 = vmatpush1.bf16.msra.mxu0 %v2519
      %2793 = vmatprep.subr.bf16.mxu0 0
      %2794 = vmatpush2.bf16.msra.mxu0 0
      %2795 = vmatprep.subr.bf16.mxu0 0
      %2796 = vmatpush2.bf16.msra.mxu0 0
      %2797 = vmatprep.subr.bf16.mxu0 0
      %2798 = vmatpush2.bf16.msra.mxu0 0
      %2799 = vmatprep.subr.bf16.mxu0 0
      %2800 = vmatpush2.bf16.msra.mxu0 0
      %2801 = vmatprep.subr.bf16.mxu0 0
      %2802 = vmatpush2.bf16.msra.mxu0 0
      %2803 = vmatprep.subr.bf16.mxu0 0
      %2804 = vmatpush2.bf16.msra.mxu0 0
      %2805 = vmatprep.subr.bf16.mxu0 0
      %2806 = vmatpush2.bf16.msra.mxu0 0
      %2807 = vmatprep.subr.bf16.mxu0 0
      %2808 = vmatpush2.bf16.msra.mxu0 0
      %2809 = vmatprep.mubr.bf16.mxu0 0
      %2810 = vmatmul.mubr.bf16.gmra.mxu0 %v2150
      %v2811 = vpop.f32.mrf.mxu0
      %v2812 = vadd.f32 0.0, %v2811
      %v2813 = vpop.f32.mrf.mxu0
      %v2814 = vpop.f32.mrf.mxu0
      %v2815 = vadd.f32 0.0, %v2814
      %v2816 = vpop.f32.mrf.mxu0
      %2817 = vdwg.mxu0
      %v2818 = vadd.f32 %v2775, %v2812
      %v2819 = vadd.f32 %v2776, %v2815
      %2820 = vrot.lane.b32.xlu0 %v1909, 126
      %v2821 = vpop.permute.xlu0 %2820
      %2823 = vmatprep.subr.bf16.mxu0 0
      %2824 = vmatpush1.bf16.msra.mxu0 0
      %2825 = vmatprep.subr.bf16.mxu0 0
      %2826 = vmatpush1.bf16.msra.mxu0 0
      %2827 = vmatprep.subr.bf16.mxu0 0
      %2828 = vmatpush1.bf16.msra.mxu0 0
      %2829 = vmatprep.subr.bf16.mxu0 0
      %2830 = vmatpush1.bf16.msra.mxu0 0
      %2831 = vmatprep.subr.bf16.mxu0 0
      %2832 = vmatpush1.bf16.msra.mxu0 0
      %2833 = vmatprep.subr.bf16.mxu0 0
      %2834 = vmatpush1.bf16.msra.mxu0 0
      %2835 = vmatprep.subr.bf16.mxu0 0
      %2836 = vmatpush1.bf16.msra.mxu0 0
      %2837 = vmatprep.subr.bf16.mxu0 0
      %2838 = vmatpush1.bf16.msra.mxu0 %v2821
      %2839 = vmatprep.subr.bf16.mxu0 0
      %2840 = vmatpush2.bf16.msra.mxu0 0
      %2841 = vmatprep.subr.bf16.mxu0 0
      %2842 = vmatpush2.bf16.msra.mxu0 0
      %2843 = vmatprep.subr.bf16.mxu0 0
      %2844 = vmatpush2.bf16.msra.mxu0 0
      %2845 = vmatprep.subr.bf16.mxu0 0
      %2846 = vmatpush2.bf16.msra.mxu0 0
      %2847 = vmatprep.subr.bf16.mxu0 0
      %2848 = vmatpush2.bf16.msra.mxu0 0
      %2849 = vmatprep.subr.bf16.mxu0 0
      %2850 = vmatpush2.bf16.msra.mxu0 0
      %2851 = vmatprep.subr.bf16.mxu0 0
      %2852 = vmatpush2.bf16.msra.mxu0 0
      %2853 = vmatprep.subr.bf16.mxu0 0
      %2854 = vmatpush2.bf16.msra.mxu0 0
      %2855 = vmatprep.mubr.bf16.mxu0 0
      %2856 = vmatmul.mubr.bf16.gmra.mxu0 %v2207
      %v2857 = vpop.f32.mrf.mxu0
      %v2858 = vadd.f32 0.0, %v2857
      %v2859 = vpop.f32.mrf.mxu0
      %v2860 = vpop.f32.mrf.mxu0
      %v2861 = vadd.f32 0.0, %v2860
      %v2862 = vpop.f32.mrf.mxu0
      %2863 = vdwg.mxu0
      %v2864 = vadd.f32 %v2818, %v2858
      %v2865 = vadd.f32 %v2819, %v2861
      %v2866 = vadd.f32 %v2864, %v2255
      %v2867 = vadd.f32 %v2865, %v2260
      %2868 = vmatprep.subr.bf16.mxu0 0
      %2869 = vmatpush1.bf16.msra.mxu0 0
      %2870 = vmatprep.subr.bf16.mxu0 0
      %2871 = vmatpush1.bf16.msra.mxu0 0
      %2872 = vmatprep.subr.bf16.mxu0 0
      %2873 = vmatpush1.bf16.msra.mxu0 0
      %2874 = vmatprep.subr.bf16.mxu0 0
      %2875 = vmatpush1.bf16.msra.mxu0 0
      %2876 = vmatprep.subr.bf16.mxu0 0
      %2877 = vmatpush1.bf16.msra.mxu0 0
      %2878 = vmatprep.subr.bf16.mxu0 0
      %2879 = vmatpush1.bf16.msra.mxu0 0
      %2880 = vmatprep.subr.bf16.mxu0 0
      %2881 = vmatpush1.bf16.msra.mxu0 0
      %2882 = vmatprep.subr.bf16.mxu0 0
      %2883 = vmatpush1.bf16.msra.mxu0 %v2090
      %2884 = vmatprep.subr.bf16.mxu0 0
      %2885 = vmatpush2.bf16.msra.mxu0 0
      %2886 = vmatprep.subr.bf16.mxu0 0
      %2887 = vmatpush2.bf16.msra.mxu0 0
      %2888 = vmatprep.subr.bf16.mxu0 0
      %2889 = vmatpush2.bf16.msra.mxu0 0
      %2890 = vmatprep.subr.bf16.mxu0 0
      %2891 = vmatpush2.bf16.msra.mxu0 0
      %2892 = vmatprep.subr.bf16.mxu0 0
      %2893 = vmatpush2.bf16.msra.mxu0 0
      %2894 = vmatprep.subr.bf16.mxu0 0
      %2895 = vmatpush2.bf16.msra.mxu0 0
      %2896 = vmatprep.subr.bf16.mxu0 0
      %2897 = vmatpush2.bf16.msra.mxu0 0
      %2898 = vmatprep.subr.bf16.mxu0 0
      %2899 = vmatpush2.bf16.msra.mxu0 0
      %2900 = vmatprep.mubr.bf16.mxu0 0
      %2901 = vmatmul.mubr.bf16.gmra.mxu0 %v1857
      %v2902 = vpop.f32.mrf.mxu0
      %v2903 = vadd.f32 0.0, %v2902
      %v2904 = vpop.f32.mrf.mxu0
      %v2905 = vpop.f32.mrf.mxu0
      %v2906 = vadd.f32 0.0, %v2905
      %v2907 = vpop.f32.mrf.mxu0
      %2908 = vdwg.mxu0
      %2909 = vmatprep.subr.bf16.mxu0 0
      %2910 = vmatpush1.bf16.msra.mxu0 0
      %2911 = vmatprep.subr.bf16.mxu0 0
      %2912 = vmatpush1.bf16.msra.mxu0 0
      %2913 = vmatprep.subr.bf16.mxu0 0
      %2914 = vmatpush1.bf16.msra.mxu0 0
      %2915 = vmatprep.subr.bf16.mxu0 0
      %2916 = vmatpush1.bf16.msra.mxu0 0
      %2917 = vmatprep.subr.bf16.mxu0 0
      %2918 = vmatpush1.bf16.msra.mxu0 0
      %2919 = vmatprep.subr.bf16.mxu0 0
      %2920 = vmatpush1.bf16.msra.mxu0 0
      %2921 = vmatprep.subr.bf16.mxu0 0
      %2922 = vmatpush1.bf16.msra.mxu0 0
      %2923 = vmatprep.subr.bf16.mxu0 0
      %2924 = vmatpush1.bf16.msra.mxu0 %v2033
      %2925 = vmatprep.subr.bf16.mxu0 0
      %2926 = vmatpush2.bf16.msra.mxu0 0
      %2927 = vmatprep.subr.bf16.mxu0 0
      %2928 = vmatpush2.bf16.msra.mxu0 0
      %2929 = vmatprep.subr.bf16.mxu0 0
      %2930 = vmatpush2.bf16.msra.mxu0 0
      %2931 = vmatprep.subr.bf16.mxu0 0
      %2932 = vmatpush2.bf16.msra.mxu0 0
      %2933 = vmatprep.subr.bf16.mxu0 0
      %2934 = vmatpush2.bf16.msra.mxu0 0
      %2935 = vmatprep.subr.bf16.mxu0 0
      %2936 = vmatpush2.bf16.msra.mxu0 0
      %2937 = vmatprep.subr.bf16.mxu0 0
      %2938 = vmatpush2.bf16.msra.mxu0 0
      %2939 = vmatprep.subr.bf16.mxu0 0
      %2940 = vmatpush2.bf16.msra.mxu0 0
      %2941 = vmatprep.mubr.bf16.mxu0 0
      %2942 = vmatmul.mubr.bf16.gmra.mxu0 %v1912
      %v2943 = vpop.f32.mrf.mxu0
      %v2944 = vadd.f32 %v2903, %v2943
      %v2945 = vpop.f32.mrf.mxu0
      %v2946 = vpop.f32.mrf.mxu0
      %v2947 = vadd.f32 %v2906, %v2946
      %v2948 = vpop.f32.mrf.mxu0
      %2949 = vdwg.mxu0
      %2950 = vmatprep.subr.bf16.mxu0 0
      %2951 = vmatpush1.bf16.msra.mxu0 0
      %2952 = vmatprep.subr.bf16.mxu0 0
      %2953 = vmatpush1.bf16.msra.mxu0 0
      %2954 = vmatprep.subr.bf16.mxu0 0
      %2955 = vmatpush1.bf16.msra.mxu0 0
      %2956 = vmatprep.subr.bf16.mxu0 0
      %2957 = vmatpush1.bf16.msra.mxu0 0
      %2958 = vmatprep.subr.bf16.mxu0 0
      %2959 = vmatpush1.bf16.msra.mxu0 0
      %2960 = vmatprep.subr.bf16.mxu0 0
      %2961 = vmatpush1.bf16.msra.mxu0 0
      %2962 = vmatprep.subr.bf16.mxu0 0
      %2963 = vmatpush1.bf16.msra.mxu0 0
      %2964 = vmatprep.subr.bf16.mxu0 0
      %2965 = vmatpush1.bf16.msra.mxu0 %v2147
      %2966 = vmatprep.subr.bf16.mxu0 0
      %2967 = vmatpush2.bf16.msra.mxu0 0
      %2968 = vmatprep.subr.bf16.mxu0 0
      %2969 = vmatpush2.bf16.msra.mxu0 0
      %2970 = vmatprep.subr.bf16.mxu0 0
      %2971 = vmatpush2.bf16.msra.mxu0 0
      %2972 = vmatprep.subr.bf16.mxu0 0
      %2973 = vmatpush2.bf16.msra.mxu0 0
      %2974 = vmatprep.subr.bf16.mxu0 0
      %2975 = vmatpush2.bf16.msra.mxu0 0
      %2976 = vmatprep.subr.bf16.mxu0 0
      %2977 = vmatpush2.bf16.msra.mxu0 0
      %2978 = vmatprep.subr.bf16.mxu0 0
      %2979 = vmatpush2.bf16.msra.mxu0 0
      %2980 = vmatprep.subr.bf16.mxu0 0
      %2981 = vmatpush2.bf16.msra.mxu0 0
      %2982 = vmatprep.mubr.bf16.mxu0 0
      %2983 = vmatmul.mubr.bf16.gmra.mxu0 %v1972
      %v2984 = vpop.f32.mrf.mxu0
      %v2985 = vadd.f32 0.0, %v2984
      %v2986 = vpop.f32.mrf.mxu0
      %v2987 = vpop.f32.mrf.mxu0
      %v2988 = vadd.f32 0.0, %v2987
      %v2989 = vpop.f32.mrf.mxu0
      %2990 = vdwg.mxu0
      %v2991 = vadd.f32 %v2944, %v2985
      %v2992 = vadd.f32 %v2947, %v2988
      %2993 = vmatprep.subr.bf16.mxu0 0
      %2994 = vmatpush1.bf16.msra.mxu0 0
      %2995 = vmatprep.subr.bf16.mxu0 0
      %2996 = vmatpush1.bf16.msra.mxu0 0
      %2997 = vmatprep.subr.bf16.mxu0 0
      %2998 = vmatpush1.bf16.msra.mxu0 0
      %2999 = vmatprep.subr.bf16.mxu0 0
      %3000 = vmatpush1.bf16.msra.mxu0 0
      %3001 = vmatprep.subr.bf16.mxu0 0
      %3002 = vmatpush1.bf16.msra.mxu0 0
      %3003 = vmatprep.subr.bf16.mxu0 0
      %3004 = vmatpush1.bf16.msra.mxu0 0
      %3005 = vmatprep.subr.bf16.mxu0 0
      %3006 = vmatpush1.bf16.msra.mxu0 0
      %3007 = vmatprep.subr.bf16.mxu0 0
      %3008 = vmatpush1.bf16.msra.mxu0 %v2204
      %3009 = vmatprep.subr.bf16.mxu0 0
      %3010 = vmatpush2.bf16.msra.mxu0 0
      %3011 = vmatprep.subr.bf16.mxu0 0
      %3012 = vmatpush2.bf16.msra.mxu0 0
      %3013 = vmatprep.subr.bf16.mxu0 0
      %3014 = vmatpush2.bf16.msra.mxu0 0
      %3015 = vmatprep.subr.bf16.mxu0 0
      %3016 = vmatpush2.bf16.msra.mxu0 0
      %3017 = vmatprep.subr.bf16.mxu0 0
      %3018 = vmatpush2.bf16.msra.mxu0 0
      %3019 = vmatprep.subr.bf16.mxu0 0
      %3020 = vmatpush2.bf16.msra.mxu0 0
      %3021 = vmatprep.subr.bf16.mxu0 0
      %3022 = vmatpush2.bf16.msra.mxu0 0
      %3023 = vmatprep.subr.bf16.mxu0 0
      %3024 = vmatpush2.bf16.msra.mxu0 0
      %3025 = vmatprep.mubr.bf16.mxu0 0
      %3026 = vmatmul.mubr.bf16.gmra.mxu0 %v2036
      %v3027 = vpop.f32.mrf.mxu0
      %v3028 = vadd.f32 0.0, %v3027
      %v3029 = vpop.f32.mrf.mxu0
      %v3030 = vpop.f32.mrf.mxu0
      %v3031 = vadd.f32 0.0, %v3030
      %v3032 = vpop.f32.mrf.mxu0
      %3033 = vdwg.mxu0
      %v3034 = vadd.f32 %v2991, %v3028
      %v3035 = vadd.f32 %v2992, %v3031
      %3036 = vmatprep.subr.bf16.mxu0 0
      %3037 = vmatpush1.bf16.msra.mxu0 0
      %3038 = vmatprep.subr.bf16.mxu0 0
      %3039 = vmatpush1.bf16.msra.mxu0 0
      %3040 = vmatprep.subr.bf16.mxu0 0
      %3041 = vmatpush1.bf16.msra.mxu0 0
      %3042 = vmatprep.subr.bf16.mxu0 0
      %3043 = vmatpush1.bf16.msra.mxu0 0
      %3044 = vmatprep.subr.bf16.mxu0 0
      %3045 = vmatpush1.bf16.msra.mxu0 0
      %3046 = vmatprep.subr.bf16.mxu0 0
      %3047 = vmatpush1.bf16.msra.mxu0 0
      %3048 = vmatprep.subr.bf16.mxu0 0
      %3049 = vmatpush1.bf16.msra.mxu0 0
      %3050 = vmatprep.subr.bf16.mxu0 0
      %3051 = vmatpush1.bf16.msra.mxu0 %v2519
      %3052 = vmatprep.subr.bf16.mxu0 0
      %3053 = vmatpush2.bf16.msra.mxu0 0
      %3054 = vmatprep.subr.bf16.mxu0 0
      %3055 = vmatpush2.bf16.msra.mxu0 0
      %3056 = vmatprep.subr.bf16.mxu0 0
      %3057 = vmatpush2.bf16.msra.mxu0 0
      %3058 = vmatprep.subr.bf16.mxu0 0
      %3059 = vmatpush2.bf16.msra.mxu0 0
      %3060 = vmatprep.subr.bf16.mxu0 0
      %3061 = vmatpush2.bf16.msra.mxu0 0
      %3062 = vmatprep.subr.bf16.mxu0 0
      %3063 = vmatpush2.bf16.msra.mxu0 0
      %3064 = vmatprep.subr.bf16.mxu0 0
      %3065 = vmatpush2.bf16.msra.mxu0 0
      %3066 = vmatprep.subr.bf16.mxu0 0
      %3067 = vmatpush2.bf16.msra.mxu0 0
      %3068 = vmatprep.mubr.bf16.mxu0 0
      %3069 = vmatmul.mubr.bf16.gmra.mxu0 %v2093
      %v3070 = vpop.f32.mrf.mxu0
      %v3071 = vadd.f32 0.0, %v3070
      %v3072 = vpop.f32.mrf.mxu0
      %v3073 = vpop.f32.mrf.mxu0
      %v3074 = vadd.f32 0.0, %v3073
      %v3075 = vpop.f32.mrf.mxu0
      %3076 = vdwg.mxu0
      %v3077 = vadd.f32 %v3034, %v3071
      %v3078 = vadd.f32 %v3035, %v3074
      %3079 = vmatprep.subr.bf16.mxu0 0
      %3080 = vmatpush1.bf16.msra.mxu0 0
      %3081 = vmatprep.subr.bf16.mxu0 0
      %3082 = vmatpush1.bf16.msra.mxu0 0
      %3083 = vmatprep.subr.bf16.mxu0 0
      %3084 = vmatpush1.bf16.msra.mxu0 0
      %3085 = vmatprep.subr.bf16.mxu0 0
      %3086 = vmatpush1.bf16.msra.mxu0 0
      %3087 = vmatprep.subr.bf16.mxu0 0
      %3088 = vmatpush1.bf16.msra.mxu0 0
      %3089 = vmatprep.subr.bf16.mxu0 0
      %3090 = vmatpush1.bf16.msra.mxu0 0
      %3091 = vmatprep.subr.bf16.mxu0 0
      %3092 = vmatpush1.bf16.msra.mxu0 0
      %3093 = vmatprep.subr.bf16.mxu0 0
      %3094 = vmatpush1.bf16.msra.mxu0 %v2821
      %3095 = vmatprep.subr.bf16.mxu0 0
      %3096 = vmatpush2.bf16.msra.mxu0 0
      %3097 = vmatprep.subr.bf16.mxu0 0
      %3098 = vmatpush2.bf16.msra.mxu0 0
      %3099 = vmatprep.subr.bf16.mxu0 0
      %3100 = vmatpush2.bf16.msra.mxu0 0
      %3101 = vmatprep.subr.bf16.mxu0 0
      %3102 = vmatpush2.bf16.msra.mxu0 0
      %3103 = vmatprep.subr.bf16.mxu0 0
      %3104 = vmatpush2.bf16.msra.mxu0 0
      %3105 = vmatprep.subr.bf16.mxu0 0
      %3106 = vmatpush2.bf16.msra.mxu0 0
      %3107 = vmatprep.subr.bf16.mxu0 0
      %3108 = vmatpush2.bf16.msra.mxu0 0
      %3109 = vmatprep.subr.bf16.mxu0 0
      %3110 = vmatpush2.bf16.msra.mxu0 0
      %3111 = vmatprep.mubr.bf16.mxu0 0
      %3112 = vmatmul.mubr.bf16.gmra.mxu0 %v2150
      %v3113 = vpop.f32.mrf.mxu0
      %v3114 = vadd.f32 0.0, %v3113
      %v3115 = vpop.f32.mrf.mxu0
      %v3116 = vpop.f32.mrf.mxu0
      %v3117 = vadd.f32 0.0, %v3116
      %v3118 = vpop.f32.mrf.mxu0
      %3119 = vdwg.mxu0
      %v3120 = vadd.f32 %v3077, %v3114
      %v3121 = vadd.f32 %v3078, %v3117
      %3122 = vrot.lane.b32.xlu0 %v1854, 126
      %v3123 = vpop.permute.xlu0 %3122
      %3125 = vmatprep.subr.bf16.mxu0 0
      %3126 = vmatpush1.bf16.msra.mxu0 0
      %3127 = vmatprep.subr.bf16.mxu0 0
      %3128 = vmatpush1.bf16.msra.mxu0 0
      %3129 = vmatprep.subr.bf16.mxu0 0
      %3130 = vmatpush1.bf16.msra.mxu0 0
      %3131 = vmatprep.subr.bf16.mxu0 0
      %3132 = vmatpush1.bf16.msra.mxu0 0
      %3133 = vmatprep.subr.bf16.mxu0 0
      %3134 = vmatpush1.bf16.msra.mxu0 0
      %3135 = vmatprep.subr.bf16.mxu0 0
      %3136 = vmatpush1.bf16.msra.mxu0 0
      %3137 = vmatprep.subr.bf16.mxu0 0
      %3138 = vmatpush1.bf16.msra.mxu0 0
      %3139 = vmatprep.subr.bf16.mxu0 0
      %3140 = vmatpush1.bf16.msra.mxu0 %v3123
      %3141 = vmatprep.subr.bf16.mxu0 0
      %3142 = vmatpush2.bf16.msra.mxu0 0
      %3143 = vmatprep.subr.bf16.mxu0 0
      %3144 = vmatpush2.bf16.msra.mxu0 0
      %3145 = vmatprep.subr.bf16.mxu0 0
      %3146 = vmatpush2.bf16.msra.mxu0 0
      %3147 = vmatprep.subr.bf16.mxu0 0
      %3148 = vmatpush2.bf16.msra.mxu0 0
      %3149 = vmatprep.subr.bf16.mxu0 0
      %3150 = vmatpush2.bf16.msra.mxu0 0
      %3151 = vmatprep.subr.bf16.mxu0 0
      %3152 = vmatpush2.bf16.msra.mxu0 0
      %3153 = vmatprep.subr.bf16.mxu0 0
      %3154 = vmatpush2.bf16.msra.mxu0 0
      %3155 = vmatprep.subr.bf16.mxu0 0
      %3156 = vmatpush2.bf16.msra.mxu0 0
      %3157 = vmatprep.mubr.bf16.mxu0 0
      %3158 = vmatmul.mubr.bf16.gmra.mxu0 %v2207
      %v3159 = vpop.f32.mrf.mxu0
      %v3160 = vadd.f32 0.0, %v3159
      %v3161 = vpop.f32.mrf.mxu0
      %v3162 = vpop.f32.mrf.mxu0
      %v3163 = vadd.f32 0.0, %v3162
      %v3164 = vpop.f32.mrf.mxu0
      %3165 = vdwg.mxu0
      %v3166 = vadd.f32 %v3120, %v3160
      %v3167 = vadd.f32 %v3121, %v3163
      %v3168 = vadd.f32 %v3166, %v2255
      %v3169 = vadd.f32 %v3167, %v2260
      %3170 = vst.msk [vmem:[%s386] sm:$0xff] %vm604, %v2262
      %3171 = vst.msk [vmem:[%s386 + $0x8] sm:$0xff] %vm604, %v2263
      %s3172 = scalar_lea.vmem %s386, 16
      %3173 = vst.msk [vmem:[%s3172] sm:$0xff] %vm604, %v2564
      %3174 = vst.msk [vmem:[%s3172 + $0x8] sm:$0xff] %vm604, %v2565
      %s3175 = scalar_lea.vmem %s386, 32
      %3176 = vst.msk [vmem:[%s3175] sm:$0xff] %vm604, %v2866
      %3177 = vst.msk [vmem:[%s3175 + $0x8] sm:$0xff] %vm604, %v2867
      %s3178 = scalar_lea.vmem %s386, 48
      %3179 = vst.msk [vmem:[%s3178] sm:$0xff] %vm604, %v3168
      %3180 = vst.msk [vmem:[%s3178 + $0x8] sm:$0xff] %vm604, %v3169
      %p3181 = scmp.lt.s32.totalorder %s22, 1
      %s3182 = scalar_select %p3181, %s22, 1
      %s3183 = smul.addr %s3182, 8
      %s3184 = smul.addr %s3183, 8
      %s3185 = scalar_lea.vmem %s11, %s3184
      // Predicated region
      $region65: #{calcium_vqvae_forward.3} parent=63 // pred_check
        %p3186 = pneg %p276
      $region66: #{calcium_vqvae_forward.3} parent=63 // pred_check_branch
        %3188 = sbr.rel (%p3186) target = $region68
      $region67: #{calcium_vqvae_forward.3} parent=63 // pred_region
        _
      $region68: #{calcium_vqvae_forward.3} parent=63 // pred_fallthru
        _
    $region64: #{calcium_vqvae_forward.3} parent=5 // pred_fallthru
      _
    %p3189 = scmp.le.s32.totalorder 2, %s17
    // Predicated region
    $region69: #{calcium_vqvae_forward.3} parent=5 // pred_check
      %p3190 = pneg %p3189
    $region70: #{calcium_vqvae_forward.3} parent=5 // pred_check_branch
      %3192 = sbr.rel (%p3190) target = $region72
    $region71: #{calcium_vqvae_forward.3} parent=5 // pred_region
      %s3193 = ssub.s32 %s17, 2
      // Predicated region
      $region73: #{calcium_vqvae_forward.3} parent=71 // pred_check
        %p3194 = pneg %p282
      $region74: #{calcium_vqvae_forward.3} parent=71 // pred_check_branch
        %3196 = sbr.rel (%p3194) target = $region76
      $region75: #{calcium_vqvae_forward.3} parent=71 // pred_region
        %p3197 = scmp.lt.s32.totalorder %s23, 1
        %s3198 = scalar_select %p3197, %s23, 1
        %s3199 = smul.addr %s3198, 8
        %s3200 = smul.addr %s3199, 8
        %s3201 = scalar_lea.vmem %s11, %s3200
      $region76: #{calcium_vqvae_forward.3} parent=71 // pred_fallthru
        _
    $region72: #{calcium_vqvae_forward.3} parent=5 // pred_fallthru
      _
  $region6: #{calcium_vqvae_forward.3} parent=0 // loop_footer
    %s21 = sadd.s32 1, %s17
  $region7: #{calcium_vqvae_forward.3} parent=0 // loop_footer_branch
    %16 = sbr.rel target = $region3
  $region8: #{calcium_vqvae_forward.3} parent=0 // loop_exit
    _

// kernel: calcium_vqvae_forward.2
$region0: #{calcium_vqvae_forward.2}
  #allocation0 [shape = 'u32[]', space=smem, size = 0x4, offset = 0x4, fixed_abs, tag = 'smem constant byte address 0x4 - core index']
  #allocation1 [shape = 'u32[144,128]{1,0:T(1,128)}', space=vmem, size = 0x12000, scoped, tag = 'internal scratch']
  #allocation2 [shape = 'bf16[4,16,10]{2,1,0:T(8,128)(2,1)}', space=vmem, size = 0x4000, scoped, tag = 'scratch operand']
  #allocation3 [shape = 'bf16[2,32,10]{2,1,0:T(8,128)(2,1)}', space=vmem, size = 0x4000, scoped, tag = 'scratch operand']
  #allocation4 [shape = 'bf16[32,10]{1,0:T(8,128)(2,1)}', space=vmem, size = 0x2000, scoped, tag = 'scratch operand']
  %s0 = inlined_call_operand.vmem [shape: bf16[2,4,16,10], index: 0, kind: input, shape index: {}]
  %s1 = inlined_call_operand.vmem [shape: bf16[7,16,16], index: 1, kind: input, shape index: {}]
  %s2 = inlined_call_operand.vmem [shape: f32[16,1], index: 2, kind: input, shape index: {}]
  %s3 = inlined_call_operand.vmem [shape: bf16[5,32,16], index: 3, kind: input, shape index: {}]
  %s4 = inlined_call_operand.vmem [shape: f32[32,1], index: 4, kind: input, shape index: {}]
  %s5 = inlined_call_operand.vmem [shape: bf16[3,32,32], index: 5, kind: input, shape index: {}]
  %s6 = inlined_call_operand.vmem [shape: f32[32,1], index: 6, kind: input, shape index: {}]
  %s7 = inlined_call_operand.vmem [shape: bf16[2,3,8,32], index: 7, kind: input, shape index: {}]
  %s8 = inlined_call_operand.vmem [shape: f32[2,8,1], index: 8, kind: input, shape index: {}]
  %s9 = inlined_call_operand.vmem [shape: bf16[2,1,32,8], index: 9, kind: input, shape index: {}]
  %s10 = inlined_call_operand.vmem [shape: f32[2,32,1], index: 10, kind: input, shape index: {}]
  %s11 = inlined_call_operand.vmem [shape: bf16[16,32], index: 11, kind: input, shape index: {}]
  %s12 = inlined_call_operand.vmem [shape: f32[16,1], index: 12, kind: input, shape index: {}]
  %s13 = inlined_call_operand.vmem [shape: f32[32,16], index: 13, kind: input, shape index: {}]
  %s14 = inlined_call_operand.vmem [shape: f32[16,32], index: 14, kind: input, shape index: {}]
  %s15 = inlined_call_operand.vmem [shape: f32[32,1], index: 15, kind: input, shape index: {}]
  %s16 = inlined_call_operand.vmem [shape: f32[2,16,8], index: 16, kind: output, shape index: {0}]
  %s17 = inlined_call_operand.vmem [shape: f32[2,16,8], index: 17, kind: output, shape index: {1}]
  %s18 = inlined_call_operand.vmem [shape: s32[2,1,8], index: 18, kind: output, shape index: {2}]
  %19 = xla_tuple %s16, %s17, %s18
  %s20 = sld [smem:[#allocation0]]
  $region113: #{calcium_vqvae_forward.2} parent=0
    _
  %s22 = ssub.s32 1, %s20
  %s23 = scalar_select 0, %s22, %s20
  loop: start=0, step=1, limit=4
  $region2: #{calcium_vqvae_forward.2} parent=0 // loop_pre_header
    _
  $region3: #{calcium_vqvae_forward.2} parent=0 // loop_header
    %s25 = sphi 0, %s29
    %p26 = scmp.ge.s32.totalorder %s25, 4
    %s35 = sphi 0, %s37
    %s38 = sphi 0, %s35
    %s39 = sphi 0, %s38
    %s55 = sphi 0, %s39
    %s59 = sphi 0, %s59
    %s61 = sphi 0, %s59
    %s62 = sphi 0, %s61
    %s76 = sphi 0, %s62
    %s80 = sphi 0, %s80
    %s82 = sphi 0, %s80
    %s83 = sphi 0, %s82
    %s97 = sphi 0, %s83
    %s101 = sphi 0, %s101
    %s103 = sphi 0, %s101
    %s104 = sphi 0, %s103
    %s118 = sphi 0, %s104
    %s122 = sphi 0, %s122
    %s124 = sphi 0, %s122
    %s125 = sphi 0, %s124
    %s139 = sphi 0, %s125
    %s143 = sphi 0, %s143
    %s145 = sphi 0, %s143
    %s146 = sphi 0, %s145
    %s160 = sphi 0, %s146
    %s164 = sphi 0, %s164
    %s166 = sphi 0, %s164
    %s167 = sphi 0, %s166
    %s181 = sphi 0, %s167
    %s185 = sphi 0, %s185
    %s187 = sphi 0, %s185
    %s188 = sphi 0, %s187
    %s202 = sphi 0, %s188
    %s206 = sphi 0, %s206
    %s208 = sphi 0, %s206
    %s209 = sphi 0, %s208
    %s223 = sphi 0, %s209
    %s227 = sphi 0, %s227
    %s229 = sphi 0, %s227
    %s230 = sphi 0, %s229
    %s244 = sphi 0, %s230
    %s248 = sphi 0, %s248
    %s250 = sphi 0, %s248
    %s251 = sphi 0, %s250
    %s265 = sphi 0, %s251
    %s269 = sphi 0, %s269
    %s271 = sphi 0, %s269
    %s272 = sphi 0, %s271
    %s286 = sphi 0, %s272
    %s290 = sphi 0, %s290
    %s292 = sphi 0, %s290
    %s293 = sphi 0, %s292
    %s307 = sphi 0, %s293
    %s311 = sphi 0, %s311
    %s313 = sphi 0, %s311
    %s314 = sphi 0, %s313
    %s328 = sphi 0, %s314
    %s332 = sphi 0, %s332
    %s334 = sphi 0, %s332
    %s335 = sphi 0, %s334
    %s349 = sphi 0, %s335
    %s353 = sphi 0, %s353
    %s355 = sphi 0, %s353
    %s356 = sphi 0, %s355
    %s370 = sphi 0, %s356
    %s376 = sphi 0, %s378
    %s379 = sphi 0, %s376
    %s380 = sphi 0, %s379
    %s396 = sphi 0, %s380
    %s402 = sphi 0, %s404
    %s405 = sphi 0, %s402
    %s406 = sphi 0, %s405
    %s422 = sphi 0, %s406
    %s428 = sphi 0, %s430
    %s431 = sphi 0, %s428
    %s432 = sphi 0, %s431
    %s448 = sphi 0, %s432
  $region4: #{calcium_vqvae_forward.2} parent=0 // loop_header_branch
    %28 = sbr.rel (%p26) target = $region8
  $region5: #{calcium_vqvae_forward.2} parent=0 // loop_body
    %s30 = ssub.s32 %s25, 1
    %s31 = ssub.s32 %s25, 2
    %s32 = sadd.s32 %s25, 1
    %s33 = ssub.s32 %s25, %s32
    %p34 = scmp.eq.s32.totalorder %s33, 0
    %s36 = sadd.s32 %s35, 1
    %s37 = scalar_select %p34, %s35, %s36
    %p40 = pneg %p34
    %p41 = scmp.eq.s32.totalorder %s25, 1
    %p42 = por %p40, %p41
    %p43 = scmp.ne.s32.totalorder %s35, %s38
    %p44 = scmp.eq.s32.totalorder %s25, 0
    %p45 = por %p43, %p44
    %p46 = scmp.ne.s32.totalorder %s35, %s38
    %p47 = scmp.eq.s32.totalorder %s30, 1
    %p48 = por %p46, %p47
    %p49 = scmp.ne.s32.totalorder %s38, %s39
    %p50 = scmp.eq.s32.totalorder %s30, 0
    %p51 = por %p49, %p50
    %p52 = scmp.ne.s32.totalorder %s38, %s39
    %p53 = scmp.eq.s32.totalorder %s31, 1
    %p54 = por %p52, %p53
    %p56 = scmp.ne.s32.totalorder %s39, %s55
    %p57 = scmp.eq.s32.totalorder %s31, 0
    %p58 = por %p56, %p57
    %s60 = sadd.s32 %s59, 1
    %p63 = scmp.eq.s32.totalorder %s25, 1
    %p64 = scmp.ne.s32.totalorder %s59, %s61
    %p65 = scmp.eq.s32.totalorder %s25, 0
    %p66 = por %p64, %p65
    %p67 = scmp.ne.s32.totalorder %s59, %s61
    %p68 = scmp.eq.s32.totalorder %s30, 1
    %p69 = por %p67, %p68
    %p70 = scmp.ne.s32.totalorder %s61, %s62
    %p71 = scmp.eq.s32.totalorder %s30, 0
    %p72 = por %p70, %p71
    %p73 = scmp.ne.s32.totalorder %s61, %s62
    %p74 = scmp.eq.s32.totalorder %s31, 1
    %p75 = por %p73, %p74
    %p77 = scmp.ne.s32.totalorder %s62, %s76
    %p78 = scmp.eq.s32.totalorder %s31, 0
    %p79 = por %p77, %p78
    %s81 = sadd.s32 %s80, 1
    %p84 = scmp.eq.s32.totalorder %s25, 1
    %p85 = scmp.ne.s32.totalorder %s80, %s82
    %p86 = scmp.eq.s32.totalorder %s25, 0
    %p87 = por %p85, %p86
    %p88 = scmp.ne.s32.totalorder %s80, %s82
    %p89 = scmp.eq.s32.totalorder %s30, 1
    %p90 = por %p88, %p89
    %p91 = scmp.ne.s32.totalorder %s82, %s83
    %p92 = scmp.eq.s32.totalorder %s30, 0
    %p93 = por %p91, %p92
    %p94 = scmp.ne.s32.totalorder %s82, %s83
    %p95 = scmp.eq.s32.totalorder %s31, 1
    %p96 = por %p94, %p95
    %p98 = scmp.ne.s32.totalorder %s83, %s97
    %p99 = scmp.eq.s32.totalorder %s31, 0
    %p100 = por %p98, %p99
    %s102 = sadd.s32 %s101, 1
    %p105 = scmp.eq.s32.totalorder %s25, 1
    %p106 = scmp.ne.s32.totalorder %s101, %s103
    %p107 = scmp.eq.s32.totalorder %s25, 0
    %p108 = por %p106, %p107
    %p109 = scmp.ne.s32.totalorder %s101, %s103
    %p110 = scmp.eq.s32.totalorder %s30, 1
    %p111 = por %p109, %p110
    %p112 = scmp.ne.s32.totalorder %s103, %s104
    %p113 = scmp.eq.s32.totalorder %s30, 0
    %p114 = por %p112, %p113
    %p115 = scmp.ne.s32.totalorder %s103, %s104
    %p116 = scmp.eq.s32.totalorder %s31, 1
    %p117 = por %p115, %p116
    %p119 = scmp.ne.s32.totalorder %s104, %s118
    %p120 = scmp.eq.s32.totalorder %s31, 0
    %p121 = por %p119, %p120
    %s123 = sadd.s32 %s122, 1
    %p126 = scmp.eq.s32.totalorder %s25, 1
    %p127 = scmp.ne.s32.totalorder %s122, %s124
    %p128 = scmp.eq.s32.totalorder %s25, 0
    %p129 = por %p127, %p128
    %p130 = scmp.ne.s32.totalorder %s122, %s124
    %p131 = scmp.eq.s32.totalorder %s30, 1
    %p132 = por %p130, %p131
    %p133 = scmp.ne.s32.totalorder %s124, %s125
    %p134 = scmp.eq.s32.totalorder %s30, 0
    %p135 = por %p133, %p134
    %p136 = scmp.ne.s32.totalorder %s124, %s125
    %p137 = scmp.eq.s32.totalorder %s31, 1
    %p138 = por %p136, %p137
    %p140 = scmp.ne.s32.totalorder %s125, %s139
    %p141 = scmp.eq.s32.totalorder %s31, 0
    %p142 = por %p140, %p141
    %s144 = sadd.s32 %s143, 1
    %p147 = scmp.eq.s32.totalorder %s25, 1
    %p148 = scmp.ne.s32.totalorder %s143, %s145
    %p149 = scmp.eq.s32.totalorder %s25, 0
    %p150 = por %p148, %p149
    %p151 = scmp.ne.s32.totalorder %s143, %s145
    %p152 = scmp.eq.s32.totalorder %s30, 1
    %p153 = por %p151, %p152
    %p154 = scmp.ne.s32.totalorder %s145, %s146
    %p155 = scmp.eq.s32.totalorder %s30, 0
    %p156 = por %p154, %p155
    %p157 = scmp.ne.s32.totalorder %s145, %s146
    %p158 = scmp.eq.s32.totalorder %s31, 1
    %p159 = por %p157, %p158
    %p161 = scmp.ne.s32.totalorder %s146, %s160
    %p162 = scmp.eq.s32.totalorder %s31, 0
    %p163 = por %p161, %p162
    %s165 = sadd.s32 %s164, 1
    %p168 = scmp.eq.s32.totalorder %s25, 1
    %p169 = scmp.ne.s32.totalorder %s164, %s166
    %p170 = scmp.eq.s32.totalorder %s25, 0
    %p171 = por %p169, %p170
    %p172 = scmp.ne.s32.totalorder %s164, %s166
    %p173 = scmp.eq.s32.totalorder %s30, 1
    %p174 = por %p172, %p173
    %p175 = scmp.ne.s32.totalorder %s166, %s167
    %p176 = scmp.eq.s32.totalorder %s30, 0
    %p177 = por %p175, %p176
    %p178 = scmp.ne.s32.totalorder %s166, %s167
    %p179 = scmp.eq.s32.totalorder %s31, 1
    %p180 = por %p178, %p179
    %p182 = scmp.ne.s32.totalorder %s167, %s181
    %p183 = scmp.eq.s32.totalorder %s31, 0
    %p184 = por %p182, %p183
    %s186 = sadd.s32 %s185, 1
    %p189 = scmp.eq.s32.totalorder %s25, 1
    %p190 = scmp.ne.s32.totalorder %s185, %s187
    %p191 = scmp.eq.s32.totalorder %s25, 0
    %p192 = por %p190, %p191
    %p193 = scmp.ne.s32.totalorder %s185, %s187
    %p194 = scmp.eq.s32.totalorder %s30, 1
    %p195 = por %p193, %p194
    %p196 = scmp.ne.s32.totalorder %s187, %s188
    %p197 = scmp.eq.s32.totalorder %s30, 0
    %p198 = por %p196, %p197
    %p199 = scmp.ne.s32.totalorder %s187, %s188
    %p200 = scmp.eq.s32.totalorder %s31, 1
    %p201 = por %p199, %p200
    %p203 = scmp.ne.s32.totalorder %s188, %s202
    %p204 = scmp.eq.s32.totalorder %s31, 0
    %p205 = por %p203, %p204
    %s207 = sadd.s32 %s206, 1
    %p210 = scmp.eq.s32.totalorder %s25, 1
    %p211 = scmp.ne.s32.totalorder %s206, %s208
    %p212 = scmp.eq.s32.totalorder %s25, 0
    %p213 = por %p211, %p212
    %p214 = scmp.ne.s32.totalorder %s206, %s208
    %p215 = scmp.eq.s32.totalorder %s30, 1
    %p216 = por %p214, %p215
    %p217 = scmp.ne.s32.totalorder %s208, %s209
    %p218 = scmp.eq.s32.totalorder %s30, 0
    %p219 = por %p217, %p218
    %p220 = scmp.ne.s32.totalorder %s208, %s209
    %p221 = scmp.eq.s32.totalorder %s31, 1
    %p222 = por %p220, %p221
    %p224 = scmp.ne.s32.totalorder %s209, %s223
    %p225 = scmp.eq.s32.totalorder %s31, 0
    %p226 = por %p224, %p225
    %s228 = sadd.s32 %s227, 1
    %p231 = scmp.eq.s32.totalorder %s25, 1
    %p232 = scmp.ne.s32.totalorder %s227, %s229
    %p233 = scmp.eq.s32.totalorder %s25, 0
    %p234 = por %p232, %p233
    %p235 = scmp.ne.s32.totalorder %s227, %s229
    %p236 = scmp.eq.s32.totalorder %s30, 1
    %p237 = por %p235, %p236
    %p238 = scmp.ne.s32.totalorder %s229, %s230
    %p239 = scmp.eq.s32.totalorder %s30, 0
    %p240 = por %p238, %p239
    %p241 = scmp.ne.s32.totalorder %s229, %s230
    %p242 = scmp.eq.s32.totalorder %s31, 1
    %p243 = por %p241, %p242
    %p245 = scmp.ne.s32.totalorder %s230, %s244
    %p246 = scmp.eq.s32.totalorder %s31, 0
    %p247 = por %p245, %p246
    %s249 = sadd.s32 %s248, 1
    %p252 = scmp.eq.s32.totalorder %s25, 1
    %p253 = scmp.ne.s32.totalorder %s248, %s250
    %p254 = scmp.eq.s32.totalorder %s25, 0
    %p255 = por %p253, %p254
    %p256 = scmp.ne.s32.totalorder %s248, %s250
    %p257 = scmp.eq.s32.totalorder %s30, 1
    %p258 = por %p256, %p257
    %p259 = scmp.ne.s32.totalorder %s250, %s251
    %p260 = scmp.eq.s32.totalorder %s30, 0
    %p261 = por %p259, %p260
    %p262 = scmp.ne.s32.totalorder %s250, %s251
    %p263 = scmp.eq.s32.totalorder %s31, 1
    %p264 = por %p262, %p263
    %p266 = scmp.ne.s32.totalorder %s251, %s265
    %p267 = scmp.eq.s32.totalorder %s31, 0
    %p268 = por %p266, %p267
    %s270 = sadd.s32 %s269, 1
    %p273 = scmp.eq.s32.totalorder %s25, 1
    %p274 = scmp.ne.s32.totalorder %s269, %s271
    %p275 = scmp.eq.s32.totalorder %s25, 0
    %p276 = por %p274, %p275
    %p277 = scmp.ne.s32.totalorder %s269, %s271
    %p278 = scmp.eq.s32.totalorder %s30, 1
    %p279 = por %p277, %p278
    %p280 = scmp.ne.s32.totalorder %s271, %s272
    %p281 = scmp.eq.s32.totalorder %s30, 0
    %p282 = por %p280, %p281
    %p283 = scmp.ne.s32.totalorder %s271, %s272
    %p284 = scmp.eq.s32.totalorder %s31, 1
    %p285 = por %p283, %p284
    %p287 = scmp.ne.s32.totalorder %s272, %s286
    %p288 = scmp.eq.s32.totalorder %s31, 0
    %p289 = por %p287, %p288
    %s291 = sadd.s32 %s290, 1
    %p294 = scmp.eq.s32.totalorder %s25, 1
    %p295 = scmp.ne.s32.totalorder %s290, %s292
    %p296 = scmp.eq.s32.totalorder %s25, 0
    %p297 = por %p295, %p296
    %p298 = scmp.ne.s32.totalorder %s290, %s292
    %p299 = scmp.eq.s32.totalorder %s30, 1
    %p300 = por %p298, %p299
    %p301 = scmp.ne.s32.totalorder %s292, %s293
    %p302 = scmp.eq.s32.totalorder %s30, 0
    %p303 = por %p301, %p302
    %p304 = scmp.ne.s32.totalorder %s292, %s293
    %p305 = scmp.eq.s32.totalorder %s31, 1
    %p306 = por %p304, %p305
    %p308 = scmp.ne.s32.totalorder %s293, %s307
    %p309 = scmp.eq.s32.totalorder %s31, 0
    %p310 = por %p308, %p309
    %s312 = sadd.s32 %s311, 1
    %p315 = scmp.eq.s32.totalorder %s25, 1
    %p316 = scmp.ne.s32.totalorder %s311, %s313
    %p317 = scmp.eq.s32.totalorder %s25, 0
    %p318 = por %p316, %p317
    %p319 = scmp.ne.s32.totalorder %s311, %s313
    %p320 = scmp.eq.s32.totalorder %s30, 1
    %p321 = por %p319, %p320
    %p322 = scmp.ne.s32.totalorder %s313, %s314
    %p323 = scmp.eq.s32.totalorder %s30, 0
    %p324 = por %p322, %p323
    %p325 = scmp.ne.s32.totalorder %s313, %s314
    %p326 = scmp.eq.s32.totalorder %s31, 1
    %p327 = por %p325, %p326
    %p329 = scmp.ne.s32.totalorder %s314, %s328
    %p330 = scmp.eq.s32.totalorder %s31, 0
    %p331 = por %p329, %p330
    %s333 = sadd.s32 %s332, 1
    %p336 = scmp.eq.s32.totalorder %s25, 1
    %p337 = scmp.ne.s32.totalorder %s332, %s334
    %p338 = scmp.eq.s32.totalorder %s25, 0
    %p339 = por %p337, %p338
    %p340 = scmp.ne.s32.totalorder %s332, %s334
    %p341 = scmp.eq.s32.totalorder %s30, 1
    %p342 = por %p340, %p341
    %p343 = scmp.ne.s32.totalorder %s334, %s335
    %p344 = scmp.eq.s32.totalorder %s30, 0
    %p345 = por %p343, %p344
    %p346 = scmp.ne.s32.totalorder %s334, %s335
    %p347 = scmp.eq.s32.totalorder %s31, 1
    %p348 = por %p346, %p347
    %p350 = scmp.ne.s32.totalorder %s335, %s349
    %p351 = scmp.eq.s32.totalorder %s31, 0
    %p352 = por %p350, %p351
    %s354 = sadd.s32 %s353, 1
    %p357 = scmp.eq.s32.totalorder %s25, 1
    %p358 = scmp.ne.s32.totalorder %s353, %s355
    %p359 = scmp.eq.s32.totalorder %s25, 0
    %p360 = por %p358, %p359
    %p361 = scmp.ne.s32.totalorder %s353, %s355
    %p362 = scmp.eq.s32.totalorder %s30, 1
    %p363 = por %p361, %p362
    %p364 = scmp.ne.s32.totalorder %s355, %s356
    %p365 = scmp.eq.s32.totalorder %s30, 0
    %p366 = por %p364, %p365
    %p367 = scmp.ne.s32.totalorder %s355, %s356
    %p368 = scmp.eq.s32.totalorder %s31, 1
    %p369 = por %p367, %p368
    %p371 = scmp.ne.s32.totalorder %s356, %s370
    %p372 = scmp.eq.s32.totalorder %s31, 0
    %p373 = por %p371, %p372
    %s374 = ssub.s32 %s25, %s32
    %p375 = scmp.eq.s32.totalorder %s374, 0
    %s377 = sadd.s32 %s376, 1
    %s378 = scalar_select %p375, %s376, %s377
    %p381 = pneg %p375
    %p382 = scmp.eq.s32.totalorder %s25, 1
    %p383 = por %p381, %p382
    %p384 = scmp.ne.s32.totalorder %s376, %s379
    %p385 = scmp.eq.s32.totalorder %s25, 0
    %p386 = por %p384, %p385
    %p387 = scmp.ne.s32.totalorder %s376, %s379
    %p388 = scmp.eq.s32.totalorder %s30, 1
    %p389 = por %p387, %p388
    %p390 = scmp.ne.s32.totalorder %s379, %s380
    %p391 = scmp.eq.s32.totalorder %s30, 0
    %p392 = por %p390, %p391
    %p393 = scmp.ne.s32.totalorder %s379, %s380
    %p394 = scmp.eq.s32.totalorder %s31, 1
    %p395 = por %p393, %p394
    %p397 = scmp.ne.s32.totalorder %s380, %s396
    %p398 = scmp.eq.s32.totalorder %s31, 0
    %p399 = por %p397, %p398
    %s400 = ssub.s32 %s25, %s32
    %p401 = scmp.eq.s32.totalorder %s400, 0
    %s403 = sadd.s32 %s402, 1
    %s404 = scalar_select %p401, %s402, %s403
    %p407 = pneg %p401
    %p408 = scmp.eq.s32.totalorder %s25, 1
    %p409 = por %p407, %p408
    %p410 = scmp.ne.s32.totalorder %s402, %s405
    %p411 = scmp.eq.s32.totalorder %s25, 0
    %p412 = por %p410, %p411
    %p413 = scmp.ne.s32.totalorder %s402, %s405
    %p414 = scmp.eq.s32.totalorder %s30, 1
    %p415 = por %p413, %p414
    %p416 = scmp.ne.s32.totalorder %s405, %s406
    %p417 = scmp.eq.s32.totalorder %s30, 0
    %p418 = por %p416, %p417
    %p419 = scmp.ne.s32.totalorder %s405, %s406
    %p420 = scmp.eq.s32.totalorder %s31, 1
    %p421 = por %p419, %p420
    %p423 = scmp.ne.s32.totalorder %s406, %s422
    %p424 = scmp.eq.s32.totalorder %s31, 0
    %p425 = por %p423, %p424
    %s426 = ssub.s32 %s25, %s32
    %p427 = scmp.eq.s32.totalorder %s426, 0
    %s429 = sadd.s32 %s428, 1
    %s430 = scalar_select %p427, %s428, %s429
    %p433 = pneg %p427
    %p434 = scmp.eq.s32.totalorder %s25, 1
    %p435 = por %p433, %p434
    %p436 = scmp.ne.s32.totalorder %s428, %s431
    %p437 = scmp.eq.s32.totalorder %s25, 0
    %p438 = por %p436, %p437
    %p439 = scmp.ne.s32.totalorder %s428, %s431
    %p440 = scmp.eq.s32.totalorder %s30, 1
    %p441 = por %p439, %p440
    %p442 = scmp.ne.s32.totalorder %s431, %s432
    %p443 = scmp.eq.s32.totalorder %s30, 0
    %p444 = por %p442, %p443
    %p445 = scmp.ne.s32.totalorder %s431, %s432
    %p446 = scmp.eq.s32.totalorder %s31, 1
    %p447 = por %p445, %p446
    %p449 = scmp.ne.s32.totalorder %s432, %s448
    %p450 = scmp.eq.s32.totalorder %s31, 0
    %p451 = por %p449, %p450
    %p452 = scmp.le.s32.totalorder 1, %s25
    %p453 = scmp.lt.s32.totalorder %s25, 3
    %p454 = pnand %p452, %p453
    %p455 = pneg %p454
    // Predicated region
    $region9: #{calcium_vqvae_forward.2} parent=5 // pred_check
      _
    $region10: #{calcium_vqvae_forward.2} parent=5 // pred_check_branch
      %457 = sbr.rel (%p454) target = $region12
    $region11: #{calcium_vqvae_forward.2} parent=5 // pred_region
      %s458 = ssub.s32 %s25, 1
      // Predicated region
      $region13: #{calcium_vqvae_forward.2} parent=11 // pred_check
        %p459 = pneg %p72
      $region14: #{calcium_vqvae_forward.2} parent=11 // pred_check_branch
        %461 = sbr.rel (%p459) target = $region16
      $region15: #{calcium_vqvae_forward.2} parent=11 // pred_region
        _
      $region16: #{calcium_vqvae_forward.2} parent=11 // pred_fallthru
        _
      // Predicated region
      $region17: #{calcium_vqvae_forward.2} parent=11 // pred_check
        %p462 = pneg %p93
      $region18: #{calcium_vqvae_forward.2} parent=11 // pred_check_branch
        %464 = sbr.rel (%p462) target = $region20
      $region19: #{calcium_vqvae_forward.2} parent=11 // pred_region
        _
      $region20: #{calcium_vqvae_forward.2} parent=11 // pred_fallthru
        _
      // Predicated region
      $region21: #{calcium_vqvae_forward.2} parent=11 // pred_check
        %p465 = pneg %p114
      $region22: #{calcium_vqvae_forward.2} parent=11 // pred_check_branch
        %467 = sbr.rel (%p465) target = $region24
      $region23: #{calcium_vqvae_forward.2} parent=11 // pred_region
        _
      $region24: #{calcium_vqvae_forward.2} parent=11 // pred_fallthru
        _
      // Predicated region
      $region25: #{calcium_vqvae_forward.2} parent=11 // pred_check
        %p468 = pneg %p135
      $region26: #{calcium_vqvae_forward.2} parent=11 // pred_check_branch
        %470 = sbr.rel (%p468) target = $region28
      $region27: #{calcium_vqvae_forward.2} parent=11 // pred_region
        _
      $region28: #{calcium_vqvae_forward.2} parent=11 // pred_fallthru
        _
      // Predicated region
      $region29: #{calcium_vqvae_forward.2} parent=11 // pred_check
        %p471 = pneg %p156
      $region30: #{calcium_vqvae_forward.2} parent=11 // pred_check_branch
        %473 = sbr.rel (%p471) target = $region32
      $region31: #{calcium_vqvae_forward.2} parent=11 // pred_region
        _
      $region32: #{calcium_vqvae_forward.2} parent=11 // pred_fallthru
        _
      // Predicated region
      $region33: #{calcium_vqvae_forward.2} parent=11 // pred_check
        %p474 = pneg %p177
      $region34: #{calcium_vqvae_forward.2} parent=11 // pred_check_branch
        %476 = sbr.rel (%p474) target = $region36
      $region35: #{calcium_vqvae_forward.2} parent=11 // pred_region
        _
      $region36: #{calcium_vqvae_forward.2} parent=11 // pred_fallthru
        _
      // Predicated region
      $region37: #{calcium_vqvae_forward.2} parent=11 // pred_check
        %p477 = pneg %p198
      $region38: #{calcium_vqvae_forward.2} parent=11 // pred_check_branch
        %479 = sbr.rel (%p477) target = $region40
      $region39: #{calcium_vqvae_forward.2} parent=11 // pred_region
        _
      $region40: #{calcium_vqvae_forward.2} parent=11 // pred_fallthru
        _
      // Predicated region
      $region41: #{calcium_vqvae_forward.2} parent=11 // pred_check
        %p480 = pneg %p219
      $region42: #{calcium_vqvae_forward.2} parent=11 // pred_check_branch
        %482 = sbr.rel (%p480) target = $region44
      $region43: #{calcium_vqvae_forward.2} parent=11 // pred_region
        _
      $region44: #{calcium_vqvae_forward.2} parent=11 // pred_fallthru
        _
      // Predicated region
      $region45: #{calcium_vqvae_forward.2} parent=11 // pred_check
        %p483 = pneg %p240
      $region46: #{calcium_vqvae_forward.2} parent=11 // pred_check_branch
        %485 = sbr.rel (%p483) target = $region48
      $region47: #{calcium_vqvae_forward.2} parent=11 // pred_region
        _
      $region48: #{calcium_vqvae_forward.2} parent=11 // pred_fallthru
        _
      // Predicated region
      $region49: #{calcium_vqvae_forward.2} parent=11 // pred_check
        %p486 = pneg %p261
      $region50: #{calcium_vqvae_forward.2} parent=11 // pred_check_branch
        %488 = sbr.rel (%p486) target = $region52
      $region51: #{calcium_vqvae_forward.2} parent=11 // pred_region
        _
      $region52: #{calcium_vqvae_forward.2} parent=11 // pred_fallthru
        _
      // Predicated region
      $region53: #{calcium_vqvae_forward.2} parent=11 // pred_check
        %p489 = pneg %p282
      $region54: #{calcium_vqvae_forward.2} parent=11 // pred_check_branch
        %491 = sbr.rel (%p489) target = $region56
      $region55: #{calcium_vqvae_forward.2} parent=11 // pred_region
        _
      $region56: #{calcium_vqvae_forward.2} parent=11 // pred_fallthru
        _
      // Predicated region
      $region57: #{calcium_vqvae_forward.2} parent=11 // pred_check
        %p492 = pneg %p303
      $region58: #{calcium_vqvae_forward.2} parent=11 // pred_check_branch
        %494 = sbr.rel (%p492) target = $region60
      $region59: #{calcium_vqvae_forward.2} parent=11 // pred_region
        _
      $region60: #{calcium_vqvae_forward.2} parent=11 // pred_fallthru
        _
      // Predicated region
      $region61: #{calcium_vqvae_forward.2} parent=11 // pred_check
        %p495 = pneg %p324
      $region62: #{calcium_vqvae_forward.2} parent=11 // pred_check_branch
        %497 = sbr.rel (%p495) target = $region64
      $region63: #{calcium_vqvae_forward.2} parent=11 // pred_region
        _
      $region64: #{calcium_vqvae_forward.2} parent=11 // pred_fallthru
        _
      // Predicated region
      $region65: #{calcium_vqvae_forward.2} parent=11 // pred_check
        %p498 = pneg %p345
      $region66: #{calcium_vqvae_forward.2} parent=11 // pred_check_branch
        %500 = sbr.rel (%p498) target = $region68
      $region67: #{calcium_vqvae_forward.2} parent=11 // pred_region
        _
      $region68: #{calcium_vqvae_forward.2} parent=11 // pred_fallthru
        _
      // Predicated region
      $region69: #{calcium_vqvae_forward.2} parent=11 // pred_check
        %p501 = pneg %p366
      $region70: #{calcium_vqvae_forward.2} parent=11 // pred_check_branch
        %503 = sbr.rel (%p501) target = $region72
      $region71: #{calcium_vqvae_forward.2} parent=11 // pred_region
        _
      $region72: #{calcium_vqvae_forward.2} parent=11 // pred_fallthru
        _
    $region12: #{calcium_vqvae_forward.2} parent=5 // pred_fallthru
      _
    %p504 = scmp.lt.s32.totalorder %s25, 2
    // Predicated region
    $region73: #{calcium_vqvae_forward.2} parent=5 // pred_check
      %p505 = pneg %p504
    $region74: #{calcium_vqvae_forward.2} parent=5 // pred_check_branch
      %507 = sbr.rel (%p505) target = $region76
    $region75: #{calcium_vqvae_forward.2} parent=5 // pred_region
      // Predicated region
      $region77: #{calcium_vqvae_forward.2} parent=75 // pred_check
        %p508 = pneg %p45
      $region78: #{calcium_vqvae_forward.2} parent=75 // pred_check_branch
        %510 = sbr.rel (%p508) target = $region80
      $region79: #{calcium_vqvae_forward.2} parent=75 // pred_region
        %p511 = scmp.lt.s32.totalorder %s25, 1
        %s512 = scalar_select %p511, %s25, 1
        %s513 = smul.addr %s512, 8
        %s514 = smul.addr %s513, 4
        %s515 = scalar_lea.vmem %s0, %s514
      $region80: #{calcium_vqvae_forward.2} parent=75 // pred_fallthru
        _
    $region76: #{calcium_vqvae_forward.2} parent=5 // pred_fallthru
      _
    %p516 = scmp.le.s32.totalorder 1, %s25
    %p517 = scmp.lt.s32.totalorder %s25, 3
    %p518 = pnand %p516, %p517
    %p519 = pneg %p518
    // Predicated region
    $region81: #{calcium_vqvae_forward.2} parent=5 // pred_check
      _
    $region82: #{calcium_vqvae_forward.2} parent=5 // pred_check_branch
      %521 = sbr.rel (%p518) target = $region84
    $region83: #{calcium_vqvae_forward.2} parent=5 // pred_region
      %s522 = ssub.s32 %s25, 1
      %p523 = scmp.lt.s32.totalorder %s30, 1
      %s524 = scalar_select %p523, %s30, 1
      %s525 = smul.addr %s524, 8
      %s526 = smul.addr %s525, 4
      %s527 = scalar_lea.vmem %s0, %s526
      %p528 = pneg %p51
      %p529 = pneg %p48
      %p530 = pneg %p72
      %p531 = pneg %p69
      %p532 = pneg %p93
      %p533 = pneg %p90
      %p534 = pneg %p114
      %p535 = pneg %p111
      %p536 = pneg %p135
      %p537 = pneg %p132
      %p538 = pneg %p156
      %p539 = pneg %p153
      %p540 = pneg %p177
      %p541 = pneg %p174
      %p542 = pneg %p198
      %p543 = pneg %p195
      %p544 = pneg %p219
      %p545 = pneg %p216
      %p546 = pneg %p240
      %p547 = pneg %p237
      %p548 = pneg %p261
      %p549 = pneg %p258
      %p550 = pneg %p282
      %p551 = pneg %p279
      %p552 = pneg %p303
      %p553 = pneg %p300
      %p554 = pneg %p324
      %p555 = pneg %p321
      %p556 = pneg %p345
      %p557 = pneg %p342
      %p558 = pneg %p366
      %p559 = pneg %p363
      %p560 = pneg %p392
      %p561 = pneg %p389
      %p562 = scmp.lt.s32.totalorder %s30, 1
      %s563 = scalar_select %p562, %s30, 1
      %s564 = smul.addr %s563, 2
      %s565 = smul.addr %s564, 8
      %s566 = scalar_lea.vmem %s16, %s565
      %p567 = pneg %p418
      %p568 = pneg %p415
      %p569 = scmp.lt.s32.totalorder %s30, 1
      %s570 = scalar_select %p569, %s30, 1
      %s571 = smul.addr %s570, 2
      %s572 = smul.addr %s571, 8
      %s573 = scalar_lea.vmem %s17, %s572
      %p574 = pneg %p444
      %p575 = pneg %p441
      %p576 = scmp.lt.s32.totalorder %s30, 1
      %s577 = scalar_select %p576, %s30, 1
      %s578 = scalar_lea.vmem %s18, %s577
      %p579 = scmp.lt.s32.totalorder %s30, 1
      %s580 = scalar_select %p579, %s30, 1
      %s581 = smul.addr %s580, 8
      %s582 = smul.addr %s581, 4
      %s583 = scalar_lea.vmem %s0, %s582
      %p584 = scmp.lt.s32.totalorder %s30, 1
      %s585 = scalar_select %p584, %s30, 1
      %s586 = smul.addr %s585, 2
      %s587 = smul.addr %s586, 8
      %s588 = scalar_lea.vmem %s16, %s587
      %p589 = scmp.lt.s32.totalorder %s30, 1
      %s590 = scalar_select %p589, %s30, 1
      %s591 = smul.addr %s590, 2
      %s592 = smul.addr %s591, 8
      %s593 = scalar_lea.vmem %s17, %s592
      %p594 = scmp.lt.s32.totalorder %s30, 1
      %s595 = scalar_select %p594, %s30, 1
      %s596 = scalar_lea.vmem %s18, %s595
      %vm598 = vcmask 76800
      %599 = vst.msk [vmem:[#allocation2] sm:$0xf] %vm598, 0
      %600 = vst.msk [vmem:[#allocation2 + $0x4] sm:$0xf] %vm598, 0
      %601 = vst.msk [vmem:[#allocation2 + $0x8] sm:$0xf] %vm598, 0
      %602 = vst.msk [vmem:[#allocation2 + $0xc] sm:$0xf] %vm598, 0
      %603 = vst.msk [vmem:[#allocation2 + $0x10] sm:$0xf] %vm598, 0
      %604 = vst.msk [vmem:[#allocation2 + $0x14] sm:$0xf] %vm598, 0
      %605 = vst.msk [vmem:[#allocation2 + $0x18] sm:$0xf] %vm598, 0
      %606 = vst.msk [vmem:[#allocation2 + $0x1c] sm:$0xf] %vm598, 0
      %607 = vst.msk [vmem:[#allocation3] sm:$0xf] %vm598, 0
      %608 = vst.msk [vmem:[#allocation3 + $0x4] sm:$0xf] %vm598, 0
      %609 = vst.msk [vmem:[#allocation3 + $0x8] sm:$0xf] %vm598, 0
      %610 = vst.msk [vmem:[#allocation3 + $0xc] sm:$0xf] %vm598, 0
      %611 = vst.msk [vmem:[#allocation3 + $0x10] sm:$0xf] %vm598, 0
      %612 = vst.msk [vmem:[#allocation3 + $0x14] sm:$0xf] %vm598, 0
      %613 = vst.msk [vmem:[#allocation3 + $0x18] sm:$0xf] %vm598, 0
      %614 = vst.msk [vmem:[#allocation3 + $0x1c] sm:$0xf] %vm598, 0
      %615 = vst.msk [vmem:[#allocation4] sm:$0xf] %vm598, 0
      %616 = vst.msk [vmem:[#allocation4 + $0x4] sm:$0xf] %vm598, 0
      %617 = vst.msk [vmem:[#allocation4 + $0x8] sm:$0xf] %vm598, 0
      %618 = vst.msk [vmem:[#allocation4 + $0xc] sm:$0xf] %vm598, 0
      %v619 = vld [vmem:[%s2] sm:$0xff]
      %v620 = vld [vmem:[%s2 + $0x8] sm:$0xff]
      %v621 = vld [vmem:[%s1] sm:$0xf]
      %v622 = vld [vmem:[%s1 + $0x4] sm:$0xf]
      %s623 = scalar_lea.vmem %s583, 8
      %v624 = vld [vmem:[%s623] sm:$0xf]
      %v625 = vld [vmem:[%s623 + $0x4] sm:$0xf]
      %s626 = scalar_lea.vmem %s1, 8
      %v627 = vld [vmem:[%s626] sm:$0xf]
      %v628 = vld [vmem:[%s626 + $0x4] sm:$0xf]
      %s629 = scalar_lea.vmem %s583, 16
      %v630 = vld [vmem:[%s629] sm:$0xf]
      %v631 = vld [vmem:[%s629 + $0x4] sm:$0xf]
      %v634 = vunpack.c.l.b16 %v627
      %v635 = vunpack.c.l.b16 %v628
      %v636 = vpack.c.b16 %v635, %v634
      %v639 = vunpack.c.l.b16 %v630
      %v640 = vunpack.c.l.b16 %v631
      %v641 = vpack.c.b16 %v640, %v639
      %vm643 = vcmask 130048
      %v645 = vsel %vm643, %v636, 0
      %647 = vmatprep.subr.bf16.mxu0 0
      %648 = vmatpush1.bf16.msra.mxu0 0
      %649 = vmatprep.subr.bf16.mxu0 0
      %650 = vmatpush1.bf16.msra.mxu0 0
      %651 = vmatprep.subr.bf16.mxu0 0
      %652 = vmatpush1.bf16.msra.mxu0 0
      %653 = vmatprep.subr.bf16.mxu0 0
      %654 = vmatpush1.bf16.msra.mxu0 0
      %655 = vmatprep.subr.bf16.mxu0 0
      %656 = vmatpush1.bf16.msra.mxu0 0
      %657 = vmatprep.subr.bf16.mxu0 0
      %658 = vmatpush1.bf16.msra.mxu0 0
      %659 = vmatprep.subr.bf16.mxu0 0
      %660 = vmatpush1.bf16.msra.mxu0 0
      %661 = vmatprep.subr.bf16.mxu0 0
      %662 = vmatpush1.bf16.msra.mxu0 %v641
      %663 = vmatprep.subr.bf16.mxu0 0
      %664 = vmatpush2.bf16.msra.mxu0 0
      %665 = vmatprep.subr.bf16.mxu0 0
      %666 = vmatpush2.bf16.msra.mxu0 0
      %667 = vmatprep.subr.bf16.mxu0 0
      %668 = vmatpush2.bf16.msra.mxu0 0
      %669 = vmatprep.subr.bf16.mxu0 0
      %670 = vmatpush2.bf16.msra.mxu0 0
      %671 = vmatprep.subr.bf16.mxu0 0
      %672 = vmatpush2.bf16.msra.mxu0 0
      %673 = vmatprep.subr.bf16.mxu0 0
      %674 = vmatpush2.bf16.msra.mxu0 0
      %675 = vmatprep.subr.bf16.mxu0 0
      %676 = vmatpush2.bf16.msra.mxu0 0
      %677 = vmatprep.subr.bf16.mxu0 0
      %678 = vmatpush2.bf16.msra.mxu0 0
      %679 = vmatprep.mubr.bf16.mxu0 0
      %680 = vmatmul.mubr.bf16.gmra.mxu0 %v645
      %v681 = vpop.f32.mrf.mxu0
      %v682 = vadd.f32 0.0, %v681
      %v683 = vpop.f32.mrf.mxu0
      %v684 = vpop.f32.mrf.mxu0
      %v685 = vadd.f32 0.0, %v684
      %v686 = vpop.f32.mrf.mxu0
      %687 = vdwg.mxu0
      %v690 = vunpack.c.l.b16 %v621
      %v691 = vunpack.c.l.b16 %v622
      %v692 = vpack.c.b16 %v691, %v690
      %v695 = vunpack.c.l.b16 %v624
      %v696 = vunpack.c.l.b16 %v625
      %v697 = vpack.c.b16 %v696, %v695
      %v700 = vsel %vm643, %v692, 0
      %702 = vmatprep.subr.bf16.mxu0 0
      %703 = vmatpush1.bf16.msra.mxu0 0
      %704 = vmatprep.subr.bf16.mxu0 0
      %705 = vmatpush1.bf16.msra.mxu0 0
      %706 = vmatprep.subr.bf16.mxu0 0
      %707 = vmatpush1.bf16.msra.mxu0 0
      %708 = vmatprep.subr.bf16.mxu0 0
      %709 = vmatpush1.bf16.msra.mxu0 0
      %710 = vmatprep.subr.bf16.mxu0 0
      %711 = vmatpush1.bf16.msra.mxu0 0
      %712 = vmatprep.subr.bf16.mxu0 0
      %713 = vmatpush1.bf16.msra.mxu0 0
      %714 = vmatprep.subr.bf16.mxu0 0
      %715 = vmatpush1.bf16.msra.mxu0 0
      %716 = vmatprep.subr.bf16.mxu0 0
      %717 = vmatpush1.bf16.msra.mxu0 %v697
      %718 = vmatprep.subr.bf16.mxu0 0
      %719 = vmatpush2.bf16.msra.mxu0 0
      %720 = vmatprep.subr.bf16.mxu0 0
      %721 = vmatpush2.bf16.msra.mxu0 0
      %722 = vmatprep.subr.bf16.mxu0 0
      %723 = vmatpush2.bf16.msra.mxu0 0
      %724 = vmatprep.subr.bf16.mxu0 0
      %725 = vmatpush2.bf16.msra.mxu0 0
      %726 = vmatprep.subr.bf16.mxu0 0
      %727 = vmatpush2.bf16.msra.mxu0 0
      %728 = vmatprep.subr.bf16.mxu0 0
      %729 = vmatpush2.bf16.msra.mxu0 0
      %730 = vmatprep.subr.bf16.mxu0 0
      %731 = vmatpush2.bf16.msra.mxu0 0
      %732 = vmatprep.subr.bf16.mxu0 0
      %733 = vmatpush2.bf16.msra.mxu0 0
      %734 = vmatprep.mubr.bf16.mxu0 0
      %735 = vmatmul.mubr.bf16.gmra.mxu0 %v700
      %v736 = vpop.f32.mrf.mxu0
      %v737 = vadd.f32 %v682, %v736
      %v738 = vpop.f32.mrf.mxu0
      %v739 = vpop.f32.mrf.mxu0
      %v740 = vadd.f32 %v685, %v739
      %v741 = vpop.f32.mrf.mxu0
      %742 = vdwg.mxu0
      %s743 = scalar_lea.vmem %s1, 16
      %v744 = vld [vmem:[%s743] sm:$0xf]
      %v745 = vld [vmem:[%s743 + $0x4] sm:$0xf]
      %s746 = scalar_lea.vmem %s583, 24
      %v747 = vld [vmem:[%s746] sm:$0xf]
      %v748 = vld [vmem:[%s746 + $0x4] sm:$0xf]
      %v751 = vunpack.c.l.b16 %v744
      %v752 = vunpack.c.l.b16 %v745
      %v753 = vpack.c.b16 %v752, %v751
      %v756 = vunpack.c.l.b16 %v747
      %v757 = vunpack.c.l.b16 %v748
      %v758 = vpack.c.b16 %v757, %v756
      %v761 = vsel %vm643, %v753, 0
      %763 = vmatprep.subr.bf16.mxu0 0
      %764 = vmatpush1.bf16.msra.mxu0 0
      %765 = vmatprep.subr.bf16.mxu0 0
      %766 = vmatpush1.bf16.msra.mxu0 0
      %767 = vmatprep.subr.bf16.mxu0 0
      %768 = vmatpush1.bf16.msra.mxu0 0
      %769 = vmatprep.subr.bf16.mxu0 0
      %770 = vmatpush1.bf16.msra.mxu0 0
      %771 = vmatprep.subr.bf16.mxu0 0
      %772 = vmatpush1.bf16.msra.mxu0 0
      %773 = vmatprep.subr.bf16.mxu0 0
      %774 = vmatpush1.bf16.msra.mxu0 0
      %775 = vmatprep.subr.bf16.mxu0 0
      %776 = vmatpush1.bf16.msra.mxu0 0
      %777 = vmatprep.subr.bf16.mxu0 0
      %778 = vmatpush1.bf16.msra.mxu0 %v758
      %779 = vmatprep.subr.bf16.mxu0 0
      %780 = vmatpush2.bf16.msra.mxu0 0
      %781 = vmatprep.subr.bf16.mxu0 0
      %782 = vmatpush2.bf16.msra.mxu0 0
      %783 = vmatprep.subr.bf16.mxu0 0
      %784 = vmatpush2.bf16.msra.mxu0 0
      %785 = vmatprep.subr.bf16.mxu0 0
      %786 = vmatpush2.bf16.msra.mxu0 0
      %787 = vmatprep.subr.bf16.mxu0 0
      %788 = vmatpush2.bf16.msra.mxu0 0
      %789 = vmatprep.subr.bf16.mxu0 0
      %790 = vmatpush2.bf16.msra.mxu0 0
      %791 = vmatprep.subr.bf16.mxu0 0
      %792 = vmatpush2.bf16.msra.mxu0 0
      %793 = vmatprep.subr.bf16.mxu0 0
      %794 = vmatpush2.bf16.msra.mxu0 0
      %795 = vmatprep.mubr.bf16.mxu0 0
      %796 = vmatmul.mubr.bf16.gmra.mxu0 %v761
      %v797 = vpop.f32.mrf.mxu0
      %v798 = vadd.f32 0.0, %v797
      %v799 = vpop.f32.mrf.mxu0
      %v800 = vpop.f32.mrf.mxu0
      %v801 = vadd.f32 0.0, %v800
      %v802 = vpop.f32.mrf.mxu0
      %803 = vdwg.mxu0
      %v804 = vadd.f32 %v737, %v798
      %v805 = vadd.f32 %v740, %v801
      %s806 = scalar_lea.vmem %s1, 24
      %v807 = vld [vmem:[%s806] sm:$0xf]
      %v808 = vld [vmem:[%s806 + $0x4] sm:$0xf]
      %v809 = vld [vmem:[%s583] sm:$0xf]
      %v810 = vld [vmem:[%s583 + $0x4] sm:$0xf]
      %v813 = vunpack.c.l.b16 %v807
      %v814 = vunpack.c.l.b16 %v808
      %v815 = vpack.c.b16 %v814, %v813
      %v818 = vunpack.c.l.b16 %v809
      %v819 = vunpack.c.l.b16 %v810
      %v820 = vpack.c.b16 %v819, %v818
      %821 = vrot.lane.b32.xlu0 %v820, 127
      %v822 = vpop.permute.xlu0 %821
      %v825 = vsel %vm643, %v815, 0
      %827 = vmatprep.subr.bf16.mxu0 0
      %828 = vmatpush1.bf16.msra.mxu0 0
      %829 = vmatprep.subr.bf16.mxu0 0
      %830 = vmatpush1.bf16.msra.mxu0 0
      %831 = vmatprep.subr.bf16.mxu0 0
      %832 = vmatpush1.bf16.msra.mxu0 0
      %833 = vmatprep.subr.bf16.mxu0 0
      %834 = vmatpush1.bf16.msra.mxu0 0
      %835 = vmatprep.subr.bf16.mxu0 0
      %836 = vmatpush1.bf16.msra.mxu0 0
      %837 = vmatprep.subr.bf16.mxu0 0
      %838 = vmatpush1.bf16.msra.mxu0 0
      %839 = vmatprep.subr.bf16.mxu0 0
      %840 = vmatpush1.bf16.msra.mxu0 0
      %841 = vmatprep.subr.bf16.mxu0 0
      %842 = vmatpush1.bf16.msra.mxu0 %v822
      %843 = vmatprep.subr.bf16.mxu0 0
      %844 = vmatpush2.bf16.msra.mxu0 0
      %845 = vmatprep.subr.bf16.mxu0 0
      %846 = vmatpush2.bf16.msra.mxu0 0
      %847 = vmatprep.subr.bf16.mxu0 0
      %848 = vmatpush2.bf16.msra.mxu0 0
      %849 = vmatprep.subr.bf16.mxu0 0
      %850 = vmatpush2.bf16.msra.mxu0 0
      %851 = vmatprep.subr.bf16.mxu0 0
      %852 = vmatpush2.bf16.msra.mxu0 0
      %853 = vmatprep.subr.bf16.mxu0 0
      %854 = vmatpush2.bf16.msra.mxu0 0
      %855 = vmatprep.subr.bf16.mxu0 0
      %856 = vmatpush2.bf16.msra.mxu0 0
      %857 = vmatprep.subr.bf16.mxu0 0
      %858 = vmatpush2.bf16.msra.mxu0 0
      %859 = vmatprep.mubr.bf16.mxu0 0
      %860 = vmatmul.mubr.bf16.gmra.mxu0 %v825
      %v861 = vpop.f32.mrf.mxu0
      %v862 = vadd.f32 0.0, %v861
      %v863 = vpop.f32.mrf.mxu0
      %v864 = vpop.f32.mrf.mxu0
      %v865 = vadd.f32 0.0, %v864
      %v866 = vpop.f32.mrf.mxu0
      %867 = vdwg.mxu0
      %v868 = vadd.f32 %v804, %v862
      %v869 = vadd.f32 %v805, %v865
      %s870 = scalar_lea.vmem %s1, 32
      %v871 = vld [vmem:[%s870] sm:$0xf]
      %v872 = vld [vmem:[%s870 + $0x4] sm:$0xf]
      %v875 = vunpack.c.l.b16 %v871
      %v876 = vunpack.c.l.b16 %v872
      %v877 = vpack.c.b16 %v876, %v875
      %878 = vrot.lane.b32.xlu0 %v697, 127
      %v879 = vpop.permute.xlu0 %878
      %v882 = vsel %vm643, %v877, 0
      %884 = vmatprep.subr.bf16.mxu0 0
      %885 = vmatpush1.bf16.msra.mxu0 0
      %886 = vmatprep.subr.bf16.mxu0 0
      %887 = vmatpush1.bf16.msra.mxu0 0
      %888 = vmatprep.subr.bf16.mxu0 0
      %889 = vmatpush1.bf16.msra.mxu0 0
      %890 = vmatprep.subr.bf16.mxu0 0
      %891 = vmatpush1.bf16.msra.mxu0 0
      %892 = vmatprep.subr.bf16.mxu0 0
      %893 = vmatpush1.bf16.msra.mxu0 0
      %894 = vmatprep.subr.bf16.mxu0 0
      %895 = vmatpush1.bf16.msra.mxu0 0
      %896 = vmatprep.subr.bf16.mxu0 0
      %897 = vmatpush1.bf16.msra.mxu0 0
      %898 = vmatprep.subr.bf16.mxu0 0
      %899 = vmatpush1.bf16.msra.mxu0 %v879
      %900 = vmatprep.subr.bf16.mxu0 0
      %901 = vmatpush2.bf16.msra.mxu0 0
      %902 = vmatprep.subr.bf16.mxu0 0
      %903 = vmatpush2.bf16.msra.mxu0 0
      %904 = vmatprep.subr.bf16.mxu0 0
      %905 = vmatpush2.bf16.msra.mxu0 0
      %906 = vmatprep.subr.bf16.mxu0 0
      %907 = vmatpush2.bf16.msra.mxu0 0
      %908 = vmatprep.subr.bf16.mxu0 0
      %909 = vmatpush2.bf16.msra.mxu0 0
      %910 = vmatprep.subr.bf16.mxu0 0
      %911 = vmatpush2.bf16.msra.mxu0 0
      %912 = vmatprep.subr.bf16.mxu0 0
      %913 = vmatpush2.bf16.msra.mxu0 0
      %914 = vmatprep.subr.bf16.mxu0 0
      %915 = vmatpush2.bf16.msra.mxu0 0
      %916 = vmatprep.mubr.bf16.mxu0 0
      %917 = vmatmul.mubr.bf16.gmra.mxu0 %v882
      %v918 = vpop.f32.mrf.mxu0
      %v919 = vadd.f32 0.0, %v918
      %v920 = vpop.f32.mrf.mxu0
      %v921 = vpop.f32.mrf.mxu0
      %v922 = vadd.f32 0.0, %v921
      %v923 = vpop.f32.mrf.mxu0
      %924 = vdwg.mxu0
      %v925 = vadd.f32 %v868, %v919
      %v926 = vadd.f32 %v869, %v922
      %s927 = scalar_lea.vmem %s1, 40
      %v928 = vld [vmem:[%s927] sm:$0xf]
      %v929 = vld [vmem:[%s927 + $0x4] sm:$0xf]
      %v932 = vunpack.c.l.b16 %v928
      %v933 = vunpack.c.l.b16 %v929
      %v934 = vpack.c.b16 %v933, %v932
      %935 = vrot.lane.b32.xlu0 %v641, 127
      %v936 = vpop.permute.xlu0 %935
      %v939 = vsel %vm643, %v934, 0
      %941 = vmatprep.subr.bf16.mxu0 0
      %942 = vmatpush1.bf16.msra.mxu0 0
      %943 = vmatprep.subr.bf16.mxu0 0
      %944 = vmatpush1.bf16.msra.mxu0 0
      %945 = vmatprep.subr.bf16.mxu0 0
      %946 = vmatpush1.bf16.msra.mxu0 0
      %947 = vmatprep.subr.bf16.mxu0 0
      %948 = vmatpush1.bf16.msra.mxu0 0
      %949 = vmatprep.subr.bf16.mxu0 0
      %950 = vmatpush1.bf16.msra.mxu0 0
      %951 = vmatprep.subr.bf16.mxu0 0
      %952 = vmatpush1.bf16.msra.mxu0 0
      %953 = vmatprep.subr.bf16.mxu0 0
      %954 = vmatpush1.bf16.msra.mxu0 0
      %955 = vmatprep.subr.bf16.mxu0 0
      %956 = vmatpush1.bf16.msra.mxu0 %v936
      %957 = vmatprep.subr.bf16.mxu0 0
      %958 = vmatpush2.bf16.msra.mxu0 0
      %959 = vmatprep.subr.bf16.mxu0 0
      %960 = vmatpush2.bf16.msra.mxu0 0
      %961 = vmatprep.subr.bf16.mxu0 0
      %962 = vmatpush2.bf16.msra.mxu0 0
      %963 = vmatprep.subr.bf16.mxu0 0
      %964 = vmatpush2.bf16.msra.mxu0 0
      %965 = vmatprep.subr.bf16.mxu0 0
      %966 = vmatpush2.bf16.msra.mxu0 0
      %967 = vmatprep.subr.bf16.mxu0 0
      %968 = vmatpush2.bf16.msra.mxu0 0
      %969 = vmatprep.subr.bf16.mxu0 0
      %970 = vmatpush2.bf16.msra.mxu0 0
      %971 = vmatprep.subr.bf16.mxu0 0
      %972 = vmatpush2.bf16.msra.mxu0 0
      %973 = vmatprep.mubr.bf16.mxu0 0
      %974 = vmatmul.mubr.bf16.gmra.mxu0 %v939
      %v975 = vpop.f32.mrf.mxu0
      %v976 = vadd.f32 0.0, %v975
      %v977 = vpop.f32.mrf.mxu0
      %v978 = vpop.f32.mrf.mxu0
      %v979 = vadd.f32 0.0, %v978
      %v980 = vpop.f32.mrf.mxu0
      %981 = vdwg.mxu0
      %v982 = vadd.f32 %v925, %v976
      %v983 = vadd.f32 %v926, %v979
      %s984 = scalar_lea.vmem %s1, 48
      %v985 = vld [vmem:[%s984] sm:$0xf]
      %v986 = vld [vmem:[%s984 + $0x4] sm:$0xf]
      %v989 = vunpack.c.l.b16 %v985
      %v990 = vunpack.c.l.b16 %v986
      %v991 = vpack.c.b16 %v990, %v989
      %992 = vrot.lane.b32.xlu0 %v758, 127
      %v993 = vpop.permute.xlu0 %992
      %v996 = vsel %vm643, %v991, 0
      %998 = vmatprep.subr.bf16.mxu0 0
      %999 = vmatpush1.bf16.msra.mxu0 0
      %1000 = vmatprep.subr.bf16.mxu0 0
      %1001 = vmatpush1.bf16.msra.mxu0 0
      %1002 = vmatprep.subr.bf16.mxu0 0
      %1003 = vmatpush1.bf16.msra.mxu0 0
      %1004 = vmatprep.subr.bf16.mxu0 0
      %1005 = vmatpush1.bf16.msra.mxu0 0
      %1006 = vmatprep.subr.bf16.mxu0 0
      %1007 = vmatpush1.bf16.msra.mxu0 0
      %1008 = vmatprep.subr.bf16.mxu0 0
      %1009 = vmatpush1.bf16.msra.mxu0 0
      %1010 = vmatprep.subr.bf16.mxu0 0
      %1011 = vmatpush1.bf16.msra.mxu0 0
      %1012 = vmatprep.subr.bf16.mxu0 0
      %1013 = vmatpush1.bf16.msra.mxu0 %v993
      %1014 = vmatprep.subr.bf16.mxu0 0
      %1015 = vmatpush2.bf16.msra.mxu0 0
      %1016 = vmatprep.subr.bf16.mxu0 0
      %1017 = vmatpush2.bf16.msra.mxu0 0
      %1018 = vmatprep.subr.bf16.mxu0 0
      %1019 = vmatpush2.bf16.msra.mxu0 0
      %1020 = vmatprep.subr.bf16.mxu0 0
      %1021 = vmatpush2.bf16.msra.mxu0 0
      %1022 = vmatprep.subr.bf16.mxu0 0
      %1023 = vmatpush2.bf16.msra.mxu0 0
      %1024 = vmatprep.subr.bf16.mxu0 0
      %1025 = vmatpush2.bf16.msra.mxu0 0
      %1026 = vmatprep.subr.bf16.mxu0 0
      %1027 = vmatpush2.bf16.msra.mxu0 0
      %1028 = vmatprep.subr.bf16.mxu0 0
      %1029 = vmatpush2.bf16.msra.mxu0 0
      %1030 = vmatprep.mubr.bf16.mxu0 0
      %1031 = vmatmul.mubr.bf16.gmra.mxu0 %v996
      %v1032 = vpop.f32.mrf.mxu0
      %v1033 = vadd.f32 0.0, %v1032
      %v1034 = vpop.f32.mrf.mxu0
      %v1035 = vpop.f32.mrf.mxu0
      %v1036 = vadd.f32 0.0, %v1035
      %v1037 = vpop.f32.mrf.mxu0
      %1038 = vdwg.mxu0
      %v1039 = vadd.f32 %v982, %v1033
      %v1040 = vadd.f32 %v983, %v1036
      %1042 = vset.pattern.permute.xlu0 0
      %1043 = vperm.xlu0 %1042, %v619
      %v1044 = vpop.permute.xlu0 %1043
      %1047 = vset.pattern.permute.xlu0 0
      %1048 = vperm.xlu0 %1047, %v620
      %v1049 = vpop.permute.xlu0 %1048
      %v1051 = vadd.f32 %v1039, %v1044
      %v1052 = vadd.f32 %v1040, %v1049
      %v1053 = vmax.f32 %v1051, 0.0
      %v1054 = vmax.f32 %v1052, 0.0
      %1055 = vmatprep.subr.bf16.mxu0 0
      %1056 = vmatpush1.bf16.msra.mxu0 0
      %1057 = vmatprep.subr.bf16.mxu0 0
      %1058 = vmatpush1.bf16.msra.mxu0 0
      %1059 = vmatprep.subr.bf16.mxu0 0
      %1060 = vmatpush1.bf16.msra.mxu0 0
      %1061 = vmatprep.subr.bf16.mxu0 0
      %1062 = vmatpush1.bf16.msra.mxu0 0
      %1063 = vmatprep.subr.bf16.mxu0 0
      %1064 = vmatpush1.bf16.msra.mxu0 0
      %1065 = vmatprep.subr.bf16.mxu0 0
      %1066 = vmatpush1.bf16.msra.mxu0 0
      %1067 = vmatprep.subr.bf16.mxu0 0
      %1068 = vmatpush1.bf16.msra.mxu0 0
      %1069 = vmatprep.subr.bf16.mxu0 0
      %1070 = vmatpush1.bf16.msra.mxu0 %v758
      %1071 = vmatprep.subr.bf16.mxu0 0
      %1072 = vmatpush2.bf16.msra.mxu0 0
      %1073 = vmatprep.subr.bf16.mxu0 0
      %1074 = vmatpush2.bf16.msra.mxu0 0
      %1075 = vmatprep.subr.bf16.mxu0 0
      %1076 = vmatpush2.bf16.msra.mxu0 0
      %1077 = vmatprep.subr.bf16.mxu0 0
      %1078 = vmatpush2.bf16.msra.mxu0 0
      %1079 = vmatprep.subr.bf16.mxu0 0
      %1080 = vmatpush2.bf16.msra.mxu0 0
      %1081 = vmatprep.subr.bf16.mxu0 0
      %1082 = vmatpush2.bf16.msra.mxu0 0
      %1083 = vmatprep.subr.bf16.mxu0 0
      %1084 = vmatpush2.bf16.msra.mxu0 0
      %1085 = vmatprep.subr.bf16.mxu0 0
      %1086 = vmatpush2.bf16.msra.mxu0 0
      %1087 = vmatprep.mubr.bf16.mxu0 0
      %1088 = vmatmul.mubr.bf16.gmra.mxu0 %v645
      %v1089 = vpop.f32.mrf.mxu0
      %v1090 = vadd.f32 0.0, %v1089
      %v1091 = vpop.f32.mrf.mxu0
      %v1092 = vpop.f32.mrf.mxu0
      %v1093 = vadd.f32 0.0, %v1092
      %v1094 = vpop.f32.mrf.mxu0
      %1095 = vdwg.mxu0
      %1096 = vmatprep.subr.bf16.mxu0 0
      %1097 = vmatpush1.bf16.msra.mxu0 0
      %1098 = vmatprep.subr.bf16.mxu0 0
      %1099 = vmatpush1.bf16.msra.mxu0 0
      %1100 = vmatprep.subr.bf16.mxu0 0
      %1101 = vmatpush1.bf16.msra.mxu0 0
      %1102 = vmatprep.subr.bf16.mxu0 0
      %1103 = vmatpush1.bf16.msra.mxu0 0
      %1104 = vmatprep.subr.bf16.mxu0 0
      %1105 = vmatpush1.bf16.msra.mxu0 0
      %1106 = vmatprep.subr.bf16.mxu0 0
      %1107 = vmatpush1.bf16.msra.mxu0 0
      %1108 = vmatprep.subr.bf16.mxu0 0
      %1109 = vmatpush1.bf16.msra.mxu0 0
      %1110 = vmatprep.subr.bf16.mxu0 0
      %1111 = vmatpush1.bf16.msra.mxu0 %v641
      %1112 = vmatprep.subr.bf16.mxu0 0
      %1113 = vmatpush2.bf16.msra.mxu0 0
      %1114 = vmatprep.subr.bf16.mxu0 0
      %1115 = vmatpush2.bf16.msra.mxu0 0
      %1116 = vmatprep.subr.bf16.mxu0 0
      %1117 = vmatpush2.bf16.msra.mxu0 0
      %1118 = vmatprep.subr.bf16.mxu0 0
      %1119 = vmatpush2.bf16.msra.mxu0 0
      %1120 = vmatprep.subr.bf16.mxu0 0
      %1121 = vmatpush2.bf16.msra.mxu0 0
      %1122 = vmatprep.subr.bf16.mxu0 0
      %1123 = vmatpush2.bf16.msra.mxu0 0
      %1124 = vmatprep.subr.bf16.mxu0 0
      %1125 = vmatpush2.bf16.msra.mxu0 0
      %1126 = vmatprep.subr.bf16.mxu0 0
      %1127 = vmatpush2.bf16.msra.mxu0 0
      %1128 = vmatprep.mubr.bf16.mxu0 0
      %1129 = vmatmul.mubr.bf16.gmra.mxu0 %v700
      %v1130 = vpop.f32.mrf.mxu0
      %v1131 = vadd.f32 %v1090, %v1130
      %v1132 = vpop.f32.mrf.mxu0
      %v1133 = vpop.f32.mrf.mxu0
      %v1134 = vadd.f32 %v1093, %v1133
      %v1135 = vpop.f32.mrf.mxu0
      %1136 = vdwg.mxu0
      %1137 = vmatprep.subr.bf16.mxu0 0
      %1138 = vmatpush1.bf16.msra.mxu0 0
      %1139 = vmatprep.subr.bf16.mxu0 0
      %1140 = vmatpush1.bf16.msra.mxu0 0
      %1141 = vmatprep.subr.bf16.mxu0 0
      %1142 = vmatpush1.bf16.msra.mxu0 0
      %1143 = vmatprep.subr.bf16.mxu0 0
      %1144 = vmatpush1.bf16.msra.mxu0 0
      %1145 = vmatprep.subr.bf16.mxu0 0
      %1146 = vmatpush1.bf16.msra.mxu0 0
      %1147 = vmatprep.subr.bf16.mxu0 0
      %1148 = vmatpush1.bf16.msra.mxu0 0
      %1149 = vmatprep.subr.bf16.mxu0 0
      %1150 = vmatpush1.bf16.msra.mxu0 0
      %1151 = vmatprep.subr.bf16.mxu0 0
      %1152 = vmatpush1.bf16.msra.mxu0 %v822
      %1153 = vmatprep.subr.bf16.mxu0 0
      %1154 = vmatpush2.bf16.msra.mxu0 0
      %1155 = vmatprep.subr.bf16.mxu0 0
      %1156 = vmatpush2.bf16.msra.mxu0 0
      %1157 = vmatprep.subr.bf16.mxu0 0
      %1158 = vmatpush2.bf16.msra.mxu0 0
      %1159 = vmatprep.subr.bf16.mxu0 0
      %1160 = vmatpush2.bf16.msra.mxu0 0
      %1161 = vmatprep.subr.bf16.mxu0 0
      %1162 = vmatpush2.bf16.msra.mxu0 0
      %1163 = vmatprep.subr.bf16.mxu0 0
      %1164 = vmatpush2.bf16.msra.mxu0 0
      %1165 = vmatprep.subr.bf16.mxu0 0
      %1166 = vmatpush2.bf16.msra.mxu0 0
      %1167 = vmatprep.subr.bf16.mxu0 0
      %1168 = vmatpush2.bf16.msra.mxu0 0
      %1169 = vmatprep.mubr.bf16.mxu0 0
      %1170 = vmatmul.mubr.bf16.gmra.mxu0 %v761
      %v1171 = vpop.f32.mrf.mxu0
      %v1172 = vadd.f32 0.0, %v1171
      %v1173 = vpop.f32.mrf.mxu0
      %v1174 = vpop.f32.mrf.mxu0
      %v1175 = vadd.f32 0.0, %v1174
      %v1176 = vpop.f32.mrf.mxu0
      %1177 = vdwg.mxu0
      %v1178 = vadd.f32 %v1131, %v1172
      %v1179 = vadd.f32 %v1134, %v1175
      %1180 = vmatprep.subr.bf16.mxu0 0
      %1181 = vmatpush1.bf16.msra.mxu0 0
      %1182 = vmatprep.subr.bf16.mxu0 0
      %1183 = vmatpush1.bf16.msra.mxu0 0
      %1184 = vmatprep.subr.bf16.mxu0 0
      %1185 = vmatpush1.bf16.msra.mxu0 0
      %1186 = vmatprep.subr.bf16.mxu0 0
      %1187 = vmatpush1.bf16.msra.mxu0 0
      %1188 = vmatprep.subr.bf16.mxu0 0
      %1189 = vmatpush1.bf16.msra.mxu0 0
      %1190 = vmatprep.subr.bf16.mxu0 0
      %1191 = vmatpush1.bf16.msra.mxu0 0
      %1192 = vmatprep.subr.bf16.mxu0 0
      %1193 = vmatpush1.bf16.msra.mxu0 0
      %1194 = vmatprep.subr.bf16.mxu0 0
      %1195 = vmatpush1.bf16.msra.mxu0 %v879
      %1196 = vmatprep.subr.bf16.mxu0 0
      %1197 = vmatpush2.bf16.msra.mxu0 0
      %1198 = vmatprep.subr.bf16.mxu0 0
      %1199 = vmatpush2.bf16.msra.mxu0 0
      %1200 = vmatprep.subr.bf16.mxu0 0
      %1201 = vmatpush2.bf16.msra.mxu0 0
      %1202 = vmatprep.subr.bf16.mxu0 0
      %1203 = vmatpush2.bf16.msra.mxu0 0
      %1204 = vmatprep.subr.bf16.mxu0 0
      %1205 = vmatpush2.bf16.msra.mxu0 0
      %1206 = vmatprep.subr.bf16.mxu0 0
      %1207 = vmatpush2.bf16.msra.mxu0 0
      %1208 = vmatprep.subr.bf16.mxu0 0
      %1209 = vmatpush2.bf16.msra.mxu0 0
      %1210 = vmatprep.subr.bf16.mxu0 0
      %1211 = vmatpush2.bf16.msra.mxu0 0
      %1212 = vmatprep.mubr.bf16.mxu0 0
      %1213 = vmatmul.mubr.bf16.gmra.mxu0 %v825
      %v1214 = vpop.f32.mrf.mxu0
      %v1215 = vadd.f32 0.0, %v1214
      %v1216 = vpop.f32.mrf.mxu0
      %v1217 = vpop.f32.mrf.mxu0
      %v1218 = vadd.f32 0.0, %v1217
      %v1219 = vpop.f32.mrf.mxu0
      %1220 = vdwg.mxu0
      %v1221 = vadd.f32 %v1178, %v1215
      %v1222 = vadd.f32 %v1179, %v1218
      %1223 = vmatprep.subr.bf16.mxu0 0
      %1224 = vmatpush1.bf16.msra.mxu0 0
      %1225 = vmatprep.subr.bf16.mxu0 0
      %1226 = vmatpush1.bf16.msra.mxu0 0
      %1227 = vmatprep.subr.bf16.mxu0 0
      %1228 = vmatpush1.bf16.msra.mxu0 0
      %1229 = vmatprep.subr.bf16.mxu0 0
      %1230 = vmatpush1.bf16.msra.mxu0 0
      %1231 = vmatprep.subr.bf16.mxu0 0
      %1232 = vmatpush1.bf16.msra.mxu0 0
      %1233 = vmatprep.subr.bf16.mxu0 0
      %1234 = vmatpush1.bf16.msra.mxu0 0
      %1235 = vmatprep.subr.bf16.mxu0 0
      %1236 = vmatpush1.bf16.msra.mxu0 0
      %1237 = vmatprep.subr.bf16.mxu0 0
      %1238 = vmatpush1.bf16.msra.mxu0 %v936
      %1239 = vmatprep.subr.bf16.mxu0 0
      %1240 = vmatpush2.bf16.msra.mxu0 0
      %1241 = vmatprep.subr.bf16.mxu0 0
      %1242 = vmatpush2.bf16.msra.mxu0 0
      %1243 = vmatprep.subr.bf16.mxu0 0
      %1244 = vmatpush2.bf16.msra.mxu0 0
      %1245 = vmatprep.subr.bf16.mxu0 0
      %1246 = vmatpush2.bf16.msra.mxu0 0
      %1247 = vmatprep.subr.bf16.mxu0 0
      %1248 = vmatpush2.bf16.msra.mxu0 0
      %1249 = vmatprep.subr.bf16.mxu0 0
      %1250 = vmatpush2.bf16.msra.mxu0 0
      %1251 = vmatprep.subr.bf16.mxu0 0
      %1252 = vmatpush2.bf16.msra.mxu0 0
      %1253 = vmatprep.subr.bf16.mxu0 0
      %1254 = vmatpush2.bf16.msra.mxu0 0
      %1255 = vmatprep.mubr.bf16.mxu0 0
      %1256 = vmatmul.mubr.bf16.gmra.mxu0 %v882
      %v1257 = vpop.f32.mrf.mxu0
      %v1258 = vadd.f32 0.0, %v1257
      %v1259 = vpop.f32.mrf.mxu0
      %v1260 = vpop.f32.mrf.mxu0
      %v1261 = vadd.f32 0.0, %v1260
      %v1262 = vpop.f32.mrf.mxu0
      %1263 = vdwg.mxu0
      %v1264 = vadd.f32 %v1221, %v1258
      %v1265 = vadd.f32 %v1222, %v1261
      %1266 = vmatprep.subr.bf16.mxu0 0
      %1267 = vmatpush1.bf16.msra.mxu0 0
      %1268 = vmatprep.subr.bf16.mxu0 0
      %1269 = vmatpush1.bf16.msra.mxu0 0
      %1270 = vmatprep.subr.bf16.mxu0 0
      %1271 = vmatpush1.bf16.msra.mxu0 0
      %1272 = vmatprep.subr.bf16.mxu0 0
      %1273 = vmatpush1.bf16.msra.mxu0 0
      %1274 = vmatprep.subr.bf16.mxu0 0
      %1275 = vmatpush1.bf16.msra.mxu0 0
      %1276 = vmatprep.subr.bf16.mxu0 0
      %1277 = vmatpush1.bf16.msra.mxu0 0
      %1278 = vmatprep.subr.bf16.mxu0 0
      %1279 = vmatpush1.bf16.msra.mxu0 0
      %1280 = vmatprep.subr.bf16.mxu0 0
      %1281 = vmatpush1.bf16.msra.mxu0 %v993
      %1282 = vmatprep.subr.bf16.mxu0 0
      %1283 = vmatpush2.bf16.msra.mxu0 0
      %1284 = vmatprep.subr.bf16.mxu0 0
      %1285 = vmatpush2.bf16.msra.mxu0 0
      %1286 = vmatprep.subr.bf16.mxu0 0
      %1287 = vmatpush2.bf16.msra.mxu0 0
      %1288 = vmatprep.subr.bf16.mxu0 0
      %1289 = vmatpush2.bf16.msra.mxu0 0
      %1290 = vmatprep.subr.bf16.mxu0 0
      %1291 = vmatpush2.bf16.msra.mxu0 0
      %1292 = vmatprep.subr.bf16.mxu0 0
      %1293 = vmatpush2.bf16.msra.mxu0 0
      %1294 = vmatprep.subr.bf16.mxu0 0
      %1295 = vmatpush2.bf16.msra.mxu0 0
      %1296 = vmatprep.subr.bf16.mxu0 0
      %1297 = vmatpush2.bf16.msra.mxu0 0
      %1298 = vmatprep.mubr.bf16.mxu0 0
      %1299 = vmatmul.mubr.bf16.gmra.mxu0 %v939
      %v1300 = vpop.f32.mrf.mxu0
      %v1301 = vadd.f32 0.0, %v1300
      %v1302 = vpop.f32.mrf.mxu0
      %v1303 = vpop.f32.mrf.mxu0
      %v1304 = vadd.f32 0.0, %v1303
      %v1305 = vpop.f32.mrf.mxu0
      %1306 = vdwg.mxu0
      %v1307 = vadd.f32 %v1264, %v1301
      %v1308 = vadd.f32 %v1265, %v1304
      %1309 = vrot.lane.b32.xlu0 %v820, 126
      %v1310 = vpop.permute.xlu0 %1309
      %1312 = vmatprep.subr.bf16.mxu0 0
      %1313 = vmatpush1.bf16.msra.mxu0 0
      %1314 = vmatprep.subr.bf16.mxu0 0
      %1315 = vmatpush1.bf16.msra.mxu0 0
      %1316 = vmatprep.subr.bf16.mxu0 0
      %1317 = vmatpush1.bf16.msra.mxu0 0
      %1318 = vmatprep.subr.bf16.mxu0 0
      %1319 = vmatpush1.bf16.msra.mxu0 0
      %1320 = vmatprep.subr.bf16.mxu0 0
      %1321 = vmatpush1.bf16.msra.mxu0 0
      %1322 = vmatprep.subr.bf16.mxu0 0
      %1323 = vmatpush1.bf16.msra.mxu0 0
      %1324 = vmatprep.subr.bf16.mxu0 0
      %1325 = vmatpush1.bf16.msra.mxu0 0
      %1326 = vmatprep.subr.bf16.mxu0 0
      %1327 = vmatpush1.bf16.msra.mxu0 %v1310
      %1328 = vmatprep.subr.bf16.mxu0 0
      %1329 = vmatpush2.bf16.msra.mxu0 0
      %1330 = vmatprep.subr.bf16.mxu0 0
      %1331 = vmatpush2.bf16.msra.mxu0 0
      %1332 = vmatprep.subr.bf16.mxu0 0
      %1333 = vmatpush2.bf16.msra.mxu0 0
      %1334 = vmatprep.subr.bf16.mxu0 0
      %1335 = vmatpush2.bf16.msra.mxu0 0
      %1336 = vmatprep.subr.bf16.mxu0 0
      %1337 = vmatpush2.bf16.msra.mxu0 0
      %1338 = vmatprep.subr.bf16.mxu0 0
      %1339 = vmatpush2.bf16.msra.mxu0 0
      %1340 = vmatprep.subr.bf16.mxu0 0
      %1341 = vmatpush2.bf16.msra.mxu0 0
      %1342 = vmatprep.subr.bf16.mxu0 0
      %1343 = vmatpush2.bf16.msra.mxu0 0
      %1344 = vmatprep.mubr.bf16.mxu0 0
      %1345 = vmatmul.mubr.bf16.gmra.mxu0 %v996
      %v1346 = vpop.f32.mrf.mxu0
      %v1347 = vadd.f32 0.0, %v1346
      %v1348 = vpop.f32.mrf.mxu0
      %v1349 = vpop.f32.mrf.mxu0
      %v1350 = vadd.f32 0.0, %v1349
      %v1351 = vpop.f32.mrf.mxu0
      %1352 = vdwg.mxu0
      %v1353 = vadd.f32 %v1307, %v1347
      %v1354 = vadd.f32 %v1308, %v1350
      %v1355 = vadd.f32 %v1353, %v1044
      %v1356 = vadd.f32 %v1354, %v1049
      %v1357 = vmax.f32 %v1355, 0.0
      %v1358 = vmax.f32 %v1356, 0.0
      %1359 = vmatprep.subr.bf16.mxu0 0
      %1360 = vmatpush1.bf16.msra.mxu0 0
      %1361 = vmatprep.subr.bf16.mxu0 0
      %1362 = vmatpush1.bf16.msra.mxu0 0
      %1363 = vmatprep.subr.bf16.mxu0 0
      %1364 = vmatpush1.bf16.msra.mxu0 0
      %1365 = vmatprep.subr.bf16.mxu0 0
      %1366 = vmatpush1.bf16.msra.mxu0 0
      %1367 = vmatprep.subr.bf16.mxu0 0
      %1368 = vmatpush1.bf16.msra.mxu0 0
      %1369 = vmatprep.subr.bf16.mxu0 0
      %1370 = vmatpush1.bf16.msra.mxu0 0
      %1371 = vmatprep.subr.bf16.mxu0 0
      %1372 = vmatpush1.bf16.msra.mxu0 0
      %1373 = vmatprep.subr.bf16.mxu0 0
      %1374 = vmatpush1.bf16.msra.mxu0 %v822
      %1375 = vmatprep.subr.bf16.mxu0 0
      %1376 = vmatpush2.bf16.msra.mxu0 0
      %1377 = vmatprep.subr.bf16.mxu0 0
      %1378 = vmatpush2.bf16.msra.mxu0 0
      %1379 = vmatprep.subr.bf16.mxu0 0
      %1380 = vmatpush2.bf16.msra.mxu0 0
      %1381 = vmatprep.subr.bf16.mxu0 0
      %1382 = vmatpush2.bf16.msra.mxu0 0
      %1383 = vmatprep.subr.bf16.mxu0 0
      %1384 = vmatpush2.bf16.msra.mxu0 0
      %1385 = vmatprep.subr.bf16.mxu0 0
      %1386 = vmatpush2.bf16.msra.mxu0 0
      %1387 = vmatprep.subr.bf16.mxu0 0
      %1388 = vmatpush2.bf16.msra.mxu0 0
      %1389 = vmatprep.subr.bf16.mxu0 0
      %1390 = vmatpush2.bf16.msra.mxu0 0
      %1391 = vmatprep.mubr.bf16.mxu0 0
      %1392 = vmatmul.mubr.bf16.gmra.mxu0 %v645
      %v1393 = vpop.f32.mrf.mxu0
      %v1394 = vadd.f32 0.0, %v1393
      %v1395 = vpop.f32.mrf.mxu0
      %v1396 = vpop.f32.mrf.mxu0
      %v1397 = vadd.f32 0.0, %v1396
      %v1398 = vpop.f32.mrf.mxu0
      %1399 = vdwg.mxu0
      %1400 = vmatprep.subr.bf16.mxu0 0
      %1401 = vmatpush1.bf16.msra.mxu0 0
      %1402 = vmatprep.subr.bf16.mxu0 0
      %1403 = vmatpush1.bf16.msra.mxu0 0
      %1404 = vmatprep.subr.bf16.mxu0 0
      %1405 = vmatpush1.bf16.msra.mxu0 0
      %1406 = vmatprep.subr.bf16.mxu0 0
      %1407 = vmatpush1.bf16.msra.mxu0 0
      %1408 = vmatprep.subr.bf16.mxu0 0
      %1409 = vmatpush1.bf16.msra.mxu0 0
      %1410 = vmatprep.subr.bf16.mxu0 0
      %1411 = vmatpush1.bf16.msra.mxu0 0
      %1412 = vmatprep.subr.bf16.mxu0 0
      %1413 = vmatpush1.bf16.msra.mxu0 0
      %1414 = vmatprep.subr.bf16.mxu0 0
      %1415 = vmatpush1.bf16.msra.mxu0 %v758
      %1416 = vmatprep.subr.bf16.mxu0 0
      %1417 = vmatpush2.bf16.msra.mxu0 0
      %1418 = vmatprep.subr.bf16.mxu0 0
      %1419 = vmatpush2.bf16.msra.mxu0 0
      %1420 = vmatprep.subr.bf16.mxu0 0
      %1421 = vmatpush2.bf16.msra.mxu0 0
      %1422 = vmatprep.subr.bf16.mxu0 0
      %1423 = vmatpush2.bf16.msra.mxu0 0
      %1424 = vmatprep.subr.bf16.mxu0 0
      %1425 = vmatpush2.bf16.msra.mxu0 0
      %1426 = vmatprep.subr.bf16.mxu0 0
      %1427 = vmatpush2.bf16.msra.mxu0 0
      %1428 = vmatprep.subr.bf16.mxu0 0
      %1429 = vmatpush2.bf16.msra.mxu0 0
      %1430 = vmatprep.subr.bf16.mxu0 0
      %1431 = vmatpush2.bf16.msra.mxu0 0
      %1432 = vmatprep.mubr.bf16.mxu0 0
      %1433 = vmatmul.mubr.bf16.gmra.mxu0 %v700
      %v1434 = vpop.f32.mrf.mxu0
      %v1435 = vadd.f32 %v1394, %v1434
      %v1436 = vpop.f32.mrf.mxu0
      %v1437 = vpop.f32.mrf.mxu0
      %v1438 = vadd.f32 %v1397, %v1437
      %v1439 = vpop.f32.mrf.mxu0
      %1440 = vdwg.mxu0
      %1441 = vmatprep.subr.bf16.mxu0 0
      %1442 = vmatpush1.bf16.msra.mxu0 0
      %1443 = vmatprep.subr.bf16.mxu0 0
      %1444 = vmatpush1.bf16.msra.mxu0 0
      %1445 = vmatprep.subr.bf16.mxu0 0
      %1446 = vmatpush1.bf16.msra.mxu0 0
      %1447 = vmatprep.subr.bf16.mxu0 0
      %1448 = vmatpush1.bf16.msra.mxu0 0
      %1449 = vmatprep.subr.bf16.mxu0 0
      %1450 = vmatpush1.bf16.msra.mxu0 0
      %1451 = vmatprep.subr.bf16.mxu0 0
      %1452 = vmatpush1.bf16.msra.mxu0 0
      %1453 = vmatprep.subr.bf16.mxu0 0
      %1454 = vmatpush1.bf16.msra.mxu0 0
      %1455 = vmatprep.subr.bf16.mxu0 0
      %1456 = vmatpush1.bf16.msra.mxu0 %v879
      %1457 = vmatprep.subr.bf16.mxu0 0
      %1458 = vmatpush2.bf16.msra.mxu0 0
      %1459 = vmatprep.subr.bf16.mxu0 0
      %1460 = vmatpush2.bf16.msra.mxu0 0
      %1461 = vmatprep.subr.bf16.mxu0 0
      %1462 = vmatpush2.bf16.msra.mxu0 0
      %1463 = vmatprep.subr.bf16.mxu0 0
      %1464 = vmatpush2.bf16.msra.mxu0 0
      %1465 = vmatprep.subr.bf16.mxu0 0
      %1466 = vmatpush2.bf16.msra.mxu0 0
      %1467 = vmatprep.subr.bf16.mxu0 0
      %1468 = vmatpush2.bf16.msra.mxu0 0
      %1469 = vmatprep.subr.bf16.mxu0 0
      %1470 = vmatpush2.bf16.msra.mxu0 0
      %1471 = vmatprep.subr.bf16.mxu0 0
      %1472 = vmatpush2.bf16.msra.mxu0 0
      %1473 = vmatprep.mubr.bf16.mxu0 0
      %1474 = vmatmul.mubr.bf16.gmra.mxu0 %v761
      %v1475 = vpop.f32.mrf.mxu0
      %v1476 = vadd.f32 0.0, %v1475
      %v1477 = vpop.f32.mrf.mxu0
      %v1478 = vpop.f32.mrf.mxu0
      %v1479 = vadd.f32 0.0, %v1478
      %v1480 = vpop.f32.mrf.mxu0
      %1481 = vdwg.mxu0
      %v1482 = vadd.f32 %v1435, %v1476
      %v1483 = vadd.f32 %v1438, %v1479
      %1484 = vmatprep.subr.bf16.mxu0 0
      %1485 = vmatpush1.bf16.msra.mxu0 0
      %1486 = vmatprep.subr.bf16.mxu0 0
      %1487 = vmatpush1.bf16.msra.mxu0 0
      %1488 = vmatprep.subr.bf16.mxu0 0
      %1489 = vmatpush1.bf16.msra.mxu0 0
      %1490 = vmatprep.subr.bf16.mxu0 0
      %1491 = vmatpush1.bf16.msra.mxu0 0
      %1492 = vmatprep.subr.bf16.mxu0 0
      %1493 = vmatpush1.bf16.msra.mxu0 0
      %1494 = vmatprep.subr.bf16.mxu0 0
      %1495 = vmatpush1.bf16.msra.mxu0 0
      %1496 = vmatprep.subr.bf16.mxu0 0
      %1497 = vmatpush1.bf16.msra.mxu0 0
      %1498 = vmatprep.subr.bf16.mxu0 0
      %1499 = vmatpush1.bf16.msra.mxu0 %v936
      %1500 = vmatprep.subr.bf16.mxu0 0
      %1501 = vmatpush2.bf16.msra.mxu0 0
      %1502 = vmatprep.subr.bf16.mxu0 0
      %1503 = vmatpush2.bf16.msra.mxu0 0
      %1504 = vmatprep.subr.bf16.mxu0 0
      %1505 = vmatpush2.bf16.msra.mxu0 0
      %1506 = vmatprep.subr.bf16.mxu0 0
      %1507 = vmatpush2.bf16.msra.mxu0 0
      %1508 = vmatprep.subr.bf16.mxu0 0
      %1509 = vmatpush2.bf16.msra.mxu0 0
      %1510 = vmatprep.subr.bf16.mxu0 0
      %1511 = vmatpush2.bf16.msra.mxu0 0
      %1512 = vmatprep.subr.bf16.mxu0 0
      %1513 = vmatpush2.bf16.msra.mxu0 0
      %1514 = vmatprep.subr.bf16.mxu0 0
      %1515 = vmatpush2.bf16.msra.mxu0 0
      %1516 = vmatprep.mubr.bf16.mxu0 0
      %1517 = vmatmul.mubr.bf16.gmra.mxu0 %v825
      %v1518 = vpop.f32.mrf.mxu0
      %v1519 = vadd.f32 0.0, %v1518
      %v1520 = vpop.f32.mrf.mxu0
      %v1521 = vpop.f32.mrf.mxu0
      %v1522 = vadd.f32 0.0, %v1521
      %v1523 = vpop.f32.mrf.mxu0
      %1524 = vdwg.mxu0
      %v1525 = vadd.f32 %v1482, %v1519
      %v1526 = vadd.f32 %v1483, %v1522
      %1527 = vmatprep.subr.bf16.mxu0 0
      %1528 = vmatpush1.bf16.msra.mxu0 0
      %1529 = vmatprep.subr.bf16.mxu0 0
      %1530 = vmatpush1.bf16.msra.mxu0 0
      %1531 = vmatprep.subr.bf16.mxu0 0
      %1532 = vmatpush1.bf16.msra.mxu0 0
      %1533 = vmatprep.subr.bf16.mxu0 0
      %1534 = vmatpush1.bf16.msra.mxu0 0
      %1535 = vmatprep.subr.bf16.mxu0 0
      %1536 = vmatpush1.bf16.msra.mxu0 0
      %1537 = vmatprep.subr.bf16.mxu0 0
      %1538 = vmatpush1.bf16.msra.mxu0 0
      %1539 = vmatprep.subr.bf16.mxu0 0
      %1540 = vmatpush1.bf16.msra.mxu0 0
      %1541 = vmatprep.subr.bf16.mxu0 0
      %1542 = vmatpush1.bf16.msra.mxu0 %v993
      %1543 = vmatprep.subr.bf16.mxu0 0
      %1544 = vmatpush2.bf16.msra.mxu0 0
      %1545 = vmatprep.subr.bf16.mxu0 0
      %1546 = vmatpush2.bf16.msra.mxu0 0
      %1547 = vmatprep.subr.bf16.mxu0 0
      %1548 = vmatpush2.bf16.msra.mxu0 0
      %1549 = vmatprep.subr.bf16.mxu0 0
      %1550 = vmatpush2.bf16.msra.mxu0 0
      %1551 = vmatprep.subr.bf16.mxu0 0
      %1552 = vmatpush2.bf16.msra.mxu0 0
      %1553 = vmatprep.subr.bf16.mxu0 0
      %1554 = vmatpush2.bf16.msra.mxu0 0
      %1555 = vmatprep.subr.bf16.mxu0 0
      %1556 = vmatpush2.bf16.msra.mxu0 0
      %1557 = vmatprep.subr.bf16.mxu0 0
      %1558 = vmatpush2.bf16.msra.mxu0 0
      %1559 = vmatprep.mubr.bf16.mxu0 0
      %1560 = vmatmul.mubr.bf16.gmra.mxu0 %v882
      %v1561 = vpop.f32.mrf.mxu0
      %v1562 = vadd.f32 0.0, %v1561
      %v1563 = vpop.f32.mrf.mxu0
      %v1564 = vpop.f32.mrf.mxu0
      %v1565 = vadd.f32 0.0, %v1564
      %v1566 = vpop.f32.mrf.mxu0
      %1567 = vdwg.mxu0
      %v1568 = vadd.f32 %v1525, %v1562
      %v1569 = vadd.f32 %v1526, %v1565
      %1570 = vmatprep.subr.bf16.mxu0 0
      %1571 = vmatpush1.bf16.msra.mxu0 0
      %1572 = vmatprep.subr.bf16.mxu0 0
      %1573 = vmatpush1.bf16.msra.mxu0 0
      %1574 = vmatprep.subr.bf16.mxu0 0
      %1575 = vmatpush1.bf16.msra.mxu0 0
      %1576 = vmatprep.subr.bf16.mxu0 0
      %1577 = vmatpush1.bf16.msra.mxu0 0
      %1578 = vmatprep.subr.bf16.mxu0 0
      %1579 = vmatpush1.bf16.msra.mxu0 0
      %1580 = vmatprep.subr.bf16.mxu0 0
      %1581 = vmatpush1.bf16.msra.mxu0 0
      %1582 = vmatprep.subr.bf16.mxu0 0
      %1583 = vmatpush1.bf16.msra.mxu0 0
      %1584 = vmatprep.subr.bf16.mxu0 0
      %1585 = vmatpush1.bf16.msra.mxu0 %v1310
      %1586 = vmatprep.subr.bf16.mxu0 0
      %1587 = vmatpush2.bf16.msra.mxu0 0
      %1588 = vmatprep.subr.bf16.mxu0 0
      %1589 = vmatpush2.bf16.msra.mxu0 0
      %1590 = vmatprep.subr.bf16.mxu0 0
      %1591 = vmatpush2.bf16.msra.mxu0 0
      %1592 = vmatprep.subr.bf16.mxu0 0
      %1593 = vmatpush2.bf16.msra.mxu0 0
      %1594 = vmatprep.subr.bf16.mxu0 0
      %1595 = vmatpush2.bf16.msra.mxu0 0
      %1596 = vmatprep.subr.bf16.mxu0 0
      %1597 = vmatpush2.bf16.msra.mxu0 0
      %1598 = vmatprep.subr.bf16.mxu0 0
      %1599 = vmatpush2.bf16.msra.mxu0 0
      %1600 = vmatprep.subr.bf16.mxu0 0
      %1601 = vmatpush2.bf16.msra.mxu0 0
      %1602 = vmatprep.mubr.bf16.mxu0 0
      %1603 = vmatmul.mubr.bf16.gmra.mxu0 %v939
      %v1604 = vpop.f32.mrf.mxu0
      %v1605 = vadd.f32 0.0, %v1604
      %v1606 = vpop.f32.mrf.mxu0
      %v1607 = vpop.f32.mrf.mxu0
      %v1608 = vadd.f32 0.0, %v1607
      %v1609 = vpop.f32.mrf.mxu0
      %1610 = vdwg.mxu0
      %v1611 = vadd.f32 %v1568, %v1605
      %v1612 = vadd.f32 %v1569, %v1608
      %1613 = vrot.lane.b32.xlu0 %v697, 126
      %v1614 = vpop.permute.xlu0 %1613
      %1616 = vmatprep.subr.bf16.mxu0 0
      %1617 = vmatpush1.bf16.msra.mxu0 0
      %1618 = vmatprep.subr.bf16.mxu0 0
      %1619 = vmatpush1.bf16.msra.mxu0 0
      %1620 = vmatprep.subr.bf16.mxu0 0
      %1621 = vmatpush1.bf16.msra.mxu0 0
      %1622 = vmatprep.subr.bf16.mxu0 0
      %1623 = vmatpush1.bf16.msra.mxu0 0
      %1624 = vmatprep.subr.bf16.mxu0 0
      %1625 = vmatpush1.bf16.msra.mxu0 0
      %1626 = vmatprep.subr.bf16.mxu0 0
      %1627 = vmatpush1.bf16.msra.mxu0 0
      %1628 = vmatprep.subr.bf16.mxu0 0
      %1629 = vmatpush1.bf16.msra.mxu0 0
      %1630 = vmatprep.subr.bf16.mxu0 0
      %1631 = vmatpush1.bf16.msra.mxu0 %v1614
      %1632 = vmatprep.subr.bf16.mxu0 0
      %1633 = vmatpush2.bf16.msra.mxu0 0
      %1634 = vmatprep.subr.bf16.mxu0 0
      %1635 = vmatpush2.bf16.msra.mxu0 0
      %1636 = vmatprep.subr.bf16.mxu0 0
      %1637 = vmatpush2.bf16.msra.mxu0 0
      %1638 = vmatprep.subr.bf16.mxu0 0
      %1639 = vmatpush2.bf16.msra.mxu0 0
      %1640 = vmatprep.subr.bf16.mxu0 0
      %1641 = vmatpush2.bf16.msra.mxu0 0
      %1642 = vmatprep.subr.bf16.mxu0 0
      %1643 = vmatpush2.bf16.msra.mxu0 0
      %1644 = vmatprep.subr.bf16.mxu0 0
      %1645 = vmatpush2.bf16.msra.mxu0 0
      %1646 = vmatprep.subr.bf16.mxu0 0
      %1647 = vmatpush2.bf16.msra.mxu0 0
      %1648 = vmatprep.mubr.bf16.mxu0 0
      %1649 = vmatmul.mubr.bf16.gmra.mxu0 %v996
      %v1650 = vpop.f32.mrf.mxu0
      %v1651 = vadd.f32 0.0, %v1650
      %v1652 = vpop.f32.mrf.mxu0
      %v1653 = vpop.f32.mrf.mxu0
      %v1654 = vadd.f32 0.0, %v1653
      %v1655 = vpop.f32.mrf.mxu0
      %1656 = vdwg.mxu0
      %v1657 = vadd.f32 %v1611, %v1651
      %v1658 = vadd.f32 %v1612, %v1654
      %v1659 = vadd.f32 %v1657, %v1044
      %v1660 = vadd.f32 %v1658, %v1049
      %v1661 = vmax.f32 %v1659, 0.0
      %v1662 = vmax.f32 %v1660, 0.0
      %1663 = vmatprep.subr.bf16.mxu0 0
      %1664 = vmatpush1.bf16.msra.mxu0 0
      %1665 = vmatprep.subr.bf16.mxu0 0
      %1666 = vmatpush1.bf16.msra.mxu0 0
      %1667 = vmatprep.subr.bf16.mxu0 0
      %1668 = vmatpush1.bf16.msra.mxu0 0
      %1669 = vmatprep.subr.bf16.mxu0 0
      %1670 = vmatpush1.bf16.msra.mxu0 0
      %1671 = vmatprep.subr.bf16.mxu0 0
      %1672 = vmatpush1.bf16.msra.mxu0 0
      %1673 = vmatprep.subr.bf16.mxu0 0
      %1674 = vmatpush1.bf16.msra.mxu0 0
      %1675 = vmatprep.subr.bf16.mxu0 0
      %1676 = vmatpush1.bf16.msra.mxu0 0
      %1677 = vmatprep.subr.bf16.mxu0 0
      %1678 = vmatpush1.bf16.msra.mxu0 %v879
      %1679 = vmatprep.subr.bf16.mxu0 0
      %1680 = vmatpush2.bf16.msra.mxu0 0
      %1681 = vmatprep.subr.bf16.mxu0 0
      %1682 = vmatpush2.bf16.msra.mxu0 0
      %1683 = vmatprep.subr.bf16.mxu0 0
      %1684 = vmatpush2.bf16.msra.mxu0 0
      %1685 = vmatprep.subr.bf16.mxu0 0
      %1686 = vmatpush2.bf16.msra.mxu0 0
      %1687 = vmatprep.subr.bf16.mxu0 0
      %1688 = vmatpush2.bf16.msra.mxu0 0
      %1689 = vmatprep.subr.bf16.mxu0 0
      %1690 = vmatpush2.bf16.msra.mxu0 0
      %1691 = vmatprep.subr.bf16.mxu0 0
      %1692 = vmatpush2.bf16.msra.mxu0 0
      %1693 = vmatprep.subr.bf16.mxu0 0
      %1694 = vmatpush2.bf16.msra.mxu0 0
      %1695 = vmatprep.mubr.bf16.mxu0 0
      %1696 = vmatmul.mubr.bf16.gmra.mxu0 %v645
      %v1697 = vpop.f32.mrf.mxu0
      %v1698 = vadd.f32 0.0, %v1697
      %v1699 = vpop.f32.mrf.mxu0
      %v1700 = vpop.f32.mrf.mxu0
      %v1701 = vadd.f32 0.0, %v1700
      %v1702 = vpop.f32.mrf.mxu0
      %1703 = vdwg.mxu0
      %1704 = vmatprep.subr.bf16.mxu0 0
      %1705 = vmatpush1.bf16.msra.mxu0 0
      %1706 = vmatprep.subr.bf16.mxu0 0
      %1707 = vmatpush1.bf16.msra.mxu0 0
      %1708 = vmatprep.subr.bf16.mxu0 0
      %1709 = vmatpush1.bf16.msra.mxu0 0
      %1710 = vmatprep.subr.bf16.mxu0 0
      %1711 = vmatpush1.bf16.msra.mxu0 0
      %1712 = vmatprep.subr.bf16.mxu0 0
      %1713 = vmatpush1.bf16.msra.mxu0 0
      %1714 = vmatprep.subr.bf16.mxu0 0
      %1715 = vmatpush1.bf16.msra.mxu0 0
      %1716 = vmatprep.subr.bf16.mxu0 0
      %1717 = vmatpush1.bf16.msra.mxu0 0
      %1718 = vmatprep.subr.bf16.mxu0 0
      %1719 = vmatpush1.bf16.msra.mxu0 %v822
      %1720 = vmatprep.subr.bf16.mxu0 0
      %1721 = vmatpush2.bf16.msra.mxu0 0
      %1722 = vmatprep.subr.bf16.mxu0 0
      %1723 = vmatpush2.bf16.msra.mxu0 0
      %1724 = vmatprep.subr.bf16.mxu0 0
      %1725 = vmatpush2.bf16.msra.mxu0 0
      %1726 = vmatprep.subr.bf16.mxu0 0
      %1727 = vmatpush2.bf16.msra.mxu0 0
      %1728 = vmatprep.subr.bf16.mxu0 0
      %1729 = vmatpush2.bf16.msra.mxu0 0
      %1730 = vmatprep.subr.bf16.mxu0 0
      %1731 = vmatpush2.bf16.msra.mxu0 0
      %1732 = vmatprep.subr.bf16.mxu0 0
      %1733 = vmatpush2.bf16.msra.mxu0 0
      %1734 = vmatprep.subr.bf16.mxu0 0
      %1735 = vmatpush2.bf16.msra.mxu0 0
      %1736 = vmatprep.mubr.bf16.mxu0 0
      %1737 = vmatmul.mubr.bf16.gmra.mxu0 %v700
      %v1738 = vpop.f32.mrf.mxu0
      %v1739 = vadd.f32 %v1698, %v1738
      %v1740 = vpop.f32.mrf.mxu0
      %v1741 = vpop.f32.mrf.mxu0
      %v1742 = vadd.f32 %v1701, %v1741
      %v1743 = vpop.f32.mrf.mxu0
      %1744 = vdwg.mxu0
      %1745 = vmatprep.subr.bf16.mxu0 0
      %1746 = vmatpush1.bf16.msra.mxu0 0
      %1747 = vmatprep.subr.bf16.mxu0 0
      %1748 = vmatpush1.bf16.msra.mxu0 0
      %1749 = vmatprep.subr.bf16.mxu0 0
      %1750 = vmatpush1.bf16.msra.mxu0 0
      %1751 = vmatprep.subr.bf16.mxu0 0
      %1752 = vmatpush1.bf16.msra.mxu0 0
      %1753 = vmatprep.subr.bf16.mxu0 0
      %1754 = vmatpush1.bf16.msra.mxu0 0
      %1755 = vmatprep.subr.bf16.mxu0 0
      %1756 = vmatpush1.bf16.msra.mxu0 0
      %1757 = vmatprep.subr.bf16.mxu0 0
      %1758 = vmatpush1.bf16.msra.mxu0 0
      %1759 = vmatprep.subr.bf16.mxu0 0
      %1760 = vmatpush1.bf16.msra.mxu0 %v936
      %1761 = vmatprep.subr.bf16.mxu0 0
      %1762 = vmatpush2.bf16.msra.mxu0 0
      %1763 = vmatprep.subr.bf16.mxu0 0
      %1764 = vmatpush2.bf16.msra.mxu0 0
      %1765 = vmatprep.subr.bf16.mxu0 0
      %1766 = vmatpush2.bf16.msra.mxu0 0
      %1767 = vmatprep.subr.bf16.mxu0 0
      %1768 = vmatpush2.bf16.msra.mxu0 0
      %1769 = vmatprep.subr.bf16.mxu0 0
      %1770 = vmatpush2.bf16.msra.mxu0 0
      %1771 = vmatprep.subr.bf16.mxu0 0
      %1772 = vmatpush2.bf16.msra.mxu0 0
      %1773 = vmatprep.subr.bf16.mxu0 0
      %1774 = vmatpush2.bf16.msra.mxu0 0
      %1775 = vmatprep.subr.bf16.mxu0 0
      %1776 = vmatpush2.bf16.msra.mxu0 0
      %1777 = vmatprep.mubr.bf16.mxu0 0
      %1778 = vmatmul.mubr.bf16.gmra.mxu0 %v761
      %v1779 = vpop.f32.mrf.mxu0
      %v1780 = vadd.f32 0.0, %v1779
      %v1781 = vpop.f32.mrf.mxu0
      %v1782 = vpop.f32.mrf.mxu0
      %v1783 = vadd.f32 0.0, %v1782
      %v1784 = vpop.f32.mrf.mxu0
      %1785 = vdwg.mxu0
      %v1786 = vadd.f32 %v1739, %v1780
      %v1787 = vadd.f32 %v1742, %v1783
      %1788 = vmatprep.subr.bf16.mxu0 0
      %1789 = vmatpush1.bf16.msra.mxu0 0
      %1790 = vmatprep.subr.bf16.mxu0 0
      %1791 = vmatpush1.bf16.msra.mxu0 0
      %1792 = vmatprep.subr.bf16.mxu0 0
      %1793 = vmatpush1.bf16.msra.mxu0 0
      %1794 = vmatprep.subr.bf16.mxu0 0
      %1795 = vmatpush1.bf16.msra.mxu0 0
      %1796 = vmatprep.subr.bf16.mxu0 0
      %1797 = vmatpush1.bf16.msra.mxu0 0
      %1798 = vmatprep.subr.bf16.mxu0 0
      %1799 = vmatpush1.bf16.msra.mxu0 0
      %1800 = vmatprep.subr.bf16.mxu0 0
      %1801 = vmatpush1.bf16.msra.mxu0 0
      %1802 = vmatprep.subr.bf16.mxu0 0
      %1803 = vmatpush1.bf16.msra.mxu0 %v993
      %1804 = vmatprep.subr.bf16.mxu0 0
      %1805 = vmatpush2.bf16.msra.mxu0 0
      %1806 = vmatprep.subr.bf16.mxu0 0
      %1807 = vmatpush2.bf16.msra.mxu0 0
      %1808 = vmatprep.subr.bf16.mxu0 0
      %1809 = vmatpush2.bf16.msra.mxu0 0
      %1810 = vmatprep.subr.bf16.mxu0 0
      %1811 = vmatpush2.bf16.msra.mxu0 0
      %1812 = vmatprep.subr.bf16.mxu0 0
      %1813 = vmatpush2.bf16.msra.mxu0 0
      %1814 = vmatprep.subr.bf16.mxu0 0
      %1815 = vmatpush2.bf16.msra.mxu0 0
      %1816 = vmatprep.subr.bf16.mxu0 0
      %1817 = vmatpush2.bf16.msra.mxu0 0
      %1818 = vmatprep.subr.bf16.mxu0 0
      %1819 = vmatpush2.bf16.msra.mxu0 0
      %1820 = vmatprep.mubr.bf16.mxu0 0
      %1821 = vmatmul.mubr.bf16.gmra.mxu0 %v825
      %v1822 = vpop.f32.mrf.mxu0
      %v1823 = vadd.f32 0.0, %v1822
      %v1824 = vpop.f32.mrf.mxu0
      %v1825 = vpop.f32.mrf.mxu0
      %v1826 = vadd.f32 0.0, %v1825
      %v1827 = vpop.f32.mrf.mxu0
      %1828 = vdwg.mxu0
      %v1829 = vadd.f32 %v1786, %v1823
      %v1830 = vadd.f32 %v1787, %v1826
      %1831 = vmatprep.subr.bf16.mxu0 0
      %1832 = vmatpush1.bf16.msra.mxu0 0
      %1833 = vmatprep.subr.bf16.mxu0 0
      %1834 = vmatpush1.bf16.msra.mxu0 0
      %1835 = vmatprep.subr.bf16.mxu0 0
      %1836 = vmatpush1.bf16.msra.mxu0 0
      %1837 = vmatprep.subr.bf16.mxu0 0
      %1838 = vmatpush1.bf16.msra.mxu0 0
      %1839 = vmatprep.subr.bf16.mxu0 0
      %1840 = vmatpush1.bf16.msra.mxu0 0
      %1841 = vmatprep.subr.bf16.mxu0 0
      %1842 = vmatpush1.bf16.msra.mxu0 0
      %1843 = vmatprep.subr.bf16.mxu0 0
      %1844 = vmatpush1.bf16.msra.mxu0 0
      %1845 = vmatprep.subr.bf16.mxu0 0
      %1846 = vmatpush1.bf16.msra.mxu0 %v1310
      %1847 = vmatprep.subr.bf16.mxu0 0
      %1848 = vmatpush2.bf16.msra.mxu0 0
      %1849 = vmatprep.subr.bf16.mxu0 0
      %1850 = vmatpush2.bf16.msra.mxu0 0
      %1851 = vmatprep.subr.bf16.mxu0 0
      %1852 = vmatpush2.bf16.msra.mxu0 0
      %1853 = vmatprep.subr.bf16.mxu0 0
      %1854 = vmatpush2.bf16.msra.mxu0 0
      %1855 = vmatprep.subr.bf16.mxu0 0
      %1856 = vmatpush2.bf16.msra.mxu0 0
      %1857 = vmatprep.subr.bf16.mxu0 0
      %1858 = vmatpush2.bf16.msra.mxu0 0
      %1859 = vmatprep.subr.bf16.mxu0 0
      %1860 = vmatpush2.bf16.msra.mxu0 0
      %1861 = vmatprep.subr.bf16.mxu0 0
      %1862 = vmatpush2.bf16.msra.mxu0 0
      %1863 = vmatprep.mubr.bf16.mxu0 0
      %1864 = vmatmul.mubr.bf16.gmra.mxu0 %v882
      %v1865 = vpop.f32.mrf.mxu0
      %v1866 = vadd.f32 0.0, %v1865
      %v1867 = vpop.f32.mrf.mxu0
      %v1868 = vpop.f32.mrf.mxu0
      %v1869 = vadd.f32 0.0, %v1868
      %v1870 = vpop.f32.mrf.mxu0
      %1871 = vdwg.mxu0
      %v1872 = vadd.f32 %v1829, %v1866
      %v1873 = vadd.f32 %v1830, %v1869
      %1874 = vmatprep.subr.bf16.mxu0 0
      %1875 = vmatpush1.bf16.msra.mxu0 0
      %1876 = vmatprep.subr.bf16.mxu0 0
      %1877 = vmatpush1.bf16.msra.mxu0 0
      %1878 = vmatprep.subr.bf16.mxu0 0
      %1879 = vmatpush1.bf16.msra.mxu0 0
      %1880 = vmatprep.subr.bf16.mxu0 0
      %1881 = vmatpush1.bf16.msra.mxu0 0
      %1882 = vmatprep.subr.bf16.mxu0 0
      %1883 = vmatpush1.bf16.msra.mxu0 0
      %1884 = vmatprep.subr.bf16.mxu0 0
      %1885 = vmatpush1.bf16.msra.mxu0 0
      %1886 = vmatprep.subr.bf16.mxu0 0
      %1887 = vmatpush1.bf16.msra.mxu0 0
      %1888 = vmatprep.subr.bf16.mxu0 0
      %1889 = vmatpush1.bf16.msra.mxu0 %v1614
      %1890 = vmatprep.subr.bf16.mxu0 0
      %1891 = vmatpush2.bf16.msra.mxu0 0
      %1892 = vmatprep.subr.bf16.mxu0 0
      %1893 = vmatpush2.bf16.msra.mxu0 0
      %1894 = vmatprep.subr.bf16.mxu0 0
      %1895 = vmatpush2.bf16.msra.mxu0 0
      %1896 = vmatprep.subr.bf16.mxu0 0
      %1897 = vmatpush2.bf16.msra.mxu0 0
      %1898 = vmatprep.subr.bf16.mxu0 0
      %1899 = vmatpush2.bf16.msra.mxu0 0
      %1900 = vmatprep.subr.bf16.mxu0 0
      %1901 = vmatpush2.bf16.msra.mxu0 0
      %1902 = vmatprep.subr.bf16.mxu0 0
      %1903 = vmatpush2.bf16.msra.mxu0 0
      %1904 = vmatprep.subr.bf16.mxu0 0
      %1905 = vmatpush2.bf16.msra.mxu0 0
      %1906 = vmatprep.mubr.bf16.mxu0 0
      %1907 = vmatmul.mubr.bf16.gmra.mxu0 %v939
      %v1908 = vpop.f32.mrf.mxu0
      %v1909 = vadd.f32 0.0, %v1908
      %v1910 = vpop.f32.mrf.mxu0
      %v1911 = vpop.f32.mrf.mxu0
      %v1912 = vadd.f32 0.0, %v1911
      %v1913 = vpop.f32.mrf.mxu0
      %1914 = vdwg.mxu0
      %v1915 = vadd.f32 %v1872, %v1909
      %v1916 = vadd.f32 %v1873, %v1912
      %1917 = vrot.lane.b32.xlu0 %v641, 126
      %v1918 = vpop.permute.xlu0 %1917
      %1920 = vmatprep.subr.bf16.mxu0 0
      %1921 = vmatpush1.bf16.msra.mxu0 0
      %1922 = vmatprep.subr.bf16.mxu0 0
      %1923 = vmatpush1.bf16.msra.mxu0 0
      %1924 = vmatprep.subr.bf16.mxu0 0
      %1925 = vmatpush1.bf16.msra.mxu0 0
      %1926 = vmatprep.subr.bf16.mxu0 0
      %1927 = vmatpush1.bf16.msra.mxu0 0
      %1928 = vmatprep.subr.bf16.mxu0 0
      %1929 = vmatpush1.bf16.msra.mxu0 0
      %1930 = vmatprep.subr.bf16.mxu0 0
      %1931 = vmatpush1.bf16.msra.mxu0 0
      %1932 = vmatprep.subr.bf16.mxu0 0
      %1933 = vmatpush1.bf16.msra.mxu0 0
      %1934 = vmatprep.subr.bf16.mxu0 0
      %1935 = vmatpush1.bf16.msra.mxu0 %v1918
      %1936 = vmatprep.subr.bf16.mxu0 0
      %1937 = vmatpush2.bf16.msra.mxu0 0
      %1938 = vmatprep.subr.bf16.mxu0 0
      %1939 = vmatpush2.bf16.msra.mxu0 0
      %1940 = vmatprep.subr.bf16.mxu0 0
      %1941 = vmatpush2.bf16.msra.mxu0 0
      %1942 = vmatprep.subr.bf16.mxu0 0
      %1943 = vmatpush2.bf16.msra.mxu0 0
      %1944 = vmatprep.subr.bf16.mxu0 0
      %1945 = vmatpush2.bf16.msra.mxu0 0
      %1946 = vmatprep.subr.bf16.mxu0 0
      %1947 = vmatpush2.bf16.msra.mxu0 0
      %1948 = vmatprep.subr.bf16.mxu0 0
      %1949 = vmatpush2.bf16.msra.mxu0 0
      %1950 = vmatprep.subr.bf16.mxu0 0
      %1951 = vmatpush2.bf16.msra.mxu0 0
      %1952 = vmatprep.mubr.bf16.mxu0 0
      %1953 = vmatmul.mubr.bf16.gmra.mxu0 %v996
      %v1954 = vpop.f32.mrf.mxu0
      %v1955 = vadd.f32 0.0, %v1954
      %v1956 = vpop.f32.mrf.mxu0
      %v1957 = vpop.f32.mrf.mxu0
      %v1958 = vadd.f32 0.0, %v1957
      %v1959 = vpop.f32.mrf.mxu0
      %1960 = vdwg.mxu0
      %v1961 = vadd.f32 %v1915, %v1955
      %v1962 = vadd.f32 %v1916, %v1958
      %v1963 = vadd.f32 %v1961, %v1044
      %v1964 = vadd.f32 %v1962, %v1049
      %v1965 = vmax.f32 %v1963, 0.0
      %v1966 = vmax.f32 %v1964, 0.0
      %v1967 = vpack.c.bf16 %v1054, %v1053
      %v1969 = vunpack.c.l.b16 %v1967
      %v1970 = vunpack.c.h.b16 %v1967
      %v1971 = vpack.c.b16 %v1969, %v1969
      %v1972 = vpack.c.b16 %v1970, %v1970
      %1973 = vrot.lane.b32.xlu0 %v1971, 1
      %v1974 = vpop.permute.xlu0 %1973
      %1975 = vrot.lane.b32.xlu0 %v1972, 1
      %v1976 = vpop.permute.xlu0 %1975
      %vm1979 = vcmask 68616
      %1980 = vst.msk [vmem:[#allocation2] sm:$0xf] %vm1979, %v1974
      %1981 = vst.msk [vmem:[#allocation2 + $0x4] sm:$0xf] %vm1979, %v1976
      %v1982 = vpack.c.bf16 %v1358, %v1357
      %v1984 = vunpack.c.l.b16 %v1982
      %v1985 = vunpack.c.h.b16 %v1982
      %v1986 = vpack.c.b16 %v1984, %v1984
      %v1987 = vpack.c.b16 %v1985, %v1985
      %1988 = vrot.lane.b32.xlu0 %v1986, 1
      %v1989 = vpop.permute.xlu0 %1988
      %1990 = vrot.lane.b32.xlu0 %v1987, 1
      %v1991 = vpop.permute.xlu0 %1990
      %s1994 = scalar_lea.vmem [#allocation2], 8
      %1995 = vst.msk [vmem:[%s1994] sm:$0xf] %vm1979, %v1989
      %1996 = vst.msk [vmem:[%s1994 + $0x4] sm:$0xf] %vm1979, %v1991
      %v1997 = vpack.c.bf16 %v1662, %v1661
      %v1999 = vunpack.c.l.b16 %v1997
      %v2000 = vunpack.c.h.b16 %v1997
      %v2001 = vpack.c.b16 %v1999, %v1999
      %v2002 = vpack.c.b16 %v2000, %v2000
      %2003 = vrot.lane.b32.xlu0 %v2001, 1
      %v2004 = vpop.permute.xlu0 %2003
      %2005 = vrot.lane.b32.xlu0 %v2002, 1
      %v2006 = vpop.permute.xlu0 %2005
      %s2009 = scalar_lea.vmem [#allocation2], 16
      %2010 = vst.msk [vmem:[%s2009] sm:$0xf] %vm1979, %v2004
      %2011 = vst.msk [vmem:[%s2009 + $0x4] sm:$0xf] %vm1979, %v2006
      %v2012 = vpack.c.bf16 %v1966, %v1965
      %v2014 = vunpack.c.l.b16 %v2012
      %v2015 = vunpack.c.h.b16 %v2012
      %v2016 = vpack.c.b16 %v2014, %v2014
      %v2017 = vpack.c.b16 %v2015, %v2015
      %2018 = vrot.lane.b32.xlu0 %v2016, 1
      %v2019 = vpop.permute.xlu0 %2018
      %2020 = vrot.lane.b32.xlu0 %v2017, 1
      %v2021 = vpop.permute.xlu0 %2020
      %s2024 = scalar_lea.vmem [#allocation2], 24
      %2025 = vst.msk [vmem:[%s2024] sm:$0xf] %vm1979, %v2019
      %2026 = vst.msk [vmem:[%s2024 + $0x4] sm:$0xf] %vm1979, %v2021
      %v2027 = vld [vmem:[%s4] sm:$0xff]
      %v2028 = vld [vmem:[%s4 + $0x8] sm:$0xff]
      %v2029 = vld [vmem:[%s4 + $0x10] sm:$0xff]
      %v2030 = vld [vmem:[%s4 + $0x18] sm:$0xff]
      %v2031 = vld [vmem:[%s3] sm:$0xf]
      %v2032 = vld [vmem:[%s3 + $0x4] sm:$0xf]
      %v2033 = vld [vmem:[%s3 + $0x8] sm:$0xf]
      %v2034 = vld [vmem:[%s3 + $0xc] sm:$0xf]
      %v2035 = vld [vmem:[%s2009] sm:$0xf]
      %v2036 = vld [vmem:[%s2009 + $0x4] sm:$0xf]
      %s2037 = scalar_lea.vmem %s3, 16
      %v2038 = vld [vmem:[%s2037] sm:$0xf]
      %v2039 = vld [vmem:[%s2037 + $0x4] sm:$0xf]
      %v2040 = vld [vmem:[%s2037 + $0x8] sm:$0xf]
      %v2041 = vld [vmem:[%s2037 + $0xc] sm:$0xf]
      %v2042 = vld [vmem:[%s2024] sm:$0xf]
      %v2043 = vld [vmem:[%s2024 + $0x4] sm:$0xf]
      %v2048 = vunpack.c.l.b16 %v2038
      %v2049 = vunpack.c.l.b16 %v2039
      %v2050 = vunpack.c.l.b16 %v2040
      %v2051 = vunpack.c.l.b16 %v2041
      %v2052 = vpack.c.b16 %v2049, %v2048
      %v2053 = vpack.c.b16 %v2051, %v2050
      %v2056 = vunpack.c.l.b16 %v2042
      %v2057 = vunpack.c.l.b16 %v2043
      %v2058 = vpack.c.b16 %v2057, %v2056
      %v2061 = vsel %vm643, %v2052, 0
      %v2064 = vsel %vm643, %v2053, 0
      %2066 = vmatprep.subr.bf16.mxu0 0
      %2067 = vmatpush1.bf16.msra.mxu0 0
      %2068 = vmatprep.subr.bf16.mxu0 0
      %2069 = vmatpush1.bf16.msra.mxu0 0
      %2070 = vmatprep.subr.bf16.mxu0 0
      %2071 = vmatpush1.bf16.msra.mxu0 0
      %2072 = vmatprep.subr.bf16.mxu0 0
      %2073 = vmatpush1.bf16.msra.mxu0 0
      %2074 = vmatprep.subr.bf16.mxu0 0
      %2075 = vmatpush1.bf16.msra.mxu0 0
      %2076 = vmatprep.subr.bf16.mxu0 0
      %2077 = vmatpush1.bf16.msra.mxu0 0
      %2078 = vmatprep.subr.bf16.mxu0 0
      %2079 = vmatpush1.bf16.msra.mxu0 0
      %2080 = vmatprep.subr.bf16.mxu0 0
      %2081 = vmatpush1.bf16.msra.mxu0 %v2058
      %2082 = vmatprep.subr.bf16.mxu0 0
      %2083 = vmatpush2.bf16.msra.mxu0 0
      %2084 = vmatprep.subr.bf16.mxu0 0
      %2085 = vmatpush2.bf16.msra.mxu0 0
      %2086 = vmatprep.subr.bf16.mxu0 0
      %2087 = vmatpush2.bf16.msra.mxu0 0
      %2088 = vmatprep.subr.bf16.mxu0 0
      %2089 = vmatpush2.bf16.msra.mxu0 0
      %2090 = vmatprep.subr.bf16.mxu0 0
      %2091 = vmatpush2.bf16.msra.mxu0 0
      %2092 = vmatprep.subr.bf16.mxu0 0
      %2093 = vmatpush2.bf16.msra.mxu0 0
      %2094 = vmatprep.subr.bf16.mxu0 0
      %2095 = vmatpush2.bf16.msra.mxu0 0
      %2096 = vmatprep.subr.bf16.mxu0 0
      %2097 = vmatpush2.bf16.msra.mxu0 0
      %2098 = vmatprep.mubr.bf16.mxu0 0
      %2099 = vmatmul.mubr.bf16.gmra.mxu0 %v2061
      %v2100 = vpop.f32.mrf.mxu0
      %v2101 = vadd.f32 0.0, %v2100
      %v2102 = vpop.f32.mrf.mxu0
      %v2103 = vpop.f32.mrf.mxu0
      %v2104 = vadd.f32 0.0, %v2103
      %v2105 = vpop.f32.mrf.mxu0
      %2106 = vmatprep.mubr.bf16.mxu0 0
      %2107 = vmatmul.mubr.bf16.gmra.mxu0 %v2064
      %v2108 = vpop.f32.mrf.mxu0
      %v2109 = vadd.f32 0.0, %v2108
      %v2110 = vpop.f32.mrf.mxu0
      %v2111 = vpop.f32.mrf.mxu0
      %v2112 = vadd.f32 0.0, %v2111
      %v2113 = vpop.f32.mrf.mxu0
      %2114 = vdwg.mxu0
      %v2119 = vunpack.c.l.b16 %v2031
      %v2120 = vunpack.c.l.b16 %v2032
      %v2121 = vunpack.c.l.b16 %v2033
      %v2122 = vunpack.c.l.b16 %v2034
      %v2123 = vpack.c.b16 %v2120, %v2119
      %v2124 = vpack.c.b16 %v2122, %v2121
      %v2127 = vunpack.c.l.b16 %v2035
      %v2128 = vunpack.c.l.b16 %v2036
      %v2129 = vpack.c.b16 %v2128, %v2127
      %v2132 = vsel %vm643, %v2123, 0
      %v2135 = vsel %vm643, %v2124, 0
      %2137 = vmatprep.subr.bf16.mxu0 0
      %2138 = vmatpush1.bf16.msra.mxu0 0
      %2139 = vmatprep.subr.bf16.mxu0 0
      %2140 = vmatpush1.bf16.msra.mxu0 0
      %2141 = vmatprep.subr.bf16.mxu0 0
      %2142 = vmatpush1.bf16.msra.mxu0 0
      %2143 = vmatprep.subr.bf16.mxu0 0
      %2144 = vmatpush1.bf16.msra.mxu0 0
      %2145 = vmatprep.subr.bf16.mxu0 0
      %2146 = vmatpush1.bf16.msra.mxu0 0
      %2147 = vmatprep.subr.bf16.mxu0 0
      %2148 = vmatpush1.bf16.msra.mxu0 0
      %2149 = vmatprep.subr.bf16.mxu0 0
      %2150 = vmatpush1.bf16.msra.mxu0 0
      %2151 = vmatprep.subr.bf16.mxu0 0
      %2152 = vmatpush1.bf16.msra.mxu0 %v2129
      %2153 = vmatprep.subr.bf16.mxu0 0
      %2154 = vmatpush2.bf16.msra.mxu0 0
      %2155 = vmatprep.subr.bf16.mxu0 0
      %2156 = vmatpush2.bf16.msra.mxu0 0
      %2157 = vmatprep.subr.bf16.mxu0 0
      %2158 = vmatpush2.bf16.msra.mxu0 0
      %2159 = vmatprep.subr.bf16.mxu0 0
      %2160 = vmatpush2.bf16.msra.mxu0 0
      %2161 = vmatprep.subr.bf16.mxu0 0
      %2162 = vmatpush2.bf16.msra.mxu0 0
      %2163 = vmatprep.subr.bf16.mxu0 0
      %2164 = vmatpush2.bf16.msra.mxu0 0
      %2165 = vmatprep.subr.bf16.mxu0 0
      %2166 = vmatpush2.bf16.msra.mxu0 0
      %2167 = vmatprep.subr.bf16.mxu0 0
      %2168 = vmatpush2.bf16.msra.mxu0 0
      %2169 = vmatprep.mubr.bf16.mxu0 0
      %2170 = vmatmul.mubr.bf16.gmra.mxu0 %v2132
      %v2171 = vpop.f32.mrf.mxu0
      %v2172 = vadd.f32 %v2101, %v2171
      %v2173 = vpop.f32.mrf.mxu0
      %v2174 = vpop.f32.mrf.mxu0
      %v2175 = vadd.f32 %v2104, %v2174
      %v2176 = vpop.f32.mrf.mxu0
      %2177 = vmatprep.mubr.bf16.mxu0 0
      %2178 = vmatmul.mubr.bf16.gmra.mxu0 %v2135
      %v2179 = vpop.f32.mrf.mxu0
      %v2180 = vadd.f32 %v2109, %v2179
      %v2181 = vpop.f32.mrf.mxu0
      %v2182 = vpop.f32.mrf.mxu0
      %v2183 = vadd.f32 %v2112, %v2182
      %v2184 = vpop.f32.mrf.mxu0
      %2185 = vdwg.mxu0
      %s2186 = scalar_lea.vmem %s3, 32
      %v2187 = vld [vmem:[%s2186] sm:$0xf]
      %v2188 = vld [vmem:[%s2186 + $0x4] sm:$0xf]
      %v2189 = vld [vmem:[%s2186 + $0x8] sm:$0xf]
      %v2190 = vld [vmem:[%s2186 + $0xc] sm:$0xf]
      %v2191 = vld [vmem:[#allocation2] sm:$0xf]
      %v2192 = vld [vmem:[#allocation2 + $0x4] sm:$0xf]
      %v2197 = vunpack.c.l.b16 %v2187
      %v2198 = vunpack.c.l.b16 %v2188
      %v2199 = vunpack.c.l.b16 %v2189
      %v2200 = vunpack.c.l.b16 %v2190
      %v2201 = vpack.c.b16 %v2198, %v2197
      %v2202 = vpack.c.b16 %v2200, %v2199
      %v2205 = vunpack.c.l.b16 %v2191
      %v2206 = vunpack.c.l.b16 %v2192
      %v2207 = vpack.c.b16 %v2206, %v2205
      %2208 = vrot.lane.b32.xlu0 %v2207, 127
      %v2209 = vpop.permute.xlu0 %2208
      %v2212 = vsel %vm643, %v2201, 0
      %v2215 = vsel %vm643, %v2202, 0
      %2217 = vmatprep.subr.bf16.mxu0 0
      %2218 = vmatpush1.bf16.msra.mxu0 0
      %2219 = vmatprep.subr.bf16.mxu0 0
      %2220 = vmatpush1.bf16.msra.mxu0 0
      %2221 = vmatprep.subr.bf16.mxu0 0
      %2222 = vmatpush1.bf16.msra.mxu0 0
      %2223 = vmatprep.subr.bf16.mxu0 0
      %2224 = vmatpush1.bf16.msra.mxu0 0
      %2225 = vmatprep.subr.bf16.mxu0 0
      %2226 = vmatpush1.bf16.msra.mxu0 0
      %2227 = vmatprep.subr.bf16.mxu0 0
      %2228 = vmatpush1.bf16.msra.mxu0 0
      %2229 = vmatprep.subr.bf16.mxu0 0
      %2230 = vmatpush1.bf16.msra.mxu0 0
      %2231 = vmatprep.subr.bf16.mxu0 0
      %2232 = vmatpush1.bf16.msra.mxu0 %v2209
      %2233 = vmatprep.subr.bf16.mxu0 0
      %2234 = vmatpush2.bf16.msra.mxu0 0
      %2235 = vmatprep.subr.bf16.mxu0 0
      %2236 = vmatpush2.bf16.msra.mxu0 0
      %2237 = vmatprep.subr.bf16.mxu0 0
      %2238 = vmatpush2.bf16.msra.mxu0 0
      %2239 = vmatprep.subr.bf16.mxu0 0
      %2240 = vmatpush2.bf16.msra.mxu0 0
      %2241 = vmatprep.subr.bf16.mxu0 0
      %2242 = vmatpush2.bf16.msra.mxu0 0
      %2243 = vmatprep.subr.bf16.mxu0 0
      %2244 = vmatpush2.bf16.msra.mxu0 0
      %2245 = vmatprep.subr.bf16.mxu0 0
      %2246 = vmatpush2.bf16.msra.mxu0 0
      %2247 = vmatprep.subr.bf16.mxu0 0
      %2248 = vmatpush2.bf16.msra.mxu0 0
      %2249 = vmatprep.mubr.bf16.mxu0 0
      %2250 = vmatmul.mubr.bf16.gmra.mxu0 %v2212
      %v2251 = vpop.f32.mrf.mxu0
      %v2252 = vadd.f32 0.0, %v2251
      %v2253 = vpop.f32.mrf.mxu0
      %v2254 = vpop.f32.mrf.mxu0
      %v2255 = vadd.f32 0.0, %v2254
      %v2256 = vpop.f32.mrf.mxu0
      %2257 = vmatprep.mubr.bf16.mxu0 0
      %2258 = vmatmul.mubr.bf16.gmra.mxu0 %v2215
      %v2259 = vpop.f32.mrf.mxu0
      %v2260 = vadd.f32 0.0, %v2259
      %v2261 = vpop.f32.mrf.mxu0
      %v2262 = vpop.f32.mrf.mxu0
      %v2263 = vadd.f32 0.0, %v2262
      %v2264 = vpop.f32.mrf.mxu0
      %2265 = vdwg.mxu0
      %v2266 = vadd.f32 %v2172, %v2252
      %v2267 = vadd.f32 %v2175, %v2255
      %v2268 = vadd.f32 %v2180, %v2260
      %v2269 = vadd.f32 %v2183, %v2263
      %s2270 = scalar_lea.vmem %s3, 48
      %v2271 = vld [vmem:[%s2270] sm:$0xf]
      %v2272 = vld [vmem:[%s2270 + $0x4] sm:$0xf]
      %v2273 = vld [vmem:[%s2270 + $0x8] sm:$0xf]
      %v2274 = vld [vmem:[%s2270 + $0xc] sm:$0xf]
      %v2275 = vld [vmem:[%s1994] sm:$0xf]
      %v2276 = vld [vmem:[%s1994 + $0x4] sm:$0xf]
      %v2281 = vunpack.c.l.b16 %v2271
      %v2282 = vunpack.c.l.b16 %v2272
      %v2283 = vunpack.c.l.b16 %v2273
      %v2284 = vunpack.c.l.b16 %v2274
      %v2285 = vpack.c.b16 %v2282, %v2281
      %v2286 = vpack.c.b16 %v2284, %v2283
      %v2289 = vunpack.c.l.b16 %v2275
      %v2290 = vunpack.c.l.b16 %v2276
      %v2291 = vpack.c.b16 %v2290, %v2289
      %2292 = vrot.lane.b32.xlu0 %v2291, 127
      %v2293 = vpop.permute.xlu0 %2292
      %v2296 = vsel %vm643, %v2285, 0
      %v2299 = vsel %vm643, %v2286, 0
      %2301 = vmatprep.subr.bf16.mxu0 0
      %2302 = vmatpush1.bf16.msra.mxu0 0
      %2303 = vmatprep.subr.bf16.mxu0 0
      %2304 = vmatpush1.bf16.msra.mxu0 0
      %2305 = vmatprep.subr.bf16.mxu0 0
      %2306 = vmatpush1.bf16.msra.mxu0 0
      %2307 = vmatprep.subr.bf16.mxu0 0
      %2308 = vmatpush1.bf16.msra.mxu0 0
      %2309 = vmatprep.subr.bf16.mxu0 0
      %2310 = vmatpush1.bf16.msra.mxu0 0
      %2311 = vmatprep.subr.bf16.mxu0 0
      %2312 = vmatpush1.bf16.msra.mxu0 0
      %2313 = vmatprep.subr.bf16.mxu0 0
      %2314 = vmatpush1.bf16.msra.mxu0 0
      %2315 = vmatprep.subr.bf16.mxu0 0
      %2316 = vmatpush1.bf16.msra.mxu0 %v2293
      %2317 = vmatprep.subr.bf16.mxu0 0
      %2318 = vmatpush2.bf16.msra.mxu0 0
      %2319 = vmatprep.subr.bf16.mxu0 0
      %2320 = vmatpush2.bf16.msra.mxu0 0
      %2321 = vmatprep.subr.bf16.mxu0 0
      %2322 = vmatpush2.bf16.msra.mxu0 0
      %2323 = vmatprep.subr.bf16.mxu0 0
      %2324 = vmatpush2.bf16.msra.mxu0 0
      %2325 = vmatprep.subr.bf16.mxu0 0
      %2326 = vmatpush2.bf16.msra.mxu0 0
      %2327 = vmatprep.subr.bf16.mxu0 0
      %2328 = vmatpush2.bf16.msra.mxu0 0
      %2329 = vmatprep.subr.bf16.mxu0 0
      %2330 = vmatpush2.bf16.msra.mxu0 0
      %2331 = vmatprep.subr.bf16.mxu0 0
      %2332 = vmatpush2.bf16.msra.mxu0 0
      %2333 = vmatprep.mubr.bf16.mxu0 0
      %2334 = vmatmul.mubr.bf16.gmra.mxu0 %v2296
      %v2335 = vpop.f32.mrf.mxu0
      %v2336 = vadd.f32 0.0, %v2335
      %v2337 = vpop.f32.mrf.mxu0
      %v2338 = vpop.f32.mrf.mxu0
      %v2339 = vadd.f32 0.0, %v2338
      %v2340 = vpop.f32.mrf.mxu0
      %2341 = vmatprep.mubr.bf16.mxu0 0
      %2342 = vmatmul.mubr.bf16.gmra.mxu0 %v2299
      %v2343 = vpop.f32.mrf.mxu0
      %v2344 = vadd.f32 0.0, %v2343
      %v2345 = vpop.f32.mrf.mxu0
      %v2346 = vpop.f32.mrf.mxu0
      %v2347 = vadd.f32 0.0, %v2346
      %v2348 = vpop.f32.mrf.mxu0
      %2349 = vdwg.mxu0
      %v2350 = vadd.f32 %v2266, %v2336
      %v2351 = vadd.f32 %v2267, %v2339
      %v2352 = vadd.f32 %v2268, %v2344
      %v2353 = vadd.f32 %v2269, %v2347
      %s2354 = scalar_lea.vmem %s3, 64
      %v2355 = vld [vmem:[%s2354] sm:$0xf]
      %v2356 = vld [vmem:[%s2354 + $0x4] sm:$0xf]
      %v2357 = vld [vmem:[%s2354 + $0x8] sm:$0xf]
      %v2358 = vld [vmem:[%s2354 + $0xc] sm:$0xf]
      %v2363 = vunpack.c.l.b16 %v2355
      %v2364 = vunpack.c.l.b16 %v2356
      %v2365 = vunpack.c.l.b16 %v2357
      %v2366 = vunpack.c.l.b16 %v2358
      %v2367 = vpack.c.b16 %v2364, %v2363
      %v2368 = vpack.c.b16 %v2366, %v2365
      %2369 = vrot.lane.b32.xlu0 %v2129, 127
      %v2370 = vpop.permute.xlu0 %2369
      %v2373 = vsel %vm643, %v2367, 0
      %v2376 = vsel %vm643, %v2368, 0
      %2378 = vmatprep.subr.bf16.mxu0 0
      %2379 = vmatpush1.bf16.msra.mxu0 0
      %2380 = vmatprep.subr.bf16.mxu0 0
      %2381 = vmatpush1.bf16.msra.mxu0 0
      %2382 = vmatprep.subr.bf16.mxu0 0
      %2383 = vmatpush1.bf16.msra.mxu0 0
      %2384 = vmatprep.subr.bf16.mxu0 0
      %2385 = vmatpush1.bf16.msra.mxu0 0
      %2386 = vmatprep.subr.bf16.mxu0 0
      %2387 = vmatpush1.bf16.msra.mxu0 0
      %2388 = vmatprep.subr.bf16.mxu0 0
      %2389 = vmatpush1.bf16.msra.mxu0 0
      %2390 = vmatprep.subr.bf16.mxu0 0
      %2391 = vmatpush1.bf16.msra.mxu0 0
      %2392 = vmatprep.subr.bf16.mxu0 0
      %2393 = vmatpush1.bf16.msra.mxu0 %v2370
      %2394 = vmatprep.subr.bf16.mxu0 0
      %2395 = vmatpush2.bf16.msra.mxu0 0
      %2396 = vmatprep.subr.bf16.mxu0 0
      %2397 = vmatpush2.bf16.msra.mxu0 0
      %2398 = vmatprep.subr.bf16.mxu0 0
      %2399 = vmatpush2.bf16.msra.mxu0 0
      %2400 = vmatprep.subr.bf16.mxu0 0
      %2401 = vmatpush2.bf16.msra.mxu0 0
      %2402 = vmatprep.subr.bf16.mxu0 0
      %2403 = vmatpush2.bf16.msra.mxu0 0
      %2404 = vmatprep.subr.bf16.mxu0 0
      %2405 = vmatpush2.bf16.msra.mxu0 0
      %2406 = vmatprep.subr.bf16.mxu0 0
      %2407 = vmatpush2.bf16.msra.mxu0 0
      %2408 = vmatprep.subr.bf16.mxu0 0
      %2409 = vmatpush2.bf16.msra.mxu0 0
      %2410 = vmatprep.mubr.bf16.mxu0 0
      %2411 = vmatmul.mubr.bf16.gmra.mxu0 %v2373
      %v2412 = vpop.f32.mrf.mxu0
      %v2413 = vadd.f32 0.0, %v2412
      %v2414 = vpop.f32.mrf.mxu0
      %v2415 = vpop.f32.mrf.mxu0
      %v2416 = vadd.f32 0.0, %v2415
      %v2417 = vpop.f32.mrf.mxu0
      %2418 = vmatprep.mubr.bf16.mxu0 0
      %2419 = vmatmul.mubr.bf16.gmra.mxu0 %v2376
      %v2420 = vpop.f32.mrf.mxu0
      %v2421 = vadd.f32 0.0, %v2420
      %v2422 = vpop.f32.mrf.mxu0
      %v2423 = vpop.f32.mrf.mxu0
      %v2424 = vadd.f32 0.0, %v2423
      %v2425 = vpop.f32.mrf.mxu0
      %2426 = vdwg.mxu0
      %v2427 = vadd.f32 %v2350, %v2413
      %v2428 = vadd.f32 %v2351, %v2416
      %v2429 = vadd.f32 %v2352, %v2421
      %v2430 = vadd.f32 %v2353, %v2424
      %2432 = vset.pattern.permute.xlu0 0
      %2433 = vperm.xlu0 %2432, %v2027
      %v2434 = vpop.permute.xlu0 %2433
      %2437 = vset.pattern.permute.xlu0 0
      %2438 = vperm.xlu0 %2437, %v2028
      %v2439 = vpop.permute.xlu0 %2438
      %2442 = vset.pattern.permute.xlu0 0
      %2443 = vperm.xlu0 %2442, %v2029
      %v2444 = vpop.permute.xlu0 %2443
      %2447 = vset.pattern.permute.xlu0 0
      %2448 = vperm.xlu0 %2447, %v2030
      %v2449 = vpop.permute.xlu0 %2448
      %v2451 = vadd.f32 %v2427, %v2434
      %v2452 = vadd.f32 %v2428, %v2439
      %v2453 = vadd.f32 %v2429, %v2444
      %v2454 = vadd.f32 %v2430, %v2449
      %v2455 = vmax.f32 %v2451, 0.0
      %v2456 = vmax.f32 %v2452, 0.0
      %v2457 = vmax.f32 %v2453, 0.0
      %v2458 = vmax.f32 %v2454, 0.0
      %2459 = vmatprep.subr.bf16.mxu0 0
      %2460 = vmatpush1.bf16.msra.mxu0 0
      %2461 = vmatprep.subr.bf16.mxu0 0
      %2462 = vmatpush1.bf16.msra.mxu0 0
      %2463 = vmatprep.subr.bf16.mxu0 0
      %2464 = vmatpush1.bf16.msra.mxu0 0
      %2465 = vmatprep.subr.bf16.mxu0 0
      %2466 = vmatpush1.bf16.msra.mxu0 0
      %2467 = vmatprep.subr.bf16.mxu0 0
      %2468 = vmatpush1.bf16.msra.mxu0 0
      %2469 = vmatprep.subr.bf16.mxu0 0
      %2470 = vmatpush1.bf16.msra.mxu0 0
      %2471 = vmatprep.subr.bf16.mxu0 0
      %2472 = vmatpush1.bf16.msra.mxu0 0
      %2473 = vmatprep.subr.bf16.mxu0 0
      %2474 = vmatpush1.bf16.msra.mxu0 %v2293
      %2475 = vmatprep.subr.bf16.mxu0 0
      %2476 = vmatpush2.bf16.msra.mxu0 0
      %2477 = vmatprep.subr.bf16.mxu0 0
      %2478 = vmatpush2.bf16.msra.mxu0 0
      %2479 = vmatprep.subr.bf16.mxu0 0
      %2480 = vmatpush2.bf16.msra.mxu0 0
      %2481 = vmatprep.subr.bf16.mxu0 0
      %2482 = vmatpush2.bf16.msra.mxu0 0
      %2483 = vmatprep.subr.bf16.mxu0 0
      %2484 = vmatpush2.bf16.msra.mxu0 0
      %2485 = vmatprep.subr.bf16.mxu0 0
      %2486 = vmatpush2.bf16.msra.mxu0 0
      %2487 = vmatprep.subr.bf16.mxu0 0
      %2488 = vmatpush2.bf16.msra.mxu0 0
      %2489 = vmatprep.subr.bf16.mxu0 0
      %2490 = vmatpush2.bf16.msra.mxu0 0
      %2491 = vmatprep.mubr.bf16.mxu0 0
      %2492 = vmatmul.mubr.bf16.gmra.mxu0 %v2061
      %v2493 = vpop.f32.mrf.mxu0
      %v2494 = vadd.f32 0.0, %v2493
      %v2495 = vpop.f32.mrf.mxu0
      %v2496 = vpop.f32.mrf.mxu0
      %v2497 = vadd.f32 0.0, %v2496
      %v2498 = vpop.f32.mrf.mxu0
      %2499 = vmatprep.mubr.bf16.mxu0 0
      %2500 = vmatmul.mubr.bf16.gmra.mxu0 %v2064
      %v2501 = vpop.f32.mrf.mxu0
      %v2502 = vadd.f32 0.0, %v2501
      %v2503 = vpop.f32.mrf.mxu0
      %v2504 = vpop.f32.mrf.mxu0
      %v2505 = vadd.f32 0.0, %v2504
      %v2506 = vpop.f32.mrf.mxu0
      %2507 = vdwg.mxu0
      %2508 = vmatprep.subr.bf16.mxu0 0
      %2509 = vmatpush1.bf16.msra.mxu0 0
      %2510 = vmatprep.subr.bf16.mxu0 0
      %2511 = vmatpush1.bf16.msra.mxu0 0
      %2512 = vmatprep.subr.bf16.mxu0 0
      %2513 = vmatpush1.bf16.msra.mxu0 0
      %2514 = vmatprep.subr.bf16.mxu0 0
      %2515 = vmatpush1.bf16.msra.mxu0 0
      %2516 = vmatprep.subr.bf16.mxu0 0
      %2517 = vmatpush1.bf16.msra.mxu0 0
      %2518 = vmatprep.subr.bf16.mxu0 0
      %2519 = vmatpush1.bf16.msra.mxu0 0
      %2520 = vmatprep.subr.bf16.mxu0 0
      %2521 = vmatpush1.bf16.msra.mxu0 0
      %2522 = vmatprep.subr.bf16.mxu0 0
      %2523 = vmatpush1.bf16.msra.mxu0 %v2209
      %2524 = vmatprep.subr.bf16.mxu0 0
      %2525 = vmatpush2.bf16.msra.mxu0 0
      %2526 = vmatprep.subr.bf16.mxu0 0
      %2527 = vmatpush2.bf16.msra.mxu0 0
      %2528 = vmatprep.subr.bf16.mxu0 0
      %2529 = vmatpush2.bf16.msra.mxu0 0
      %2530 = vmatprep.subr.bf16.mxu0 0
      %2531 = vmatpush2.bf16.msra.mxu0 0
      %2532 = vmatprep.subr.bf16.mxu0 0
      %2533 = vmatpush2.bf16.msra.mxu0 0
      %2534 = vmatprep.subr.bf16.mxu0 0
      %2535 = vmatpush2.bf16.msra.mxu0 0
      %2536 = vmatprep.subr.bf16.mxu0 0
      %2537 = vmatpush2.bf16.msra.mxu0 0
      %2538 = vmatprep.subr.bf16.mxu0 0
      %2539 = vmatpush2.bf16.msra.mxu0 0
      %2540 = vmatprep.mubr.bf16.mxu0 0
      %2541 = vmatmul.mubr.bf16.gmra.mxu0 %v2132
      %v2542 = vpop.f32.mrf.mxu0
      %v2543 = vadd.f32 %v2494, %v2542
      %v2544 = vpop.f32.mrf.mxu0
      %v2545 = vpop.f32.mrf.mxu0
      %v2546 = vadd.f32 %v2497, %v2545
      %v2547 = vpop.f32.mrf.mxu0
      %2548 = vmatprep.mubr.bf16.mxu0 0
      %2549 = vmatmul.mubr.bf16.gmra.mxu0 %v2135
      %v2550 = vpop.f32.mrf.mxu0
      %v2551 = vadd.f32 %v2502, %v2550
      %v2552 = vpop.f32.mrf.mxu0
      %v2553 = vpop.f32.mrf.mxu0
      %v2554 = vadd.f32 %v2505, %v2553
      %v2555 = vpop.f32.mrf.mxu0
      %2556 = vdwg.mxu0
      %2557 = vmatprep.subr.bf16.mxu0 0
      %2558 = vmatpush1.bf16.msra.mxu0 0
      %2559 = vmatprep.subr.bf16.mxu0 0
      %2560 = vmatpush1.bf16.msra.mxu0 0
      %2561 = vmatprep.subr.bf16.mxu0 0
      %2562 = vmatpush1.bf16.msra.mxu0 0
      %2563 = vmatprep.subr.bf16.mxu0 0
      %2564 = vmatpush1.bf16.msra.mxu0 0
      %2565 = vmatprep.subr.bf16.mxu0 0
      %2566 = vmatpush1.bf16.msra.mxu0 0
      %2567 = vmatprep.subr.bf16.mxu0 0
      %2568 = vmatpush1.bf16.msra.mxu0 0
      %2569 = vmatprep.subr.bf16.mxu0 0
      %2570 = vmatpush1.bf16.msra.mxu0 0
      %2571 = vmatprep.subr.bf16.mxu0 0
      %2572 = vmatpush1.bf16.msra.mxu0 %v2370
      %2573 = vmatprep.subr.bf16.mxu0 0
      %2574 = vmatpush2.bf16.msra.mxu0 0
      %2575 = vmatprep.subr.bf16.mxu0 0
      %2576 = vmatpush2.bf16.msra.mxu0 0
      %2577 = vmatprep.subr.bf16.mxu0 0
      %2578 = vmatpush2.bf16.msra.mxu0 0
      %2579 = vmatprep.subr.bf16.mxu0 0
      %2580 = vmatpush2.bf16.msra.mxu0 0
      %2581 = vmatprep.subr.bf16.mxu0 0
      %2582 = vmatpush2.bf16.msra.mxu0 0
      %2583 = vmatprep.subr.bf16.mxu0 0
      %2584 = vmatpush2.bf16.msra.mxu0 0
      %2585 = vmatprep.subr.bf16.mxu0 0
      %2586 = vmatpush2.bf16.msra.mxu0 0
      %2587 = vmatprep.subr.bf16.mxu0 0
      %2588 = vmatpush2.bf16.msra.mxu0 0
      %2589 = vmatprep.mubr.bf16.mxu0 0
      %2590 = vmatmul.mubr.bf16.gmra.mxu0 %v2212
      %v2591 = vpop.f32.mrf.mxu0
      %v2592 = vadd.f32 0.0, %v2591
      %v2593 = vpop.f32.mrf.mxu0
      %v2594 = vpop.f32.mrf.mxu0
      %v2595 = vadd.f32 0.0, %v2594
      %v2596 = vpop.f32.mrf.mxu0
      %2597 = vmatprep.mubr.bf16.mxu0 0
      %2598 = vmatmul.mubr.bf16.gmra.mxu0 %v2215
      %v2599 = vpop.f32.mrf.mxu0
      %v2600 = vadd.f32 0.0, %v2599
      %v2601 = vpop.f32.mrf.mxu0
      %v2602 = vpop.f32.mrf.mxu0
      %v2603 = vadd.f32 0.0, %v2602
      %v2604 = vpop.f32.mrf.mxu0
      %2605 = vdwg.mxu0
      %v2606 = vadd.f32 %v2543, %v2592
      %v2607 = vadd.f32 %v2546, %v2595
      %v2608 = vadd.f32 %v2551, %v2600
      %v2609 = vadd.f32 %v2554, %v2603
      %2610 = vrot.lane.b32.xlu0 %v2058, 127
      %v2611 = vpop.permute.xlu0 %2610
      %2613 = vmatprep.subr.bf16.mxu0 0
      %2614 = vmatpush1.bf16.msra.mxu0 0
      %2615 = vmatprep.subr.bf16.mxu0 0
      %2616 = vmatpush1.bf16.msra.mxu0 0
      %2617 = vmatprep.subr.bf16.mxu0 0
      %2618 = vmatpush1.bf16.msra.mxu0 0
      %2619 = vmatprep.subr.bf16.mxu0 0
      %2620 = vmatpush1.bf16.msra.mxu0 0
      %2621 = vmatprep.subr.bf16.mxu0 0
      %2622 = vmatpush1.bf16.msra.mxu0 0
      %2623 = vmatprep.subr.bf16.mxu0 0
      %2624 = vmatpush1.bf16.msra.mxu0 0
      %2625 = vmatprep.subr.bf16.mxu0 0
      %2626 = vmatpush1.bf16.msra.mxu0 0
      %2627 = vmatprep.subr.bf16.mxu0 0
      %2628 = vmatpush1.bf16.msra.mxu0 %v2611
      %2629 = vmatprep.subr.bf16.mxu0 0
      %2630 = vmatpush2.bf16.msra.mxu0 0
      %2631 = vmatprep.subr.bf16.mxu0 0
      %2632 = vmatpush2.bf16.msra.mxu0 0
      %2633 = vmatprep.subr.bf16.mxu0 0
      %2634 = vmatpush2.bf16.msra.mxu0 0
      %2635 = vmatprep.subr.bf16.mxu0 0
      %2636 = vmatpush2.bf16.msra.mxu0 0
      %2637 = vmatprep.subr.bf16.mxu0 0
      %2638 = vmatpush2.bf16.msra.mxu0 0
      %2639 = vmatprep.subr.bf16.mxu0 0
      %2640 = vmatpush2.bf16.msra.mxu0 0
      %2641 = vmatprep.subr.bf16.mxu0 0
      %2642 = vmatpush2.bf16.msra.mxu0 0
      %2643 = vmatprep.subr.bf16.mxu0 0
      %2644 = vmatpush2.bf16.msra.mxu0 0
      %2645 = vmatprep.mubr.bf16.mxu0 0
      %2646 = vmatmul.mubr.bf16.gmra.mxu0 %v2296
      %v2647 = vpop.f32.mrf.mxu0
      %v2648 = vadd.f32 0.0, %v2647
      %v2649 = vpop.f32.mrf.mxu0
      %v2650 = vpop.f32.mrf.mxu0
      %v2651 = vadd.f32 0.0, %v2650
      %v2652 = vpop.f32.mrf.mxu0
      %2653 = vmatprep.mubr.bf16.mxu0 0
      %2654 = vmatmul.mubr.bf16.gmra.mxu0 %v2299
      %v2655 = vpop.f32.mrf.mxu0
      %v2656 = vadd.f32 0.0, %v2655
      %v2657 = vpop.f32.mrf.mxu0
      %v2658 = vpop.f32.mrf.mxu0
      %v2659 = vadd.f32 0.0, %v2658
      %v2660 = vpop.f32.mrf.mxu0
      %2661 = vdwg.mxu0
      %v2662 = vadd.f32 %v2606, %v2648
      %v2663 = vadd.f32 %v2607, %v2651
      %v2664 = vadd.f32 %v2608, %v2656
      %v2665 = vadd.f32 %v2609, %v2659
      %2666 = vrot.lane.b32.xlu0 %v2207, 126
      %v2667 = vpop.permute.xlu0 %2666
      %2669 = vmatprep.subr.bf16.mxu0 0
      %2670 = vmatpush1.bf16.msra.mxu0 0
      %2671 = vmatprep.subr.bf16.mxu0 0
      %2672 = vmatpush1.bf16.msra.mxu0 0
      %2673 = vmatprep.subr.bf16.mxu0 0
      %2674 = vmatpush1.bf16.msra.mxu0 0
      %2675 = vmatprep.subr.bf16.mxu0 0
      %2676 = vmatpush1.bf16.msra.mxu0 0
      %2677 = vmatprep.subr.bf16.mxu0 0
      %2678 = vmatpush1.bf16.msra.mxu0 0
      %2679 = vmatprep.subr.bf16.mxu0 0
      %2680 = vmatpush1.bf16.msra.mxu0 0
      %2681 = vmatprep.subr.bf16.mxu0 0
      %2682 = vmatpush1.bf16.msra.mxu0 0
      %2683 = vmatprep.subr.bf16.mxu0 0
      %2684 = vmatpush1.bf16.msra.mxu0 %v2667
      %2685 = vmatprep.subr.bf16.mxu0 0
      %2686 = vmatpush2.bf16.msra.mxu0 0
      %2687 = vmatprep.subr.bf16.mxu0 0
      %2688 = vmatpush2.bf16.msra.mxu0 0
      %2689 = vmatprep.subr.bf16.mxu0 0
      %2690 = vmatpush2.bf16.msra.mxu0 0
      %2691 = vmatprep.subr.bf16.mxu0 0
      %2692 = vmatpush2.bf16.msra.mxu0 0
      %2693 = vmatprep.subr.bf16.mxu0 0
      %2694 = vmatpush2.bf16.msra.mxu0 0
      %2695 = vmatprep.subr.bf16.mxu0 0
      %2696 = vmatpush2.bf16.msra.mxu0 0
      %2697 = vmatprep.subr.bf16.mxu0 0
      %2698 = vmatpush2.bf16.msra.mxu0 0
      %2699 = vmatprep.subr.bf16.mxu0 0
      %2700 = vmatpush2.bf16.msra.mxu0 0
      %2701 = vmatprep.mubr.bf16.mxu0 0
      %2702 = vmatmul.mubr.bf16.gmra.mxu0 %v2373
      %v2703 = vpop.f32.mrf.mxu0
      %v2704 = vadd.f32 0.0, %v2703
      %v2705 = vpop.f32.mrf.mxu0
      %v2706 = vpop.f32.mrf.mxu0
      %v2707 = vadd.f32 0.0, %v2706
      %v2708 = vpop.f32.mrf.mxu0
      %2709 = vmatprep.mubr.bf16.mxu0 0
      %2710 = vmatmul.mubr.bf16.gmra.mxu0 %v2376
      %v2711 = vpop.f32.mrf.mxu0
      %v2712 = vadd.f32 0.0, %v2711
      %v2713 = vpop.f32.mrf.mxu0
      %v2714 = vpop.f32.mrf.mxu0
      %v2715 = vadd.f32 0.0, %v2714
      %v2716 = vpop.f32.mrf.mxu0
      %2717 = vdwg.mxu0
      %v2718 = vadd.f32 %v2662, %v2704
      %v2719 = vadd.f32 %v2663, %v2707
      %v2720 = vadd.f32 %v2664, %v2712
      %v2721 = vadd.f32 %v2665, %v2715
      %v2722 = vadd.f32 %v2718, %v2434
      %v2723 = vadd.f32 %v2719, %v2439
      %v2724 = vadd.f32 %v2720, %v2444
      %v2725 = vadd.f32 %v2721, %v2449
      %v2726 = vmax.f32 %v2722, 0.0
      %v2727 = vmax.f32 %v2723, 0.0
      %v2728 = vmax.f32 %v2724, 0.0
      %v2729 = vmax.f32 %v2725, 0.0
      %v2730 = vpack.c.bf16 %v2456, %v2455
      %v2731 = vpack.c.bf16 %v2458, %v2457
      %v2734 = vunpack.c.l.b16 %v2730
      %v2735 = vunpack.c.h.b16 %v2730
      %v2736 = vunpack.c.l.b16 %v2731
      %v2737 = vunpack.c.h.b16 %v2731
      %v2738 = vpack.c.b16 %v2734, %v2734
      %v2739 = vpack.c.b16 %v2735, %v2735
      %v2740 = vpack.c.b16 %v2736, %v2736
      %v2741 = vpack.c.b16 %v2737, %v2737
      %2742 = vrot.lane.b32.xlu0 %v2738, 1
      %v2743 = vpop.permute.xlu0 %2742
      %2744 = vrot.lane.b32.xlu0 %v2739, 1
      %v2745 = vpop.permute.xlu0 %2744
      %2746 = vrot.lane.b32.xlu0 %v2740, 1
      %v2747 = vpop.permute.xlu0 %2746
      %2748 = vrot.lane.b32.xlu0 %v2741, 1
      %v2749 = vpop.permute.xlu0 %2748
      %2754 = vst.msk [vmem:[#allocation3] sm:$0xf] %vm1979, %v2743
      %2755 = vst.msk [vmem:[#allocation3 + $0x4] sm:$0xf] %vm1979, %v2745
      %2756 = vst.msk [vmem:[#allocation3 + $0x8] sm:$0xf] %vm1979, %v2747
      %2757 = vst.msk [vmem:[#allocation3 + $0xc] sm:$0xf] %vm1979, %v2749
      %v2758 = vpack.c.bf16 %v2727, %v2726
      %v2759 = vpack.c.bf16 %v2729, %v2728
      %v2762 = vunpack.c.l.b16 %v2758
      %v2763 = vunpack.c.h.b16 %v2758
      %v2764 = vunpack.c.l.b16 %v2759
      %v2765 = vunpack.c.h.b16 %v2759
      %v2766 = vpack.c.b16 %v2762, %v2762
      %v2767 = vpack.c.b16 %v2763, %v2763
      %v2768 = vpack.c.b16 %v2764, %v2764
      %v2769 = vpack.c.b16 %v2765, %v2765
      %2770 = vrot.lane.b32.xlu0 %v2766, 1
      %v2771 = vpop.permute.xlu0 %2770
      %2772 = vrot.lane.b32.xlu0 %v2767, 1
      %v2773 = vpop.permute.xlu0 %2772
      %2774 = vrot.lane.b32.xlu0 %v2768, 1
      %v2775 = vpop.permute.xlu0 %2774
      %2776 = vrot.lane.b32.xlu0 %v2769, 1
      %v2777 = vpop.permute.xlu0 %2776
      %s2782 = scalar_lea.vmem [#allocation3], 16
      %2783 = vst.msk [vmem:[%s2782] sm:$0xf] %vm1979, %v2771
      %2784 = vst.msk [vmem:[%s2782 + $0x4] sm:$0xf] %vm1979, %v2773
      %2785 = vst.msk [vmem:[%s2782 + $0x8] sm:$0xf] %vm1979, %v2775
      %2786 = vst.msk [vmem:[%s2782 + $0xc] sm:$0xf] %vm1979, %v2777
      %v2787 = vld [vmem:[%s6] sm:$0xff]
      %v2788 = vld [vmem:[%s6 + $0x8] sm:$0xff]
      %v2789 = vld [vmem:[%s6 + $0x10] sm:$0xff]
      %v2790 = vld [vmem:[%s6 + $0x18] sm:$0xff]
      %v2791 = vld [vmem:[%s5] sm:$0xf]
      %v2792 = vld [vmem:[%s5 + $0x4] sm:$0xf]
      %v2793 = vld [vmem:[%s5 + $0x8] sm:$0xf]
      %v2794 = vld [vmem:[%s5 + $0xc] sm:$0xf]
      %v2795 = vld [vmem:[%s2782] sm:$0xf]
      %v2796 = vld [vmem:[%s2782 + $0x4] sm:$0xf]
      %v2797 = vld [vmem:[%s2782 + $0x8] sm:$0xf]
      %v2798 = vld [vmem:[%s2782 + $0xc] sm:$0xf]
      %s2799 = scalar_lea.vmem %s5, 16
      %v2800 = vld [vmem:[%s2799] sm:$0xf]
      %v2801 = vld [vmem:[%s2799 + $0x4] sm:$0xf]
      %v2802 = vld [vmem:[%s2799 + $0x8] sm:$0xf]
      %v2803 = vld [vmem:[%s2799 + $0xc] sm:$0xf]
      %v2804 = vld [vmem:[#allocation3] sm:$0xf]
      %v2805 = vld [vmem:[#allocation3 + $0x4] sm:$0xf]
      %v2806 = vld [vmem:[#allocation3 + $0x8] sm:$0xf]
      %v2807 = vld [vmem:[#allocation3 + $0xc] sm:$0xf]
      %v2812 = vunpack.c.l.b16 %v2800
      %v2813 = vunpack.c.l.b16 %v2801
      %v2814 = vunpack.c.l.b16 %v2802
      %v2815 = vunpack.c.l.b16 %v2803
      %v2816 = vpack.c.b16 %v2813, %v2812
      %v2817 = vpack.c.b16 %v2815, %v2814
      %v2822 = vunpack.c.l.b16 %v2804
      %v2823 = vunpack.c.l.b16 %v2805
      %v2824 = vunpack.c.l.b16 %v2806
      %v2825 = vunpack.c.l.b16 %v2807
      %v2826 = vpack.c.b16 %v2823, %v2822
      %v2827 = vpack.c.b16 %v2825, %v2824
      %2828 = vrot.lane.b32.xlu0 %v2826, 127
      %v2829 = vpop.permute.xlu0 %2828
      %2830 = vrot.lane.b32.xlu0 %v2827, 127
      %v2831 = vpop.permute.xlu0 %2830
      %vm2834 = vcmask 261120
      %v2836 = vsel %vm2834, %v2816, 0
      %v2839 = vsel %vm2834, %v2817, 0
      %2841 = vmatprep.subr.bf16.mxu0 0
      %2842 = vmatpush1.bf16.msra.mxu0 0
      %2843 = vmatprep.subr.bf16.mxu0 0
      %2844 = vmatpush1.bf16.msra.mxu0 0
      %2845 = vmatprep.subr.bf16.mxu0 0
      %2846 = vmatpush1.bf16.msra.mxu0 0
      %2847 = vmatprep.subr.bf16.mxu0 0
      %2848 = vmatpush1.bf16.msra.mxu0 0
      %2849 = vmatprep.subr.bf16.mxu0 0
      %2850 = vmatpush1.bf16.msra.mxu0 0
      %2851 = vmatprep.subr.bf16.mxu0 0
      %2852 = vmatpush1.bf16.msra.mxu0 0
      %2853 = vmatprep.subr.bf16.mxu0 0
      %2854 = vmatpush1.bf16.msra.mxu0 %v2831
      %2855 = vmatprep.subr.bf16.mxu0 0
      %2856 = vmatpush1.bf16.msra.mxu0 %v2829
      %2857 = vmatprep.subr.bf16.mxu0 0
      %2858 = vmatpush2.bf16.msra.mxu0 0
      %2859 = vmatprep.subr.bf16.mxu0 0
      %2860 = vmatpush2.bf16.msra.mxu0 0
      %2861 = vmatprep.subr.bf16.mxu0 0
      %2862 = vmatpush2.bf16.msra.mxu0 0
      %2863 = vmatprep.subr.bf16.mxu0 0
      %2864 = vmatpush2.bf16.msra.mxu0 0
      %2865 = vmatprep.subr.bf16.mxu0 0
      %2866 = vmatpush2.bf16.msra.mxu0 0
      %2867 = vmatprep.subr.bf16.mxu0 0
      %2868 = vmatpush2.bf16.msra.mxu0 0
      %2869 = vmatprep.subr.bf16.mxu0 0
      %2870 = vmatpush2.bf16.msra.mxu0 0
      %2871 = vmatprep.subr.bf16.mxu0 0
      %2872 = vmatpush2.bf16.msra.mxu0 0
      %2873 = vmatprep.mubr.bf16.mxu0 0
      %2874 = vmatmul.mubr.bf16.gmra.mxu0 %v2836
      %v2875 = vpop.f32.mrf.mxu0
      %v2876 = vadd.f32 0.0, %v2875
      %v2877 = vpop.f32.mrf.mxu0
      %v2878 = vpop.f32.mrf.mxu0
      %v2879 = vadd.f32 0.0, %v2878
      %v2880 = vpop.f32.mrf.mxu0
      %2881 = vmatprep.mubr.bf16.mxu0 0
      %2882 = vmatmul.mubr.bf16.gmra.mxu0 %v2839
      %v2883 = vpop.f32.mrf.mxu0
      %v2884 = vadd.f32 0.0, %v2883
      %v2885 = vpop.f32.mrf.mxu0
      %v2886 = vpop.f32.mrf.mxu0
      %v2887 = vadd.f32 0.0, %v2886
      %v2888 = vpop.f32.mrf.mxu0
      %2889 = vdwg.mxu0
      %v2894 = vunpack.c.l.b16 %v2791
      %v2895 = vunpack.c.l.b16 %v2792
      %v2896 = vunpack.c.l.b16 %v2793
      %v2897 = vunpack.c.l.b16 %v2794
      %v2898 = vpack.c.b16 %v2895, %v2894
      %v2899 = vpack.c.b16 %v2897, %v2896
      %v2904 = vunpack.c.l.b16 %v2795
      %v2905 = vunpack.c.l.b16 %v2796
      %v2906 = vunpack.c.l.b16 %v2797
      %v2907 = vunpack.c.l.b16 %v2798
      %v2908 = vpack.c.b16 %v2905, %v2904
      %v2909 = vpack.c.b16 %v2907, %v2906
      %v2913 = vsel %vm2834, %v2898, 0
      %v2916 = vsel %vm2834, %v2899, 0
      %2918 = vmatprep.subr.bf16.mxu0 0
      %2919 = vmatpush1.bf16.msra.mxu0 0
      %2920 = vmatprep.subr.bf16.mxu0 0
      %2921 = vmatpush1.bf16.msra.mxu0 0
      %2922 = vmatprep.subr.bf16.mxu0 0
      %2923 = vmatpush1.bf16.msra.mxu0 0
      %2924 = vmatprep.subr.bf16.mxu0 0
      %2925 = vmatpush1.bf16.msra.mxu0 0
      %2926 = vmatprep.subr.bf16.mxu0 0
      %2927 = vmatpush1.bf16.msra.mxu0 0
      %2928 = vmatprep.subr.bf16.mxu0 0
      %2929 = vmatpush1.bf16.msra.mxu0 0
      %2930 = vmatprep.subr.bf16.mxu0 0
      %2931 = vmatpush1.bf16.msra.mxu0 %v2909
      %2932 = vmatprep.subr.bf16.mxu0 0
      %2933 = vmatpush1.bf16.msra.mxu0 %v2908
      %2934 = vmatprep.subr.bf16.mxu0 0
      %2935 = vmatpush2.bf16.msra.mxu0 0
      %2936 = vmatprep.subr.bf16.mxu0 0
      %2937 = vmatpush2.bf16.msra.mxu0 0
      %2938 = vmatprep.subr.bf16.mxu0 0
      %2939 = vmatpush2.bf16.msra.mxu0 0
      %2940 = vmatprep.subr.bf16.mxu0 0
      %2941 = vmatpush2.bf16.msra.mxu0 0
      %2942 = vmatprep.subr.bf16.mxu0 0
      %2943 = vmatpush2.bf16.msra.mxu0 0
      %2944 = vmatprep.subr.bf16.mxu0 0
      %2945 = vmatpush2.bf16.msra.mxu0 0
      %2946 = vmatprep.subr.bf16.mxu0 0
      %2947 = vmatpush2.bf16.msra.mxu0 0
      %2948 = vmatprep.subr.bf16.mxu0 0
      %2949 = vmatpush2.bf16.msra.mxu0 0
      %2950 = vmatprep.mubr.bf16.mxu0 0
      %2951 = vmatmul.mubr.bf16.gmra.mxu0 %v2913
      %v2952 = vpop.f32.mrf.mxu0
      %v2953 = vadd.f32 %v2876, %v2952
      %v2954 = vpop.f32.mrf.mxu0
      %v2955 = vpop.f32.mrf.mxu0
      %v2956 = vadd.f32 %v2879, %v2955
      %v2957 = vpop.f32.mrf.mxu0
      %2958 = vmatprep.mubr.bf16.mxu0 0
      %2959 = vmatmul.mubr.bf16.gmra.mxu0 %v2916
      %v2960 = vpop.f32.mrf.mxu0
      %v2961 = vadd.f32 %v2884, %v2960
      %v2962 = vpop.f32.mrf.mxu0
      %v2963 = vpop.f32.mrf.mxu0
      %v2964 = vadd.f32 %v2887, %v2963
      %v2965 = vpop.f32.mrf.mxu0
      %2966 = vdwg.mxu0
      %s2967 = scalar_lea.vmem %s5, 32
      %v2968 = vld [vmem:[%s2967] sm:$0xf]
      %v2969 = vld [vmem:[%s2967 + $0x4] sm:$0xf]
      %v2970 = vld [vmem:[%s2967 + $0x8] sm:$0xf]
      %v2971 = vld [vmem:[%s2967 + $0xc] sm:$0xf]
      %v2976 = vunpack.c.l.b16 %v2968
      %v2977 = vunpack.c.l.b16 %v2969
      %v2978 = vunpack.c.l.b16 %v2970
      %v2979 = vunpack.c.l.b16 %v2971
      %v2980 = vpack.c.b16 %v2977, %v2976
      %v2981 = vpack.c.b16 %v2979, %v2978
      %2982 = vrot.lane.b32.xlu0 %v2908, 127
      %v2983 = vpop.permute.xlu0 %2982
      %2984 = vrot.lane.b32.xlu0 %v2909, 127
      %v2985 = vpop.permute.xlu0 %2984
      %v2989 = vsel %vm2834, %v2980, 0
      %v2992 = vsel %vm2834, %v2981, 0
      %2994 = vmatprep.subr.bf16.mxu0 0
      %2995 = vmatpush1.bf16.msra.mxu0 0
      %2996 = vmatprep.subr.bf16.mxu0 0
      %2997 = vmatpush1.bf16.msra.mxu0 0
      %2998 = vmatprep.subr.bf16.mxu0 0
      %2999 = vmatpush1.bf16.msra.mxu0 0
      %3000 = vmatprep.subr.bf16.mxu0 0
      %3001 = vmatpush1.bf16.msra.mxu0 0
      %3002 = vmatprep.subr.bf16.mxu0 0
      %3003 = vmatpush1.bf16.msra.mxu0 0
      %3004 = vmatprep.subr.bf16.mxu0 0
      %3005 = vmatpush1.bf16.msra.mxu0 0
      %3006 = vmatprep.subr.bf16.mxu0 0
      %3007 = vmatpush1.bf16.msra.mxu0 %v2985
      %3008 = vmatprep.subr.bf16.mxu0 0
      %3009 = vmatpush1.bf16.msra.mxu0 %v2983
      %3010 = vmatprep.subr.bf16.mxu0 0
      %3011 = vmatpush2.bf16.msra.mxu0 0
      %3012 = vmatprep.subr.bf16.mxu0 0
      %3013 = vmatpush2.bf16.msra.mxu0 0
      %3014 = vmatprep.subr.bf16.mxu0 0
      %3015 = vmatpush2.bf16.msra.mxu0 0
      %3016 = vmatprep.subr.bf16.mxu0 0
      %3017 = vmatpush2.bf16.msra.mxu0 0
      %3018 = vmatprep.subr.bf16.mxu0 0
      %3019 = vmatpush2.bf16.msra.mxu0 0
      %3020 = vmatprep.subr.bf16.mxu0 0
      %3021 = vmatpush2.bf16.msra.mxu0 0
      %3022 = vmatprep.subr.bf16.mxu0 0
      %3023 = vmatpush2.bf16.msra.mxu0 0
      %3024 = vmatprep.subr.bf16.mxu0 0
      %3025 = vmatpush2.bf16.msra.mxu0 0
      %3026 = vmatprep.mubr.bf16.mxu0 0
      %3027 = vmatmul.mubr.bf16.gmra.mxu0 %v2989
      %v3028 = vpop.f32.mrf.mxu0
      %v3029 = vadd.f32 0.0, %v3028
      %v3030 = vpop.f32.mrf.mxu0
      %v3031 = vpop.f32.mrf.mxu0
      %v3032 = vadd.f32 0.0, %v3031
      %v3033 = vpop.f32.mrf.mxu0
      %3034 = vmatprep.mubr.bf16.mxu0 0
      %3035 = vmatmul.mubr.bf16.gmra.mxu0 %v2992
      %v3036 = vpop.f32.mrf.mxu0
      %v3037 = vadd.f32 0.0, %v3036
      %v3038 = vpop.f32.mrf.mxu0
      %v3039 = vpop.f32.mrf.mxu0
      %v3040 = vadd.f32 0.0, %v3039
      %v3041 = vpop.f32.mrf.mxu0
      %3042 = vdwg.mxu0
      %v3043 = vadd.f32 %v2953, %v3029
      %v3044 = vadd.f32 %v2956, %v3032
      %v3045 = vadd.f32 %v2961, %v3037
      %v3046 = vadd.f32 %v2964, %v3040
      %3048 = vset.pattern.permute.xlu0 0
      %3049 = vperm.xlu0 %3048, %v2787
      %v3050 = vpop.permute.xlu0 %3049
      %3053 = vset.pattern.permute.xlu0 0
      %3054 = vperm.xlu0 %3053, %v2788
      %v3055 = vpop.permute.xlu0 %3054
      %3058 = vset.pattern.permute.xlu0 0
      %3059 = vperm.xlu0 %3058, %v2789
      %v3060 = vpop.permute.xlu0 %3059
      %3063 = vset.pattern.permute.xlu0 0
      %3064 = vperm.xlu0 %3063, %v2790
      %v3065 = vpop.permute.xlu0 %3064
      %v3067 = vadd.f32 %v3043, %v3050
      %v3068 = vadd.f32 %v3044, %v3055
      %v3069 = vadd.f32 %v3045, %v3060
      %v3070 = vadd.f32 %v3046, %v3065
      %v3071 = vmax.f32 %v3067, 0.0
      %v3072 = vmax.f32 %v3068, 0.0
      %v3073 = vmax.f32 %v3069, 0.0
      %v3074 = vmax.f32 %v3070, 0.0
      %v3075 = vpack.c.bf16 %v3072, %v3071
      %v3076 = vpack.c.bf16 %v3074, %v3073
      %v3079 = vunpack.c.l.b16 %v3075
      %v3080 = vunpack.c.h.b16 %v3075
      %v3081 = vunpack.c.l.b16 %v3076
      %v3082 = vunpack.c.h.b16 %v3076
      %v3083 = vpack.c.b16 %v3079, %v3079
      %v3084 = vpack.c.b16 %v3080, %v3080
      %v3085 = vpack.c.b16 %v3081, %v3081
      %v3086 = vpack.c.b16 %v3082, %v3082
      %3087 = vrot.lane.b32.xlu0 %v3083, 1
      %v3088 = vpop.permute.xlu0 %3087
      %3089 = vrot.lane.b32.xlu0 %v3084, 1
      %v3090 = vpop.permute.xlu0 %3089
      %3091 = vrot.lane.b32.xlu0 %v3085, 1
      %v3092 = vpop.permute.xlu0 %3091
      %3093 = vrot.lane.b32.xlu0 %v3086, 1
      %v3094 = vpop.permute.xlu0 %3093
      %3099 = vst.msk [vmem:[#allocation4] sm:$0xf] %vm1979, %v3088
      %3100 = vst.msk [vmem:[#allocation4 + $0x4] sm:$0xf] %vm1979, %v3090
      %3101 = vst.msk [vmem:[#allocation4 + $0x8] sm:$0xf] %vm1979, %v3092
      %3102 = vst.msk [vmem:[#allocation4 + $0xc] sm:$0xf] %vm1979, %v3094
      %v3103 = vld [vmem:[%s8] sm:$0xff]
      %v3104 = vld [vmem:[%s7] sm:$0xf]
      %v3105 = vld [vmem:[#allocation4] sm:$0xf]
      %v3106 = vld [vmem:[#allocation4 + $0x4] sm:$0xf]
      %v3107 = vld [vmem:[#allocation4 + $0x8] sm:$0xf]
      %v3108 = vld [vmem:[#allocation4 + $0xc] sm:$0xf]
      %s3109 = scalar_lea.vmem %s7, 4
      %v3110 = vld [vmem:[%s3109] sm:$0xf]
      %v3115 = vunpack.c.l.b16 %v3105
      %v3116 = vunpack.c.l.b16 %v3106
      %v3117 = vunpack.c.l.b16 %v3107
      %v3118 = vunpack.c.l.b16 %v3108
      %v3119 = vpack.c.b16 %v3116, %v3115
      %v3120 = vpack.c.b16 %v3118, %v3117
      %3121 = vrot.lane.b32.xlu0 %v3119, 127
      %v3122 = vpop.permute.xlu0 %3121
      %3123 = vrot.lane.b32.xlu0 %v3120, 127
      %v3124 = vpop.permute.xlu0 %3123
      %v3128 = vsel %vm2834, %v3110, 0
      %3130 = vmatprep.subr.bf16.mxu0 0
      %3131 = vmatpush1.bf16.msra.mxu0 0
      %3132 = vmatprep.subr.bf16.mxu0 0
      %3133 = vmatpush1.bf16.msra.mxu0 0
      %3134 = vmatprep.subr.bf16.mxu0 0
      %3135 = vmatpush1.bf16.msra.mxu0 0
      %3136 = vmatprep.subr.bf16.mxu0 0
      %3137 = vmatpush1.bf16.msra.mxu0 0
      %3138 = vmatprep.subr.bf16.mxu0 0
      %3139 = vmatpush1.bf16.msra.mxu0 0
      %3140 = vmatprep.subr.bf16.mxu0 0
      %3141 = vmatpush1.bf16.msra.mxu0 0
      %3142 = vmatprep.subr.bf16.mxu0 0
      %3143 = vmatpush1.bf16.msra.mxu0 %v3124
      %3144 = vmatprep.subr.bf16.mxu0 0
      %3145 = vmatpush1.bf16.msra.mxu0 %v3122
      %3146 = vmatprep.subr.bf16.mxu0 0
      %3147 = vmatpush2.bf16.msra.mxu0 0
      %3148 = vmatprep.subr.bf16.mxu0 0
      %3149 = vmatpush2.bf16.msra.mxu0 0
      %3150 = vmatprep.subr.bf16.mxu0 0
      %3151 = vmatpush2.bf16.msra.mxu0 0
      %3152 = vmatprep.subr.bf16.mxu0 0
      %3153 = vmatpush2.bf16.msra.mxu0 0
      %3154 = vmatprep.subr.bf16.mxu0 0
      %3155 = vmatpush2.bf16.msra.mxu0 0
      %3156 = vmatprep.subr.bf16.mxu0 0
      %3157 = vmatpush2.bf16.msra.mxu0 0
      %3158 = vmatprep.subr.bf16.mxu0 0
      %3159 = vmatpush2.bf16.msra.mxu0 0
      %3160 = vmatprep.subr.bf16.mxu0 0
      %3161 = vmatpush2.bf16.msra.mxu0 0
      %3162 = vmatprep.mubr.bf16.mxu0 0
      %3163 = vmatmul.mubr.bf16.gmra.mxu0 %v3128
      %v3164 = vpop.f32.mrf.mxu0
      %v3165 = vadd.f32 0.0, %v3164
      %v3166 = vpop.f32.mrf.mxu0
      %v3167 = vpop.f32.mrf.mxu0
      %v3168 = vpop.f32.mrf.mxu0
      %3169 = vdwg.mxu0
      %v3173 = vsel %vm2834, %v3104, 0
      %3175 = vmatprep.subr.bf16.mxu0 0
      %3176 = vmatpush1.bf16.msra.mxu0 0
      %3177 = vmatprep.subr.bf16.mxu0 0
      %3178 = vmatpush1.bf16.msra.mxu0 0
      %3179 = vmatprep.subr.bf16.mxu0 0
      %3180 = vmatpush1.bf16.msra.mxu0 0
      %3181 = vmatprep.subr.bf16.mxu0 0
      %3182 = vmatpush1.bf16.msra.mxu0 0
      %3183 = vmatprep.subr.bf16.mxu0 0
      %3184 = vmatpush1.bf16.msra.mxu0 0
      %3185 = vmatprep.subr.bf16.mxu0 0
      %3186 = vmatpush1.bf16.msra.mxu0 0
      %3187 = vmatprep.subr.bf16.mxu0 0
      %3188 = vmatpush1.bf16.msra.mxu0 %v3120
      %3189 = vmatprep.subr.bf16.mxu0 0
      %3190 = vmatpush1.bf16.msra.mxu0 %v3119
      %3191 = vmatprep.subr.bf16.mxu0 0
      %3192 = vmatpush2.bf16.msra.mxu0 0
      %3193 = vmatprep.subr.bf16.mxu0 0
      %3194 = vmatpush2.bf16.msra.mxu0 0
      %3195 = vmatprep.subr.bf16.mxu0 0
      %3196 = vmatpush2.bf16.msra.mxu0 0
      %3197 = vmatprep.subr.bf16.mxu0 0
      %3198 = vmatpush2.bf16.msra.mxu0 0
      %3199 = vmatprep.subr.bf16.mxu0 0
      %3200 = vmatpush2.bf16.msra.mxu0 0
      %3201 = vmatprep.subr.bf16.mxu0 0
      %3202 = vmatpush2.bf16.msra.mxu0 0
      %3203 = vmatprep.subr.bf16.mxu0 0
      %3204 = vmatpush2.bf16.msra.mxu0 0
      %3205 = vmatprep.subr.bf16.mxu0 0
      %3206 = vmatpush2.bf16.msra.mxu0 0
      %3207 = vmatprep.mubr.bf16.mxu0 0
      %3208 = vmatmul.mubr.bf16.gmra.mxu0 %v3173
      %v3209 = vpop.f32.mrf.mxu0
      %v3210 = vadd.f32 %v3165, %v3209
      %v3211 = vpop.f32.mrf.mxu0
      %v3212 = vpop.f32.mrf.mxu0
      %v3213 = vpop.f32.mrf.mxu0
      %3214 = vdwg.mxu0
      %s3215 = scalar_lea.vmem %s7, 8
      %v3216 = vld [vmem:[%s3215] sm:$0xf]
      %3217 = vrot.lane.b32.xlu0 %v3119, 126
      %v3218 = vpop.permute.xlu0 %3217
      %3219 = vrot.lane.b32.xlu0 %v3120, 126
      %v3220 = vpop.permute.xlu0 %3219
      %v3224 = vsel %vm2834, %v3216, 0
      %3226 = vmatprep.subr.bf16.mxu0 0
      %3227 = vmatpush1.bf16.msra.mxu0 0
      %3228 = vmatprep.subr.bf16.mxu0 0
      %3229 = vmatpush1.bf16.msra.mxu0 0
      %3230 = vmatprep.subr.bf16.mxu0 0
      %3231 = vmatpush1.bf16.msra.mxu0 0
      %3232 = vmatprep.subr.bf16.mxu0 0
      %3233 = vmatpush1.bf16.msra.mxu0 0
      %3234 = vmatprep.subr.bf16.mxu0 0
      %3235 = vmatpush1.bf16.msra.mxu0 0
      %3236 = vmatprep.subr.bf16.mxu0 0
      %3237 = vmatpush1.bf16.msra.mxu0 0
      %3238 = vmatprep.subr.bf16.mxu0 0
      %3239 = vmatpush1.bf16.msra.mxu0 %v3220
      %3240 = vmatprep.subr.bf16.mxu0 0
      %3241 = vmatpush1.bf16.msra.mxu0 %v3218
      %3242 = vmatprep.subr.bf16.mxu0 0
      %3243 = vmatpush2.bf16.msra.mxu0 0
      %3244 = vmatprep.subr.bf16.mxu0 0
      %3245 = vmatpush2.bf16.msra.mxu0 0
      %3246 = vmatprep.subr.bf16.mxu0 0
      %3247 = vmatpush2.bf16.msra.mxu0 0
      %3248 = vmatprep.subr.bf16.mxu0 0
      %3249 = vmatpush2.bf16.msra.mxu0 0
      %3250 = vmatprep.subr.bf16.mxu0 0
      %3251 = vmatpush2.bf16.msra.mxu0 0
      %3252 = vmatprep.subr.bf16.mxu0 0
      %3253 = vmatpush2.bf16.msra.mxu0 0
      %3254 = vmatprep.subr.bf16.mxu0 0
      %3255 = vmatpush2.bf16.msra.mxu0 0
      %3256 = vmatprep.subr.bf16.mxu0 0
      %3257 = vmatpush2.bf16.msra.mxu0 0
      %3258 = vmatprep.mubr.bf16.mxu0 0
      %3259 = vmatmul.mubr.bf16.gmra.mxu0 %v3224
      %v3260 = vpop.f32.mrf.mxu0
      %v3261 = vadd.f32 0.0, %v3260
      %v3262 = vpop.f32.mrf.mxu0
      %v3263 = vpop.f32.mrf.mxu0
      %v3264 = vpop.f32.mrf.mxu0
      %3265 = vdwg.mxu0
      %v3266 = vadd.f32 %v3210, %v3261
      %3268 = vset.pattern.permute.xlu0 0
      %3269 = vperm.xlu0 %3268, %v3103
      %v3270 = vpop.permute.xlu0 %3269
      %v3272 = vadd.f32 %v3266, %v3270
      %v3273 = vmax.f32 %v3272, 0.0
      %v3274 = vpack.c.bf16 %v3273, %v3273
      %v3275 = vld [vmem:[%s9] sm:$0xf]
      %v3276 = vld [vmem:[%s9 + $0x4] sm:$0xf]
      %v3277 = vld [vmem:[%s9 + $0x8] sm:$0xf]
      %v3278 = vld [vmem:[%s9 + $0xc] sm:$0xf]
      %v3279 = vld [vmem:[%s10] sm:$0xff]
      %v3280 = vld [vmem:[%s10 + $0x8] sm:$0xff]
      %v3281 = vld [vmem:[%s10 + $0x10] sm:$0xff]
      %v3282 = vld [vmem:[%s10 + $0x18] sm:$0xff]
      %3284 = vset.pattern.permute.xlu0 0
      %3285 = vperm.xlu0 %3284, %v3279
      %v3286 = vpop.permute.xlu0 %3285
      %3289 = vset.pattern.permute.xlu0 0
      %3290 = vperm.xlu0 %3289, %v3280
      %v3291 = vpop.permute.xlu0 %3290
      %3294 = vset.pattern.permute.xlu0 0
      %3295 = vperm.xlu0 %3294, %v3281
      %v3296 = vpop.permute.xlu0 %3295
      %3299 = vset.pattern.permute.xlu0 0
      %3300 = vperm.xlu0 %3299, %v3282
      %v3301 = vpop.permute.xlu0 %3300
      %v3307 = vunpack.c.l.b16 %v3275
      %v3308 = vunpack.c.l.b16 %v3276
      %v3309 = vunpack.c.l.b16 %v3277
      %v3310 = vunpack.c.l.b16 %v3278
      %v3311 = vpack.c.b16 %v3308, %v3307
      %v3312 = vpack.c.b16 %v3310, %v3309
      %vm3313 = vcmask 64512
      %v3315 = vsel %vm3313, %v3311, 0
      %v3318 = vsel %vm3313, %v3312, 0
      %vm3320 = vcmask 1043456
      %v3322 = vsel %vm3320, %v3274, 0
      %3324 = vmatprep.subr.bf16.mxu0 0
      %3325 = vmatpush1.bf16.msra.mxu0 0
      %3326 = vmatprep.subr.bf16.mxu0 0
      %3327 = vmatpush1.bf16.msra.mxu0 0
      %3328 = vmatprep.subr.bf16.mxu0 0
      %3329 = vmatpush1.bf16.msra.mxu0 0
      %3330 = vmatprep.subr.bf16.mxu0 0
      %3331 = vmatpush1.bf16.msra.mxu0 0
      %3332 = vmatprep.subr.bf16.mxu0 0
      %3333 = vmatpush1.bf16.msra.mxu0 0
      %3334 = vmatprep.subr.bf16.mxu0 0
      %3335 = vmatpush1.bf16.msra.mxu0 0
      %3336 = vmatprep.subr.bf16.mxu0 0
      %3337 = vmatpush1.bf16.msra.mxu0 0
      %3338 = vmatprep.subr.bf16.mxu0 0
      %3339 = vmatpush1.bf16.msra.mxu0 %v3322
      %3340 = vmatprep.subr.bf16.mxu0 0
      %3341 = vmatpush2.bf16.msra.mxu0 0
      %3342 = vmatprep.subr.bf16.mxu0 0
      %3343 = vmatpush2.bf16.msra.mxu0 0
      %3344 = vmatprep.subr.bf16.mxu0 0
      %3345 = vmatpush2.bf16.msra.mxu0 0
      %3346 = vmatprep.subr.bf16.mxu0 0
      %3347 = vmatpush2.bf16.msra.mxu0 0
      %3348 = vmatprep.subr.bf16.mxu0 0
      %3349 = vmatpush2.bf16.msra.mxu0 0
      %3350 = vmatprep.subr.bf16.mxu0 0
      %3351 = vmatpush2.bf16.msra.mxu0 0
      %3352 = vmatprep.subr.bf16.mxu0 0
      %3353 = vmatpush2.bf16.msra.mxu0 0
      %3354 = vmatprep.subr.bf16.mxu0 0
      %3355 = vmatpush2.bf16.msra.mxu0 0
      %3356 = vmatprep.mubr.bf16.mxu0 0
      %3357 = vmatmul.mubr.bf16.gmra.mxu0 %v3315
      %v3358 = vpop.f32.mrf.mxu0
      %v3359 = vadd.f32 %v3286, %v3358
      %v3360 = vpop.f32.mrf.mxu0
      %v3361 = vpop.f32.mrf.mxu0
      %v3362 = vadd.f32 %v3291, %v3361
      %v3363 = vpop.f32.mrf.mxu0
      %3364 = vmatprep.mubr.bf16.mxu0 0
      %3365 = vmatmul.mubr.bf16.gmra.mxu0 %v3318
      %v3366 = vpop.f32.mrf.mxu0
      %v3367 = vadd.f32 %v3296, %v3366
      %v3368 = vpop.f32.mrf.mxu0
      %v3369 = vpop.f32.mrf.mxu0
      %v3370 = vadd.f32 %v3301, %v3369
      %v3371 = vpop.f32.mrf.mxu0
      %3372 = vdwg.mxu0
      %v3373 = vadd.f32 %v3067, %v3359
      %v3374 = vadd.f32 %v3068, %v3362
      %v3375 = vadd.f32 %v3069, %v3367
      %v3376 = vadd.f32 %v3070, %v3370
      %v3377 = vmax.f32 %v3373, 0.0
      %v3378 = vmax.f32 %v3374, 0.0
      %v3379 = vmax.f32 %v3375, 0.0
      %v3380 = vmax.f32 %v3376, 0.0
      %v3381 = vpack.c.bf16 %v3378, %v3377
      %v3382 = vpack.c.bf16 %v3380, %v3379
      %v3385 = vunpack.c.l.b16 %v3381
      %v3386 = vunpack.c.h.b16 %v3381
      %v3387 = vunpack.c.l.b16 %v3382
      %v3388 = vunpack.c.h.b16 %v3382
      %v3389 = vpack.c.b16 %v3385, %v3385
      %v3390 = vpack.c.b16 %v3386, %v3386
      %v3391 = vpack.c.b16 %v3387, %v3387
      %v3392 = vpack.c.b16 %v3388, %v3388
      %3393 = vrot.lane.b32.xlu0 %v3389, 1
      %v3394 = vpop.permute.xlu0 %3393
      %3395 = vrot.lane.b32.xlu0 %v3390, 1
      %v3396 = vpop.permute.xlu0 %3395
      %3397 = vrot.lane.b32.xlu0 %v3391, 1
      %v3398 = vpop.permute.xlu0 %3397
      %3399 = vrot.lane.b32.xlu0 %v3392, 1
      %v3400 = vpop.permute.xlu0 %3399
      %3405 = vst.msk [vmem:[#allocation4] sm:$0xf] %vm1979, %v3394
      %3406 = vst.msk [vmem:[#allocation4 + $0x4] sm:$0xf] %vm1979, %v3396
      %3407 = vst.msk [vmem:[#allocation4 + $0x8] sm:$0xf] %vm1979, %v3398
      %3408 = vst.msk [vmem:[#allocation4 + $0xc] sm:$0xf] %vm1979, %v3400
      %s3409 = scalar_lea.vmem %s8, 8
      %v3410 = vld [vmem:[%s3409] sm:$0xff]
      %s3411 = scalar_lea.vmem %s7, 12
      %v3412 = vld [vmem:[%s3411] sm:$0xf]
      %v3413 = vld [vmem:[#allocation4] sm:$0xf]
      %v3414 = vld [vmem:[#allocation4 + $0x4] sm:$0xf]
      %v3415 = vld [vmem:[#allocation4 + $0x8] sm:$0xf]
      %v3416 = vld [vmem:[#allocation4 + $0xc] sm:$0xf]
      %s3417 = scalar_lea.vmem %s7, 16
      %v3418 = vld [vmem:[%s3417] sm:$0xf]
      %v3423 = vunpack.c.l.b16 %v3413
      %v3424 = vunpack.c.l.b16 %v3414
      %v3425 = vunpack.c.l.b16 %v3415
      %v3426 = vunpack.c.l.b16 %v3416
      %v3427 = vpack.c.b16 %v3424, %v3423
      %v3428 = vpack.c.b16 %v3426, %v3425
      %3429 = vrot.lane.b32.xlu0 %v3427, 127
      %v3430 = vpop.permute.xlu0 %3429
      %3431 = vrot.lane.b32.xlu0 %v3428, 127
      %v3432 = vpop.permute.xlu0 %3431
      %v3436 = vsel %vm2834, %v3418, 0
      %3438 = vmatprep.subr.bf16.mxu0 0
      %3439 = vmatpush1.bf16.msra.mxu0 0
      %3440 = vmatprep.subr.bf16.mxu0 0
      %3441 = vmatpush1.bf16.msra.mxu0 0
      %3442 = vmatprep.subr.bf16.mxu0 0
      %3443 = vmatpush1.bf16.msra.mxu0 0
      %3444 = vmatprep.subr.bf16.mxu0 0
      %3445 = vmatpush1.bf16.msra.mxu0 0
      %3446 = vmatprep.subr.bf16.mxu0 0
      %3447 = vmatpush1.bf16.msra.mxu0 0
      %3448 = vmatprep.subr.bf16.mxu0 0
      %3449 = vmatpush1.bf16.msra.mxu0 0
      %3450 = vmatprep.subr.bf16.mxu0 0
      %3451 = vmatpush1.bf16.msra.mxu0 %v3432
      %3452 = vmatprep.subr.bf16.mxu0 0
      %3453 = vmatpush1.bf16.msra.mxu0 %v3430
      %3454 = vmatprep.subr.bf16.mxu0 0
      %3455 = vmatpush2.bf16.msra.mxu0 0
      %3456 = vmatprep.subr.bf16.mxu0 0
      %3457 = vmatpush2.bf16.msra.mxu0 0
      %3458 = vmatprep.subr.bf16.mxu0 0
      %3459 = vmatpush2.bf16.msra.mxu0 0
      %3460 = vmatprep.subr.bf16.mxu0 0
      %3461 = vmatpush2.bf16.msra.mxu0 0
      %3462 = vmatprep.subr.bf16.mxu0 0
      %3463 = vmatpush2.bf16.msra.mxu0 0
      %3464 = vmatprep.subr.bf16.mxu0 0
      %3465 = vmatpush2.bf16.msra.mxu0 0
      %3466 = vmatprep.subr.bf16.mxu0 0
      %3467 = vmatpush2.bf16.msra.mxu0 0
      %3468 = vmatprep.subr.bf16.mxu0 0
      %3469 = vmatpush2.bf16.msra.mxu0 0
      %3470 = vmatprep.mubr.bf16.mxu0 0
      %3471 = vmatmul.mubr.bf16.gmra.mxu0 %v3436
      %v3472 = vpop.f32.mrf.mxu0
      %v3473 = vadd.f32 0.0, %v3472
      %v3474 = vpop.f32.mrf.mxu0
      %v3475 = vpop.f32.mrf.mxu0
      %v3476 = vpop.f32.mrf.mxu0
      %3477 = vdwg.mxu0
      %v3481 = vsel %vm2834, %v3412, 0
      %3483 = vmatprep.subr.bf16.mxu0 0
      %3484 = vmatpush1.bf16.msra.mxu0 0
      %3485 = vmatprep.subr.bf16.mxu0 0
      %3486 = vmatpush1.bf16.msra.mxu0 0
      %3487 = vmatprep.subr.bf16.mxu0 0
      %3488 = vmatpush1.bf16.msra.mxu0 0
      %3489 = vmatprep.subr.bf16.mxu0 0
      %3490 = vmatpush1.bf16.msra.mxu0 0
      %3491 = vmatprep.subr.bf16.mxu0 0
      %3492 = vmatpush1.bf16.msra.mxu0 0
      %3493 = vmatprep.subr.bf16.mxu0 0
      %3494 = vmatpush1.bf16.msra.mxu0 0
      %3495 = vmatprep.subr.bf16.mxu0 0
      %3496 = vmatpush1.bf16.msra.mxu0 %v3428
      %3497 = vmatprep.subr.bf16.mxu0 0
      %3498 = vmatpush1.bf16.msra.mxu0 %v3427
      %3499 = vmatprep.subr.bf16.mxu0 0
      %3500 = vmatpush2.bf16.msra.mxu0 0
      %3501 = vmatprep.subr.bf16.mxu0 0
      %3502 = vmatpush2.bf16.msra.mxu0 0
      %3503 = vmatprep.subr.bf16.mxu0 0
      %3504 = vmatpush2.bf16.msra.mxu0 0
      %3505 = vmatprep.subr.bf16.mxu0 0
      %3506 = vmatpush2.bf16.msra.mxu0 0
      %3507 = vmatprep.subr.bf16.mxu0 0
      %3508 = vmatpush2.bf16.msra.mxu0 0
      %3509 = vmatprep.subr.bf16.mxu0 0
      %3510 = vmatpush2.bf16.msra.mxu0 0
      %3511 = vmatprep.subr.bf16.mxu0 0
      %3512 = vmatpush2.bf16.msra.mxu0 0
      %3513 = vmatprep.subr.bf16.mxu0 0
      %3514 = vmatpush2.bf16.msra.mxu0 0
      %3515 = vmatprep.mubr.bf16.mxu0 0
      %3516 = vmatmul.mubr.bf16.gmra.mxu0 %v3481
      %v3517 = vpop.f32.mrf.mxu0
      %v3518 = vadd.f32 %v3473, %v3517
      %v3519 = vpop.f32.mrf.mxu0
      %v3520 = vpop.f32.mrf.mxu0
      %v3521 = vpop.f32.mrf.mxu0
      %3522 = vdwg.mxu0
      %s3523 = scalar_lea.vmem %s7, 20
      %v3524 = vld [vmem:[%s3523] sm:$0xf]
      %3525 = vrot.lane.b32.xlu0 %v3427, 126
      %v3526 = vpop.permute.xlu0 %3525
      %3527 = vrot.lane.b32.xlu0 %v3428, 126
      %v3528 = vpop.permute.xlu0 %3527
      %v3532 = vsel %vm2834, %v3524, 0
      %3534 = vmatprep.subr.bf16.mxu0 0
      %3535 = vmatpush1.bf16.msra.mxu0 0
      %3536 = vmatprep.subr.bf16.mxu0 0
      %3537 = vmatpush1.bf16.msra.mxu0 0
      %3538 = vmatprep.subr.bf16.mxu0 0
      %3539 = vmatpush1.bf16.msra.mxu0 0
      %3540 = vmatprep.subr.bf16.mxu0 0
      %3541 = vmatpush1.bf16.msra.mxu0 0
      %3542 = vmatprep.subr.bf16.mxu0 0
      %3543 = vmatpush1.bf16.msra.mxu0 0
      %3544 = vmatprep.subr.bf16.mxu0 0
      %3545 = vmatpush1.bf16.msra.mxu0 0
      %3546 = vmatprep.subr.bf16.mxu0 0
      %3547 = vmatpush1.bf16.msra.mxu0 %v3528
      %3548 = vmatprep.subr.bf16.mxu0 0
      %3549 = vmatpush1.bf16.msra.mxu0 %v3526
      %3550 = vmatprep.subr.bf16.mxu0 0
      %3551 = vmatpush2.bf16.msra.mxu0 0
      %3552 = vmatprep.subr.bf16.mxu0 0
      %3553 = vmatpush2.bf16.msra.mxu0 0
      %3554 = vmatprep.subr.bf16.mxu0 0
      %3555 = vmatpush2.bf16.msra.mxu0 0
      %3556 = vmatprep.subr.bf16.mxu0 0
      %3557 = vmatpush2.bf16.msra.mxu0 0
      %3558 = vmatprep.subr.bf16.mxu0 0
      %3559 = vmatpush2.bf16.msra.mxu0 0
      %3560 = vmatprep.subr.bf16.mxu0 0
      %3561 = vmatpush2.bf16.msra.mxu0 0
      %3562 = vmatprep.subr.bf16.mxu0 0
      %3563 = vmatpush2.bf16.msra.mxu0 0
      %3564 = vmatprep.subr.bf16.mxu0 0
      %3565 = vmatpush2.bf16.msra.mxu0 0
      %3566 = vmatprep.mubr.bf16.mxu0 0
      %3567 = vmatmul.mubr.bf16.gmra.mxu0 %v3532
      %v3568 = vpop.f32.mrf.mxu0
      %v3569 = vadd.f32 0.0, %v3568
      %v3570 = vpop.f32.mrf.mxu0
      %v3571 = vpop.f32.mrf.mxu0
      %v3572 = vpop.f32.mrf.mxu0
      %3573 = vdwg.mxu0
      %v3574 = vadd.f32 %v3518, %v3569
      %3576 = vset.pattern.permute.xlu0 0
      %3577 = vperm.xlu0 %3576, %v3410
      %v3578 = vpop.permute.xlu0 %3577
      %v3580 = vadd.f32 %v3574, %v3578
      %v3581 = vmax.f32 %v3580, 0.0
      %v3582 = vpack.c.bf16 %v3581, %v3581
      %s3583 = scalar_lea.vmem %s9, 16
      %v3584 = vld [vmem:[%s3583] sm:$0xf]
      %v3585 = vld [vmem:[%s3583 + $0x4] sm:$0xf]
      %v3586 = vld [vmem:[%s3583 + $0x8] sm:$0xf]
      %v3587 = vld [vmem:[%s3583 + $0xc] sm:$0xf]
      %s3588 = scalar_lea.vmem %s10, 32
      %v3589 = vld [vmem:[%s3588] sm:$0xff]
      %v3590 = vld [vmem:[%s3588 + $0x8] sm:$0xff]
      %v3591 = vld [vmem:[%s3588 + $0x10] sm:$0xff]
      %v3592 = vld [vmem:[%s3588 + $0x18] sm:$0xff]
      %3594 = vset.pattern.permute.xlu0 0
      %3595 = vperm.xlu0 %3594, %v3589
      %v3596 = vpop.permute.xlu0 %3595
      %3599 = vset.pattern.permute.xlu0 0
      %3600 = vperm.xlu0 %3599, %v3590
      %v3601 = vpop.permute.xlu0 %3600
      %3604 = vset.pattern.permute.xlu0 0
      %3605 = vperm.xlu0 %3604, %v3591
      %v3606 = vpop.permute.xlu0 %3605
      %3609 = vset.pattern.permute.xlu0 0
      %3610 = vperm.xlu0 %3609, %v3592
      %v3611 = vpop.permute.xlu0 %3610
      %v3617 = vunpack.c.l.b16 %v3584
      %v3618 = vunpack.c.l.b16 %v3585
      %v3619 = vunpack.c.l.b16 %v3586
      %v3620 = vunpack.c.l.b16 %v3587
      %v3621 = vpack.c.b16 %v3618, %v3617
      %v3622 = vpack.c.b16 %v3620, %v3619
      %v3624 = vsel %vm3313, %v3621, 0
      %v3627 = vsel %vm3313, %v3622, 0
      %v3630 = vsel %vm3320, %v3582, 0
      %3632 = vmatprep.subr.bf16.mxu0 0
      %3633 = vmatpush1.bf16.msra.mxu0 0
      %3634 = vmatprep.subr.bf16.mxu0 0
      %3635 = vmatpush1.bf16.msra.mxu0 0
      %3636 = vmatprep.subr.bf16.mxu0 0
      %3637 = vmatpush1.bf16.msra.mxu0 0
      %3638 = vmatprep.subr.bf16.mxu0 0
      %3639 = vmatpush1.bf16.msra.mxu0 0
      %3640 = vmatprep.subr.bf16.mxu0 0
      %3641 = vmatpush1.bf16.msra.mxu0 0
      %3642 = vmatprep.subr.bf16.mxu0 0
      %3643 = vmatpush1.bf16.msra.mxu0 0
      %3644 = vmatprep.subr.bf16.mxu0 0
      %3645 = vmatpush1.bf16.msra.mxu0 0
      %3646 = vmatprep.subr.bf16.mxu0 0
      %3647 = vmatpush1.bf16.msra.mxu0 %v3630
      %3648 = vmatprep.subr.bf16.mxu0 0
      %3649 = vmatpush2.bf16.msra.mxu0 0
      %3650 = vmatprep.subr.bf16.mxu0 0
      %3651 = vmatpush2.bf16.msra.mxu0 0
      %3652 = vmatprep.subr.bf16.mxu0 0
      %3653 = vmatpush2.bf16.msra.mxu0 0
      %3654 = vmatprep.subr.bf16.mxu0 0
      %3655 = vmatpush2.bf16.msra.mxu0 0
      %3656 = vmatprep.subr.bf16.mxu0 0
      %3657 = vmatpush2.bf16.msra.mxu0 0
      %3658 = vmatprep.subr.bf16.mxu0 0
      %3659 = vmatpush2.bf16.msra.mxu0 0
      %3660 = vmatprep.subr.bf16.mxu0 0
      %3661 = vmatpush2.bf16.msra.mxu0 0
      %3662 = vmatprep.subr.bf16.mxu0 0
      %3663 = vmatpush2.bf16.msra.mxu0 0
      %3664 = vmatprep.mubr.bf16.mxu0 0
      %3665 = vmatmul.mubr.bf16.gmra.mxu0 %v3624
      %v3666 = vpop.f32.mrf.mxu0
      %v3667 = vadd.f32 %v3596, %v3666
      %v3668 = vpop.f32.mrf.mxu0
      %v3669 = vpop.f32.mrf.mxu0
      %v3670 = vadd.f32 %v3601, %v3669
      %v3671 = vpop.f32.mrf.mxu0
      %3672 = vmatprep.mubr.bf16.mxu0 0
      %3673 = vmatmul.mubr.bf16.gmra.mxu0 %v3627
      %v3674 = vpop.f32.mrf.mxu0
      %v3675 = vadd.f32 %v3606, %v3674
      %v3676 = vpop.f32.mrf.mxu0
      %v3677 = vpop.f32.mrf.mxu0
      %v3678 = vadd.f32 %v3611, %v3677
      %v3679 = vpop.f32.mrf.mxu0
      %3680 = vdwg.mxu0
      %v3681 = vadd.f32 %v3373, %v3667
      %v3682 = vadd.f32 %v3374, %v3670
      %v3683 = vadd.f32 %v3375, %v3675
      %v3684 = vadd.f32 %v3376, %v3678
      %v3685 = vld [vmem:[%s11] sm:$0xf]
      %v3686 = vld [vmem:[%s11 + $0x4] sm:$0xf]
      %v3687 = vpack.c.bf16 %v3682, %v3681
      %v3688 = vpack.c.bf16 %v3684, %v3683
      %v3689 = vld [vmem:[%s12] sm:$0xff]
      %v3690 = vld [vmem:[%s12 + $0x8] sm:$0xff]
      %3692 = vset.pattern.permute.xlu0 0
      %3693 = vperm.xlu0 %3692, %v3689
      %v3694 = vpop.permute.xlu0 %3693
      %3697 = vset.pattern.permute.xlu0 0
      %3698 = vperm.xlu0 %3697, %v3690
      %v3699 = vpop.permute.xlu0 %3698
      %v3703 = vunpack.c.l.b16 %v3685
      %v3704 = vunpack.c.l.b16 %v3686
      %v3705 = vpack.c.b16 %v3704, %v3703
      %v3707 = vsel %vm2834, %v3705, 0
      %3709 = vmatprep.subr.bf16.mxu0 0
      %3710 = vmatpush1.bf16.msra.mxu0 0
      %3711 = vmatprep.subr.bf16.mxu0 0
      %3712 = vmatpush1.bf16.msra.mxu0 0
      %3713 = vmatprep.subr.bf16.mxu0 0
      %3714 = vmatpush1.bf16.msra.mxu0 0
      %3715 = vmatprep.subr.bf16.mxu0 0
      %3716 = vmatpush1.bf16.msra.mxu0 0
      %3717 = vmatprep.subr.bf16.mxu0 0
      %3718 = vmatpush1.bf16.msra.mxu0 0
      %3719 = vmatprep.subr.bf16.mxu0 0
      %3720 = vmatpush1.bf16.msra.mxu0 0
      %3721 = vmatprep.subr.bf16.mxu0 0
      %3722 = vmatpush1.bf16.msra.mxu0 %v3688
      %3723 = vmatprep.subr.bf16.mxu0 0
      %3724 = vmatpush1.bf16.msra.mxu0 %v3687
      %3725 = vmatprep.subr.bf16.mxu0 0
      %3726 = vmatpush2.bf16.msra.mxu0 0
      %3727 = vmatprep.subr.bf16.mxu0 0
      %3728 = vmatpush2.bf16.msra.mxu0 0
      %3729 = vmatprep.subr.bf16.mxu0 0
      %3730 = vmatpush2.bf16.msra.mxu0 0
      %3731 = vmatprep.subr.bf16.mxu0 0
      %3732 = vmatpush2.bf16.msra.mxu0 0
      %3733 = vmatprep.subr.bf16.mxu0 0
      %3734 = vmatpush2.bf16.msra.mxu0 0
      %3735 = vmatprep.subr.bf16.mxu0 0
      %3736 = vmatpush2.bf16.msra.mxu0 0
      %3737 = vmatprep.subr.bf16.mxu0 0
      %3738 = vmatpush2.bf16.msra.mxu0 0
      %3739 = vmatprep.subr.bf16.mxu0 0
      %3740 = vmatpush2.bf16.msra.mxu0 0
      %3741 = vmatprep.mubr.bf16.mxu0 0
      %3742 = vmatmul.mubr.bf16.gmra.mxu0 %v3707
      %v3743 = vpop.f32.mrf.mxu0
      %v3744 = vadd.f32 %v3694, %v3743
      %v3745 = vpop.f32.mrf.mxu0
      %v3746 = vpop.f32.mrf.mxu0
      %v3747 = vadd.f32 %v3699, %v3746
      %v3748 = vpop.f32.mrf.mxu0
      %3749 = vdwg.mxu0
      %v3750 = vmul.f32 %v3744, %v3744
      %v3751 = vmul.f32 %v3747, %v3747
      %v3752 = vsel %vm3313, %v3750, 0.0
      %v3753 = vsel %vm3313, %v3751, 0.0
      %v3754 = vadd.f32 %v3752, %v3753
      %v3755 = vrot.slane %v3754, 4
      %v3756 = vadd.f32 %v3754, %v3755
      %v3757 = vrot.slane %v3756, 2
      %v3758 = vadd.f32 %v3756, %v3757
      %v3759 = vrot.slane %v3758, 1
      %v3760 = vadd.f32 %v3758, %v3759
      %v3761 = vld [vmem:[%s13] sm:$0xff]
      %v3762 = vld [vmem:[%s13 + $0x8] sm:$0xff]
      %v3763 = vld [vmem:[%s13 + $0x10] sm:$0xff]
      %v3764 = vld [vmem:[%s13 + $0x18] sm:$0xff]
      %v3766 = vsel %vm643, %v3761, 0
      %v3769 = vsel %vm643, %v3762, 0
      %v3772 = vsel %vm643, %v3763, 0
      %v3775 = vsel %vm643, %v3764, 0
      %3777 = vmatprep.subr.mxu0 0.0
      %3778 = vmatpush1.msra.mxu0 0.0
      %3779 = vmatprep.subr.mxu0 0.0
      %3780 = vmatpush1.msra.mxu0 0.0
      %3781 = vmatprep.subr.mxu0 0.0
      %3782 = vmatpush1.msra.mxu0 0.0
      %3783 = vmatprep.subr.mxu0 0.0
      %3784 = vmatpush1.msra.mxu0 0.0
      %3785 = vmatprep.subr.mxu0 0.0
      %3786 = vmatpush1.msra.mxu0 0.0
      %3787 = vmatprep.subr.mxu0 0.0
      %3788 = vmatpush1.msra.mxu0 0.0
      %3789 = vmatprep.subr.mxu0 0.0
      %3790 = vmatpush1.msra.mxu0 0.0
      %3791 = vmatprep.subr.mxu0 0.0
      %3792 = vmatpush1.msra.mxu0 0.0
      %3793 = vmatprep.subr.mxu0 0.0
      %3794 = vmatpush1.msra.mxu0 0.0
      %3795 = vmatprep.subr.mxu0 0.0
      %3796 = vmatpush1.msra.mxu0 0.0
      %3797 = vmatprep.subr.mxu0 0.0
      %3798 = vmatpush1.msra.mxu0 0.0
      %3799 = vmatprep.subr.mxu0 0.0
      %3800 = vmatpush1.msra.mxu0 0.0
      %3801 = vmatprep.subr.mxu0 0.0
      %3802 = vmatpush1.msra.mxu0 0.0
      %3803 = vmatprep.subr.mxu0 0.0
      %3804 = vmatpush1.msra.mxu0 0.0
      %3805 = vmatprep.subr.mxu0 0.0
      %3806 = vmatpush1.msra.mxu0 %v3747
      %3807 = vmatprep.subr.mxu0 0.0
      %3808 = vmatpush1.msra.mxu0 %v3744
      %3809 = vmatprep.subr.mxu0 0.0
      %3810 = vmatpush2.msra.mxu0 0.0
      %3811 = vmatprep.subr.mxu0 0.0
      %3812 = vmatpush2.msra.mxu0 0.0
      %3813 = vmatprep.subr.mxu0 0.0
      %3814 = vmatpush2.msra.mxu0 0.0
      %3815 = vmatprep.subr.mxu0 0.0
      %3816 = vmatpush2.msra.mxu0 0.0
      %3817 = vmatprep.subr.mxu0 0.0
      %3818 = vmatpush2.msra.mxu0 0.0
      %3819 = vmatprep.subr.mxu0 0.0
      %3820 = vmatpush2.msra.mxu0 0.0
      %3821 = vmatprep.subr.mxu0 0.0
      %3822 = vmatpush2.msra.mxu0 0.0
      %3823 = vmatprep.subr.mxu0 0.0
      %3824 = vmatpush2.msra.mxu0 0.0
      %3825 = vmatprep.subr.mxu0 0.0
      %3826 = vmatpush2.msra.mxu0 0.0
      %3827 = vmatprep.subr.mxu0 0.0
      %3828 = vmatpush2.msra.mxu0 0.0
      %3829 = vmatprep.subr.mxu0 0.0
      %3830 = vmatpush2.msra.mxu0 0.0
      %3831 = vmatprep.subr.mxu0 0.0
      %3832 = vmatpush2.msra.mxu0 0.0
      %3833 = vmatprep.subr.mxu0 0.0
      %3834 = vmatpush2.msra.mxu0 0.0
      %3835 = vmatprep.subr.mxu0 0.0
      %3836 = vmatpush2.msra.mxu0 0.0
      %3837 = vmatprep.subr.mxu0 0.0
      %3838 = vmatpush2.msra.mxu0 0.0
      %3839 = vmatprep.subr.mxu0 0.0
      %3840 = vmatpush2.msra.mxu0 0.0
      %3841 = vmatprep.mubr.f32.mxu0 0.0
      %3842 = vmatmul.mubr.f32.gmra.mxu0 %v3766
      %v3843 = vpop.f32.mrf.mxu0
      %v3844 = vadd.f32 0.0, %v3843
      %v3845 = vpop.f32.mrf.mxu0
      %3846 = vmatprep.mubr.f32.mxu0 0.0
      %3847 = vmatmul.mubr.f32.gmra.mxu0 %v3769
      %v3848 = vpop.f32.mrf.mxu0
      %v3849 = vadd.f32 0.0, %v3848
      %v3850 = vpop.f32.mrf.mxu0
      %3851 = vmatprep.mubr.f32.mxu0 0.0
      %3852 = vmatmul.mubr.f32.gmra.mxu0 %v3772
      %v3853 = vpop.f32.mrf.mxu0
      %v3854 = vadd.f32 0.0, %v3853
      %v3855 = vpop.f32.mrf.mxu0
      %3856 = vmatprep.mubr.f32.mxu0 0.0
      %3857 = vmatmul.mubr.f32.gmra.mxu0 %v3775
      %v3858 = vpop.f32.mrf.mxu0
      %v3859 = vadd.f32 0.0, %v3858
      %v3860 = vpop.f32.mrf.mxu0
      %3861 = vdwg.mxu0
      %v3862 = vld [vmem:[%s15] sm:$0xff]
      %v3863 = vld [vmem:[%s15 + $0x8] sm:$0xff]
      %v3864 = vld [vmem:[%s15 + $0x10] sm:$0xff]
      %v3865 = vld [vmem:[%s15 + $0x18] sm:$0xff]
      %v3866 = vmul.f32 %v3844, 2.0
      %v3867 = vmul.f32 %v3849, 2.0
      %v3868 = vmul.f32 %v3854, 2.0
      %v3869 = vmul.f32 %v3859, 2.0
      %3871 = vset.pattern.permute.xlu0 0
      %3872 = vperm.xlu0 %3871, %v3862
      %v3873 = vpop.permute.xlu0 %3872
      %3876 = vset.pattern.permute.xlu0 0
      %3877 = vperm.xlu0 %3876, %v3863
      %v3878 = vpop.permute.xlu0 %3877
      %3881 = vset.pattern.permute.xlu0 0
      %3882 = vperm.xlu0 %3881, %v3864
      %v3883 = vpop.permute.xlu0 %3882
      %3886 = vset.pattern.permute.xlu0 0
      %3887 = vperm.xlu0 %3886, %v3865
      %v3888 = vpop.permute.xlu0 %3887
      %v3890 = vsub.f32 %v3873, %v3866
      %v3891 = vsub.f32 %v3878, %v3867
      %v3892 = vsub.f32 %v3883, %v3868
      %v3893 = vsub.f32 %v3888, %v3869
      %v3894 = vadd.f32 %v3890, %v3760
      %v3895 = vadd.f32 %v3891, %v3760
      %v3896 = vadd.f32 %v3892, %v3760
      %v3897 = vadd.f32 %v3893, %v3760
      %v3898 = vsel %vm3313, %v3894, inf
      %v3899 = vsel %vm3313, %v3895, inf
      %v3900 = vsel %vm3313, %v3896, inf
      %v3901 = vsel %vm3313, %v3897, inf
      %v3902 = vmin.f32 %v3898, %v3899
      %v3903 = vmin.f32 %v3900, %v3901
      %v3904 = vmin.f32 %v3902, %v3903
      %v3905 = vrot.slane %v3904, 4
      %v3906 = vmin.f32 %v3904, %v3905
      %v3907 = vrot.slane %v3906, 2
      %v3908 = vmin.f32 %v3906, %v3907
      %v3909 = vrot.slane %v3908, 1
      %v3910 = vmin.f32 %v3908, %v3909
      %v3911 = vlaneseq
      %v3912 = vshrl.u32 %v3911, 7
      %v3913 = vadd.s32 %v3912, 8
      %v3914 = vadd.s32 %v3912, 16
      %v3915 = vadd.s32 %v3912, 24
      %vm3916 = vcmp.le.f32.partialorder %v3894, %v3910
      %vm3917 = vcmp.le.f32.partialorder %v3895, %v3910
      %vm3918 = vcmp.le.f32.partialorder %v3896, %v3910
      %vm3919 = vcmp.le.f32.partialorder %v3897, %v3910
      %v3920 = vsel %vm3916, %v3912, 32
      %v3921 = vsel %vm3917, %v3913, 32
      %v3922 = vsel %vm3918, %v3914, 32
      %v3923 = vsel %vm3919, %v3915, 32
      %v3924 = vsel %vm3313, %v3920, 2147483647
      %v3925 = vsel %vm3313, %v3921, 2147483647
      %v3926 = vsel %vm3313, %v3922, 2147483647
      %v3927 = vsel %vm3313, %v3923, 2147483647
      %vm3928 = vcmp.lt.s32.totalorder %v3924, %v3925
      %v3929 = vsel %vm3928, %v3924, %v3925
      %vm3930 = vcmp.lt.s32.totalorder %v3926, %v3927
      %v3931 = vsel %vm3930, %v3926, %v3927
      %vm3932 = vcmp.lt.s32.totalorder %v3929, %v3931
      %v3933 = vsel %vm3932, %v3929, %v3931
      %v3934 = vrot.slane %v3933, 4
      %vm3935 = vcmp.lt.s32.totalorder %v3933, %v3934
      %v3936 = vsel %vm3935, %v3933, %v3934
      %v3937 = vrot.slane %v3936, 2
      %vm3938 = vcmp.lt.s32.totalorder %v3936, %v3937
      %v3939 = vsel %vm3938, %v3936, %v3937
      %v3940 = vrot.slane %v3939, 1
      %vm3941 = vcmp.lt.s32.totalorder %v3939, %v3940
      %v3942 = vsel %vm3941, %v3939, %v3940
      %vm3943 = vcmp.eq.s32.totalorder %v3912, %v3942
      %vm3944 = vcmp.eq.s32.totalorder %v3913, %v3942
      %vm3945 = vcmp.eq.s32.totalorder %v3914, %v3942
      %vm3946 = vcmp.eq.s32.totalorder %v3915, %v3942
      %v3947 = vsel %vm3943, 1, 0
      %v3948 = vsel %vm3944, 1, 0
      %v3949 = vsel %vm3945, 1, 0
      %v3950 = vsel %vm3946, 1, 0
      %v3951 = vcvt.s32.f32 %v3947
      %v3952 = vcvt.s32.f32 %v3948
      %v3953 = vcvt.s32.f32 %v3949
      %v3954 = vcvt.s32.f32 %v3950
      %v3955 = vld [vmem:[%s14] sm:$0xff]
      %v3956 = vld [vmem:[%s14 + $0x8] sm:$0xff]
      %v3958 = vsel %vm2834, %v3955, 0
      %v3961 = vsel %vm2834, %v3956, 0
      %3963 = vmatprep.subr.mxu0 0.0
      %3964 = vmatpush1.msra.mxu0 0.0
      %3965 = vmatprep.subr.mxu0 0.0
      %3966 = vmatpush1.msra.mxu0 0.0
      %3967 = vmatprep.subr.mxu0 0.0
      %3968 = vmatpush1.msra.mxu0 0.0
      %3969 = vmatprep.subr.mxu0 0.0
      %3970 = vmatpush1.msra.mxu0 0.0
      %3971 = vmatprep.subr.mxu0 0.0
      %3972 = vmatpush1.msra.mxu0 0.0
      %3973 = vmatprep.subr.mxu0 0.0
      %3974 = vmatpush1.msra.mxu0 0.0
      %3975 = vmatprep.subr.mxu0 0.0
      %3976 = vmatpush1.msra.mxu0 0.0
      %3977 = vmatprep.subr.mxu0 0.0
      %3978 = vmatpush1.msra.mxu0 0.0
      %3979 = vmatprep.subr.mxu0 0.0
      %3980 = vmatpush1.msra.mxu0 0.0
      %3981 = vmatprep.subr.mxu0 0.0
      %3982 = vmatpush1.msra.mxu0 0.0
      %3983 = vmatprep.subr.mxu0 0.0
      %3984 = vmatpush1.msra.mxu0 0.0
      %3985 = vmatprep.subr.mxu0 0.0
      %3986 = vmatpush1.msra.mxu0 0.0
      %3987 = vmatprep.subr.mxu0 0.0
      %3988 = vmatpush1.msra.mxu0 %v3954
      %3989 = vmatprep.subr.mxu0 0.0
      %3990 = vmatpush1.msra.mxu0 %v3953
      %3991 = vmatprep.subr.mxu0 0.0
      %3992 = vmatpush1.msra.mxu0 %v3952
      %3993 = vmatprep.subr.mxu0 0.0
      %3994 = vmatpush1.msra.mxu0 %v3951
      %3995 = vmatprep.subr.mxu0 0.0
      %3996 = vmatpush2.msra.mxu0 0.0
      %3997 = vmatprep.subr.mxu0 0.0
      %3998 = vmatpush2.msra.mxu0 0.0
      %3999 = vmatprep.subr.mxu0 0.0
      %4000 = vmatpush2.msra.mxu0 0.0
      %4001 = vmatprep.subr.mxu0 0.0
      %4002 = vmatpush2.msra.mxu0 0.0
      %4003 = vmatprep.subr.mxu0 0.0
      %4004 = vmatpush2.msra.mxu0 0.0
      %4005 = vmatprep.subr.mxu0 0.0
      %4006 = vmatpush2.msra.mxu0 0.0
      %4007 = vmatprep.subr.mxu0 0.0
      %4008 = vmatpush2.msra.mxu0 0.0
      %4009 = vmatprep.subr.mxu0 0.0
      %4010 = vmatpush2.msra.mxu0 0.0
      %4011 = vmatprep.subr.mxu0 0.0
      %4012 = vmatpush2.msra.mxu0 0.0
      %4013 = vmatprep.subr.mxu0 0.0
      %4014 = vmatpush2.msra.mxu0 0.0
      %4015 = vmatprep.subr.mxu0 0.0
      %4016 = vmatpush2.msra.mxu0 0.0
      %4017 = vmatprep.subr.mxu0 0.0
      %4018 = vmatpush2.msra.mxu0 0.0
      %4019 = vmatprep.subr.mxu0 0.0
      %4020 = vmatpush2.msra.mxu0 0.0
      %4021 = vmatprep.subr.mxu0 0.0
      %4022 = vmatpush2.msra.mxu0 0.0
      %4023 = vmatprep.subr.mxu0 0.0
      %4024 = vmatpush2.msra.mxu0 0.0
      %4025 = vmatprep.subr.mxu0 0.0
      %4026 = vmatpush2.msra.mxu0 0.0
      %4027 = vmatprep.mubr.f32.mxu0 0.0
      %4028 = vmatmul.mubr.f32.gmra.mxu0 %v3958
      %v4029 = vpop.f32.mrf.mxu0
      %v4030 = vadd.f32 0.0, %v4029
      %v4031 = vpop.f32.mrf.mxu0
      %4032 = vmatprep.mubr.f32.mxu0 0.0
      %4033 = vmatmul.mubr.f32.gmra.mxu0 %v3961
      %v4034 = vpop.f32.mrf.mxu0
      %v4035 = vadd.f32 0.0, %v4034
      %v4036 = vpop.f32.mrf.mxu0
      %4037 = vdwg.mxu0
      %4038 = vst.msk [vmem:[%s588] sm:$0xff] %vm3313, %v3744
      %4039 = vst.msk [vmem:[%s588 + $0x8] sm:$0xff] %vm3313, %v3747
      %4040 = vst.msk [vmem:[%s593] sm:$0xff] %vm3313, %v4030
      %4041 = vst.msk [vmem:[%s593 + $0x8] sm:$0xff] %vm3313, %v4035
      %vm4042 = vcmask 57344
      %4043 = vst.msk [vmem:[%s596] sm:$0x1] %vm4042, %v3942
      %p4044 = scmp.lt.s32.totalorder %s30, 1
      %s4045 = scalar_select %p4044, %s30, 1
      %s4046 = smul.addr %s4045, 2
      %s4047 = smul.addr %s4046, 8
      %s4048 = scalar_lea.vmem %s16, %s4047
      %p4049 = scmp.lt.s32.totalorder %s30, 1
      %s4050 = scalar_select %p4049, %s30, 1
      %s4051 = smul.addr %s4050, 2
      %s4052 = smul.addr %s4051, 8
      %s4053 = scalar_lea.vmem %s17, %s4052
      %p4054 = scmp.lt.s32.totalorder %s30, 1
      %s4055 = scalar_select %p4054, %s30, 1
      %s4056 = scalar_lea.vmem %s18, %s4055
      // Predicated region
      $region85: #{calcium_vqvae_forward.2} parent=83 // pred_check
        %p4057 = pneg %p389
      $region86: #{calcium_vqvae_forward.2} parent=83 // pred_check_branch
        %4059 = sbr.rel (%p4057) target = $region88
      $region87: #{calcium_vqvae_forward.2} parent=83 // pred_region
        _
      $region88: #{calcium_vqvae_forward.2} parent=83 // pred_fallthru
        _
      // Predicated region
      $region89: #{calcium_vqvae_forward.2} parent=83 // pred_check
        %p4060 = pneg %p415
      $region90: #{calcium_vqvae_forward.2} parent=83 // pred_check_branch
        %4062 = sbr.rel (%p4060) target = $region92
      $region91: #{calcium_vqvae_forward.2} parent=83 // pred_region
        _
      $region92: #{calcium_vqvae_forward.2} parent=83 // pred_fallthru
        _
      // Predicated region
      $region93: #{calcium_vqvae_forward.2} parent=83 // pred_check
        %p4063 = pneg %p441
      $region94: #{calcium_vqvae_forward.2} parent=83 // pred_check_branch
        %4065 = sbr.rel (%p4063) target = $region96
      $region95: #{calcium_vqvae_forward.2} parent=83 // pred_region
        _
      $region96: #{calcium_vqvae_forward.2} parent=83 // pred_fallthru
        _
    $region84: #{calcium_vqvae_forward.2} parent=5 // pred_fallthru
      _
    %p4066 = scmp.le.s32.totalorder 2, %s25
    // Predicated region
    $region97: #{calcium_vqvae_forward.2} parent=5 // pred_check
      %p4067 = pneg %p4066
    $region98: #{calcium_vqvae_forward.2} parent=5 // pred_check_branch
      %4069 = sbr.rel (%p4067) target = $region100
    $region99: #{calcium_vqvae_forward.2} parent=5 // pred_region
      %s4070 = ssub.s32 %s25, 2
      // Predicated region
      $region101: #{calcium_vqvae_forward.2} parent=99 // pred_check
        %p4071 = pneg %p395
      $region102: #{calcium_vqvae_forward.2} parent=99 // pred_check_branch
        %4073 = sbr.rel (%p4071) target = $region104
      $region103: #{calcium_vqvae_forward.2} parent=99 // pred_region
        %p4074 = scmp.lt.s32.totalorder %s31, 1
        %s4075 = scalar_select %p4074, %s31, 1
        %s4076 = smul.addr %s4075, 2
        %s4077 = smul.addr %s4076, 8
        %s4078 = scalar_lea.vmem %s16, %s4077
      $region104: #{calcium_vqvae_forward.2} parent=99 // pred_fallthru
        _
      // Predicated region
      $region105: #{calcium_vqvae_forward.2} parent=99 // pred_check
        %p4079 = pneg %p421
      $region106: #{calcium_vqvae_forward.2} parent=99 // pred_check_branch
        %4081 = sbr.rel (%p4079) target = $region108
      $region107: #{calcium_vqvae_forward.2} parent=99 // pred_region
        %p4082 = scmp.lt.s32.totalorder %s31, 1
        %s4083 = scalar_select %p4082, %s31, 1
        %s4084 = smul.addr %s4083, 2
        %s4085 = smul.addr %s4084, 8
        %s4086 = scalar_lea.vmem %s17, %s4085
      $region108: #{calcium_vqvae_forward.2} parent=99 // pred_fallthru
        _
      // Predicated region
      $region109: #{calcium_vqvae_forward.2} parent=99 // pred_check
        %p4087 = pneg %p447
      $region110: #{calcium_vqvae_forward.2} parent=99 // pred_check_branch
        %4089 = sbr.rel (%p4087) target = $region112
      $region111: #{calcium_vqvae_forward.2} parent=99 // pred_region
        %p4090 = scmp.lt.s32.totalorder %s31, 1
        %s4091 = scalar_select %p4090, %s31, 1
        %s4092 = scalar_lea.vmem %s18, %s4091
      $region112: #{calcium_vqvae_forward.2} parent=99 // pred_fallthru
        _
    $region100: #{calcium_vqvae_forward.2} parent=5 // pred_fallthru
      _
  $region6: #{calcium_vqvae_forward.2} parent=0 // loop_footer
    %s29 = sadd.s32 1, %s25
  $region7: #{calcium_vqvae_forward.2} parent=0 // loop_footer_branch
    %24 = sbr.rel target = $region3
  $region8: #{calcium_vqvae_forward.2} parent=0 // loop_exit
    _

</llo_original>
